<compile_context>
chip_gen: v5e
topology: v5e:2x2
jax: 0.10.0
libtpu: 0.0.40
codegen_flags: <defaults>
</compile_context>

<pallas_src>
import functools

import jax
import jax.numpy as jnp
from jax.experimental import pallas as pl
from jax.experimental.pallas import tpu as pltpu

RNN_DIM = 100                 # logical hidden size (from the PyTorch module)
RNN_PAD = 128                 # padded, lane-dense hidden size
MATMUL_DTYPE = jnp.bfloat16   # MXU operand dtype (accumulation stays f32)
MAX_TILE_ROWS = 1024          # sequences per grid step (upper bound)
MIN_GRID_STEPS = 4            # keep >=4 grid steps when N allows (v7x megacore)


def _round_up(x, m):
    return (x + m - 1) // m * m


def _vmem_config():
    """Per-generation VMEM budget: v5e/v6e have 128 MiB, v7x has 64 MiB/TC."""
    cap = 64 * 1024 * 1024                       # v7x-safe default
    try:
        cap = int(getattr(pltpu.get_tpu_info(), "vmem_capacity_bytes", cap))
    except Exception:
        pass
    limit = min((cap * 3) // 4, 96 * 1024 * 1024)            # scoped limit
    budget = max(limit - 8 * 1024 * 1024, 12 * 1024 * 1024)  # weights + slack
    return limit, budget


VMEM_LIMIT_BYTES, VMEM_TILE_BUDGET = _vmem_config()


# ----------------------------------------------------------------------------
# Fused kernel: bidirectional GRU + attention pooling (+ optional projection)
# ----------------------------------------------------------------------------
def _bigru_attn_kernel(T, Hp, has_proj, x_ref, wih_ref, whh_ref, bih_ref,
                       bhh_ref, aw_ref, ab_ref, hc_ref, *rest):
    """One tile of sequences.

    x_ref:   (T, n, Din)      time-major input tile (bf16)
    wih_ref: (Din, 6*Hp)      [fwd | bwd] input weights (bf16), gates [r,z,n]
    whh_ref: (2, Hp, 3*Hp)    recurrent weights (bf16)
    bih_ref: (1, 6*Hp)        [fwd | bwd] input biases (f32)
    bhh_ref: (2, 1, 3*Hp)     recurrent biases (f32)
    aw_ref:  (2*Hp, Hp)       attention fc weight (bf16)
    ab_ref:  (1, Hp)          attention fc bias (f32)
    hc_ref:  (1, Hp)          attention context vector (f32)
    rest (has_proj): pw_ref (2*Hp, Cp) bf16, pb_ref (1, Cp) f32,
                     out_ref (n, Cp) f32, then scratch
    rest (else):     out_ref (n, 2*Hp) bf16, then scratch
    scratch: xg_ref (2, T, n, 3*Hp) f32, of_ref / ob_ref (T, n, Hp) f32
    """
    if has_proj:
        pw_ref, pb_ref, out_ref, xg_ref, of_ref, ob_ref = rest
    else:
        pw_ref = pb_ref = None
        out_ref, xg_ref, of_ref, ob_ref = rest

    n = x_ref.shape[1]
    din = x_ref.shape[2]
    G = 3 * Hp
    mm = wih_ref.dtype            # bf16 MXU operand dtype

    # Hoisted input projection for BOTH directions in ONE MXU matmul
    # (single pass over x2d, b_ih folded in -> removed from the serial chain).
    x2d = x_ref[...].reshape(T * n, din).astype(mm)
    xg = jnp.dot(x2d, wih_ref[...],
                 preferred_element_type=jnp.float32) + bih_ref[...]
    xg_ref[0] = xg[:, :G].reshape(T, n, G)
    xg_ref[1] = xg[:, G:].reshape(T, n, G)

    xg_f = xg_ref.at[0]           # Ref views, no load
    xg_b = xg_ref.at[1]
    whh_f = whh_ref[0]            # (Hp, 3Hp) bf16
    whh_b = whh_ref[1]
    bhh_f = bhh_ref[0]            # (1, 3Hp) f32
    bhh_b = bhh_ref[1]

    def gru_gates(g, hg, h):
        r = jax.nn.sigmoid(g[:, :Hp] + hg[:, :Hp])
        z = jax.nn.sigmoid(g[:, Hp:2 * Hp] + hg[:, Hp:2 * Hp])
        c = jnp.tanh(g[:, 2 * Hp:] + r * hg[:, 2 * Hp:])
        return (1.0 - z) * c + z * h

    # Interleaved forward/backward recurrence: per step, two independent bf16
    # (n,Hp)@(Hp,3Hp) matmuls + two independent gate blocks, so one
    # direction's MXU work overlaps the other's VPU/EUP sigmoid/tanh.
    # T is static -> fully unrolled at trace time.  h carries stay f32.
    hf = jnp.zeros((n, Hp), jnp.float32)
    hb = jnp.zeros((n, Hp), jnp.float32)
    for i in range(T):
        tb = T - 1 - i
        gf = xg_f[i]                                            # (n, 3Hp) f32
        gb = xg_b[tb]
        hgf = jnp.dot(hf.astype(mm), whh_f,
                      preferred_element_type=jnp.float32) + bhh_f
        hgb = jnp.dot(hb.astype(mm), whh_b,
                      preferred_element_type=jnp.float32) + bhh_b
        hf = gru_gates(gf, hgf, hf)
        hb = gru_gates(gb, hgb, hb)
        of_ref[i] = hf
        ob_ref[tb] = hb

    of = of_ref[...]              # (T, n, Hp) forward hidden states, f32
    ob = ob_ref[...]              # (T, n, Hp) backward hidden states, f32

    # Attention: softmax_t( tanh(fc([of, ob])) . hc ), then weighted sum over
    # time via broadcast-multiply + sum over the T axis.
    aw = aw_ref[...]
    ha = jnp.tanh(
        jnp.dot(of.reshape(T * n, Hp).astype(mm), aw[:Hp],
                preferred_element_type=jnp.float32)
        + jnp.dot(ob.reshape(T * n, Hp).astype(mm), aw[Hp:],
                  preferred_element_type=jnp.float32)
        + ab_ref[...]).reshape(T, n, Hp)
    scores = jnp.sum(ha * hc_ref[...], axis=-1, keepdims=True)     # (T, n, 1)
    scores = scores - jnp.max(scores, axis=0, keepdims=True)
    e = jnp.exp(scores)
    w = e * pl.reciprocal(jnp.sum(e, axis=0, keepdims=True), approx=True)

    pooled_f = jnp.sum(w * of, axis=0)                              # (n, Hp)
    pooled_b = jnp.sum(w * ob, axis=0)                              # (n, Hp)

    if has_proj:
        pw = pw_ref[...]
        out_ref[...] = (
            jnp.dot(pooled_f.astype(mm), pw[:Hp],
                    preferred_element_type=jnp.float32)
            + jnp.dot(pooled_b.astype(mm), pw[Hp:],
                      preferred_element_type=jnp.float32)
            + pb_ref[...])
    else:
        # bf16 output: halves the stage-1 -> stage-2 HBM round trip.
        out_ref[:, :Hp] = pooled_f.astype(out_ref.dtype)
        out_ref[:, Hp:] = pooled_b.astype(out_ref.dtype)


# ----------------------------------------------------------------------------
# pallas_call plumbing
# ----------------------------------------------------------------------------
def _pick_tile(n_rows, t, d_in, d_out, hp, in_isize, out_isize):
    """Rows per grid step: as big as possible while the per-tile working set
    (double-buffered in/out blocks + f32 scratch) fits the VMEM budget, but
    small enough that the 1-D grid keeps >= MIN_GRID_STEPS steps so both v7x
    TensorCores get work under the "parallel" dimension semantics."""
    per_row = (2 * t * d_in * in_isize            # input block (double-buffered)
               + 2 * d_out * out_isize            # output block (double-buffered)
               + 4 * t * 6 * hp                   # xg scratch, f32
               + 2 * 4 * t * hp)                  # of / ob scratch, f32
    fit = max(8, (VMEM_TILE_BUDGET // per_row) // 8 * 8)
    want = max(8, _round_up(pl.cdiv(n_rows, MIN_GRID_STEPS), 8))
    return int(min(MAX_TILE_ROWS, fit, want, _round_up(n_rows, 8)))


def _bigru_attn(x_tm, gru, attn_w, attn_b, hc, proj_w=None, proj_b=None):
    """x_tm: (T, N, Din) time-major.  Returns (N, 2*Hp) bf16 pooled vectors,
    or (N, Cp) f32 projected outputs when proj_w/proj_b are given."""
    T, N, Din = x_tm.shape
    Hp = gru['whh'].shape[1]
    has_proj = proj_w is not None
    out_f = proj_w.shape[1] if has_proj else 2 * Hp
    out_dtype = jnp.float32 if has_proj else MATMUL_DTYPE
    out_isize = 4 if has_proj else 2

    tile = _pick_tile(N, T, Din, out_f, Hp, x_tm.dtype.itemsize, out_isize)
    Np = _round_up(N, tile)
    if Np != N:
        x_tm = jnp.pad(x_tm, ((0, 0), (0, Np - N), (0, 0)))

    def _wspec(a):
        nd = a.ndim

        def imap(i):
            return (0,) * nd

        return pl.BlockSpec(a.shape, imap)

    in_specs = [pl.BlockSpec((T, tile, Din), lambda i: (0, i, 0)),
                _wspec(gru['wih']), _wspec(gru['whh']),
                _wspec(gru['bih']), _wspec(gru['bhh']),
                _wspec(attn_w), _wspec(attn_b), _wspec(hc)]
    args = [x_tm, gru['wih'], gru['whh'], gru['bih'], gru['bhh'],
            attn_w, attn_b, hc]
    if has_proj:
        in_specs += [_wspec(proj_w), _wspec(proj_b)]
        args += [proj_w, proj_b]

    out = pl.pallas_call(
        functools.partial(_bigru_attn_kernel, T, Hp, has_proj),
        out_shape=jax.ShapeDtypeStruct((Np, out_f), out_dtype),
        grid=(Np // tile,),
        in_specs=in_specs,
        out_specs=pl.BlockSpec((tile, out_f), lambda i: (i, 0)),
        scratch_shapes=[
            pltpu.VMEM((2, T, tile, 3 * Hp), jnp.float32),
            pltpu.VMEM((T, tile, Hp), jnp.float32),
            pltpu.VMEM((T, tile, Hp), jnp.float32),
        ],
        compiler_params=pltpu.CompilerParams(
            dimension_semantics=("parallel",),
            vmem_limit_bytes=VMEM_LIMIT_BYTES),
    )(*args)
    return out[:N]


# ----------------------------------------------------------------------------
# Parameters
# ----------------------------------------------------------------------------
def init_params(key, num_class, embedding_dim):
    """Logical (PyTorch-shaped, H=100) f32 parameters."""
    H = RNN_DIM
    keys = iter(jax.random.split(key, 64))

    def nrm(shape, scale=0.1):
        return (scale * jax.random.normal(next(keys), shape)).astype(jnp.float32)

    emb = nrm((257, embedding_dim), 1.0)
    emb = emb.at[256].set(0.0)                      # padding_idx = 256

    def gru_p(in_dim):
        return dict(
            wih_f=nrm((in_dim, 3 * H)), whh_f=nrm((H, 3 * H)),
            bih_f=nrm((1, 3 * H)), bhh_f=nrm((1, 3 * H)),
            wih_b=nrm((in_dim, 3 * H)), whh_b=nrm((H, 3 * H)),
            bih_b=nrm((1, 3 * H)), bhh_b=nrm((1, 3 * H)))

    return dict(
        embedding=emb,
        rnn1=gru_p(embedding_dim),
        rnn2=gru_p(2 * H),
        fc1_w=nrm((2 * H, H)), fc1_b=nrm((1, H)),
        fc2_w=nrm((2 * H, H)), fc2_b=nrm((1, H)),
        fc3_w=nrm((2 * H, num_class)), fc3_b=nrm((1, num_class)),
        hc1=nrm((H, 1), 1.0), hc2=nrm((H, 1), 1.0))


def pad_params(p, num_class):
    """Zero-pad the logical H=100 parameters to the lane-dense Hp=128 layout
    used by the kernels.  Zero padding keeps the padded hidden lanes exactly
    zero through the recurrence (h0 = 0, padded biases = 0), so the logical
    results are unchanged.  MXU operands are bf16; biases stay f32."""
    H, Hp = RNN_DIM, RNN_PAD
    Cp = _round_up(max(num_class, 1), 128)

    def pad_gate_cols(w):                       # (..., 3H) -> (..., 3Hp)
        pad = [(0, 0)] * (w.ndim - 1) + [(0, Hp - H)]
        return jnp.concatenate(
            [jnp.pad(w[..., i * H:(i + 1) * H], pad) for i in range(3)], axis=-1)

    def pad_h_rows(w):                          # (H, X) -> (Hp, X)
        return jnp.pad(w, ((0, Hp - H), (0, 0)))

    def pad_2h_rows(w):                         # (2H, X) -> (2Hp, X)
        return jnp.concatenate([pad_h_rows(w[:H]), pad_h_rows(w[H:])], axis=0)

    def pad_cols(w, to):
        return jnp.pad(w, [(0, 0)] * (w.ndim - 1) + [(0, to - w.shape[-1])])

    def gru(g, pad_in):
        # Directions concatenated along the output axis -> single fused
        # x @ W_ih matmul in-kernel.
        wih = jnp.concatenate([pad_gate_cols(pad_in(g['wih_f'])),
                               pad_gate_cols(pad_in(g['wih_b']))],
                              axis=-1).astype(MATMUL_DTYPE)
        bih = jnp.concatenate([pad_gate_cols(g['bih_f']),
                               pad_gate_cols(g['bih_b'])], axis=-1)
        # Recurrent weights bf16 (MXU operands on the serial critical path).
        whh = jnp.stack([pad_gate_cols(pad_h_rows(g['whh_f'])),
                         pad_gate_cols(pad_h_rows(g['whh_b']))]
                        ).astype(MATMUL_DTYPE)
        bhh = jnp.stack([pad_gate_cols(g['bhh_f']), pad_gate_cols(g['bhh_b'])])
        return dict(wih=wih, whh=whh, bih=bih, bhh=bhh)

    return dict(
        # bf16 table -> the XLA gather emits a bf16 (T, b*l, E) tensor,
        # halving stage-1 input DMA bytes.
        embedding=p['embedding'].astype(MATMUL_DTYPE),
        rnn1=gru(p['rnn1'], lambda w: w),
        rnn2=gru(p['rnn2'], pad_2h_rows),
        fc1_w=pad_cols(pad_2h_rows(p['fc1_w']), Hp).astype(MATMUL_DTYPE),
        fc1_b=pad_cols(p['fc1_b'], Hp),
        fc2_w=pad_cols(pad_2h_rows(p['fc2_w']), Hp).astype(MATMUL_DTYPE),
        fc2_b=pad_cols(p['fc2_b'], Hp),
        fc3_w=pad_cols(pad_2h_rows(p['fc3_w']), Cp).astype(MATMUL_DTYPE),
        fc3_b=pad_cols(p['fc3_b'], Cp),
        hc1=pad_cols(p['hc1'].reshape(1, H), Hp),
        hc2=pad_cols(p['hc2'].reshape(1, H), Hp))


# ----------------------------------------------------------------------------
# Forward pass
# ----------------------------------------------------------------------------
def ebsnn_gru_forward(x, pp, num_class):
    """x: (b, l, segment_len) int32 byte indices in [0, 256]."""
    b, l, seg = x.shape
    Hp = RNN_PAD
    n_seg = b * l

    # Byte embedding (XLA gather).  The tiny int32 index array is transposed
    # first so the gather directly produces the time-major (seg, b*l, E)
    # layout the kernel wants -- no activation-sized transposes in XLA.
    # TODO(synk): an in-kernel gather (ids via scalar prefetch, bf16 table
    # resident in VMEM) would cut stage-1 input HBM bytes further but TPU
    # in-kernel gathers lower to serialized dynamic slices; not done here.
    ids_tm = x.reshape(n_seg, seg).T                          # (seg, b*l)
    x1_tm = jnp.take(pp['embedding'], ids_tm, axis=0)         # (seg, b*l, E) bf16

    # Stage 1: per-segment BiGRU + fc1/tanh/hc1 attention pooling (fused).
    seg_vec = _bigru_attn(x1_tm, pp['rnn1'], pp['fc1_w'], pp['fc1_b'],
                          pp['hc1'])                          # (b*l, 2Hp) bf16

    # Flow-level sequence, time-major (small (b, l, 2Hp) bf16 transpose).
    flow_tm = jnp.transpose(seg_vec.reshape(b, l, 2 * Hp), (1, 0, 2))

    # Stage 2: flow-level BiGRU + fc2/tanh/hc2 attention + fc3 (fused).
    # TODO(synk): nn.Dropout before fc3 is identity at inference; no
    # stochastic dropout is applied here.
    logits = _bigru_attn(flow_tm, pp['rnn2'], pp['fc2_w'], pp['fc2_b'],
                         pp['hc2'], proj_w=pp['fc3_w'], proj_b=pp['fc3_b'])
    return logits[:, :num_class]                              # (b, num_class)


# ----------------------------------------------------------------------------
# Pure-JAX f32 reference (for a loose-tolerance sanity check)
# ----------------------------------------------------------------------------
def _ref_forward(x, p, num_class):
    H = RNN_DIM
    b, l, seg = x.shape

    def gru_dir(xs, wih, whh, bih, bhh, reverse):
        N, T = xs.shape[0], xs.shape[1]
        h = jnp.zeros((N, H), jnp.float32)
        outs = [None] * T
        order = range(T - 1, -1, -1) if reverse else range(T)
        for t in order:
            g = xs[:, t] @ wih + bih
            hg = h @ whh + bhh
            r = jax.nn.sigmoid(g[:, :H] + hg[:, :H])
            z = jax.nn.sigmoid(g[:, H:2 * H] + hg[:, H:2 * H])
            c = jnp.tanh(g[:, 2 * H:] + r * hg[:, 2 * H:])
            h = (1.0 - z) * c + z * h
            outs[t] = h
        return jnp.stack(outs, axis=1)                         # (N, T, H)

    def bigru(xs, g):
        of = gru_dir(xs, g['wih_f'], g['whh_f'], g['bih_f'], g['bhh_f'], False)
        ob = gru_dir(xs, g['wih_b'], g['whh_b'], g['bih_b'], g['bhh_b'], True)
        return jnp.concatenate([of, ob], axis=-1)              # (N, T, 2H)

    x1 = jnp.take(p['embedding'], x.reshape(b * l, seg), axis=0)
    out1 = bigru(x1, p['rnn1'])                                # (b*l, seg, 2H)
    h1 = jnp.tanh(out1.reshape(-1, 2 * H) @ p['fc1_w'] + p['fc1_b'])
    w1 = jax.nn.softmax((h1 @ p['hc1']).reshape(b * l, seg), axis=1)
    out2 = jnp.einsum('nt,ntd->nd', w1, out1).reshape(b, l, 2 * H)
    out3 = bigru(out2, p['rnn2'])                              # (b, l, 2H)
    h2 = jnp.tanh(out3.reshape(-1, 2 * H) @ p['fc2_w']
                  + p['fc2_b']).reshape(b, l, H)
    w2 = jax.nn.softmax((h2 @ p['hc2'])[..., 0], axis=1)       # (b, l)
    out4 = jnp.einsum('bl,bld->bd', w2, out3)                  # (b, 2H)
    return out4 @ p['fc3_w'] + p['fc3_b']                      # (b, num_class)


if __name__ == "__main__":
    key = jax.random.PRNGKey(0)
    k_param, k_x = jax.random.split(key)

    num_class = 5
    embedding_dim = 32
    b, l, seg = 2, 4, 8

    params = init_params(k_param, num_class, embedding_dim)
    pparams = pad_params(params, num_class)
    x = jax.random.randint(k_x, (b, l, seg), 0, 257, dtype=jnp.int32)

    fwd = jax.jit(functools.partial(ebsnn_gru_forward, num_class=num_class))
    out = jax.block_until_ready(fwd(x, pparams))

    assert out.shape == (b, num_class), out.shape
    assert out.dtype == jnp.float32
    assert bool(jnp.all(jnp.isfinite(out)))

    # Loose-tolerance check vs. a pure-JAX f32 reference (bf16 MXU operands /
    # bf16 activation DMAs introduce small numeric deltas by design).
    ref = _ref_forward(x, params, num_class)
    max_err = float(jnp.max(jnp.abs(out - ref)))
    assert max_err < 0.25, f"max |kernel - ref| = {max_err}"

    print("KERNEL_OK")
</pallas_src>

<mosaic_0001>
module attributes {stable_mosaic.version = 11 : i64} {
  func.func @_bigru_attn_kernel(%arg0: i32, %arg1: memref<8x8x32xbf16, #tpu.memory_space<vmem>>, %arg2: memref<32x768xbf16, #tpu.memory_space<vmem>>, %arg3: memref<2x128x384xbf16, #tpu.memory_space<vmem>>, %arg4: memref<1x768xf32, #tpu.memory_space<vmem>>, %arg5: memref<2x1x384xf32, #tpu.memory_space<vmem>>, %arg6: memref<256x128xbf16, #tpu.memory_space<vmem>>, %arg7: memref<1x128xf32, #tpu.memory_space<vmem>>, %arg8: memref<1x128xf32, #tpu.memory_space<vmem>>, %arg9: memref<8x256xbf16, #tpu.memory_space<vmem>>, %arg10: memref<2x8x8x384xf32, #tpu.memory_space<vmem>>, %arg11: memref<8x8x128xf32, #tpu.memory_space<vmem>>, %arg12: memref<8x8x128xf32, #tpu.memory_space<vmem>>) attributes {dimension_semantics = [#tpu.dimension_semantics<parallel>], iteration_bounds = array<i64: 1>, scalar_prefetch = 0 : i64, scratch_operands = 3 : i64, tpu.core_type = #tpu.core_type<tc>, window_params = [{transform_indices = @transform_0, window_bounds = array<i64: 8, 8, 32>}, {pipeline_mode = #tpu.pipeline_mode<synchronous>, transform_indices = @transform_1, window_bounds = array<i64: 32, 768>}, {pipeline_mode = #tpu.pipeline_mode<synchronous>, transform_indices = @transform_2, window_bounds = array<i64: 2, 128, 384>}, {pipeline_mode = #tpu.pipeline_mode<synchronous>, transform_indices = @transform_3, window_bounds = array<i64: 1, 768>}, {pipeline_mode = #tpu.pipeline_mode<synchronous>, transform_indices = @transform_4, window_bounds = array<i64: 2, 1, 384>}, {pipeline_mode = #tpu.pipeline_mode<synchronous>, transform_indices = @transform_5, window_bounds = array<i64: 256, 128>}, {pipeline_mode = #tpu.pipeline_mode<synchronous>, transform_indices = @transform_6, window_bounds = array<i64: 1, 128>}, {pipeline_mode = #tpu.pipeline_mode<synchronous>, transform_indices = @transform_7, window_bounds = array<i64: 1, 128>}, {transform_indices = @transform_8, window_bounds = array<i64: 8, 256>}]} {
    %c0 = arith.constant 0 : index
    %c0_0 = arith.constant 0 : index
    %c0_1 = arith.constant 0 : index
    %0 = vector.load %arg1[%c0, %c0_0, %c0_1] : memref<8x8x32xbf16, #tpu.memory_space<vmem>>, vector<8x8x32xbf16>
    %1 = vector.shape_cast %0 : vector<8x8x32xbf16> to vector<64x32xbf16>
    %c0_2 = arith.constant 0 : index
    %c0_3 = arith.constant 0 : index
    %2 = vector.load %arg2[%c0_2, %c0_3] : memref<32x768xbf16, #tpu.memory_space<vmem>>, vector<32x768xbf16>
    %cst = arith.constant dense<0.000000e+00> : vector<64x768xf32>
    %3 = tpu.matmul %1, %2, %cst {dimension_numbers = #tpu.dot_dimension_numbers<[1], [0], [0], [1], [0, 0, 1, 1], [], []>} : vector<64x32xbf16>, vector<32x768xbf16>, vector<64x768xf32> -> vector<64x768xf32>
    %c0_4 = arith.constant 0 : index
    %c0_5 = arith.constant 0 : index
    %4 = vector.load %arg4[%c0_4, %c0_5] : memref<1x768xf32, #tpu.memory_space<vmem>>, vector<1x768xf32>
    %5 = vector.broadcast %4 : vector<1x768xf32> to vector<64x768xf32>
    %6 = arith.addf %3, %5 : vector<64x768xf32>
    %7 = vector.extract_strided_slice %6 {offsets = [0, 0], sizes = [64, 384], strides = [1, 1]} : vector<64x768xf32> to vector<64x384xf32>
    %8 = vector.shape_cast %7 : vector<64x384xf32> to vector<8x8x384xf32>
    %c0_6 = arith.constant 0 : index
    %c0_7 = arith.constant 0 : index
    %c0_8 = arith.constant 0 : index
    %c0_9 = arith.constant 0 : index
    %9 = vector.load %arg10[%c0_6, %c0_7, %c0_8, %c0_9] : memref<2x8x8x384xf32, #tpu.memory_space<vmem>>, vector<1x8x8x384xf32>
    %10 = vector.shape_cast %9 : vector<1x8x8x384xf32> to vector<8x8x384xf32>
    %11 = vector.shape_cast %8 : vector<8x8x384xf32> to vector<1x8x8x384xf32>
    tpu.vector_store %arg10[%c0_6, %c0_7, %c0_8, %c0_9], %11 {strides = array<i32>} : memref<2x8x8x384xf32, #tpu.memory_space<vmem>>, vector<1x8x8x384xf32>,
    %12 = vector.extract_strided_slice %6 {offsets = [0, 384], sizes = [64, 384], strides = [1, 1]} : vector<64x768xf32> to vector<64x384xf32>
    %13 = vector.shape_cast %12 : vector<64x384xf32> to vector<8x8x384xf32>
    %c1 = arith.constant 1 : index
    %c0_10 = arith.constant 0 : index
    %c0_11 = arith.constant 0 : index
    %c0_12 = arith.constant 0 : index
    %14 = vector.load %arg10[%c1, %c0_10, %c0_11, %c0_12] : memref<2x8x8x384xf32, #tpu.memory_space<vmem>>, vector<1x8x8x384xf32>
    %15 = vector.shape_cast %14 : vector<1x8x8x384xf32> to vector<8x8x384xf32>
    %16 = vector.shape_cast %13 : vector<8x8x384xf32> to vector<1x8x8x384xf32>
    tpu.vector_store %arg10[%c1, %c0_10, %c0_11, %c0_12], %16 {strides = array<i32>} : memref<2x8x8x384xf32, #tpu.memory_space<vmem>>, vector<1x8x8x384xf32>,
    %c0_13 = arith.constant 0 : index
    %c0_14 = arith.constant 0 : index
    %c0_15 = arith.constant 0 : index
    %17 = vector.load %arg3[%c0_13, %c0_14, %c0_15] : memref<2x128x384xbf16, #tpu.memory_space<vmem>>, vector<1x128x384xbf16>
    %18 = vector.shape_cast %17 : vector<1x128x384xbf16> to vector<128x384xbf16>
    %c1_16 = arith.constant 1 : index
    %c0_17 = arith.constant 0 : index
    %c0_18 = arith.constant 0 : index
    %19 = vector.load %arg3[%c1_16, %c0_17, %c0_18] : memref<2x128x384xbf16, #tpu.memory_space<vmem>>, vector<1x128x384xbf16>
    %20 = vector.shape_cast %19 : vector<1x128x384xbf16> to vector<128x384xbf16>
    %c0_19 = arith.constant 0 : index
    %c0_20 = arith.constant 0 : index
    %c0_21 = arith.constant 0 : index
    %21 = vector.load %arg5[%c0_19, %c0_20, %c0_21] : memref<2x1x384xf32, #tpu.memory_space<vmem>>, vector<1x1x384xf32>
    %22 = vector.shape_cast %21 : vector<1x1x384xf32> to vector<1x384xf32>
    %c1_22 = arith.constant 1 : index
    %c0_23 = arith.constant 0 : index
    %c0_24 = arith.constant 0 : index
    %23 = vector.load %arg5[%c1_22, %c0_23, %c0_24] : memref<2x1x384xf32, #tpu.memory_space<vmem>>, vector<1x1x384xf32>
    %24 = vector.shape_cast %23 : vector<1x1x384xf32> to vector<1x384xf32>
    %cst_25 = arith.constant 0.000000e+00 : f32
    %25 = vector.broadcast %cst_25 : f32 to vector<8x128xf32>
    %cst_26 = arith.constant 0.000000e+00 : f32
    %26 = vector.broadcast %cst_26 : f32 to vector<8x128xf32>
    %c0_i32 = arith.constant 0 : i32
    %c0_i32_27 = arith.constant 0 : i32
    %c0_i32_28 = arith.constant 0 : i32
    %c0_i32_29 = arith.constant 0 : i32
    %27 = tpu.memref_slice %arg10[%c0_i32, %c0_i32_27, %c0_i32_28, %c0_i32_29] : memref<2x8x8x384xf32, #tpu.memory_space<vmem>> -> memref<1x8x8x384xf32, #tpu.memory_space<vmem>>
    %28 = tpu.memref_squeeze %27 : memref<1x8x8x384xf32, #tpu.memory_space<vmem>> -> memref<8x8x384xf32, #tpu.memory_space<vmem>>
    %c0_30 = arith.constant 0 : index
    %c0_31 = arith.constant 0 : index
    %c0_32 = arith.constant 0 : index
    %29 = vector.load %28[%c0_30, %c0_31, %c0_32] : memref<8x8x384xf32, #tpu.memory_space<vmem>>, vector<1x8x384xf32>
    %30 = vector.shape_cast %29 : vector<1x8x384xf32> to vector<8x384xf32>
    %c1_i32 = arith.constant 1 : i32
    %c0_i32_33 = arith.constant 0 : i32
    %c0_i32_34 = arith.constant 0 : i32
    %c0_i32_35 = arith.constant 0 : i32
    %31 = tpu.memref_slice %arg10[%c1_i32, %c0_i32_33, %c0_i32_34, %c0_i32_35] : memref<2x8x8x384xf32, #tpu.memory_space<vmem>> -> memref<1x8x8x384xf32, #tpu.memory_space<vmem>>
    %32 = tpu.memref_squeeze %31 : memref<1x8x8x384xf32, #tpu.memory_space<vmem>> -> memref<8x8x384xf32, #tpu.memory_space<vmem>>
    %c7 = arith.constant 7 : index
    %c0_36 = arith.constant 0 : index
    %c0_37 = arith.constant 0 : index
    %33 = vector.load %32[%c7, %c0_36, %c0_37] : memref<8x8x384xf32, #tpu.memory_space<vmem>>, vector<1x8x384xf32>
    %34 = vector.shape_cast %33 : vector<1x8x384xf32> to vector<8x384xf32>
    %35 = arith.truncf %25 : vector<8x128xf32> to vector<8x128xbf16>
    %cst_38 = arith.constant dense<0.000000e+00> : vector<8x384xf32>
    %36 = tpu.matmul %35, %18, %cst_38 {dimension_numbers = #tpu.dot_dimension_numbers<[1], [0], [0], [1], [0, 0, 1, 1], [], []>} : vector<8x128xbf16>, vector<128x384xbf16>, vector<8x384xf32> -> vector<8x384xf32>
    %37 = vector.broadcast %22 : vector<1x384xf32> to vector<8x384xf32>
    %38 = arith.addf %36, %37 : vector<8x384xf32>
    %39 = arith.truncf %26 : vector<8x128xf32> to vector<8x128xbf16>
    %cst_39 = arith.constant dense<0.000000e+00> : vector<8x384xf32>
    %40 = tpu.matmul %39, %20, %cst_39 {dimension_numbers = #tpu.dot_dimension_numbers<[1], [0], [0], [1], [0, 0, 1, 1], [], []>} : vector<8x128xbf16>, vector<128x384xbf16>, vector<8x384xf32> -> vector<8x384xf32>
    %41 = vector.broadcast %24 : vector<1x384xf32> to vector<8x384xf32>
    %42 = arith.addf %40, %41 : vector<8x384xf32>
    %43 = vector.extract_strided_slice %30 {offsets = [0, 0], sizes = [8, 128], strides = [1, 1]} : vector<8x384xf32> to vector<8x128xf32>
    %44 = vector.extract_strided_slice %38 {offsets = [0, 0], sizes = [8, 128], strides = [1, 1]} : vector<8x384xf32> to vector<8x128xf32>
    %45 = arith.addf %43, %44 : vector<8x128xf32>
    %46 = arith.negf %45 : vector<8x128xf32>
    %47 = math.exp %46 : vector<8x128xf32>
    %cst_40 = arith.constant 1.000000e+00 : f32
    %48 = vector.broadcast %cst_40 : f32 to vector<8x128xf32>
    %49 = arith.addf %48, %47 : vector<8x128xf32>
    %50 = arith.divf %48, %49 : vector<8x128xf32>
    %51 = vector.extract_strided_slice %30 {offsets = [0, 128], sizes = [8, 128], strides = [1, 1]} : vector<8x384xf32> to vector<8x128xf32>
    %52 = vector.extract_strided_slice %38 {offsets = [0, 128], sizes = [8, 128], strides = [1, 1]} : vector<8x384xf32> to vector<8x128xf32>
    %53 = arith.addf %51, %52 : vector<8x128xf32>
    %54 = arith.negf %53 : vector<8x128xf32>
    %55 = math.exp %54 : vector<8x128xf32>
    %cst_41 = arith.constant 1.000000e+00 : f32
    %56 = vector.broadcast %cst_41 : f32 to vector<8x128xf32>
    %57 = arith.addf %56, %55 : vector<8x128xf32>
    %58 = arith.divf %56, %57 : vector<8x128xf32>
    %59 = vector.extract_strided_slice %30 {offsets = [0, 256], sizes = [8, 128], strides = [1, 1]} : vector<8x384xf32> to vector<8x128xf32>
    %60 = vector.extract_strided_slice %38 {offsets = [0, 256], sizes = [8, 128], strides = [1, 1]} : vector<8x384xf32> to vector<8x128xf32>
    %61 = arith.mulf %50, %60 : vector<8x128xf32>
    %62 = arith.addf %59, %61 : vector<8x128xf32>
    %63 = math.tanh %62 : vector<8x128xf32>
    %cst_42 = arith.constant 1.000000e+00 : f32
    %64 = vector.broadcast %cst_42 : f32 to vector<8x128xf32>
    %65 = arith.subf %64, %58 : vector<8x128xf32>
    %66 = arith.mulf %65, %63 : vector<8x128xf32>
    %67 = arith.mulf %58, %25 : vector<8x128xf32>
    %68 = arith.addf %66, %67 : vector<8x128xf32>
    %69 = vector.extract_strided_slice %34 {offsets = [0, 0], sizes = [8, 128], strides = [1, 1]} : vector<8x384xf32> to vector<8x128xf32>
    %70 = vector.extract_strided_slice %42 {offsets = [0, 0], sizes = [8, 128], strides = [1, 1]} : vector<8x384xf32> to vector<8x128xf32>
    %71 = arith.addf %69, %70 : vector<8x128xf32>
    %72 = arith.negf %71 : vector<8x128xf32>
    %73 = math.exp %72 : vector<8x128xf32>
    %cst_43 = arith.constant 1.000000e+00 : f32
    %74 = vector.broadcast %cst_43 : f32 to vector<8x128xf32>
    %75 = arith.addf %74, %73 : vector<8x128xf32>
    %76 = arith.divf %74, %75 : vector<8x128xf32>
    %77 = vector.extract_strided_slice %34 {offsets = [0, 128], sizes = [8, 128], strides = [1, 1]} : vector<8x384xf32> to vector<8x128xf32>
    %78 = vector.extract_strided_slice %42 {offsets = [0, 128], sizes = [8, 128], strides = [1, 1]} : vector<8x384xf32> to vector<8x128xf32>
    %79 = arith.addf %77, %78 : vector<8x128xf32>
    %80 = arith.negf %79 : vector<8x128xf32>
    %81 = math.exp %80 : vector<8x128xf32>
    %cst_44 = arith.constant 1.000000e+00 : f32
    %82 = vector.broadcast %cst_44 : f32 to vector<8x128xf32>
    %83 = arith.addf %82, %81 : vector<8x128xf32>
    %84 = arith.divf %82, %83 : vector<8x128xf32>
    %85 = vector.extract_strided_slice %34 {offsets = [0, 256], sizes = [8, 128], strides = [1, 1]} : vector<8x384xf32> to vector<8x128xf32>
    %86 = vector.extract_strided_slice %42 {offsets = [0, 256], sizes = [8, 128], strides = [1, 1]} : vector<8x384xf32> to vector<8x128xf32>
    %87 = arith.mulf %76, %86 : vector<8x128xf32>
    %88 = arith.addf %85, %87 : vector<8x128xf32>
    %89 = math.tanh %88 : vector<8x128xf32>
    %cst_45 = arith.constant 1.000000e+00 : f32
    %90 = vector.broadcast %cst_45 : f32 to vector<8x128xf32>
    %91 = arith.subf %90, %84 : vector<8x128xf32>
    %92 = arith.mulf %91, %89 : vector<8x128xf32>
    %93 = arith.mulf %84, %26 : vector<8x128xf32>
    %94 = arith.addf %92, %93 : vector<8x128xf32>
    %c0_46 = arith.constant 0 : index
    %c0_47 = arith.constant 0 : index
    %c0_48 = arith.constant 0 : index
    %95 = vector.load %arg11[%c0_46, %c0_47, %c0_48] : memref<8x8x128xf32, #tpu.memory_space<vmem>>, vector<1x8x128xf32>
    %96 = vector.shape_cast %95 : vector<1x8x128xf32> to vector<8x128xf32>
    %97 = vector.shape_cast %68 : vector<8x128xf32> to vector<1x8x128xf32>
    tpu.vector_store %arg11[%c0_46, %c0_47, %c0_48], %97 {strides = array<i32>} : memref<8x8x128xf32, #tpu.memory_space<vmem>>, vector<1x8x128xf32>,
    %c7_49 = arith.constant 7 : index
    %c0_50 = arith.constant 0 : index
    %c0_51 = arith.constant 0 : index
    %98 = vector.load %arg12[%c7_49, %c0_50, %c0_51] : memref<8x8x128xf32, #tpu.memory_space<vmem>>, vector<1x8x128xf32>
    %99 = vector.shape_cast %98 : vector<1x8x128xf32> to vector<8x128xf32>
    %100 = vector.shape_cast %94 : vector<8x128xf32> to vector<1x8x128xf32>
    tpu.vector_store %arg12[%c7_49, %c0_50, %c0_51], %100 {strides = array<i32>} : memref<8x8x128xf32, #tpu.memory_space<vmem>>, vector<1x8x128xf32>,
    %c0_i32_52 = arith.constant 0 : i32
    %c0_i32_53 = arith.constant 0 : i32
    %c0_i32_54 = arith.constant 0 : i32
    %c0_i32_55 = arith.constant 0 : i32
    %101 = tpu.memref_slice %arg10[%c0_i32_52, %c0_i32_53, %c0_i32_54, %c0_i32_55] : memref<2x8x8x384xf32, #tpu.memory_space<vmem>> -> memref<1x8x8x384xf32, #tpu.memory_space<vmem>>
    %102 = tpu.memref_squeeze %101 : memref<1x8x8x384xf32, #tpu.memory_space<vmem>> -> memref<8x8x384xf32, #tpu.memory_space<vmem>>
    %c1_56 = arith.constant 1 : index
    %c0_57 = arith.constant 0 : index
    %c0_58 = arith.constant 0 : index
    %103 = vector.load %102[%c1_56, %c0_57, %c0_58] : memref<8x8x384xf32, #tpu.memory_space<vmem>>, vector<1x8x384xf32>
    %104 = vector.shape_cast %103 : vector<1x8x384xf32> to vector<8x384xf32>
    %c1_i32_59 = arith.constant 1 : i32
    %c0_i32_60 = arith.constant 0 : i32
    %c0_i32_61 = arith.constant 0 : i32
    %c0_i32_62 = arith.constant 0 : i32
    %105 = tpu.memref_slice %arg10[%c1_i32_59, %c0_i32_60, %c0_i32_61, %c0_i32_62] : memref<2x8x8x384xf32, #tpu.memory_space<vmem>> -> memref<1x8x8x384xf32, #tpu.memory_space<vmem>>
    %106 = tpu.memref_squeeze %105 : memref<1x8x8x384xf32, #tpu.memory_space<vmem>> -> memref<8x8x384xf32, #tpu.memory_space<vmem>>
    %c6 = arith.constant 6 : index
    %c0_63 = arith.constant 0 : index
    %c0_64 = arith.constant 0 : index
    %107 = vector.load %106[%c6, %c0_63, %c0_64] : memref<8x8x384xf32, #tpu.memory_space<vmem>>, vector<1x8x384xf32>
    %108 = vector.shape_cast %107 : vector<1x8x384xf32> to vector<8x384xf32>
    %109 = arith.truncf %68 : vector<8x128xf32> to vector<8x128xbf16>
    %cst_65 = arith.constant dense<0.000000e+00> : vector<8x384xf32>
    %110 = tpu.matmul %109, %18, %cst_65 {dimension_numbers = #tpu.dot_dimension_numbers<[1], [0], [0], [1], [0, 0, 1, 1], [], []>} : vector<8x128xbf16>, vector<128x384xbf16>, vector<8x384xf32> -> vector<8x384xf32>
    %111 = vector.broadcast %22 : vector<1x384xf32> to vector<8x384xf32>
    %112 = arith.addf %110, %111 : vector<8x384xf32>
    %113 = arith.truncf %94 : vector<8x128xf32> to vector<8x128xbf16>
    %cst_66 = arith.constant dense<0.000000e+00> : vector<8x384xf32>
    %114 = tpu.matmul %113, %20, %cst_66 {dimension_numbers = #tpu.dot_dimension_numbers<[1], [0], [0], [1], [0, 0, 1, 1], [], []>} : vector<8x128xbf16>, vector<128x384xbf16>, vector<8x384xf32> -> vector<8x384xf32>
    %115 = vector.broadcast %24 : vector<1x384xf32> to vector<8x384xf32>
    %116 = arith.addf %114, %115 : vector<8x384xf32>
    %117 = vector.extract_strided_slice %104 {offsets = [0, 0], sizes = [8, 128], strides = [1, 1]} : vector<8x384xf32> to vector<8x128xf32>
    %118 = vector.extract_strided_slice %112 {offsets = [0, 0], sizes = [8, 128], strides = [1, 1]} : vector<8x384xf32> to vector<8x128xf32>
    %119 = arith.addf %117, %118 : vector<8x128xf32>
    %120 = arith.negf %119 : vector<8x128xf32>
    %121 = math.exp %120 : vector<8x128xf32>
    %cst_67 = arith.constant 1.000000e+00 : f32
    %122 = vector.broadcast %cst_67 : f32 to vector<8x128xf32>
    %123 = arith.addf %122, %121 : vector<8x128xf32>
    %124 = arith.divf %122, %123 : vector<8x128xf32>
    %125 = vector.extract_strided_slice %104 {offsets = [0, 128], sizes = [8, 128], strides = [1, 1]} : vector<8x384xf32> to vector<8x128xf32>
    %126 = vector.extract_strided_slice %112 {offsets = [0, 128], sizes = [8, 128], strides = [1, 1]} : vector<8x384xf32> to vector<8x128xf32>
    %127 = arith.addf %125, %126 : vector<8x128xf32>
    %128 = arith.negf %127 : vector<8x128xf32>
    %129 = math.exp %128 : vector<8x128xf32>
    %cst_68 = arith.constant 1.000000e+00 : f32
    %130 = vector.broadcast %cst_68 : f32 to vector<8x128xf32>
    %131 = arith.addf %130, %129 : vector<8x128xf32>
    %132 = arith.divf %130, %131 : vector<8x128xf32>
    %133 = vector.extract_strided_slice %104 {offsets = [0, 256], sizes = [8, 128], strides = [1, 1]} : vector<8x384xf32> to vector<8x128xf32>
    %134 = vector.extract_strided_slice %112 {offsets = [0, 256], sizes = [8, 128], strides = [1, 1]} : vector<8x384xf32> to vector<8x128xf32>
    %135 = arith.mulf %124, %134 : vector<8x128xf32>
    %136 = arith.addf %133, %135 : vector<8x128xf32>
    %137 = math.tanh %136 : vector<8x128xf32>
    %cst_69 = arith.constant 1.000000e+00 : f32
    %138 = vector.broadcast %cst_69 : f32 to vector<8x128xf32>
    %139 = arith.subf %138, %132 : vector<8x128xf32>
    %140 = arith.mulf %139, %137 : vector<8x128xf32>
    %141 = arith.mulf %132, %68 : vector<8x128xf32>
    %142 = arith.addf %140, %141 : vector<8x128xf32>
    %143 = vector.extract_strided_slice %108 {offsets = [0, 0], sizes = [8, 128], strides = [1, 1]} : vector<8x384xf32> to vector<8x128xf32>
    %144 = vector.extract_strided_slice %116 {offsets = [0, 0], sizes = [8, 128], strides = [1, 1]} : vector<8x384xf32> to vector<8x128xf32>
    %145 = arith.addf %143, %144 : vector<8x128xf32>
    %146 = arith.negf %145 : vector<8x128xf32>
    %147 = math.exp %146 : vector<8x128xf32>
    %cst_70 = arith.constant 1.000000e+00 : f32
    %148 = vector.broadcast %cst_70 : f32 to vector<8x128xf32>
    %149 = arith.addf %148, %147 : vector<8x128xf32>
    %150 = arith.divf %148, %149 : vector<8x128xf32>
    %151 = vector.extract_strided_slice %108 {offsets = [0, 128], sizes = [8, 128], strides = [1, 1]} : vector<8x384xf32> to vector<8x128xf32>
    %152 = vector.extract_strided_slice %116 {offsets = [0, 128], sizes = [8, 128], strides = [1, 1]} : vector<8x384xf32> to vector<8x128xf32>
    %153 = arith.addf %151, %152 : vector<8x128xf32>
    %154 = arith.negf %153 : vector<8x128xf32>
    %155 = math.exp %154 : vector<8x128xf32>
    %cst_71 = arith.constant 1.000000e+00 : f32
    %156 = vector.broadcast %cst_71 : f32 to vector<8x128xf32>
    %157 = arith.addf %156, %155 : vector<8x128xf32>
    %158 = arith.divf %156, %157 : vector<8x128xf32>
    %159 = vector.extract_strided_slice %108 {offsets = [0, 256], sizes = [8, 128], strides = [1, 1]} : vector<8x384xf32> to vector<8x128xf32>
    %160 = vector.extract_strided_slice %116 {offsets = [0, 256], sizes = [8, 128], strides = [1, 1]} : vector<8x384xf32> to vector<8x128xf32>
    %161 = arith.mulf %150, %160 : vector<8x128xf32>
    %162 = arith.addf %159, %161 : vector<8x128xf32>
    %163 = math.tanh %162 : vector<8x128xf32>
    %cst_72 = arith.constant 1.000000e+00 : f32
    %164 = vector.broadcast %cst_72 : f32 to vector<8x128xf32>
    %165 = arith.subf %164, %158 : vector<8x128xf32>
    %166 = arith.mulf %165, %163 : vector<8x128xf32>
    %167 = arith.mulf %158, %94 : vector<8x128xf32>
    %168 = arith.addf %166, %167 : vector<8x128xf32>
    %c1_73 = arith.constant 1 : index
    %c0_74 = arith.constant 0 : index
    %c0_75 = arith.constant 0 : index
    %169 = vector.load %arg11[%c1_73, %c0_74, %c0_75] : memref<8x8x128xf32, #tpu.memory_space<vmem>>, vector<1x8x128xf32>
    %170 = vector.shape_cast %169 : vector<1x8x128xf32> to vector<8x128xf32>
    %171 = vector.shape_cast %142 : vector<8x128xf32> to vector<1x8x128xf32>
    tpu.vector_store %arg11[%c1_73, %c0_74, %c0_75], %171 {strides = array<i32>} : memref<8x8x128xf32, #tpu.memory_space<vmem>>, vector<1x8x128xf32>,
    %c6_76 = arith.constant 6 : index
    %c0_77 = arith.constant 0 : index
    %c0_78 = arith.constant 0 : index
    %172 = vector.load %arg12[%c6_76, %c0_77, %c0_78] : memref<8x8x128xf32, #tpu.memory_space<vmem>>, vector<1x8x128xf32>
    %173 = vector.shape_cast %172 : vector<1x8x128xf32> to vector<8x128xf32>
    %174 = vector.shape_cast %168 : vector<8x128xf32> to vector<1x8x128xf32>
    tpu.vector_store %arg12[%c6_76, %c0_77, %c0_78], %174 {strides = array<i32>} : memref<8x8x128xf32, #tpu.memory_space<vmem>>, vector<1x8x128xf32>,
    %c0_i32_79 = arith.constant 0 : i32
    %c0_i32_80 = arith.constant 0 : i32
    %c0_i32_81 = arith.constant 0 : i32
    %c0_i32_82 = arith.constant 0 : i32
    %175 = tpu.memref_slice %arg10[%c0_i32_79, %c0_i32_80, %c0_i32_81, %c0_i32_82] : memref<2x8x8x384xf32, #tpu.memory_space<vmem>> -> memref<1x8x8x384xf32, #tpu.memory_space<vmem>>
    %176 = tpu.memref_squeeze %175 : memref<1x8x8x384xf32, #tpu.memory_space<vmem>> -> memref<8x8x384xf32, #tpu.memory_space<vmem>>
    %c2 = arith.constant 2 : index
    %c0_83 = arith.constant 0 : index
    %c0_84 = arith.constant 0 : index
    %177 = vector.load %176[%c2, %c0_83, %c0_84] : memref<8x8x384xf32, #tpu.memory_space<vmem>>, vector<1x8x384xf32>
    %178 = vector.shape_cast %177 : vector<1x8x384xf32> to vector<8x384xf32>
    %c1_i32_85 = arith.constant 1 : i32
    %c0_i32_86 = arith.constant 0 : i32
    %c0_i32_87 = arith.constant 0 : i32
    %c0_i32_88 = arith.constant 0 : i32
    %179 = tpu.memref_slice %arg10[%c1_i32_85, %c0_i32_86, %c0_i32_87, %c0_i32_88] : memref<2x8x8x384xf32, #tpu.memory_space<vmem>> -> memref<1x8x8x384xf32, #tpu.memory_space<vmem>>
    %180 = tpu.memref_squeeze %179 : memref<1x8x8x384xf32, #tpu.memory_space<vmem>> -> memref<8x8x384xf32, #tpu.memory_space<vmem>>
    %c5 = arith.constant 5 : index
    %c0_89 = arith.constant 0 : index
    %c0_90 = arith.constant 0 : index
    %181 = vector.load %180[%c5, %c0_89, %c0_90] : memref<8x8x384xf32, #tpu.memory_space<vmem>>, vector<1x8x384xf32>
    %182 = vector.shape_cast %181 : vector<1x8x384xf32> to vector<8x384xf32>
    %183 = arith.truncf %142 : vector<8x128xf32> to vector<8x128xbf16>
    %cst_91 = arith.constant dense<0.000000e+00> : vector<8x384xf32>
    %184 = tpu.matmul %183, %18, %cst_91 {dimension_numbers = #tpu.dot_dimension_numbers<[1], [0], [0], [1], [0, 0, 1, 1], [], []>} : vector<8x128xbf16>, vector<128x384xbf16>, vector<8x384xf32> -> vector<8x384xf32>
    %185 = vector.broadcast %22 : vector<1x384xf32> to vector<8x384xf32>
    %186 = arith.addf %184, %185 : vector<8x384xf32>
    %187 = arith.truncf %168 : vector<8x128xf32> to vector<8x128xbf16>
    %cst_92 = arith.constant dense<0.000000e+00> : vector<8x384xf32>
    %188 = tpu.matmul %187, %20, %cst_92 {dimension_numbers = #tpu.dot_dimension_numbers<[1], [0], [0], [1], [0, 0, 1, 1], [], []>} : vector<8x128xbf16>, vector<128x384xbf16>, vector<8x384xf32> -> vector<8x384xf32>
    %189 = vector.broadcast %24 : vector<1x384xf32> to vector<8x384xf32>
    %190 = arith.addf %188, %189 : vector<8x384xf32>
    %191 = vector.extract_strided_slice %178 {offsets = [0, 0], sizes = [8, 128], strides = [1, 1]} : vector<8x384xf32> to vector<8x128xf32>
    %192 = vector.extract_strided_slice %186 {offsets = [0, 0], sizes = [8, 128], strides = [1, 1]} : vector<8x384xf32> to vector<8x128xf32>
    %193 = arith.addf %191, %192 : vector<8x128xf32>
    %194 = arith.negf %193 : vector<8x128xf32>
    %195 = math.exp %194 : vector<8x128xf32>
    %cst_93 = arith.constant 1.000000e+00 : f32
    %196 = vector.broadcast %cst_93 : f32 to vector<8x128xf32>
    %197 = arith.addf %196, %195 : vector<8x128xf32>
    %198 = arith.divf %196, %197 : vector<8x128xf32>
    %199 = vector.extract_strided_slice %178 {offsets = [0, 128], sizes = [8, 128], strides = [1, 1]} : vector<8x384xf32> to vector<8x128xf32>
    %200 = vector.extract_strided_slice %186 {offsets = [0, 128], sizes = [8, 128], strides = [1, 1]} : vector<8x384xf32> to vector<8x128xf32>
    %201 = arith.addf %199, %200 : vector<8x128xf32>
    %202 = arith.negf %201 : vector<8x128xf32>
    %203 = math.exp %202 : vector<8x128xf32>
    %cst_94 = arith.constant 1.000000e+00 : f32
    %204 = vector.broadcast %cst_94 : f32 to vector<8x128xf32>
    %205 = arith.addf %204, %203 : vector<8x128xf32>
    %206 = arith.divf %204, %205 : vector<8x128xf32>
    %207 = vector.extract_strided_slice %178 {offsets = [0, 256], sizes = [8, 128], strides = [1, 1]} : vector<8x384xf32> to vector<8x128xf32>
    %208 = vector.extract_strided_slice %186 {offsets = [0, 256], sizes = [8, 128], strides = [1, 1]} : vector<8x384xf32> to vector<8x128xf32>
    %209 = arith.mulf %198, %208 : vector<8x128xf32>
    %210 = arith.addf %207, %209 : vector<8x128xf32>
    %211 = math.tanh %210 : vector<8x128xf32>
    %cst_95 = arith.constant 1.000000e+00 : f32
    %212 = vector.broadcast %cst_95 : f32 to vector<8x128xf32>
    %213 = arith.subf %212, %206 : vector<8x128xf32>
    %214 = arith.mulf %213, %211 : vector<8x128xf32>
    %215 = arith.mulf %206, %142 : vector<8x128xf32>
    %216 = arith.addf %214, %215 : vector<8x128xf32>
    %217 = vector.extract_strided_slice %182 {offsets = [0, 0], sizes = [8, 128], strides = [1, 1]} : vector<8x384xf32> to vector<8x128xf32>
    %218 = vector.extract_strided_slice %190 {offsets = [0, 0], sizes = [8, 128], strides = [1, 1]} : vector<8x384xf32> to vector<8x128xf32>
    %219 = arith.addf %217, %218 : vector<8x128xf32>
    %220 = arith.negf %219 : vector<8x128xf32>
    %221 = math.exp %220 : vector<8x128xf32>
    %cst_96 = arith.constant 1.000000e+00 : f32
    %222 = vector.broadcast %cst_96 : f32 to vector<8x128xf32>
    %223 = arith.addf %222, %221 : vector<8x128xf32>
    %224 = arith.divf %222, %223 : vector<8x128xf32>
    %225 = vector.extract_strided_slice %182 {offsets = [0, 128], sizes = [8, 128], strides = [1, 1]} : vector<8x384xf32> to vector<8x128xf32>
    %226 = vector.extract_strided_slice %190 {offsets = [0, 128], sizes = [8, 128], strides = [1, 1]} : vector<8x384xf32> to vector<8x128xf32>
    %227 = arith.addf %225, %226 : vector<8x128xf32>
    %228 = arith.negf %227 : vector<8x128xf32>
    %229 = math.exp %228 : vector<8x128xf32>
    %cst_97 = arith.constant 1.000000e+00 : f32
    %230 = vector.broadcast %cst_97 : f32 to vector<8x128xf32>
    %231 = arith.addf %230, %229 : vector<8x128xf32>
    %232 = arith.divf %230, %231 : vector<8x128xf32>
    %233 = vector.extract_strided_slice %182 {offsets = [0, 256], sizes = [8, 128], strides = [1, 1]} : vector<8x384xf32> to vector<8x128xf32>
    %234 = vector.extract_strided_slice %190 {offsets = [0, 256], sizes = [8, 128], strides = [1, 1]} : vector<8x384xf32> to vector<8x128xf32>
    %235 = arith.mulf %224, %234 : vector<8x128xf32>
    %236 = arith.addf %233, %235 : vector<8x128xf32>
    %237 = math.tanh %236 : vector<8x128xf32>
    %cst_98 = arith.constant 1.000000e+00 : f32
    %238 = vector.broadcast %cst_98 : f32 to vector<8x128xf32>
    %239 = arith.subf %238, %232 : vector<8x128xf32>
    %240 = arith.mulf %239, %237 : vector<8x128xf32>
    %241 = arith.mulf %232, %168 : vector<8x128xf32>
    %242 = arith.addf %240, %241 : vector<8x128xf32>
    %c2_99 = arith.constant 2 : index
    %c0_100 = arith.constant 0 : index
    %c0_101 = arith.constant 0 : index
    %243 = vector.load %arg11[%c2_99, %c0_100, %c0_101] : memref<8x8x128xf32, #tpu.memory_space<vmem>>, vector<1x8x128xf32>
    %244 = vector.shape_cast %243 : vector<1x8x128xf32> to vector<8x128xf32>
    %245 = vector.shape_cast %216 : vector<8x128xf32> to vector<1x8x128xf32>
    tpu.vector_store %arg11[%c2_99, %c0_100, %c0_101], %245 {strides = array<i32>} : memref<8x8x128xf32, #tpu.memory_space<vmem>>, vector<1x8x128xf32>,
    %c5_102 = arith.constant 5 : index
    %c0_103 = arith.constant 0 : index
    %c0_104 = arith.constant 0 : index
    %246 = vector.load %arg12[%c5_102, %c0_103, %c0_104] : memref<8x8x128xf32, #tpu.memory_space<vmem>>, vector<1x8x128xf32>
    %247 = vector.shape_cast %246 : vector<1x8x128xf32> to vector<8x128xf32>
    %248 = vector.shape_cast %242 : vector<8x128xf32> to vector<1x8x128xf32>
    tpu.vector_store %arg12[%c5_102, %c0_103, %c0_104], %248 {strides = array<i32>} : memref<8x8x128xf32, #tpu.memory_space<vmem>>, vector<1x8x128xf32>,
    %c0_i32_105 = arith.constant 0 : i32
    %c0_i32_106 = arith.constant 0 : i32
    %c0_i32_107 = arith.constant 0 : i32
    %c0_i32_108 = arith.constant 0 : i32
    %249 = tpu.memref_slice %arg10[%c0_i32_105, %c0_i32_106, %c0_i32_107, %c0_i32_108] : memref<2x8x8x384xf32, #tpu.memory_space<vmem>> -> memref<1x8x8x384xf32, #tpu.memory_space<vmem>>
    %250 = tpu.memref_squeeze %249 : memref<1x8x8x384xf32, #tpu.memory_space<vmem>> -> memref<8x8x384xf32, #tpu.memory_space<vmem>>
    %c3 = arith.constant 3 : index
    %c0_109 = arith.constant 0 : index
    %c0_110 = arith.constant 0 : index
    %251 = vector.load %250[%c3, %c0_109, %c0_110] : memref<8x8x384xf32, #tpu.memory_space<vmem>>, vector<1x8x384xf32>
    %252 = vector.shape_cast %251 : vector<1x8x384xf32> to vector<8x384xf32>
    %c1_i32_111 = arith.constant 1 : i32
    %c0_i32_112 = arith.constant 0 : i32
    %c0_i32_113 = arith.constant 0 : i32
    %c0_i32_114 = arith.constant 0 : i32
    %253 = tpu.memref_slice %arg10[%c1_i32_111, %c0_i32_112, %c0_i32_113, %c0_i32_114] : memref<2x8x8x384xf32, #tpu.memory_space<vmem>> -> memref<1x8x8x384xf32, #tpu.memory_space<vmem>>
    %254 = tpu.memref_squeeze %253 : memref<1x8x8x384xf32, #tpu.memory_space<vmem>> -> memref<8x8x384xf32, #tpu.memory_space<vmem>>
    %c4 = arith.constant 4 : index
    %c0_115 = arith.constant 0 : index
    %c0_116 = arith.constant 0 : index
    %255 = vector.load %254[%c4, %c0_115, %c0_116] : memref<8x8x384xf32, #tpu.memory_space<vmem>>, vector<1x8x384xf32>
    %256 = vector.shape_cast %255 : vector<1x8x384xf32> to vector<8x384xf32>
    %257 = arith.truncf %216 : vector<8x128xf32> to vector<8x128xbf16>
    %cst_117 = arith.constant dense<0.000000e+00> : vector<8x384xf32>
    %258 = tpu.matmul %257, %18, %cst_117 {dimension_numbers = #tpu.dot_dimension_numbers<[1], [0], [0], [1], [0, 0, 1, 1], [], []>} : vector<8x128xbf16>, vector<128x384xbf16>, vector<8x384xf32> -> vector<8x384xf32>
    %259 = vector.broadcast %22 : vector<1x384xf32> to vector<8x384xf32>
    %260 = arith.addf %258, %259 : vector<8x384xf32>
    %261 = arith.truncf %242 : vector<8x128xf32> to vector<8x128xbf16>
    %cst_118 = arith.constant dense<0.000000e+00> : vector<8x384xf32>
    %262 = tpu.matmul %261, %20, %cst_118 {dimension_numbers = #tpu.dot_dimension_numbers<[1], [0], [0], [1], [0, 0, 1, 1], [], []>} : vector<8x128xbf16>, vector<128x384xbf16>, vector<8x384xf32> -> vector<8x384xf32>
    %263 = vector.broadcast %24 : vector<1x384xf32> to vector<8x384xf32>
    %264 = arith.addf %262, %263 : vector<8x384xf32>
    %265 = vector.extract_strided_slice %252 {offsets = [0, 0], sizes = [8, 128], strides = [1, 1]} : vector<8x384xf32> to vector<8x128xf32>
    %266 = vector.extract_strided_slice %260 {offsets = [0, 0], sizes = [8, 128], strides = [1, 1]} : vector<8x384xf32> to vector<8x128xf32>
    %267 = arith.addf %265, %266 : vector<8x128xf32>
    %268 = arith.negf %267 : vector<8x128xf32>
    %269 = math.exp %268 : vector<8x128xf32>
    %cst_119 = arith.constant 1.000000e+00 : f32
    %270 = vector.broadcast %cst_119 : f32 to vector<8x128xf32>
    %271 = arith.addf %270, %269 : vector<8x128xf32>
    %272 = arith.divf %270, %271 : vector<8x128xf32>
    %273 = vector.extract_strided_slice %252 {offsets = [0, 128], sizes = [8, 128], strides = [1, 1]} : vector<8x384xf32> to vector<8x128xf32>
    %274 = vector.extract_strided_slice %260 {offsets = [0, 128], sizes = [8, 128], strides = [1, 1]} : vector<8x384xf32> to vector<8x128xf32>
    %275 = arith.addf %273, %274 : vector<8x128xf32>
    %276 = arith.negf %275 : vector<8x128xf32>
    %277 = math.exp %276 : vector<8x128xf32>
    %cst_120 = arith.constant 1.000000e+00 : f32
    %278 = vector.broadcast %cst_120 : f32 to vector<8x128xf32>
    %279 = arith.addf %278, %277 : vector<8x128xf32>
    %280 = arith.divf %278, %279 : vector<8x128xf32>
    %281 = vector.extract_strided_slice %252 {offsets = [0, 256], sizes = [8, 128], strides = [1, 1]} : vector<8x384xf32> to vector<8x128xf32>
    %282 = vector.extract_strided_slice %260 {offsets = [0, 256], sizes = [8, 128], strides = [1, 1]} : vector<8x384xf32> to vector<8x128xf32>
    %283 = arith.mulf %272, %282 : vector<8x128xf32>
    %284 = arith.addf %281, %283 : vector<8x128xf32>
    %285 = math.tanh %284 : vector<8x128xf32>
    %cst_121 = arith.constant 1.000000e+00 : f32
    %286 = vector.broadcast %cst_121 : f32 to vector<8x128xf32>
    %287 = arith.subf %286, %280 : vector<8x128xf32>
    %288 = arith.mulf %287, %285 : vector<8x128xf32>
    %289 = arith.mulf %280, %216 : vector<8x128xf32>
    %290 = arith.addf %288, %289 : vector<8x128xf32>
    %291 = vector.extract_strided_slice %256 {offsets = [0, 0], sizes = [8, 128], strides = [1, 1]} : vector<8x384xf32> to vector<8x128xf32>
    %292 = vector.extract_strided_slice %264 {offsets = [0, 0], sizes = [8, 128], strides = [1, 1]} : vector<8x384xf32> to vector<8x128xf32>
    %293 = arith.addf %291, %292 : vector<8x128xf32>
    %294 = arith.negf %293 : vector<8x128xf32>
    %295 = math.exp %294 : vector<8x128xf32>
    %cst_122 = arith.constant 1.000000e+00 : f32
    %296 = vector.broadcast %cst_122 : f32 to vector<8x128xf32>
    %297 = arith.addf %296, %295 : vector<8x128xf32>
    %298 = arith.divf %296, %297 : vector<8x128xf32>
    %299 = vector.extract_strided_slice %256 {offsets = [0, 128], sizes = [8, 128], strides = [1, 1]} : vector<8x384xf32> to vector<8x128xf32>
    %300 = vector.extract_strided_slice %264 {offsets = [0, 128], sizes = [8, 128], strides = [1, 1]} : vector<8x384xf32> to vector<8x128xf32>
    %301 = arith.addf %299, %300 : vector<8x128xf32>
    %302 = arith.negf %301 : vector<8x128xf32>
    %303 = math.exp %302 : vector<8x128xf32>
    %cst_123 = arith.constant 1.000000e+00 : f32
    %304 = vector.broadcast %cst_123 : f32 to vector<8x128xf32>
    %305 = arith.addf %304, %303 : vector<8x128xf32>
    %306 = arith.divf %304, %305 : vector<8x128xf32>
    %307 = vector.extract_strided_slice %256 {offsets = [0, 256], sizes = [8, 128], strides = [1, 1]} : vector<8x384xf32> to vector<8x128xf32>
    %308 = vector.extract_strided_slice %264 {offsets = [0, 256], sizes = [8, 128], strides = [1, 1]} : vector<8x384xf32> to vector<8x128xf32>
    %309 = arith.mulf %298, %308 : vector<8x128xf32>
    %310 = arith.addf %307, %309 : vector<8x128xf32>
    %311 = math.tanh %310 : vector<8x128xf32>
    %cst_124 = arith.constant 1.000000e+00 : f32
    %312 = vector.broadcast %cst_124 : f32 to vector<8x128xf32>
    %313 = arith.subf %312, %306 : vector<8x128xf32>
    %314 = arith.mulf %313, %311 : vector<8x128xf32>
    %315 = arith.mulf %306, %242 : vector<8x128xf32>
    %316 = arith.addf %314, %315 : vector<8x128xf32>
    %c3_125 = arith.constant 3 : index
    %c0_126 = arith.constant 0 : index
    %c0_127 = arith.constant 0 : index
    %317 = vector.load %arg11[%c3_125, %c0_126, %c0_127] : memref<8x8x128xf32, #tpu.memory_space<vmem>>, vector<1x8x128xf32>
    %318 = vector.shape_cast %317 : vector<1x8x128xf32> to vector<8x128xf32>
    %319 = vector.shape_cast %290 : vector<8x128xf32> to vector<1x8x128xf32>
    tpu.vector_store %arg11[%c3_125, %c0_126, %c0_127], %319 {strides = array<i32>} : memref<8x8x128xf32, #tpu.memory_space<vmem>>, vector<1x8x128xf32>,
    %c4_128 = arith.constant 4 : index
    %c0_129 = arith.constant 0 : index
    %c0_130 = arith.constant 0 : index
    %320 = vector.load %arg12[%c4_128, %c0_129, %c0_130] : memref<8x8x128xf32, #tpu.memory_space<vmem>>, vector<1x8x128xf32>
    %321 = vector.shape_cast %320 : vector<1x8x128xf32> to vector<8x128xf32>
    %322 = vector.shape_cast %316 : vector<8x128xf32> to vector<1x8x128xf32>
    tpu.vector_store %arg12[%c4_128, %c0_129, %c0_130], %322 {strides = array<i32>} : memref<8x8x128xf32, #tpu.memory_space<vmem>>, vector<1x8x128xf32>,
    %c0_i32_131 = arith.constant 0 : i32
    %c0_i32_132 = arith.constant 0 : i32
    %c0_i32_133 = arith.constant 0 : i32
    %c0_i32_134 = arith.constant 0 : i32
    %323 = tpu.memref_slice %arg10[%c0_i32_131, %c0_i32_132, %c0_i32_133, %c0_i32_134] : memref<2x8x8x384xf32, #tpu.memory_space<vmem>> -> memref<1x8x8x384xf32, #tpu.memory_space<vmem>>
    %324 = tpu.memref_squeeze %323 : memref<1x8x8x384xf32, #tpu.memory_space<vmem>> -> memref<8x8x384xf32, #tpu.memory_space<vmem>>
    %c4_135 = arith.constant 4 : index
    %c0_136 = arith.constant 0 : index
    %c0_137 = arith.constant 0 : index
    %325 = vector.load %324[%c4_135, %c0_136, %c0_137] : memref<8x8x384xf32, #tpu.memory_space<vmem>>, vector<1x8x384xf32>
    %326 = vector.shape_cast %325 : vector<1x8x384xf32> to vector<8x384xf32>
    %c1_i32_138 = arith.constant 1 : i32
    %c0_i32_139 = arith.constant 0 : i32
    %c0_i32_140 = arith.constant 0 : i32
    %c0_i32_141 = arith.constant 0 : i32
    %327 = tpu.memref_slice %arg10[%c1_i32_138, %c0_i32_139, %c0_i32_140, %c0_i32_141] : memref<2x8x8x384xf32, #tpu.memory_space<vmem>> -> memref<1x8x8x384xf32, #tpu.memory_space<vmem>>
    %328 = tpu.memref_squeeze %327 : memref<1x8x8x384xf32, #tpu.memory_space<vmem>> -> memref<8x8x384xf32, #tpu.memory_space<vmem>>
    %c3_142 = arith.constant 3 : index
    %c0_143 = arith.constant 0 : index
    %c0_144 = arith.constant 0 : index
    %329 = vector.load %328[%c3_142, %c0_143, %c0_144] : memref<8x8x384xf32, #tpu.memory_space<vmem>>, vector<1x8x384xf32>
    %330 = vector.shape_cast %329 : vector<1x8x384xf32> to vector<8x384xf32>
    %331 = arith.truncf %290 : vector<8x128xf32> to vector<8x128xbf16>
    %cst_145 = arith.constant dense<0.000000e+00> : vector<8x384xf32>
    %332 = tpu.matmul %331, %18, %cst_145 {dimension_numbers = #tpu.dot_dimension_numbers<[1], [0], [0], [1], [0, 0, 1, 1], [], []>} : vector<8x128xbf16>, vector<128x384xbf16>, vector<8x384xf32> -> vector<8x384xf32>
    %333 = vector.broadcast %22 : vector<1x384xf32> to vector<8x384xf32>
    %334 = arith.addf %332, %333 : vector<8x384xf32>
    %335 = arith.truncf %316 : vector<8x128xf32> to vector<8x128xbf16>
    %cst_146 = arith.constant dense<0.000000e+00> : vector<8x384xf32>
    %336 = tpu.matmul %335, %20, %cst_146 {dimension_numbers = #tpu.dot_dimension_numbers<[1], [0], [0], [1], [0, 0, 1, 1], [], []>} : vector<8x128xbf16>, vector<128x384xbf16>, vector<8x384xf32> -> vector<8x384xf32>
    %337 = vector.broadcast %24 : vector<1x384xf32> to vector<8x384xf32>
    %338 = arith.addf %336, %337 : vector<8x384xf32>
    %339 = vector.extract_strided_slice %326 {offsets = [0, 0], sizes = [8, 128], strides = [1, 1]} : vector<8x384xf32> to vector<8x128xf32>
    %340 = vector.extract_strided_slice %334 {offsets = [0, 0], sizes = [8, 128], strides = [1, 1]} : vector<8x384xf32> to vector<8x128xf32>
    %341 = arith.addf %339, %340 : vector<8x128xf32>
    %342 = arith.negf %341 : vector<8x128xf32>
    %343 = math.exp %342 : vector<8x128xf32>
    %cst_147 = arith.constant 1.000000e+00 : f32
    %344 = vector.broadcast %cst_147 : f32 to vector<8x128xf32>
    %345 = arith.addf %344, %343 : vector<8x128xf32>
    %346 = arith.divf %344, %345 : vector<8x128xf32>
    %347 = vector.extract_strided_slice %326 {offsets = [0, 128], sizes = [8, 128], strides = [1, 1]} : vector<8x384xf32> to vector<8x128xf32>
    %348 = vector.extract_strided_slice %334 {offsets = [0, 128], sizes = [8, 128], strides = [1, 1]} : vector<8x384xf32> to vector<8x128xf32>
    %349 = arith.addf %347, %348 : vector<8x128xf32>
    %350 = arith.negf %349 : vector<8x128xf32>
    %351 = math.exp %350 : vector<8x128xf32>
    %cst_148 = arith.constant 1.000000e+00 : f32
    %352 = vector.broadcast %cst_148 : f32 to vector<8x128xf32>
    %353 = arith.addf %352, %351 : vector<8x128xf32>
    %354 = arith.divf %352, %353 : vector<8x128xf32>
    %355 = vector.extract_strided_slice %326 {offsets = [0, 256], sizes = [8, 128], strides = [1, 1]} : vector<8x384xf32> to vector<8x128xf32>
    %356 = vector.extract_strided_slice %334 {offsets = [0, 256], sizes = [8, 128], strides = [1, 1]} : vector<8x384xf32> to vector<8x128xf32>
    %357 = arith.mulf %346, %356 : vector<8x128xf32>
    %358 = arith.addf %355, %357 : vector<8x128xf32>
    %359 = math.tanh %358 : vector<8x128xf32>
    %cst_149 = arith.constant 1.000000e+00 : f32
    %360 = vector.broadcast %cst_149 : f32 to vector<8x128xf32>
    %361 = arith.subf %360, %354 : vector<8x128xf32>
    %362 = arith.mulf %361, %359 : vector<8x128xf32>
    %363 = arith.mulf %354, %290 : vector<8x128xf32>
    %364 = arith.addf %362, %363 : vector<8x128xf32>
    %365 = vector.extract_strided_slice %330 {offsets = [0, 0], sizes = [8, 128], strides = [1, 1]} : vector<8x384xf32> to vector<8x128xf32>
    %366 = vector.extract_strided_slice %338 {offsets = [0, 0], sizes = [8, 128], strides = [1, 1]} : vector<8x384xf32> to vector<8x128xf32>
    %367 = arith.addf %365, %366 : vector<8x128xf32>
    %368 = arith.negf %367 : vector<8x128xf32>
    %369 = math.exp %368 : vector<8x128xf32>
    %cst_150 = arith.constant 1.000000e+00 : f32
    %370 = vector.broadcast %cst_150 : f32 to vector<8x128xf32>
    %371 = arith.addf %370, %369 : vector<8x128xf32>
    %372 = arith.divf %370, %371 : vector<8x128xf32>
    %373 = vector.extract_strided_slice %330 {offsets = [0, 128], sizes = [8, 128], strides = [1, 1]} : vector<8x384xf32> to vector<8x128xf32>
    %374 = vector.extract_strided_slice %338 {offsets = [0, 128], sizes = [8, 128], strides = [1, 1]} : vector<8x384xf32> to vector<8x128xf32>
    %375 = arith.addf %373, %374 : vector<8x128xf32>
    %376 = arith.negf %375 : vector<8x128xf32>
    %377 = math.exp %376 : vector<8x128xf32>
    %cst_151 = arith.constant 1.000000e+00 : f32
    %378 = vector.broadcast %cst_151 : f32 to vector<8x128xf32>
    %379 = arith.addf %378, %377 : vector<8x128xf32>
    %380 = arith.divf %378, %379 : vector<8x128xf32>
    %381 = vector.extract_strided_slice %330 {offsets = [0, 256], sizes = [8, 128], strides = [1, 1]} : vector<8x384xf32> to vector<8x128xf32>
    %382 = vector.extract_strided_slice %338 {offsets = [0, 256], sizes = [8, 128], strides = [1, 1]} : vector<8x384xf32> to vector<8x128xf32>
    %383 = arith.mulf %372, %382 : vector<8x128xf32>
    %384 = arith.addf %381, %383 : vector<8x128xf32>
    %385 = math.tanh %384 : vector<8x128xf32>
    %cst_152 = arith.constant 1.000000e+00 : f32
    %386 = vector.broadcast %cst_152 : f32 to vector<8x128xf32>
    %387 = arith.subf %386, %380 : vector<8x128xf32>
    %388 = arith.mulf %387, %385 : vector<8x128xf32>
    %389 = arith.mulf %380, %316 : vector<8x128xf32>
    %390 = arith.addf %388, %389 : vector<8x128xf32>
    %c4_153 = arith.constant 4 : index
    %c0_154 = arith.constant 0 : index
    %c0_155 = arith.constant 0 : index
    %391 = vector.load %arg11[%c4_153, %c0_154, %c0_155] : memref<8x8x128xf32, #tpu.memory_space<vmem>>, vector<1x8x128xf32>
    %392 = vector.shape_cast %391 : vector<1x8x128xf32> to vector<8x128xf32>
    %393 = vector.shape_cast %364 : vector<8x128xf32> to vector<1x8x128xf32>
    tpu.vector_store %arg11[%c4_153, %c0_154, %c0_155], %393 {strides = array<i32>} : memref<8x8x128xf32, #tpu.memory_space<vmem>>, vector<1x8x128xf32>,
    %c3_156 = arith.constant 3 : index
    %c0_157 = arith.constant 0 : index
    %c0_158 = arith.constant 0 : index
    %394 = vector.load %arg12[%c3_156, %c0_157, %c0_158] : memref<8x8x128xf32, #tpu.memory_space<vmem>>, vector<1x8x128xf32>
    %395 = vector.shape_cast %394 : vector<1x8x128xf32> to vector<8x128xf32>
    %396 = vector.shape_cast %390 : vector<8x128xf32> to vector<1x8x128xf32>
    tpu.vector_store %arg12[%c3_156, %c0_157, %c0_158], %396 {strides = array<i32>} : memref<8x8x128xf32, #tpu.memory_space<vmem>>, vector<1x8x128xf32>,
    %c0_i32_159 = arith.constant 0 : i32
    %c0_i32_160 = arith.constant 0 : i32
    %c0_i32_161 = arith.constant 0 : i32
    %c0_i32_162 = arith.constant 0 : i32
    %397 = tpu.memref_slice %arg10[%c0_i32_159, %c0_i32_160, %c0_i32_161, %c0_i32_162] : memref<2x8x8x384xf32, #tpu.memory_space<vmem>> -> memref<1x8x8x384xf32, #tpu.memory_space<vmem>>
    %398 = tpu.memref_squeeze %397 : memref<1x8x8x384xf32, #tpu.memory_space<vmem>> -> memref<8x8x384xf32, #tpu.memory_space<vmem>>
    %c5_163 = arith.constant 5 : index
    %c0_164 = arith.constant 0 : index
    %c0_165 = arith.constant 0 : index
    %399 = vector.load %398[%c5_163, %c0_164, %c0_165] : memref<8x8x384xf32, #tpu.memory_space<vmem>>, vector<1x8x384xf32>
    %400 = vector.shape_cast %399 : vector<1x8x384xf32> to vector<8x384xf32>
    %c1_i32_166 = arith.constant 1 : i32
    %c0_i32_167 = arith.constant 0 : i32
    %c0_i32_168 = arith.constant 0 : i32
    %c0_i32_169 = arith.constant 0 : i32
    %401 = tpu.memref_slice %arg10[%c1_i32_166, %c0_i32_167, %c0_i32_168, %c0_i32_169] : memref<2x8x8x384xf32, #tpu.memory_space<vmem>> -> memref<1x8x8x384xf32, #tpu.memory_space<vmem>>
    %402 = tpu.memref_squeeze %401 : memref<1x8x8x384xf32, #tpu.memory_space<vmem>> -> memref<8x8x384xf32, #tpu.memory_space<vmem>>
    %c2_170 = arith.constant 2 : index
    %c0_171 = arith.constant 0 : index
    %c0_172 = arith.constant 0 : index
    %403 = vector.load %402[%c2_170, %c0_171, %c0_172] : memref<8x8x384xf32, #tpu.memory_space<vmem>>, vector<1x8x384xf32>
    %404 = vector.shape_cast %403 : vector<1x8x384xf32> to vector<8x384xf32>
    %405 = arith.truncf %364 : vector<8x128xf32> to vector<8x128xbf16>
    %cst_173 = arith.constant dense<0.000000e+00> : vector<8x384xf32>
    %406 = tpu.matmul %405, %18, %cst_173 {dimension_numbers = #tpu.dot_dimension_numbers<[1], [0], [0], [1], [0, 0, 1, 1], [], []>} : vector<8x128xbf16>, vector<128x384xbf16>, vector<8x384xf32> -> vector<8x384xf32>
    %407 = vector.broadcast %22 : vector<1x384xf32> to vector<8x384xf32>
    %408 = arith.addf %406, %407 : vector<8x384xf32>
    %409 = arith.truncf %390 : vector<8x128xf32> to vector<8x128xbf16>
    %cst_174 = arith.constant dense<0.000000e+00> : vector<8x384xf32>
    %410 = tpu.matmul %409, %20, %cst_174 {dimension_numbers = #tpu.dot_dimension_numbers<[1], [0], [0], [1], [0, 0, 1, 1], [], []>} : vector<8x128xbf16>, vector<128x384xbf16>, vector<8x384xf32> -> vector<8x384xf32>
    %411 = vector.broadcast %24 : vector<1x384xf32> to vector<8x384xf32>
    %412 = arith.addf %410, %411 : vector<8x384xf32>
    %413 = vector.extract_strided_slice %400 {offsets = [0, 0], sizes = [8, 128], strides = [1, 1]} : vector<8x384xf32> to vector<8x128xf32>
    %414 = vector.extract_strided_slice %408 {offsets = [0, 0], sizes = [8, 128], strides = [1, 1]} : vector<8x384xf32> to vector<8x128xf32>
    %415 = arith.addf %413, %414 : vector<8x128xf32>
    %416 = arith.negf %415 : vector<8x128xf32>
    %417 = math.exp %416 : vector<8x128xf32>
    %cst_175 = arith.constant 1.000000e+00 : f32
    %418 = vector.broadcast %cst_175 : f32 to vector<8x128xf32>
    %419 = arith.addf %418, %417 : vector<8x128xf32>
    %420 = arith.divf %418, %419 : vector<8x128xf32>
    %421 = vector.extract_strided_slice %400 {offsets = [0, 128], sizes = [8, 128], strides = [1, 1]} : vector<8x384xf32> to vector<8x128xf32>
    %422 = vector.extract_strided_slice %408 {offsets = [0, 128], sizes = [8, 128], strides = [1, 1]} : vector<8x384xf32> to vector<8x128xf32>
    %423 = arith.addf %421, %422 : vector<8x128xf32>
    %424 = arith.negf %423 : vector<8x128xf32>
    %425 = math.exp %424 : vector<8x128xf32>
    %cst_176 = arith.constant 1.000000e+00 : f32
    %426 = vector.broadcast %cst_176 : f32 to vector<8x128xf32>
    %427 = arith.addf %426, %425 : vector<8x128xf32>
    %428 = arith.divf %426, %427 : vector<8x128xf32>
    %429 = vector.extract_strided_slice %400 {offsets = [0, 256], sizes = [8, 128], strides = [1, 1]} : vector<8x384xf32> to vector<8x128xf32>
    %430 = vector.extract_strided_slice %408 {offsets = [0, 256], sizes = [8, 128], strides = [1, 1]} : vector<8x384xf32> to vector<8x128xf32>
    %431 = arith.mulf %420, %430 : vector<8x128xf32>
    %432 = arith.addf %429, %431 : vector<8x128xf32>
    %433 = math.tanh %432 : vector<8x128xf32>
    %cst_177 = arith.constant 1.000000e+00 : f32
    %434 = vector.broadcast %cst_177 : f32 to vector<8x128xf32>
    %435 = arith.subf %434, %428 : vector<8x128xf32>
    %436 = arith.mulf %435, %433 : vector<8x128xf32>
    %437 = arith.mulf %428, %364 : vector<8x128xf32>
    %438 = arith.addf %436, %437 : vector<8x128xf32>
    %439 = vector.extract_strided_slice %404 {offsets = [0, 0], sizes = [8, 128], strides = [1, 1]} : vector<8x384xf32> to vector<8x128xf32>
    %440 = vector.extract_strided_slice %412 {offsets = [0, 0], sizes = [8, 128], strides = [1, 1]} : vector<8x384xf32> to vector<8x128xf32>
    %441 = arith.addf %439, %440 : vector<8x128xf32>
    %442 = arith.negf %441 : vector<8x128xf32>
    %443 = math.exp %442 : vector<8x128xf32>
    %cst_178 = arith.constant 1.000000e+00 : f32
    %444 = vector.broadcast %cst_178 : f32 to vector<8x128xf32>
    %445 = arith.addf %444, %443 : vector<8x128xf32>
    %446 = arith.divf %444, %445 : vector<8x128xf32>
    %447 = vector.extract_strided_slice %404 {offsets = [0, 128], sizes = [8, 128], strides = [1, 1]} : vector<8x384xf32> to vector<8x128xf32>
    %448 = vector.extract_strided_slice %412 {offsets = [0, 128], sizes = [8, 128], strides = [1, 1]} : vector<8x384xf32> to vector<8x128xf32>
    %449 = arith.addf %447, %448 : vector<8x128xf32>
    %450 = arith.negf %449 : vector<8x128xf32>
    %451 = math.exp %450 : vector<8x128xf32>
    %cst_179 = arith.constant 1.000000e+00 : f32
    %452 = vector.broadcast %cst_179 : f32 to vector<8x128xf32>
    %453 = arith.addf %452, %451 : vector<8x128xf32>
    %454 = arith.divf %452, %453 : vector<8x128xf32>
    %455 = vector.extract_strided_slice %404 {offsets = [0, 256], sizes = [8, 128], strides = [1, 1]} : vector<8x384xf32> to vector<8x128xf32>
    %456 = vector.extract_strided_slice %412 {offsets = [0, 256], sizes = [8, 128], strides = [1, 1]} : vector<8x384xf32> to vector<8x128xf32>
    %457 = arith.mulf %446, %456 : vector<8x128xf32>
    %458 = arith.addf %455, %457 : vector<8x128xf32>
    %459 = math.tanh %458 : vector<8x128xf32>
    %cst_180 = arith.constant 1.000000e+00 : f32
    %460 = vector.broadcast %cst_180 : f32 to vector<8x128xf32>
    %461 = arith.subf %460, %454 : vector<8x128xf32>
    %462 = arith.mulf %461, %459 : vector<8x128xf32>
    %463 = arith.mulf %454, %390 : vector<8x128xf32>
    %464 = arith.addf %462, %463 : vector<8x128xf32>
    %c5_181 = arith.constant 5 : index
    %c0_182 = arith.constant 0 : index
    %c0_183 = arith.constant 0 : index
    %465 = vector.load %arg11[%c5_181, %c0_182, %c0_183] : memref<8x8x128xf32, #tpu.memory_space<vmem>>, vector<1x8x128xf32>
    %466 = vector.shape_cast %465 : vector<1x8x128xf32> to vector<8x128xf32>
    %467 = vector.shape_cast %438 : vector<8x128xf32> to vector<1x8x128xf32>
    tpu.vector_store %arg11[%c5_181, %c0_182, %c0_183], %467 {strides = array<i32>} : memref<8x8x128xf32, #tpu.memory_space<vmem>>, vector<1x8x128xf32>,
    %c2_184 = arith.constant 2 : index
    %c0_185 = arith.constant 0 : index
    %c0_186 = arith.constant 0 : index
    %468 = vector.load %arg12[%c2_184, %c0_185, %c0_186] : memref<8x8x128xf32, #tpu.memory_space<vmem>>, vector<1x8x128xf32>
    %469 = vector.shape_cast %468 : vector<1x8x128xf32> to vector<8x128xf32>
    %470 = vector.shape_cast %464 : vector<8x128xf32> to vector<1x8x128xf32>
    tpu.vector_store %arg12[%c2_184, %c0_185, %c0_186], %470 {strides = array<i32>} : memref<8x8x128xf32, #tpu.memory_space<vmem>>, vector<1x8x128xf32>,
    %c0_i32_187 = arith.constant 0 : i32
    %c0_i32_188 = arith.constant 0 : i32
    %c0_i32_189 = arith.constant 0 : i32
    %c0_i32_190 = arith.constant 0 : i32
    %471 = tpu.memref_slice %arg10[%c0_i32_187, %c0_i32_188, %c0_i32_189, %c0_i32_190] : memref<2x8x8x384xf32, #tpu.memory_space<vmem>> -> memref<1x8x8x384xf32, #tpu.memory_space<vmem>>
    %472 = tpu.memref_squeeze %471 : memref<1x8x8x384xf32, #tpu.memory_space<vmem>> -> memref<8x8x384xf32, #tpu.memory_space<vmem>>
    %c6_191 = arith.constant 6 : index
    %c0_192 = arith.constant 0 : index
    %c0_193 = arith.constant 0 : index
    %473 = vector.load %472[%c6_191, %c0_192, %c0_193] : memref<8x8x384xf32, #tpu.memory_space<vmem>>, vector<1x8x384xf32>
    %474 = vector.shape_cast %473 : vector<1x8x384xf32> to vector<8x384xf32>
    %c1_i32_194 = arith.constant 1 : i32
    %c0_i32_195 = arith.constant 0 : i32
    %c0_i32_196 = arith.constant 0 : i32
    %c0_i32_197 = arith.constant 0 : i32
    %475 = tpu.memref_slice %arg10[%c1_i32_194, %c0_i32_195, %c0_i32_196, %c0_i32_197] : memref<2x8x8x384xf32, #tpu.memory_space<vmem>> -> memref<1x8x8x384xf32, #tpu.memory_space<vmem>>
    %476 = tpu.memref_squeeze %475 : memref<1x8x8x384xf32, #tpu.memory_space<vmem>> -> memref<8x8x384xf32, #tpu.memory_space<vmem>>
    %c1_198 = arith.constant 1 : index
    %c0_199 = arith.constant 0 : index
    %c0_200 = arith.constant 0 : index
    %477 = vector.load %476[%c1_198, %c0_199, %c0_200] : memref<8x8x384xf32, #tpu.memory_space<vmem>>, vector<1x8x384xf32>
    %478 = vector.shape_cast %477 : vector<1x8x384xf32> to vector<8x384xf32>
    %479 = arith.truncf %438 : vector<8x128xf32> to vector<8x128xbf16>
    %cst_201 = arith.constant dense<0.000000e+00> : vector<8x384xf32>
    %480 = tpu.matmul %479, %18, %cst_201 {dimension_numbers = #tpu.dot_dimension_numbers<[1], [0], [0], [1], [0, 0, 1, 1], [], []>} : vector<8x128xbf16>, vector<128x384xbf16>, vector<8x384xf32> -> vector<8x384xf32>
    %481 = vector.broadcast %22 : vector<1x384xf32> to vector<8x384xf32>
    %482 = arith.addf %480, %481 : vector<8x384xf32>
    %483 = arith.truncf %464 : vector<8x128xf32> to vector<8x128xbf16>
    %cst_202 = arith.constant dense<0.000000e+00> : vector<8x384xf32>
    %484 = tpu.matmul %483, %20, %cst_202 {dimension_numbers = #tpu.dot_dimension_numbers<[1], [0], [0], [1], [0, 0, 1, 1], [], []>} : vector<8x128xbf16>, vector<128x384xbf16>, vector<8x384xf32> -> vector<8x384xf32>
    %485 = vector.broadcast %24 : vector<1x384xf32> to vector<8x384xf32>
    %486 = arith.addf %484, %485 : vector<8x384xf32>
    %487 = vector.extract_strided_slice %474 {offsets = [0, 0], sizes = [8, 128], strides = [1, 1]} : vector<8x384xf32> to vector<8x128xf32>
    %488 = vector.extract_strided_slice %482 {offsets = [0, 0], sizes = [8, 128], strides = [1, 1]} : vector<8x384xf32> to vector<8x128xf32>
    %489 = arith.addf %487, %488 : vector<8x128xf32>
    %490 = arith.negf %489 : vector<8x128xf32>
    %491 = math.exp %490 : vector<8x128xf32>
    %cst_203 = arith.constant 1.000000e+00 : f32
    %492 = vector.broadcast %cst_203 : f32 to vector<8x128xf32>
    %493 = arith.addf %492, %491 : vector<8x128xf32>
    %494 = arith.divf %492, %493 : vector<8x128xf32>
    %495 = vector.extract_strided_slice %474 {offsets = [0, 128], sizes = [8, 128], strides = [1, 1]} : vector<8x384xf32> to vector<8x128xf32>
    %496 = vector.extract_strided_slice %482 {offsets = [0, 128], sizes = [8, 128], strides = [1, 1]} : vector<8x384xf32> to vector<8x128xf32>
    %497 = arith.addf %495, %496 : vector<8x128xf32>
    %498 = arith.negf %497 : vector<8x128xf32>
    %499 = math.exp %498 : vector<8x128xf32>
    %cst_204 = arith.constant 1.000000e+00 : f32
    %500 = vector.broadcast %cst_204 : f32 to vector<8x128xf32>
    %501 = arith.addf %500, %499 : vector<8x128xf32>
    %502 = arith.divf %500, %501 : vector<8x128xf32>
    %503 = vector.extract_strided_slice %474 {offsets = [0, 256], sizes = [8, 128], strides = [1, 1]} : vector<8x384xf32> to vector<8x128xf32>
    %504 = vector.extract_strided_slice %482 {offsets = [0, 256], sizes = [8, 128], strides = [1, 1]} : vector<8x384xf32> to vector<8x128xf32>
    %505 = arith.mulf %494, %504 : vector<8x128xf32>
    %506 = arith.addf %503, %505 : vector<8x128xf32>
    %507 = math.tanh %506 : vector<8x128xf32>
    %cst_205 = arith.constant 1.000000e+00 : f32
    %508 = vector.broadcast %cst_205 : f32 to vector<8x128xf32>
    %509 = arith.subf %508, %502 : vector<8x128xf32>
    %510 = arith.mulf %509, %507 : vector<8x128xf32>
    %511 = arith.mulf %502, %438 : vector<8x128xf32>
    %512 = arith.addf %510, %511 : vector<8x128xf32>
    %513 = vector.extract_strided_slice %478 {offsets = [0, 0], sizes = [8, 128], strides = [1, 1]} : vector<8x384xf32> to vector<8x128xf32>
    %514 = vector.extract_strided_slice %486 {offsets = [0, 0], sizes = [8, 128], strides = [1, 1]} : vector<8x384xf32> to vector<8x128xf32>
    %515 = arith.addf %513, %514 : vector<8x128xf32>
    %516 = arith.negf %515 : vector<8x128xf32>
    %517 = math.exp %516 : vector<8x128xf32>
    %cst_206 = arith.constant 1.000000e+00 : f32
    %518 = vector.broadcast %cst_206 : f32 to vector<8x128xf32>
    %519 = arith.addf %518, %517 : vector<8x128xf32>
    %520 = arith.divf %518, %519 : vector<8x128xf32>
    %521 = vector.extract_strided_slice %478 {offsets = [0, 128], sizes = [8, 128], strides = [1, 1]} : vector<8x384xf32> to vector<8x128xf32>
    %522 = vector.extract_strided_slice %486 {offsets = [0, 128], sizes = [8, 128], strides = [1, 1]} : vector<8x384xf32> to vector<8x128xf32>
    %523 = arith.addf %521, %522 : vector<8x128xf32>
    %524 = arith.negf %523 : vector<8x128xf32>
    %525 = math.exp %524 : vector<8x128xf32>
    %cst_207 = arith.constant 1.000000e+00 : f32
    %526 = vector.broadcast %cst_207 : f32 to vector<8x128xf32>
    %527 = arith.addf %526, %525 : vector<8x128xf32>
    %528 = arith.divf %526, %527 : vector<8x128xf32>
    %529 = vector.extract_strided_slice %478 {offsets = [0, 256], sizes = [8, 128], strides = [1, 1]} : vector<8x384xf32> to vector<8x128xf32>
    %530 = vector.extract_strided_slice %486 {offsets = [0, 256], sizes = [8, 128], strides = [1, 1]} : vector<8x384xf32> to vector<8x128xf32>
    %531 = arith.mulf %520, %530 : vector<8x128xf32>
    %532 = arith.addf %529, %531 : vector<8x128xf32>
    %533 = math.tanh %532 : vector<8x128xf32>
    %cst_208 = arith.constant 1.000000e+00 : f32
    %534 = vector.broadcast %cst_208 : f32 to vector<8x128xf32>
    %535 = arith.subf %534, %528 : vector<8x128xf32>
    %536 = arith.mulf %535, %533 : vector<8x128xf32>
    %537 = arith.mulf %528, %464 : vector<8x128xf32>
    %538 = arith.addf %536, %537 : vector<8x128xf32>
    %c6_209 = arith.constant 6 : index
    %c0_210 = arith.constant 0 : index
    %c0_211 = arith.constant 0 : index
    %539 = vector.load %arg11[%c6_209, %c0_210, %c0_211] : memref<8x8x128xf32, #tpu.memory_space<vmem>>, vector<1x8x128xf32>
    %540 = vector.shape_cast %539 : vector<1x8x128xf32> to vector<8x128xf32>
    %541 = vector.shape_cast %512 : vector<8x128xf32> to vector<1x8x128xf32>
    tpu.vector_store %arg11[%c6_209, %c0_210, %c0_211], %541 {strides = array<i32>} : memref<8x8x128xf32, #tpu.memory_space<vmem>>, vector<1x8x128xf32>,
    %c1_212 = arith.constant 1 : index
    %c0_213 = arith.constant 0 : index
    %c0_214 = arith.constant 0 : index
    %542 = vector.load %arg12[%c1_212, %c0_213, %c0_214] : memref<8x8x128xf32, #tpu.memory_space<vmem>>, vector<1x8x128xf32>
    %543 = vector.shape_cast %542 : vector<1x8x128xf32> to vector<8x128xf32>
    %544 = vector.shape_cast %538 : vector<8x128xf32> to vector<1x8x128xf32>
    tpu.vector_store %arg12[%c1_212, %c0_213, %c0_214], %544 {strides = array<i32>} : memref<8x8x128xf32, #tpu.memory_space<vmem>>, vector<1x8x128xf32>,
    %c0_i32_215 = arith.constant 0 : i32
    %c0_i32_216 = arith.constant 0 : i32
    %c0_i32_217 = arith.constant 0 : i32
    %c0_i32_218 = arith.constant 0 : i32
    %545 = tpu.memref_slice %arg10[%c0_i32_215, %c0_i32_216, %c0_i32_217, %c0_i32_218] : memref<2x8x8x384xf32, #tpu.memory_space<vmem>> -> memref<1x8x8x384xf32, #tpu.memory_space<vmem>>
    %546 = tpu.memref_squeeze %545 : memref<1x8x8x384xf32, #tpu.memory_space<vmem>> -> memref<8x8x384xf32, #tpu.memory_space<vmem>>
    %c7_219 = arith.constant 7 : index
    %c0_220 = arith.constant 0 : index
    %c0_221 = arith.constant 0 : index
    %547 = vector.load %546[%c7_219, %c0_220, %c0_221] : memref<8x8x384xf32, #tpu.memory_space<vmem>>, vector<1x8x384xf32>
    %548 = vector.shape_cast %547 : vector<1x8x384xf32> to vector<8x384xf32>
    %c1_i32_222 = arith.constant 1 : i32
    %c0_i32_223 = arith.constant 0 : i32
    %c0_i32_224 = arith.constant 0 : i32
    %c0_i32_225 = arith.constant 0 : i32
    %549 = tpu.memref_slice %arg10[%c1_i32_222, %c0_i32_223, %c0_i32_224, %c0_i32_225] : memref<2x8x8x384xf32, #tpu.memory_space<vmem>> -> memref<1x8x8x384xf32, #tpu.memory_space<vmem>>
    %550 = tpu.memref_squeeze %549 : memref<1x8x8x384xf32, #tpu.memory_space<vmem>> -> memref<8x8x384xf32, #tpu.memory_space<vmem>>
    %c0_226 = arith.constant 0 : index
    %c0_227 = arith.constant 0 : index
    %c0_228 = arith.constant 0 : index
    %551 = vector.load %550[%c0_226, %c0_227, %c0_228] : memref<8x8x384xf32, #tpu.memory_space<vmem>>, vector<1x8x384xf32>
    %552 = vector.shape_cast %551 : vector<1x8x384xf32> to vector<8x384xf32>
    %553 = arith.truncf %512 : vector<8x128xf32> to vector<8x128xbf16>
    %cst_229 = arith.constant dense<0.000000e+00> : vector<8x384xf32>
    %554 = tpu.matmul %553, %18, %cst_229 {dimension_numbers = #tpu.dot_dimension_numbers<[1], [0], [0], [1], [0, 0, 1, 1], [], []>} : vector<8x128xbf16>, vector<128x384xbf16>, vector<8x384xf32> -> vector<8x384xf32>
    %555 = vector.broadcast %22 : vector<1x384xf32> to vector<8x384xf32>
    %556 = arith.addf %554, %555 : vector<8x384xf32>
    %557 = arith.truncf %538 : vector<8x128xf32> to vector<8x128xbf16>
    %cst_230 = arith.constant dense<0.000000e+00> : vector<8x384xf32>
    %558 = tpu.matmul %557, %20, %cst_230 {dimension_numbers = #tpu.dot_dimension_numbers<[1], [0], [0], [1], [0, 0, 1, 1], [], []>} : vector<8x128xbf16>, vector<128x384xbf16>, vector<8x384xf32> -> vector<8x384xf32>
    %559 = vector.broadcast %24 : vector<1x384xf32> to vector<8x384xf32>
    %560 = arith.addf %558, %559 : vector<8x384xf32>
    %561 = vector.extract_strided_slice %548 {offsets = [0, 0], sizes = [8, 128], strides = [1, 1]} : vector<8x384xf32> to vector<8x128xf32>
    %562 = vector.extract_strided_slice %556 {offsets = [0, 0], sizes = [8, 128], strides = [1, 1]} : vector<8x384xf32> to vector<8x128xf32>
    %563 = arith.addf %561, %562 : vector<8x128xf32>
    %564 = arith.negf %563 : vector<8x128xf32>
    %565 = math.exp %564 : vector<8x128xf32>
    %cst_231 = arith.constant 1.000000e+00 : f32
    %566 = vector.broadcast %cst_231 : f32 to vector<8x128xf32>
    %567 = arith.addf %566, %565 : vector<8x128xf32>
    %568 = arith.divf %566, %567 : vector<8x128xf32>
    %569 = vector.extract_strided_slice %548 {offsets = [0, 128], sizes = [8, 128], strides = [1, 1]} : vector<8x384xf32> to vector<8x128xf32>
    %570 = vector.extract_strided_slice %556 {offsets = [0, 128], sizes = [8, 128], strides = [1, 1]} : vector<8x384xf32> to vector<8x128xf32>
    %571 = arith.addf %569, %570 : vector<8x128xf32>
    %572 = arith.negf %571 : vector<8x128xf32>
    %573 = math.exp %572 : vector<8x128xf32>
    %cst_232 = arith.constant 1.000000e+00 : f32
    %574 = vector.broadcast %cst_232 : f32 to vector<8x128xf32>
    %575 = arith.addf %574, %573 : vector<8x128xf32>
    %576 = arith.divf %574, %575 : vector<8x128xf32>
    %577 = vector.extract_strided_slice %548 {offsets = [0, 256], sizes = [8, 128], strides = [1, 1]} : vector<8x384xf32> to vector<8x128xf32>
    %578 = vector.extract_strided_slice %556 {offsets = [0, 256], sizes = [8, 128], strides = [1, 1]} : vector<8x384xf32> to vector<8x128xf32>
    %579 = arith.mulf %568, %578 : vector<8x128xf32>
    %580 = arith.addf %577, %579 : vector<8x128xf32>
    %581 = math.tanh %580 : vector<8x128xf32>
    %cst_233 = arith.constant 1.000000e+00 : f32
    %582 = vector.broadcast %cst_233 : f32 to vector<8x128xf32>
    %583 = arith.subf %582, %576 : vector<8x128xf32>
    %584 = arith.mulf %583, %581 : vector<8x128xf32>
    %585 = arith.mulf %576, %512 : vector<8x128xf32>
    %586 = arith.addf %584, %585 : vector<8x128xf32>
    %587 = vector.extract_strided_slice %552 {offsets = [0, 0], sizes = [8, 128], strides = [1, 1]} : vector<8x384xf32> to vector<8x128xf32>
    %588 = vector.extract_strided_slice %560 {offsets = [0, 0], sizes = [8, 128], strides = [1, 1]} : vector<8x384xf32> to vector<8x128xf32>
    %589 = arith.addf %587, %588 : vector<8x128xf32>
    %590 = arith.negf %589 : vector<8x128xf32>
    %591 = math.exp %590 : vector<8x128xf32>
    %cst_234 = arith.constant 1.000000e+00 : f32
    %592 = vector.broadcast %cst_234 : f32 to vector<8x128xf32>
    %593 = arith.addf %592, %591 : vector<8x128xf32>
    %594 = arith.divf %592, %593 : vector<8x128xf32>
    %595 = vector.extract_strided_slice %552 {offsets = [0, 128], sizes = [8, 128], strides = [1, 1]} : vector<8x384xf32> to vector<8x128xf32>
    %596 = vector.extract_strided_slice %560 {offsets = [0, 128], sizes = [8, 128], strides = [1, 1]} : vector<8x384xf32> to vector<8x128xf32>
    %597 = arith.addf %595, %596 : vector<8x128xf32>
    %598 = arith.negf %597 : vector<8x128xf32>
    %599 = math.exp %598 : vector<8x128xf32>
    %cst_235 = arith.constant 1.000000e+00 : f32
    %600 = vector.broadcast %cst_235 : f32 to vector<8x128xf32>
    %601 = arith.addf %600, %599 : vector<8x128xf32>
    %602 = arith.divf %600, %601 : vector<8x128xf32>
    %603 = vector.extract_strided_slice %552 {offsets = [0, 256], sizes = [8, 128], strides = [1, 1]} : vector<8x384xf32> to vector<8x128xf32>
    %604 = vector.extract_strided_slice %560 {offsets = [0, 256], sizes = [8, 128], strides = [1, 1]} : vector<8x384xf32> to vector<8x128xf32>
    %605 = arith.mulf %594, %604 : vector<8x128xf32>
    %606 = arith.addf %603, %605 : vector<8x128xf32>
    %607 = math.tanh %606 : vector<8x128xf32>
    %cst_236 = arith.constant 1.000000e+00 : f32
    %608 = vector.broadcast %cst_236 : f32 to vector<8x128xf32>
    %609 = arith.subf %608, %602 : vector<8x128xf32>
    %610 = arith.mulf %609, %607 : vector<8x128xf32>
    %611 = arith.mulf %602, %538 : vector<8x128xf32>
    %612 = arith.addf %610, %611 : vector<8x128xf32>
    %c7_237 = arith.constant 7 : index
    %c0_238 = arith.constant 0 : index
    %c0_239 = arith.constant 0 : index
    %613 = vector.load %arg11[%c7_237, %c0_238, %c0_239] : memref<8x8x128xf32, #tpu.memory_space<vmem>>, vector<1x8x128xf32>
    %614 = vector.shape_cast %613 : vector<1x8x128xf32> to vector<8x128xf32>
    %615 = vector.shape_cast %586 : vector<8x128xf32> to vector<1x8x128xf32>
    tpu.vector_store %arg11[%c7_237, %c0_238, %c0_239], %615 {strides = array<i32>} : memref<8x8x128xf32, #tpu.memory_space<vmem>>, vector<1x8x128xf32>,
    %c0_240 = arith.constant 0 : index
    %c0_241 = arith.constant 0 : index
    %c0_242 = arith.constant 0 : index
    %616 = vector.load %arg12[%c0_240, %c0_241, %c0_242] : memref<8x8x128xf32, #tpu.memory_space<vmem>>, vector<1x8x128xf32>
    %617 = vector.shape_cast %616 : vector<1x8x128xf32> to vector<8x128xf32>
    %618 = vector.shape_cast %612 : vector<8x128xf32> to vector<1x8x128xf32>
    tpu.vector_store %arg12[%c0_240, %c0_241, %c0_242], %618 {strides = array<i32>} : memref<8x8x128xf32, #tpu.memory_space<vmem>>, vector<1x8x128xf32>,
    %c0_243 = arith.constant 0 : index
    %c0_244 = arith.constant 0 : index
    %c0_245 = arith.constant 0 : index
    %619 = vector.load %arg11[%c0_243, %c0_244, %c0_245] : memref<8x8x128xf32, #tpu.memory_space<vmem>>, vector<8x8x128xf32>
    %c0_246 = arith.constant 0 : index
    %c0_247 = arith.constant 0 : index
    %c0_248 = arith.constant 0 : index
    %620 = vector.load %arg12[%c0_246, %c0_247, %c0_248] : memref<8x8x128xf32, #tpu.memory_space<vmem>>, vector<8x8x128xf32>
    %c0_249 = arith.constant 0 : index
    %c0_250 = arith.constant 0 : index
    %621 = vector.load %arg6[%c0_249, %c0_250] : memref<256x128xbf16, #tpu.memory_space<vmem>>, vector<256x128xbf16>
    %622 = vector.shape_cast %619 : vector<8x8x128xf32> to vector<64x128xf32>
    %623 = arith.truncf %622 : vector<64x128xf32> to vector<64x128xbf16>
    %624 = vector.extract_strided_slice %621 {offsets = [0, 0], sizes = [128, 128], strides = [1, 1]} : vector<256x128xbf16> to vector<128x128xbf16>
    %cst_251 = arith.constant dense<0.000000e+00> : vector<64x128xf32>
    %625 = tpu.matmul %623, %624, %cst_251 {dimension_numbers = #tpu.dot_dimension_numbers<[1], [0], [0], [1], [0, 0, 1, 1], [], []>} : vector<64x128xbf16>, vector<128x128xbf16>, vector<64x128xf32> -> vector<64x128xf32>
    %626 = vector.shape_cast %620 : vector<8x8x128xf32> to vector<64x128xf32>
    %627 = arith.truncf %626 : vector<64x128xf32> to vector<64x128xbf16>
    %628 = vector.extract_strided_slice %621 {offsets = [128, 0], sizes = [128, 128], strides = [1, 1]} : vector<256x128xbf16> to vector<128x128xbf16>
    %cst_252 = arith.constant dense<0.000000e+00> : vector<64x128xf32>
    %629 = tpu.matmul %627, %628, %cst_252 {dimension_numbers = #tpu.dot_dimension_numbers<[1], [0], [0], [1], [0, 0, 1, 1], [], []>} : vector<64x128xbf16>, vector<128x128xbf16>, vector<64x128xf32> -> vector<64x128xf32>
    %630 = arith.addf %625, %629 : vector<64x128xf32>
    %c0_253 = arith.constant 0 : index
    %c0_254 = arith.constant 0 : index
    %631 = vector.load %arg7[%c0_253, %c0_254] : memref<1x128xf32, #tpu.memory_space<vmem>>, vector<1x128xf32>
    %632 = vector.broadcast %631 : vector<1x128xf32> to vector<64x128xf32>
    %633 = arith.addf %630, %632 : vector<64x128xf32>
    %634 = math.tanh %633 : vector<64x128xf32>
    %635 = vector.shape_cast %634 : vector<64x128xf32> to vector<8x8x128xf32>
    %c0_255 = arith.constant 0 : index
    %c0_256 = arith.constant 0 : index
    %636 = vector.load %arg8[%c0_255, %c0_256] : memref<1x128xf32, #tpu.memory_space<vmem>>, vector<1x128xf32>
    %637 = vector.shape_cast %636 : vector<1x128xf32> to vector<1x1x128xf32>
    %638 = vector.broadcast %637 : vector<1x1x128xf32> to vector<8x8x128xf32>
    %639 = arith.mulf %635, %638 : vector<8x8x128xf32>
    %cst_257 = arith.constant dense<0.000000e+00> : vector<8x8xf32>
    %640 = vector.multi_reduction <add>, %639, %cst_257 [2] : vector<8x8x128xf32> to vector<8x8xf32>
    %641 = vector.shape_cast %640 : vector<8x8xf32> to vector<8x8x1xf32>
    %cst_258 = arith.constant dense<0xFF800000> : vector<8x1xf32>
    %642 = vector.multi_reduction <maximumf>, %641, %cst_258 [0] : vector<8x8x1xf32> to vector<8x1xf32>
    %643 = vector.shape_cast %642 : vector<8x1xf32> to vector<1x8x1xf32>
    %644 = vector.broadcast %643 : vector<1x8x1xf32> to vector<8x8x1xf32>
    %645 = arith.subf %641, %644 : vector<8x8x1xf32>
    %646 = math.exp %645 : vector<8x8x1xf32>
    %cst_259 = arith.constant dense<0.000000e+00> : vector<8x1xf32>
    %647 = vector.multi_reduction <add>, %646, %cst_259 [0] : vector<8x8x1xf32> to vector<8x1xf32>
    %648 = vector.shape_cast %647 : vector<8x1xf32> to vector<1x8x1xf32>
    %649 = tpu.reciprocal %648 {approx = true} : vector<1x8x1xf32> -> vector<1x8x1xf32>
    %650 = vector.broadcast %649 : vector<1x8x1xf32> to vector<8x8x1xf32>
    %651 = arith.mulf %646, %650 : vector<8x8x1xf32>
    %652 = vector.broadcast %651 : vector<8x8x1xf32> to vector<8x8x128xf32>
    %653 = arith.mulf %652, %619 : vector<8x8x128xf32>
    %cst_260 = arith.constant dense<0.000000e+00> : vector<8x128xf32>
    %654 = vector.multi_reduction <add>, %653, %cst_260 [0] : vector<8x8x128xf32> to vector<8x128xf32>
    %655 = vector.broadcast %651 : vector<8x8x1xf32> to vector<8x8x128xf32>
    %656 = arith.mulf %655, %620 : vector<8x8x128xf32>
    %cst_261 = arith.constant dense<0.000000e+00> : vector<8x128xf32>
    %657 = vector.multi_reduction <add>, %656, %cst_261 [0] : vector<8x8x128xf32> to vector<8x128xf32>
    %658 = arith.truncf %654 : vector<8x128xf32> to vector<8x128xbf16>
    %c0_262 = arith.constant 0 : index
    %c0_263 = arith.constant 0 : index
    %659 = vector.load %arg9[%c0_262, %c0_263] : memref<8x256xbf16, #tpu.memory_space<vmem>>, vector<8x128xbf16>
    tpu.vector_store %arg9[%c0_262, %c0_263], %658 {strides = array<i32>} : memref<8x256xbf16, #tpu.memory_space<vmem>>, vector<8x128xbf16>,
    %660 = arith.truncf %657 : vector<8x128xf32> to vector<8x128xbf16>
    %c0_264 = arith.constant 0 : index
    %c128 = arith.constant 128 : index
    %661 = vector.load %arg9[%c0_264, %c128] : memref<8x256xbf16, #tpu.memory_space<vmem>>, vector<8x128xbf16>
    tpu.vector_store %arg9[%c0_264, %c128], %660 {strides = array<i32>} : memref<8x256xbf16, #tpu.memory_space<vmem>>, vector<8x128xbf16>,
    return
  }
  func.func @transform_0(%arg0: i32) -> (i32, i32, i32) {
    %c0_i32 = arith.constant 0 : i32
    %c0_i32_0 = arith.constant 0 : i32
    %c0_i32_1 = arith.constant 0 : i32
    return %c0_i32, %arg0, %c0_i32_0 : i32, i32, i32
  }
  func.func @transform_1(%arg0: i32) -> (i32, i32) {
    %c0_i32 = arith.constant 0 : i32
    %c0_i32_0 = arith.constant 0 : i32
    %c0_i32_1 = arith.constant 0 : i32
    return %c0_i32, %c0_i32_0 : i32, i32
  }
  func.func @transform_2(%arg0: i32) -> (i32, i32, i32) {
    %c0_i32 = arith.constant 0 : i32
    %c0_i32_0 = arith.constant 0 : i32
    %c0_i32_1 = arith.constant 0 : i32
    %c0_i32_2 = arith.constant 0 : i32
    return %c0_i32, %c0_i32_0, %c0_i32_1 : i32, i32, i32
  }
  func.func @transform_3(%arg0: i32) -> (i32, i32) {
    %c0_i32 = arith.constant 0 : i32
    %c0_i32_0 = arith.constant 0 : i32
    %c0_i32_1 = arith.constant 0 : i32
    return %c0_i32, %c0_i32_0 : i32, i32
  }
  func.func @transform_4(%arg0: i32) -> (i32, i32, i32) {
    %c0_i32 = arith.constant 0 : i32
    %c0_i32_0 = arith.constant 0 : i32
    %c0_i32_1 = arith.constant 0 : i32
    %c0_i32_2 = arith.constant 0 : i32
    return %c0_i32, %c0_i32_0, %c0_i32_1 : i32, i32, i32
  }
  func.func @transform_5(%arg0: i32) -> (i32, i32) {
    %c0_i32 = arith.constant 0 : i32
    %c0_i32_0 = arith.constant 0 : i32
    %c0_i32_1 = arith.constant 0 : i32
    return %c0_i32, %c0_i32_0 : i32, i32
  }
  func.func @transform_6(%arg0: i32) -> (i32, i32) {
    %c0_i32 = arith.constant 0 : i32
    %c0_i32_0 = arith.constant 0 : i32
    %c0_i32_1 = arith.constant 0 : i32
    return %c0_i32, %c0_i32_0 : i32, i32
  }
  func.func @transform_7(%arg0: i32) -> (i32, i32) {
    %c0_i32 = arith.constant 0 : i32
    %c0_i32_0 = arith.constant 0 : i32
    %c0_i32_1 = arith.constant 0 : i32
    return %c0_i32, %c0_i32_0 : i32, i32
  }
  func.func @transform_8(%arg0: i32) -> (i32, i32) {
    %c0_i32 = arith.constant 0 : i32
    %c0_i32_0 = arith.constant 0 : i32
    return %arg0, %c0_i32 : i32, i32
  }
}

module attributes {stable_mosaic.version = 11 : i64} {
  func.func @_bigru_attn_kernel(%arg0: i32, %arg1: memref<4x8x256xbf16, #tpu.memory_space<vmem>>, %arg2: memref<256x768xbf16, #tpu.memory_space<vmem>>, %arg3: memref<2x128x384xbf16, #tpu.memory_space<vmem>>, %arg4: memref<1x768xf32, #tpu.memory_space<vmem>>, %arg5: memref<2x1x384xf32, #tpu.memory_space<vmem>>, %arg6: memref<256x128xbf16, #tpu.memory_space<vmem>>, %arg7: memref<1x128xf32, #tpu.memory_space<vmem>>, %arg8: memref<1x128xf32, #tpu.memory_space<vmem>>, %arg9: memref<256x128xbf16, #tpu.memory_space<vmem>>, %arg10: memref<1x128xf32, #tpu.memory_space<vmem>>, %arg11: memref<8x128xf32, #tpu.memory_space<vmem>>, %arg12: memref<2x4x8x384xf32, #tpu.memory_space<vmem>>, %arg13: memref<4x8x128xf32, #tpu.memory_space<vmem>>, %arg14: memref<4x8x128xf32, #tpu.memory_space<vmem>>) attributes {dimension_semantics = [#tpu.dimension_semantics<parallel>], iteration_bounds = array<i64: 1>, scalar_prefetch = 0 : i64, scratch_operands = 3 : i64, tpu.core_type = #tpu.core_type<tc>, window_params = [{transform_indices = @transform_0, window_bounds = array<i64: 4, 8, 256>}, {pipeline_mode = #tpu.pipeline_mode<synchronous>, transform_indices = @transform_1, window_bounds = array<i64: 256, 768>}, {pipeline_mode = #tpu.pipeline_mode<synchronous>, transform_indices = @transform_2, window_bounds = array<i64: 2, 128, 384>}, {pipeline_mode = #tpu.pipeline_mode<synchronous>, transform_indices = @transform_3, window_bounds = array<i64: 1, 768>}, {pipeline_mode = #tpu.pipeline_mode<synchronous>, transform_indices = @transform_4, window_bounds = array<i64: 2, 1, 384>}, {pipeline_mode = #tpu.pipeline_mode<synchronous>, transform_indices = @transform_5, window_bounds = array<i64: 256, 128>}, {pipeline_mode = #tpu.pipeline_mode<synchronous>, transform_indices = @transform_6, window_bounds = array<i64: 1, 128>}, {pipeline_mode = #tpu.pipeline_mode<synchronous>, transform_indices = @transform_7, window_bounds = array<i64: 1, 128>}, {pipeline_mode = #tpu.pipeline_mode<synchronous>, transform_indices = @transform_8, window_bounds = array<i64: 256, 128>}, {pipeline_mode = #tpu.pipeline_mode<synchronous>, transform_indices = @transform_9, window_bounds = array<i64: 1, 128>}, {transform_indices = @transform_10, window_bounds = array<i64: 8, 128>}]} {
    %c0 = arith.constant 0 : index
    %c0_0 = arith.constant 0 : index
    %c0_1 = arith.constant 0 : index
    %0 = vector.load %arg1[%c0, %c0_0, %c0_1] : memref<4x8x256xbf16, #tpu.memory_space<vmem>>, vector<4x8x256xbf16>
    %1 = vector.shape_cast %0 : vector<4x8x256xbf16> to vector<32x256xbf16>
    %c0_2 = arith.constant 0 : index
    %c0_3 = arith.constant 0 : index
    %2 = vector.load %arg2[%c0_2, %c0_3] : memref<256x768xbf16, #tpu.memory_space<vmem>>, vector<256x768xbf16>
    %cst = arith.constant dense<0.000000e+00> : vector<32x768xf32>
    %3 = tpu.matmul %1, %2, %cst {dimension_numbers = #tpu.dot_dimension_numbers<[1], [0], [0], [1], [0, 0, 1, 1], [], []>} : vector<32x256xbf16>, vector<256x768xbf16>, vector<32x768xf32> -> vector<32x768xf32>
    %c0_4 = arith.constant 0 : index
    %c0_5 = arith.constant 0 : index
    %4 = vector.load %arg4[%c0_4, %c0_5] : memref<1x768xf32, #tpu.memory_space<vmem>>, vector<1x768xf32>
    %5 = vector.broadcast %4 : vector<1x768xf32> to vector<32x768xf32>
    %6 = arith.addf %3, %5 : vector<32x768xf32>
    %7 = vector.extract_strided_slice %6 {offsets = [0, 0], sizes = [32, 384], strides = [1, 1]} : vector<32x768xf32> to vector<32x384xf32>
    %8 = vector.shape_cast %7 : vector<32x384xf32> to vector<4x8x384xf32>
    %c0_6 = arith.constant 0 : index
    %c0_7 = arith.constant 0 : index
    %c0_8 = arith.constant 0 : index
    %c0_9 = arith.constant 0 : index
    %9 = vector.load %arg12[%c0_6, %c0_7, %c0_8, %c0_9] : memref<2x4x8x384xf32, #tpu.memory_space<vmem>>, vector<1x4x8x384xf32>
    %10 = vector.shape_cast %9 : vector<1x4x8x384xf32> to vector<4x8x384xf32>
    %11 = vector.shape_cast %8 : vector<4x8x384xf32> to vector<1x4x8x384xf32>
    tpu.vector_store %arg12[%c0_6, %c0_7, %c0_8, %c0_9], %11 {strides = array<i32>} : memref<2x4x8x384xf32, #tpu.memory_space<vmem>>, vector<1x4x8x384xf32>,
    %12 = vector.extract_strided_slice %6 {offsets = [0, 384], sizes = [32, 384], strides = [1, 1]} : vector<32x768xf32> to vector<32x384xf32>
    %13 = vector.shape_cast %12 : vector<32x384xf32> to vector<4x8x384xf32>
    %c1 = arith.constant 1 : index
    %c0_10 = arith.constant 0 : index
    %c0_11 = arith.constant 0 : index
    %c0_12 = arith.constant 0 : index
    %14 = vector.load %arg12[%c1, %c0_10, %c0_11, %c0_12] : memref<2x4x8x384xf32, #tpu.memory_space<vmem>>, vector<1x4x8x384xf32>
    %15 = vector.shape_cast %14 : vector<1x4x8x384xf32> to vector<4x8x384xf32>
    %16 = vector.shape_cast %13 : vector<4x8x384xf32> to vector<1x4x8x384xf32>
    tpu.vector_store %arg12[%c1, %c0_10, %c0_11, %c0_12], %16 {strides = array<i32>} : memref<2x4x8x384xf32, #tpu.memory_space<vmem>>, vector<1x4x8x384xf32>,
    %c0_13 = arith.constant 0 : index
    %c0_14 = arith.constant 0 : index
    %c0_15 = arith.constant 0 : index
    %17 = vector.load %arg3[%c0_13, %c0_14, %c0_15] : memref<2x128x384xbf16, #tpu.memory_space<vmem>>, vector<1x128x384xbf16>
    %18 = vector.shape_cast %17 : vector<1x128x384xbf16> to vector<128x384xbf16>
    %c1_16 = arith.constant 1 : index
    %c0_17 = arith.constant 0 : index
    %c0_18 = arith.constant 0 : index
    %19 = vector.load %arg3[%c1_16, %c0_17, %c0_18] : memref<2x128x384xbf16, #tpu.memory_space<vmem>>, vector<1x128x384xbf16>
    %20 = vector.shape_cast %19 : vector<1x128x384xbf16> to vector<128x384xbf16>
    %c0_19 = arith.constant 0 : index
    %c0_20 = arith.constant 0 : index
    %c0_21 = arith.constant 0 : index
    %21 = vector.load %arg5[%c0_19, %c0_20, %c0_21] : memref<2x1x384xf32, #tpu.memory_space<vmem>>, vector<1x1x384xf32>
    %22 = vector.shape_cast %21 : vector<1x1x384xf32> to vector<1x384xf32>
    %c1_22 = arith.constant 1 : index
    %c0_23 = arith.constant 0 : index
    %c0_24 = arith.constant 0 : index
    %23 = vector.load %arg5[%c1_22, %c0_23, %c0_24] : memref<2x1x384xf32, #tpu.memory_space<vmem>>, vector<1x1x384xf32>
    %24 = vector.shape_cast %23 : vector<1x1x384xf32> to vector<1x384xf32>
    %cst_25 = arith.constant 0.000000e+00 : f32
    %25 = vector.broadcast %cst_25 : f32 to vector<8x128xf32>
    %cst_26 = arith.constant 0.000000e+00 : f32
    %26 = vector.broadcast %cst_26 : f32 to vector<8x128xf32>
    %c0_i32 = arith.constant 0 : i32
    %c0_i32_27 = arith.constant 0 : i32
    %c0_i32_28 = arith.constant 0 : i32
    %c0_i32_29 = arith.constant 0 : i32
    %27 = tpu.memref_slice %arg12[%c0_i32, %c0_i32_27, %c0_i32_28, %c0_i32_29] : memref<2x4x8x384xf32, #tpu.memory_space<vmem>> -> memref<1x4x8x384xf32, #tpu.memory_space<vmem>>
    %28 = tpu.memref_squeeze %27 : memref<1x4x8x384xf32, #tpu.memory_space<vmem>> -> memref<4x8x384xf32, #tpu.memory_space<vmem>>
    %c0_30 = arith.constant 0 : index
    %c0_31 = arith.constant 0 : index
    %c0_32 = arith.constant 0 : index
    %29 = vector.load %28[%c0_30, %c0_31, %c0_32] : memref<4x8x384xf32, #tpu.memory_space<vmem>>, vector<1x8x384xf32>
    %30 = vector.shape_cast %29 : vector<1x8x384xf32> to vector<8x384xf32>
    %c1_i32 = arith.constant 1 : i32
    %c0_i32_33 = arith.constant 0 : i32
    %c0_i32_34 = arith.constant 0 : i32
    %c0_i32_35 = arith.constant 0 : i32
    %31 = tpu.memref_slice %arg12[%c1_i32, %c0_i32_33, %c0_i32_34, %c0_i32_35] : memref<2x4x8x384xf32, #tpu.memory_space<vmem>> -> memref<1x4x8x384xf32, #tpu.memory_space<vmem>>
    %32 = tpu.memref_squeeze %31 : memref<1x4x8x384xf32, #tpu.memory_space<vmem>> -> memref<4x8x384xf32, #tpu.memory_space<vmem>>
    %c3 = arith.constant 3 : index
    %c0_36 = arith.constant 0 : index
    %c0_37 = arith.constant 0 : index
    %33 = vector.load %32[%c3, %c0_36, %c0_37] : memref<4x8x384xf32, #tpu.memory_space<vmem>>, vector<1x8x384xf32>
    %34 = vector.shape_cast %33 : vector<1x8x384xf32> to vector<8x384xf32>
    %35 = arith.truncf %25 : vector<8x128xf32> to vector<8x128xbf16>
    %cst_38 = arith.constant dense<0.000000e+00> : vector<8x384xf32>
    %36 = tpu.matmul %35, %18, %cst_38 {dimension_numbers = #tpu.dot_dimension_numbers<[1], [0], [0], [1], [0, 0, 1, 1], [], []>} : vector<8x128xbf16>, vector<128x384xbf16>, vector<8x384xf32> -> vector<8x384xf32>
    %37 = vector.broadcast %22 : vector<1x384xf32> to vector<8x384xf32>
    %38 = arith.addf %36, %37 : vector<8x384xf32>
    %39 = arith.truncf %26 : vector<8x128xf32> to vector<8x128xbf16>
    %cst_39 = arith.constant dense<0.000000e+00> : vector<8x384xf32>
    %40 = tpu.matmul %39, %20, %cst_39 {dimension_numbers = #tpu.dot_dimension_numbers<[1], [0], [0], [1], [0, 0, 1, 1], [], []>} : vector<8x128xbf16>, vector<128x384xbf16>, vector<8x384xf32> -> vector<8x384xf32>
    %41 = vector.broadcast %24 : vector<1x384xf32> to vector<8x384xf32>
    %42 = arith.addf %40, %41 : vector<8x384xf32>
    %43 = vector.extract_strided_slice %30 {offsets = [0, 0], sizes = [8, 128], strides = [1, 1]} : vector<8x384xf32> to vector<8x128xf32>
    %44 = vector.extract_strided_slice %38 {offsets = [0, 0], sizes = [8, 128], strides = [1, 1]} : vector<8x384xf32> to vector<8x128xf32>
    %45 = arith.addf %43, %44 : vector<8x128xf32>
    %46 = arith.negf %45 : vector<8x128xf32>
    %47 = math.exp %46 : vector<8x128xf32>
    %cst_40 = arith.constant 1.000000e+00 : f32
    %48 = vector.broadcast %cst_40 : f32 to vector<8x128xf32>
    %49 = arith.addf %48, %47 : vector<8x128xf32>
    %50 = arith.divf %48, %49 : vector<8x128xf32>
    %51 = vector.extract_strided_slice %30 {offsets = [0, 128], sizes = [8, 128], strides = [1, 1]} : vector<8x384xf32> to vector<8x128xf32>
    %52 = vector.extract_strided_slice %38 {offsets = [0, 128], sizes = [8, 128], strides = [1, 1]} : vector<8x384xf32> to vector<8x128xf32>
    %53 = arith.addf %51, %52 : vector<8x128xf32>
    %54 = arith.negf %53 : vector<8x128xf32>
    %55 = math.exp %54 : vector<8x128xf32>
    %cst_41 = arith.constant 1.000000e+00 : f32
    %56 = vector.broadcast %cst_41 : f32 to vector<8x128xf32>
    %57 = arith.addf %56, %55 : vector<8x128xf32>
    %58 = arith.divf %56, %57 : vector<8x128xf32>
    %59 = vector.extract_strided_slice %30 {offsets = [0, 256], sizes = [8, 128], strides = [1, 1]} : vector<8x384xf32> to vector<8x128xf32>
    %60 = vector.extract_strided_slice %38 {offsets = [0, 256], sizes = [8, 128], strides = [1, 1]} : vector<8x384xf32> to vector<8x128xf32>
    %61 = arith.mulf %50, %60 : vector<8x128xf32>
    %62 = arith.addf %59, %61 : vector<8x128xf32>
    %63 = math.tanh %62 : vector<8x128xf32>
    %cst_42 = arith.constant 1.000000e+00 : f32
    %64 = vector.broadcast %cst_42 : f32 to vector<8x128xf32>
    %65 = arith.subf %64, %58 : vector<8x128xf32>
    %66 = arith.mulf %65, %63 : vector<8x128xf32>
    %67 = arith.mulf %58, %25 : vector<8x128xf32>
    %68 = arith.addf %66, %67 : vector<8x128xf32>
    %69 = vector.extract_strided_slice %34 {offsets = [0, 0], sizes = [8, 128], strides = [1, 1]} : vector<8x384xf32> to vector<8x128xf32>
    %70 = vector.extract_strided_slice %42 {offsets = [0, 0], sizes = [8, 128], strides = [1, 1]} : vector<8x384xf32> to vector<8x128xf32>
    %71 = arith.addf %69, %70 : vector<8x128xf32>
    %72 = arith.negf %71 : vector<8x128xf32>
    %73 = math.exp %72 : vector<8x128xf32>
    %cst_43 = arith.constant 1.000000e+00 : f32
    %74 = vector.broadcast %cst_43 : f32 to vector<8x128xf32>
    %75 = arith.addf %74, %73 : vector<8x128xf32>
    %76 = arith.divf %74, %75 : vector<8x128xf32>
    %77 = vector.extract_strided_slice %34 {offsets = [0, 128], sizes = [8, 128], strides = [1, 1]} : vector<8x384xf32> to vector<8x128xf32>
    %78 = vector.extract_strided_slice %42 {offsets = [0, 128], sizes = [8, 128], strides = [1, 1]} : vector<8x384xf32> to vector<8x128xf32>
    %79 = arith.addf %77, %78 : vector<8x128xf32>
    %80 = arith.negf %79 : vector<8x128xf32>
    %81 = math.exp %80 : vector<8x128xf32>
    %cst_44 = arith.constant 1.000000e+00 : f32
    %82 = vector.broadcast %cst_44 : f32 to vector<8x128xf32>
    %83 = arith.addf %82, %81 : vector<8x128xf32>
    %84 = arith.divf %82, %83 : vector<8x128xf32>
    %85 = vector.extract_strided_slice %34 {offsets = [0, 256], sizes = [8, 128], strides = [1, 1]} : vector<8x384xf32> to vector<8x128xf32>
    %86 = vector.extract_strided_slice %42 {offsets = [0, 256], sizes = [8, 128], strides = [1, 1]} : vector<8x384xf32> to vector<8x128xf32>
    %87 = arith.mulf %76, %86 : vector<8x128xf32>
    %88 = arith.addf %85, %87 : vector<8x128xf32>
    %89 = math.tanh %88 : vector<8x128xf32>
    %cst_45 = arith.constant 1.000000e+00 : f32
    %90 = vector.broadcast %cst_45 : f32 to vector<8x128xf32>
    %91 = arith.subf %90, %84 : vector<8x128xf32>
    %92 = arith.mulf %91, %89 : vector<8x128xf32>
    %93 = arith.mulf %84, %26 : vector<8x128xf32>
    %94 = arith.addf %92, %93 : vector<8x128xf32>
    %c0_46 = arith.constant 0 : index
    %c0_47 = arith.constant 0 : index
    %c0_48 = arith.constant 0 : index
    %95 = vector.load %arg13[%c0_46, %c0_47, %c0_48] : memref<4x8x128xf32, #tpu.memory_space<vmem>>, vector<1x8x128xf32>
    %96 = vector.shape_cast %95 : vector<1x8x128xf32> to vector<8x128xf32>
    %97 = vector.shape_cast %68 : vector<8x128xf32> to vector<1x8x128xf32>
    tpu.vector_store %arg13[%c0_46, %c0_47, %c0_48], %97 {strides = array<i32>} : memref<4x8x128xf32, #tpu.memory_space<vmem>>, vector<1x8x128xf32>,
    %c3_49 = arith.constant 3 : index
    %c0_50 = arith.constant 0 : index
    %c0_51 = arith.constant 0 : index
    %98 = vector.load %arg14[%c3_49, %c0_50, %c0_51] : memref<4x8x128xf32, #tpu.memory_space<vmem>>, vector<1x8x128xf32>
    %99 = vector.shape_cast %98 : vector<1x8x128xf32> to vector<8x128xf32>
    %100 = vector.shape_cast %94 : vector<8x128xf32> to vector<1x8x128xf32>
    tpu.vector_store %arg14[%c3_49, %c0_50, %c0_51], %100 {strides = array<i32>} : memref<4x8x128xf32, #tpu.memory_space<vmem>>, vector<1x8x128xf32>,
    %c0_i32_52 = arith.constant 0 : i32
    %c0_i32_53 = arith.constant 0 : i32
    %c0_i32_54 = arith.constant 0 : i32
    %c0_i32_55 = arith.constant 0 : i32
    %101 = tpu.memref_slice %arg12[%c0_i32_52, %c0_i32_53, %c0_i32_54, %c0_i32_55] : memref<2x4x8x384xf32, #tpu.memory_space<vmem>> -> memref<1x4x8x384xf32, #tpu.memory_space<vmem>>
    %102 = tpu.memref_squeeze %101 : memref<1x4x8x384xf32, #tpu.memory_space<vmem>> -> memref<4x8x384xf32, #tpu.memory_space<vmem>>
    %c1_56 = arith.constant 1 : index
    %c0_57 = arith.constant 0 : index
    %c0_58 = arith.constant 0 : index
    %103 = vector.load %102[%c1_56, %c0_57, %c0_58] : memref<4x8x384xf32, #tpu.memory_space<vmem>>, vector<1x8x384xf32>
    %104 = vector.shape_cast %103 : vector<1x8x384xf32> to vector<8x384xf32>
    %c1_i32_59 = arith.constant 1 : i32
    %c0_i32_60 = arith.constant 0 : i32
    %c0_i32_61 = arith.constant 0 : i32
    %c0_i32_62 = arith.constant 0 : i32
    %105 = tpu.memref_slice %arg12[%c1_i32_59, %c0_i32_60, %c0_i32_61, %c0_i32_62] : memref<2x4x8x384xf32, #tpu.memory_space<vmem>> -> memref<1x4x8x384xf32, #tpu.memory_space<vmem>>
    %106 = tpu.memref_squeeze %105 : memref<1x4x8x384xf32, #tpu.memory_space<vmem>> -> memref<4x8x384xf32, #tpu.memory_space<vmem>>
    %c2 = arith.constant 2 : index
    %c0_63 = arith.constant 0 : index
    %c0_64 = arith.constant 0 : index
    %107 = vector.load %106[%c2, %c0_63, %c0_64] : memref<4x8x384xf32, #tpu.memory_space<vmem>>, vector<1x8x384xf32>
    %108 = vector.shape_cast %107 : vector<1x8x384xf32> to vector<8x384xf32>
    %109 = arith.truncf %68 : vector<8x128xf32> to vector<8x128xbf16>
    %cst_65 = arith.constant dense<0.000000e+00> : vector<8x384xf32>
    %110 = tpu.matmul %109, %18, %cst_65 {dimension_numbers = #tpu.dot_dimension_numbers<[1], [0], [0], [1], [0, 0, 1, 1], [], []>} : vector<8x128xbf16>, vector<128x384xbf16>, vector<8x384xf32> -> vector<8x384xf32>
    %111 = vector.broadcast %22 : vector<1x384xf32> to vector<8x384xf32>
    %112 = arith.addf %110, %111 : vector<8x384xf32>
    %113 = arith.truncf %94 : vector<8x128xf32> to vector<8x128xbf16>
    %cst_66 = arith.constant dense<0.000000e+00> : vector<8x384xf32>
    %114 = tpu.matmul %113, %20, %cst_66 {dimension_numbers = #tpu.dot_dimension_numbers<[1], [0], [0], [1], [0, 0, 1, 1], [], []>} : vector<8x128xbf16>, vector<128x384xbf16>, vector<8x384xf32> -> vector<8x384xf32>
    %115 = vector.broadcast %24 : vector<1x384xf32> to vector<8x384xf32>
    %116 = arith.addf %114, %115 : vector<8x384xf32>
    %117 = vector.extract_strided_slice %104 {offsets = [0, 0], sizes = [8, 128], strides = [1, 1]} : vector<8x384xf32> to vector<8x128xf32>
    %118 = vector.extract_strided_slice %112 {offsets = [0, 0], sizes = [8, 128], strides = [1, 1]} : vector<8x384xf32> to vector<8x128xf32>
    %119 = arith.addf %117, %118 : vector<8x128xf32>
    %120 = arith.negf %119 : vector<8x128xf32>
    %121 = math.exp %120 : vector<8x128xf32>
    %cst_67 = arith.constant 1.000000e+00 : f32
    %122 = vector.broadcast %cst_67 : f32 to vector<8x128xf32>
    %123 = arith.addf %122, %121 : vector<8x128xf32>
    %124 = arith.divf %122, %123 : vector<8x128xf32>
    %125 = vector.extract_strided_slice %104 {offsets = [0, 128], sizes = [8, 128], strides = [1, 1]} : vector<8x384xf32> to vector<8x128xf32>
    %126 = vector.extract_strided_slice %112 {offsets = [0, 128], sizes = [8, 128], strides = [1, 1]} : vector<8x384xf32> to vector<8x128xf32>
    %127 = arith.addf %125, %126 : vector<8x128xf32>
    %128 = arith.negf %127 : vector<8x128xf32>
    %129 = math.exp %128 : vector<8x128xf32>
    %cst_68 = arith.constant 1.000000e+00 : f32
    %130 = vector.broadcast %cst_68 : f32 to vector<8x128xf32>
    %131 = arith.addf %130, %129 : vector<8x128xf32>
    %132 = arith.divf %130, %131 : vector<8x128xf32>
    %133 = vector.extract_strided_slice %104 {offsets = [0, 256], sizes = [8, 128], strides = [1, 1]} : vector<8x384xf32> to vector<8x128xf32>
    %134 = vector.extract_strided_slice %112 {offsets = [0, 256], sizes = [8, 128], strides = [1, 1]} : vector<8x384xf32> to vector<8x128xf32>
    %135 = arith.mulf %124, %134 : vector<8x128xf32>
    %136 = arith.addf %133, %135 : vector<8x128xf32>
    %137 = math.tanh %136 : vector<8x128xf32>
    %cst_69 = arith.constant 1.000000e+00 : f32
    %138 = vector.broadcast %cst_69 : f32 to vector<8x128xf32>
    %139 = arith.subf %138, %132 : vector<8x128xf32>
    %140 = arith.mulf %139, %137 : vector<8x128xf32>
    %141 = arith.mulf %132, %68 : vector<8x128xf32>
    %142 = arith.addf %140, %141 : vector<8x128xf32>
    %143 = vector.extract_strided_slice %108 {offsets = [0, 0], sizes = [8, 128], strides = [1, 1]} : vector<8x384xf32> to vector<8x128xf32>
    %144 = vector.extract_strided_slice %116 {offsets = [0, 0], sizes = [8, 128], strides = [1, 1]} : vector<8x384xf32> to vector<8x128xf32>
    %145 = arith.addf %143, %144 : vector<8x128xf32>
    %146 = arith.negf %145 : vector<8x128xf32>
    %147 = math.exp %146 : vector<8x128xf32>
    %cst_70 = arith.constant 1.000000e+00 : f32
    %148 = vector.broadcast %cst_70 : f32 to vector<8x128xf32>
    %149 = arith.addf %148, %147 : vector<8x128xf32>
    %150 = arith.divf %148, %149 : vector<8x128xf32>
    %151 = vector.extract_strided_slice %108 {offsets = [0, 128], sizes = [8, 128], strides = [1, 1]} : vector<8x384xf32> to vector<8x128xf32>
    %152 = vector.extract_strided_slice %116 {offsets = [0, 128], sizes = [8, 128], strides = [1, 1]} : vector<8x384xf32> to vector<8x128xf32>
    %153 = arith.addf %151, %152 : vector<8x128xf32>
    %154 = arith.negf %153 : vector<8x128xf32>
    %155 = math.exp %154 : vector<8x128xf32>
    %cst_71 = arith.constant 1.000000e+00 : f32
    %156 = vector.broadcast %cst_71 : f32 to vector<8x128xf32>
    %157 = arith.addf %156, %155 : vector<8x128xf32>
    %158 = arith.divf %156, %157 : vector<8x128xf32>
    %159 = vector.extract_strided_slice %108 {offsets = [0, 256], sizes = [8, 128], strides = [1, 1]} : vector<8x384xf32> to vector<8x128xf32>
    %160 = vector.extract_strided_slice %116 {offsets = [0, 256], sizes = [8, 128], strides = [1, 1]} : vector<8x384xf32> to vector<8x128xf32>
    %161 = arith.mulf %150, %160 : vector<8x128xf32>
    %162 = arith.addf %159, %161 : vector<8x128xf32>
    %163 = math.tanh %162 : vector<8x128xf32>
    %cst_72 = arith.constant 1.000000e+00 : f32
    %164 = vector.broadcast %cst_72 : f32 to vector<8x128xf32>
    %165 = arith.subf %164, %158 : vector<8x128xf32>
    %166 = arith.mulf %165, %163 : vector<8x128xf32>
    %167 = arith.mulf %158, %94 : vector<8x128xf32>
    %168 = arith.addf %166, %167 : vector<8x128xf32>
    %c1_73 = arith.constant 1 : index
    %c0_74 = arith.constant 0 : index
    %c0_75 = arith.constant 0 : index
    %169 = vector.load %arg13[%c1_73, %c0_74, %c0_75] : memref<4x8x128xf32, #tpu.memory_space<vmem>>, vector<1x8x128xf32>
    %170 = vector.shape_cast %169 : vector<1x8x128xf32> to vector<8x128xf32>
    %171 = vector.shape_cast %142 : vector<8x128xf32> to vector<1x8x128xf32>
    tpu.vector_store %arg13[%c1_73, %c0_74, %c0_75], %171 {strides = array<i32>} : memref<4x8x128xf32, #tpu.memory_space<vmem>>, vector<1x8x128xf32>,
    %c2_76 = arith.constant 2 : index
    %c0_77 = arith.constant 0 : index
    %c0_78 = arith.constant 0 : index
    %172 = vector.load %arg14[%c2_76, %c0_77, %c0_78] : memref<4x8x128xf32, #tpu.memory_space<vmem>>, vector<1x8x128xf32>
    %173 = vector.shape_cast %172 : vector<1x8x128xf32> to vector<8x128xf32>
    %174 = vector.shape_cast %168 : vector<8x128xf32> to vector<1x8x128xf32>
    tpu.vector_store %arg14[%c2_76, %c0_77, %c0_78], %174 {strides = array<i32>} : memref<4x8x128xf32, #tpu.memory_space<vmem>>, vector<1x8x128xf32>,
    %c0_i32_79 = arith.constant 0 : i32
    %c0_i32_80 = arith.constant 0 : i32
    %c0_i32_81 = arith.constant 0 : i32
    %c0_i32_82 = arith.constant 0 : i32
    %175 = tpu.memref_slice %arg12[%c0_i32_79, %c0_i32_80, %c0_i32_81, %c0_i32_82] : memref<2x4x8x384xf32, #tpu.memory_space<vmem>> -> memref<1x4x8x384xf32, #tpu.memory_space<vmem>>
    %176 = tpu.memref_squeeze %175 : memref<1x4x8x384xf32, #tpu.memory_space<vmem>> -> memref<4x8x384xf32, #tpu.memory_space<vmem>>
    %c2_83 = arith.constant 2 : index
    %c0_84 = arith.constant 0 : index
    %c0_85 = arith.constant 0 : index
    %177 = vector.load %176[%c2_83, %c0_84, %c0_85] : memref<4x8x384xf32, #tpu.memory_space<vmem>>, vector<1x8x384xf32>
    %178 = vector.shape_cast %177 : vector<1x8x384xf32> to vector<8x384xf32>
    %c1_i32_86 = arith.constant 1 : i32
    %c0_i32_87 = arith.constant 0 : i32
    %c0_i32_88 = arith.constant 0 : i32
    %c0_i32_89 = arith.constant 0 : i32
    %179 = tpu.memref_slice %arg12[%c1_i32_86, %c0_i32_87, %c0_i32_88, %c0_i32_89] : memref<2x4x8x384xf32, #tpu.memory_space<vmem>> -> memref<1x4x8x384xf32, #tpu.memory_space<vmem>>
    %180 = tpu.memref_squeeze %179 : memref<1x4x8x384xf32, #tpu.memory_space<vmem>> -> memref<4x8x384xf32, #tpu.memory_space<vmem>>
    %c1_90 = arith.constant 1 : index
    %c0_91 = arith.constant 0 : index
    %c0_92 = arith.constant 0 : index
    %181 = vector.load %180[%c1_90, %c0_91, %c0_92] : memref<4x8x384xf32, #tpu.memory_space<vmem>>, vector<1x8x384xf32>
    %182 = vector.shape_cast %181 : vector<1x8x384xf32> to vector<8x384xf32>
    %183 = arith.truncf %142 : vector<8x128xf32> to vector<8x128xbf16>
    %cst_93 = arith.constant dense<0.000000e+00> : vector<8x384xf32>
    %184 = tpu.matmul %183, %18, %cst_93 {dimension_numbers = #tpu.dot_dimension_numbers<[1], [0], [0], [1], [0, 0, 1, 1], [], []>} : vector<8x128xbf16>, vector<128x384xbf16>, vector<8x384xf32> -> vector<8x384xf32>
    %185 = vector.broadcast %22 : vector<1x384xf32> to vector<8x384xf32>
    %186 = arith.addf %184, %185 : vector<8x384xf32>
    %187 = arith.truncf %168 : vector<8x128xf32> to vector<8x128xbf16>
    %cst_94 = arith.constant dense<0.000000e+00> : vector<8x384xf32>
    %188 = tpu.matmul %187, %20, %cst_94 {dimension_numbers = #tpu.dot_dimension_numbers<[1], [0], [0], [1], [0, 0, 1, 1], [], []>} : vector<8x128xbf16>, vector<128x384xbf16>, vector<8x384xf32> -> vector<8x384xf32>
    %189 = vector.broadcast %24 : vector<1x384xf32> to vector<8x384xf32>
    %190 = arith.addf %188, %189 : vector<8x384xf32>
    %191 = vector.extract_strided_slice %178 {offsets = [0, 0], sizes = [8, 128], strides = [1, 1]} : vector<8x384xf32> to vector<8x128xf32>
    %192 = vector.extract_strided_slice %186 {offsets = [0, 0], sizes = [8, 128], strides = [1, 1]} : vector<8x384xf32> to vector<8x128xf32>
    %193 = arith.addf %191, %192 : vector<8x128xf32>
    %194 = arith.negf %193 : vector<8x128xf32>
    %195 = math.exp %194 : vector<8x128xf32>
    %cst_95 = arith.constant 1.000000e+00 : f32
    %196 = vector.broadcast %cst_95 : f32 to vector<8x128xf32>
    %197 = arith.addf %196, %195 : vector<8x128xf32>
    %198 = arith.divf %196, %197 : vector<8x128xf32>
    %199 = vector.extract_strided_slice %178 {offsets = [0, 128], sizes = [8, 128], strides = [1, 1]} : vector<8x384xf32> to vector<8x128xf32>
    %200 = vector.extract_strided_slice %186 {offsets = [0, 128], sizes = [8, 128], strides = [1, 1]} : vector<8x384xf32> to vector<8x128xf32>
    %201 = arith.addf %199, %200 : vector<8x128xf32>
    %202 = arith.negf %201 : vector<8x128xf32>
    %203 = math.exp %202 : vector<8x128xf32>
    %cst_96 = arith.constant 1.000000e+00 : f32
    %204 = vector.broadcast %cst_96 : f32 to vector<8x128xf32>
    %205 = arith.addf %204, %203 : vector<8x128xf32>
    %206 = arith.divf %204, %205 : vector<8x128xf32>
    %207 = vector.extract_strided_slice %178 {offsets = [0, 256], sizes = [8, 128], strides = [1, 1]} : vector<8x384xf32> to vector<8x128xf32>
    %208 = vector.extract_strided_slice %186 {offsets = [0, 256], sizes = [8, 128], strides = [1, 1]} : vector<8x384xf32> to vector<8x128xf32>
    %209 = arith.mulf %198, %208 : vector<8x128xf32>
    %210 = arith.addf %207, %209 : vector<8x128xf32>
    %211 = math.tanh %210 : vector<8x128xf32>
    %cst_97 = arith.constant 1.000000e+00 : f32
    %212 = vector.broadcast %cst_97 : f32 to vector<8x128xf32>
    %213 = arith.subf %212, %206 : vector<8x128xf32>
    %214 = arith.mulf %213, %211 : vector<8x128xf32>
    %215 = arith.mulf %206, %142 : vector<8x128xf32>
    %216 = arith.addf %214, %215 : vector<8x128xf32>
    %217 = vector.extract_strided_slice %182 {offsets = [0, 0], sizes = [8, 128], strides = [1, 1]} : vector<8x384xf32> to vector<8x128xf32>
    %218 = vector.extract_strided_slice %190 {offsets = [0, 0], sizes = [8, 128], strides = [1, 1]} : vector<8x384xf32> to vector<8x128xf32>
    %219 = arith.addf %217, %218 : vector<8x128xf32>
    %220 = arith.negf %219 : vector<8x128xf32>
    %221 = math.exp %220 : vector<8x128xf32>
    %cst_98 = arith.constant 1.000000e+00 : f32
    %222 = vector.broadcast %cst_98 : f32 to vector<8x128xf32>
    %223 = arith.addf %222, %221 : vector<8x128xf32>
    %224 = arith.divf %222, %223 : vector<8x128xf32>
    %225 = vector.extract_strided_slice %182 {offsets = [0, 128], sizes = [8, 128], strides = [1, 1]} : vector<8x384xf32> to vector<8x128xf32>
    %226 = vector.extract_strided_slice %190 {offsets = [0, 128], sizes = [8, 128], strides = [1, 1]} : vector<8x384xf32> to vector<8x128xf32>
    %227 = arith.addf %225, %226 : vector<8x128xf32>
    %228 = arith.negf %227 : vector<8x128xf32>
    %229 = math.exp %228 : vector<8x128xf32>
    %cst_99 = arith.constant 1.000000e+00 : f32
    %230 = vector.broadcast %cst_99 : f32 to vector<8x128xf32>
    %231 = arith.addf %230, %229 : vector<8x128xf32>
    %232 = arith.divf %230, %231 : vector<8x128xf32>
    %233 = vector.extract_strided_slice %182 {offsets = [0, 256], sizes = [8, 128], strides = [1, 1]} : vector<8x384xf32> to vector<8x128xf32>
    %234 = vector.extract_strided_slice %190 {offsets = [0, 256], sizes = [8, 128], strides = [1, 1]} : vector<8x384xf32> to vector<8x128xf32>
    %235 = arith.mulf %224, %234 : vector<8x128xf32>
    %236 = arith.addf %233, %235 : vector<8x128xf32>
    %237 = math.tanh %236 : vector<8x128xf32>
    %cst_100 = arith.constant 1.000000e+00 : f32
    %238 = vector.broadcast %cst_100 : f32 to vector<8x128xf32>
    %239 = arith.subf %238, %232 : vector<8x128xf32>
    %240 = arith.mulf %239, %237 : vector<8x128xf32>
    %241 = arith.mulf %232, %168 : vector<8x128xf32>
    %242 = arith.addf %240, %241 : vector<8x128xf32>
    %c2_101 = arith.constant 2 : index
    %c0_102 = arith.constant 0 : index
    %c0_103 = arith.constant 0 : index
    %243 = vector.load %arg13[%c2_101, %c0_102, %c0_103] : memref<4x8x128xf32, #tpu.memory_space<vmem>>, vector<1x8x128xf32>
    %244 = vector.shape_cast %243 : vector<1x8x128xf32> to vector<8x128xf32>
    %245 = vector.shape_cast %216 : vector<8x128xf32> to vector<1x8x128xf32>
    tpu.vector_store %arg13[%c2_101, %c0_102, %c0_103], %245 {strides = array<i32>} : memref<4x8x128xf32, #tpu.memory_space<vmem>>, vector<1x8x128xf32>,
    %c1_104 = arith.constant 1 : index
    %c0_105 = arith.constant 0 : index
    %c0_106 = arith.constant 0 : index
    %246 = vector.load %arg14[%c1_104, %c0_105, %c0_106] : memref<4x8x128xf32, #tpu.memory_space<vmem>>, vector<1x8x128xf32>
    %247 = vector.shape_cast %246 : vector<1x8x128xf32> to vector<8x128xf32>
    %248 = vector.shape_cast %242 : vector<8x128xf32> to vector<1x8x128xf32>
    tpu.vector_store %arg14[%c1_104, %c0_105, %c0_106], %248 {strides = array<i32>} : memref<4x8x128xf32, #tpu.memory_space<vmem>>, vector<1x8x128xf32>,
    %c0_i32_107 = arith.constant 0 : i32
    %c0_i32_108 = arith.constant 0 : i32
    %c0_i32_109 = arith.constant 0 : i32
    %c0_i32_110 = arith.constant 0 : i32
    %249 = tpu.memref_slice %arg12[%c0_i32_107, %c0_i32_108, %c0_i32_109, %c0_i32_110] : memref<2x4x8x384xf32, #tpu.memory_space<vmem>> -> memref<1x4x8x384xf32, #tpu.memory_space<vmem>>
    %250 = tpu.memref_squeeze %249 : memref<1x4x8x384xf32, #tpu.memory_space<vmem>> -> memref<4x8x384xf32, #tpu.memory_space<vmem>>
    %c3_111 = arith.constant 3 : index
    %c0_112 = arith.constant 0 : index
    %c0_113 = arith.constant 0 : index
    %251 = vector.load %250[%c3_111, %c0_112, %c0_113] : memref<4x8x384xf32, #tpu.memory_space<vmem>>, vector<1x8x384xf32>
    %252 = vector.shape_cast %251 : vector<1x8x384xf32> to vector<8x384xf32>
    %c1_i32_114 = arith.constant 1 : i32
    %c0_i32_115 = arith.constant 0 : i32
    %c0_i32_116 = arith.constant 0 : i32
    %c0_i32_117 = arith.constant 0 : i32
    %253 = tpu.memref_slice %arg12[%c1_i32_114, %c0_i32_115, %c0_i32_116, %c0_i32_117] : memref<2x4x8x384xf32, #tpu.memory_space<vmem>> -> memref<1x4x8x384xf32, #tpu.memory_space<vmem>>
    %254 = tpu.memref_squeeze %253 : memref<1x4x8x384xf32, #tpu.memory_space<vmem>> -> memref<4x8x384xf32, #tpu.memory_space<vmem>>
    %c0_118 = arith.constant 0 : index
    %c0_119 = arith.constant 0 : index
    %c0_120 = arith.constant 0 : index
    %255 = vector.load %254[%c0_118, %c0_119, %c0_120] : memref<4x8x384xf32, #tpu.memory_space<vmem>>, vector<1x8x384xf32>
    %256 = vector.shape_cast %255 : vector<1x8x384xf32> to vector<8x384xf32>
    %257 = arith.truncf %216 : vector<8x128xf32> to vector<8x128xbf16>
    %cst_121 = arith.constant dense<0.000000e+00> : vector<8x384xf32>
    %258 = tpu.matmul %257, %18, %cst_121 {dimension_numbers = #tpu.dot_dimension_numbers<[1], [0], [0], [1], [0, 0, 1, 1], [], []>} : vector<8x128xbf16>, vector<128x384xbf16>, vector<8x384xf32> -> vector<8x384xf32>
    %259 = vector.broadcast %22 : vector<1x384xf32> to vector<8x384xf32>
    %260 = arith.addf %258, %259 : vector<8x384xf32>
    %261 = arith.truncf %242 : vector<8x128xf32> to vector<8x128xbf16>
    %cst_122 = arith.constant dense<0.000000e+00> : vector<8x384xf32>
    %262 = tpu.matmul %261, %20, %cst_122 {dimension_numbers = #tpu.dot_dimension_numbers<[1], [0], [0], [1], [0, 0, 1, 1], [], []>} : vector<8x128xbf16>, vector<128x384xbf16>, vector<8x384xf32> -> vector<8x384xf32>
    %263 = vector.broadcast %24 : vector<1x384xf32> to vector<8x384xf32>
    %264 = arith.addf %262, %263 : vector<8x384xf32>
    %265 = vector.extract_strided_slice %252 {offsets = [0, 0], sizes = [8, 128], strides = [1, 1]} : vector<8x384xf32> to vector<8x128xf32>
    %266 = vector.extract_strided_slice %260 {offsets = [0, 0], sizes = [8, 128], strides = [1, 1]} : vector<8x384xf32> to vector<8x128xf32>
    %267 = arith.addf %265, %266 : vector<8x128xf32>
    %268 = arith.negf %267 : vector<8x128xf32>
    %269 = math.exp %268 : vector<8x128xf32>
    %cst_123 = arith.constant 1.000000e+00 : f32
    %270 = vector.broadcast %cst_123 : f32 to vector<8x128xf32>
    %271 = arith.addf %270, %269 : vector<8x128xf32>
    %272 = arith.divf %270, %271 : vector<8x128xf32>
    %273 = vector.extract_strided_slice %252 {offsets = [0, 128], sizes = [8, 128], strides = [1, 1]} : vector<8x384xf32> to vector<8x128xf32>
    %274 = vector.extract_strided_slice %260 {offsets = [0, 128], sizes = [8, 128], strides = [1, 1]} : vector<8x384xf32> to vector<8x128xf32>
    %275 = arith.addf %273, %274 : vector<8x128xf32>
    %276 = arith.negf %275 : vector<8x128xf32>
    %277 = math.exp %276 : vector<8x128xf32>
    %cst_124 = arith.constant 1.000000e+00 : f32
    %278 = vector.broadcast %cst_124 : f32 to vector<8x128xf32>
    %279 = arith.addf %278, %277 : vector<8x128xf32>
    %280 = arith.divf %278, %279 : vector<8x128xf32>
    %281 = vector.extract_strided_slice %252 {offsets = [0, 256], sizes = [8, 128], strides = [1, 1]} : vector<8x384xf32> to vector<8x128xf32>
    %282 = vector.extract_strided_slice %260 {offsets = [0, 256], sizes = [8, 128], strides = [1, 1]} : vector<8x384xf32> to vector<8x128xf32>
    %283 = arith.mulf %272, %282 : vector<8x128xf32>
    %284 = arith.addf %281, %283 : vector<8x128xf32>
    %285 = math.tanh %284 : vector<8x128xf32>
    %cst_125 = arith.constant 1.000000e+00 : f32
    %286 = vector.broadcast %cst_125 : f32 to vector<8x128xf32>
    %287 = arith.subf %286, %280 : vector<8x128xf32>
    %288 = arith.mulf %287, %285 : vector<8x128xf32>
    %289 = arith.mulf %280, %216 : vector<8x128xf32>
    %290 = arith.addf %288, %289 : vector<8x128xf32>
    %291 = vector.extract_strided_slice %256 {offsets = [0, 0], sizes = [8, 128], strides = [1, 1]} : vector<8x384xf32> to vector<8x128xf32>
    %292 = vector.extract_strided_slice %264 {offsets = [0, 0], sizes = [8, 128], strides = [1, 1]} : vector<8x384xf32> to vector<8x128xf32>
    %293 = arith.addf %291, %292 : vector<8x128xf32>
    %294 = arith.negf %293 : vector<8x128xf32>
    %295 = math.exp %294 : vector<8x128xf32>
    %cst_126 = arith.constant 1.000000e+00 : f32
    %296 = vector.broadcast %cst_126 : f32 to vector<8x128xf32>
    %297 = arith.addf %296, %295 : vector<8x128xf32>
    %298 = arith.divf %296, %297 : vector<8x128xf32>
    %299 = vector.extract_strided_slice %256 {offsets = [0, 128], sizes = [8, 128], strides = [1, 1]} : vector<8x384xf32> to vector<8x128xf32>
    %300 = vector.extract_strided_slice %264 {offsets = [0, 128], sizes = [8, 128], strides = [1, 1]} : vector<8x384xf32> to vector<8x128xf32>
    %301 = arith.addf %299, %300 : vector<8x128xf32>
    %302 = arith.negf %301 : vector<8x128xf32>
    %303 = math.exp %302 : vector<8x128xf32>
    %cst_127 = arith.constant 1.000000e+00 : f32
    %304 = vector.broadcast %cst_127 : f32 to vector<8x128xf32>
    %305 = arith.addf %304, %303 : vector<8x128xf32>
    %306 = arith.divf %304, %305 : vector<8x128xf32>
    %307 = vector.extract_strided_slice %256 {offsets = [0, 256], sizes = [8, 128], strides = [1, 1]} : vector<8x384xf32> to vector<8x128xf32>
    %308 = vector.extract_strided_slice %264 {offsets = [0, 256], sizes = [8, 128], strides = [1, 1]} : vector<8x384xf32> to vector<8x128xf32>
    %309 = arith.mulf %298, %308 : vector<8x128xf32>
    %310 = arith.addf %307, %309 : vector<8x128xf32>
    %311 = math.tanh %310 : vector<8x128xf32>
    %cst_128 = arith.constant 1.000000e+00 : f32
    %312 = vector.broadcast %cst_128 : f32 to vector<8x128xf32>
    %313 = arith.subf %312, %306 : vector<8x128xf32>
    %314 = arith.mulf %313, %311 : vector<8x128xf32>
    %315 = arith.mulf %306, %242 : vector<8x128xf32>
    %316 = arith.addf %314, %315 : vector<8x128xf32>
    %c3_129 = arith.constant 3 : index
    %c0_130 = arith.constant 0 : index
    %c0_131 = arith.constant 0 : index
    %317 = vector.load %arg13[%c3_129, %c0_130, %c0_131] : memref<4x8x128xf32, #tpu.memory_space<vmem>>, vector<1x8x128xf32>
    %318 = vector.shape_cast %317 : vector<1x8x128xf32> to vector<8x128xf32>
    %319 = vector.shape_cast %290 : vector<8x128xf32> to vector<1x8x128xf32>
    tpu.vector_store %arg13[%c3_129, %c0_130, %c0_131], %319 {strides = array<i32>} : memref<4x8x128xf32, #tpu.memory_space<vmem>>, vector<1x8x128xf32>,
    %c0_132 = arith.constant 0 : index
    %c0_133 = arith.constant 0 : index
    %c0_134 = arith.constant 0 : index
    %320 = vector.load %arg14[%c0_132, %c0_133, %c0_134] : memref<4x8x128xf32, #tpu.memory_space<vmem>>, vector<1x8x128xf32>
    %321 = vector.shape_cast %320 : vector<1x8x128xf32> to vector<8x128xf32>
    %322 = vector.shape_cast %316 : vector<8x128xf32> to vector<1x8x128xf32>
    tpu.vector_store %arg14[%c0_132, %c0_133, %c0_134], %322 {strides = array<i32>} : memref<4x8x128xf32, #tpu.memory_space<vmem>>, vector<1x8x128xf32>,
    %c0_135 = arith.constant 0 : index
    %c0_136 = arith.constant 0 : index
    %c0_137 = arith.constant 0 : index
    %323 = vector.load %arg13[%c0_135, %c0_136, %c0_137] : memref<4x8x128xf32, #tpu.memory_space<vmem>>, vector<4x8x128xf32>
    %c0_138 = arith.constant 0 : index
    %c0_139 = arith.constant 0 : index
    %c0_140 = arith.constant 0 : index
    %324 = vector.load %arg14[%c0_138, %c0_139, %c0_140] : memref<4x8x128xf32, #tpu.memory_space<vmem>>, vector<4x8x128xf32>
    %c0_141 = arith.constant 0 : index
    %c0_142 = arith.constant 0 : index
    %325 = vector.load %arg6[%c0_141, %c0_142] : memref<256x128xbf16, #tpu.memory_space<vmem>>, vector<256x128xbf16>
    %326 = vector.shape_cast %323 : vector<4x8x128xf32> to vector<32x128xf32>
    %327 = arith.truncf %326 : vector<32x128xf32> to vector<32x128xbf16>
    %328 = vector.extract_strided_slice %325 {offsets = [0, 0], sizes = [128, 128], strides = [1, 1]} : vector<256x128xbf16> to vector<128x128xbf16>
    %cst_143 = arith.constant dense<0.000000e+00> : vector<32x128xf32>
    %329 = tpu.matmul %327, %328, %cst_143 {dimension_numbers = #tpu.dot_dimension_numbers<[1], [0], [0], [1], [0, 0, 1, 1], [], []>} : vector<32x128xbf16>, vector<128x128xbf16>, vector<32x128xf32> -> vector<32x128xf32>
    %330 = vector.shape_cast %324 : vector<4x8x128xf32> to vector<32x128xf32>
    %331 = arith.truncf %330 : vector<32x128xf32> to vector<32x128xbf16>
    %332 = vector.extract_strided_slice %325 {offsets = [128, 0], sizes = [128, 128], strides = [1, 1]} : vector<256x128xbf16> to vector<128x128xbf16>
    %cst_144 = arith.constant dense<0.000000e+00> : vector<32x128xf32>
    %333 = tpu.matmul %331, %332, %cst_144 {dimension_numbers = #tpu.dot_dimension_numbers<[1], [0], [0], [1], [0, 0, 1, 1], [], []>} : vector<32x128xbf16>, vector<128x128xbf16>, vector<32x128xf32> -> vector<32x128xf32>
    %334 = arith.addf %329, %333 : vector<32x128xf32>
    %c0_145 = arith.constant 0 : index
    %c0_146 = arith.constant 0 : index
    %335 = vector.load %arg7[%c0_145, %c0_146] : memref<1x128xf32, #tpu.memory_space<vmem>>, vector<1x128xf32>
    %336 = vector.broadcast %335 : vector<1x128xf32> to vector<32x128xf32>
    %337 = arith.addf %334, %336 : vector<32x128xf32>
    %338 = math.tanh %337 : vector<32x128xf32>
    %339 = vector.shape_cast %338 : vector<32x128xf32> to vector<4x8x128xf32>
    %c0_147 = arith.constant 0 : index
    %c0_148 = arith.constant 0 : index
    %340 = vector.load %arg8[%c0_147, %c0_148] : memref<1x128xf32, #tpu.memory_space<vmem>>, vector<1x128xf32>
    %341 = vector.shape_cast %340 : vector<1x128xf32> to vector<1x1x128xf32>
    %342 = vector.broadcast %341 : vector<1x1x128xf32> to vector<4x8x128xf32>
    %343 = arith.mulf %339, %342 : vector<4x8x128xf32>
    %cst_149 = arith.constant dense<0.000000e+00> : vector<4x8xf32>
    %344 = vector.multi_reduction <add>, %343, %cst_149 [2] : vector<4x8x128xf32> to vector<4x8xf32>
    %345 = vector.shape_cast %344 : vector<4x8xf32> to vector<4x8x1xf32>
    %cst_150 = arith.constant dense<0xFF800000> : vector<8x1xf32>
    %346 = vector.multi_reduction <maximumf>, %345, %cst_150 [0] : vector<4x8x1xf32> to vector<8x1xf32>
    %347 = vector.shape_cast %346 : vector<8x1xf32> to vector<1x8x1xf32>
    %348 = vector.broadcast %347 : vector<1x8x1xf32> to vector<4x8x1xf32>
    %349 = arith.subf %345, %348 : vector<4x8x1xf32>
    %350 = math.exp %349 : vector<4x8x1xf32>
    %cst_151 = arith.constant dense<0.000000e+00> : vector<8x1xf32>
    %351 = vector.multi_reduction <add>, %350, %cst_151 [0] : vector<4x8x1xf32> to vector<8x1xf32>
    %352 = vector.shape_cast %351 : vector<8x1xf32> to vector<1x8x1xf32>
    %353 = tpu.reciprocal %352 {approx = true} : vector<1x8x1xf32> -> vector<1x8x1xf32>
    %354 = vector.broadcast %353 : vector<1x8x1xf32> to vector<4x8x1xf32>
    %355 = arith.mulf %350, %354 : vector<4x8x1xf32>
    %356 = vector.broadcast %355 : vector<4x8x1xf32> to vector<4x8x128xf32>
    %357 = arith.mulf %356, %323 : vector<4x8x128xf32>
    %cst_152 = arith.constant dense<0.000000e+00> : vector<8x128xf32>
    %358 = vector.multi_reduction <add>, %357, %cst_152 [0] : vector<4x8x128xf32> to vector<8x128xf32>
    %359 = vector.broadcast %355 : vector<4x8x1xf32> to vector<4x8x128xf32>
    %360 = arith.mulf %359, %324 : vector<4x8x128xf32>
    %cst_153 = arith.constant dense<0.000000e+00> : vector<8x128xf32>
    %361 = vector.multi_reduction <add>, %360, %cst_153 [0] : vector<4x8x128xf32> to vector<8x128xf32>
    %c0_154 = arith.constant 0 : index
    %c0_155 = arith.constant 0 : index
    %362 = vector.load %arg9[%c0_154, %c0_155] : memref<256x128xbf16, #tpu.memory_space<vmem>>, vector<256x128xbf16>
    %363 = arith.truncf %358 : vector<8x128xf32> to vector<8x128xbf16>
    %364 = vector.extract_strided_slice %362 {offsets = [0, 0], sizes = [128, 128], strides = [1, 1]} : vector<256x128xbf16> to vector<128x128xbf16>
    %cst_156 = arith.constant dense<0.000000e+00> : vector<8x128xf32>
    %365 = tpu.matmul %363, %364, %cst_156 {dimension_numbers = #tpu.dot_dimension_numbers<[1], [0], [0], [1], [0, 0, 1, 1], [], []>} : vector<8x128xbf16>, vector<128x128xbf16>, vector<8x128xf32> -> vector<8x128xf32>
    %366 = arith.truncf %361 : vector<8x128xf32> to vector<8x128xbf16>
    %367 = vector.extract_strided_slice %362 {offsets = [128, 0], sizes = [128, 128], strides = [1, 1]} : vector<256x128xbf16> to vector<128x128xbf16>
    %cst_157 = arith.constant dense<0.000000e+00> : vector<8x128xf32>
    %368 = tpu.matmul %366, %367, %cst_157 {dimension_numbers = #tpu.dot_dimension_numbers<[1], [0], [0], [1], [0, 0, 1, 1], [], []>} : vector<8x128xbf16>, vector<128x128xbf16>, vector<8x128xf32> -> vector<8x128xf32>
    %369 = arith.addf %365, %368 : vector<8x128xf32>
    %c0_158 = arith.constant 0 : index
    %c0_159 = arith.constant 0 : index
    %370 = vector.load %arg10[%c0_158, %c0_159] : memref<1x128xf32, #tpu.memory_space<vmem>>, vector<1x128xf32>
    %371 = vector.broadcast %370 : vector<1x128xf32> to vector<8x128xf32>
    %372 = arith.addf %369, %371 : vector<8x128xf32>
    %c0_160 = arith.constant 0 : index
    %c0_161 = arith.constant 0 : index
    %373 = vector.load %arg11[%c0_160, %c0_161] : memref<8x128xf32, #tpu.memory_space<vmem>>, vector<8x128xf32>
    tpu.vector_store %arg11[%c0_160, %c0_161], %372 {strides = array<i32>} : memref<8x128xf32, #tpu.memory_space<vmem>>, vector<8x128xf32>,
    return
  }
  func.func @transform_0(%arg0: i32) -> (i32, i32, i32) {
    %c0_i32 = arith.constant 0 : i32
    %c0_i32_0 = arith.constant 0 : i32
    %c0_i32_1 = arith.constant 0 : i32
    return %c0_i32, %arg0, %c0_i32_0 : i32, i32, i32
  }
  func.func @transform_1(%arg0: i32) -> (i32, i32) {
    %c0_i32 = arith.constant 0 : i32
    %c0_i32_0 = arith.constant 0 : i32
    %c0_i32_1 = arith.constant 0 : i32
    return %c0_i32, %c0_i32_0 : i32, i32
  }
  func.func @transform_2(%arg0: i32) -> (i32, i32, i32) {
    %c0_i32 = arith.constant 0 : i32
    %c0_i32_0 = arith.constant 0 : i32
    %c0_i32_1 = arith.constant 0 : i32
    %c0_i32_2 = arith.constant 0 : i32
    return %c0_i32, %c0_i32_0, %c0_i32_1 : i32, i32, i32
  }
  func.func @transform_3(%arg0: i32) -> (i32, i32) {
    %c0_i32 = arith.constant 0 : i32
    %c0_i32_0 = arith.constant 0 : i32
    %c0_i32_1 = arith.constant 0 : i32
    return %c0_i32, %c0_i32_0 : i32, i32
  }
  func.func @transform_4(%arg0: i32) -> (i32, i32, i32) {
    %c0_i32 = arith.constant 0 : i32
    %c0_i32_0 = arith.constant 0 : i32
    %c0_i32_1 = arith.constant 0 : i32
    %c0_i32_2 = arith.constant 0 : i32
    return %c0_i32, %c0_i32_0, %c0_i32_1 : i32, i32, i32
  }
  func.func @transform_5(%arg0: i32) -> (i32, i32) {
    %c0_i32 = arith.constant 0 : i32
    %c0_i32_0 = arith.constant 0 : i32
    %c0_i32_1 = arith.constant 0 : i32
    return %c0_i32, %c0_i32_0 : i32, i32
  }
  func.func @transform_6(%arg0: i32) -> (i32, i32) {
    %c0_i32 = arith.constant 0 : i32
    %c0_i32_0 = arith.constant 0 : i32
    %c0_i32_1 = arith.constant 0 : i32
    return %c0_i32, %c0_i32_0 : i32, i32
  }
  func.func @transform_7(%arg0: i32) -> (i32, i32) {
    %c0_i32 = arith.constant 0 : i32
    %c0_i32_0 = arith.constant 0 : i32
    %c0_i32_1 = arith.constant 0 : i32
    return %c0_i32, %c0_i32_0 : i32, i32
  }
  func.func @transform_8(%arg0: i32) -> (i32, i32) {
    %c0_i32 = arith.constant 0 : i32
    %c0_i32_0 = arith.constant 0 : i32
    %c0_i32_1 = arith.constant 0 : i32
    return %c0_i32, %c0_i32_0 : i32, i32
  }
  func.func @transform_9(%arg0: i32) -> (i32, i32) {
    %c0_i32 = arith.constant 0 : i32
    %c0_i32_0 = arith.constant 0 : i32
    %c0_i32_1 = arith.constant 0 : i32
    return %c0_i32, %c0_i32_0 : i32, i32
  }
  func.func @transform_10(%arg0: i32) -> (i32, i32) {
    %c0_i32 = arith.constant 0 : i32
    %c0_i32_0 = arith.constant 0 : i32
    return %arg0, %c0_i32 : i32, i32
  }
}

</mosaic_0001>

<llo_original>
// kernel: ebsnn_gru_forward.2
$region0: #{ebsnn_gru_forward.2}
  #allocation0 [shape = 'u32[]', space=smem, size = 0x4, offset = 0x4, fixed_abs, tag = 'smem constant byte address 0x4 - core index']
  #allocation1 [shape = 'u32[72,128]{1,0:T(1,128)}', space=vmem, size = 0x9000, scoped, tag = 'internal scratch']
  #allocation2 [shape = 'f32[2,8,8,384]{3,2,1,0:T(8,128)}', space=vmem, size = 0x30000, scoped, tag = 'scratch operand']
  #allocation3 [shape = 'f32[8,8,128]{2,1,0:T(8,128)}', space=vmem, size = 0x8000, scoped, tag = 'scratch operand']
  #allocation4 [shape = 'f32[8,8,128]{2,1,0:T(8,128)}', space=vmem, size = 0x8000, scoped, tag = 'scratch operand']
  %s0 = inlined_call_operand.vmem [shape: bf16[8,8,32], index: 0, kind: input, shape index: {}]
  %s1 = inlined_call_operand.hbm [shape: bf16[32,768], index: 1, kind: input, shape index: {}]
  %s2 = inlined_call_operand.vmem [shape: bf16[2,128,384], index: 2, kind: input, shape index: {}]
  %s3 = inlined_call_operand.hbm [shape: f32[1,768], index: 3, kind: input, shape index: {}]
  %s4 = inlined_call_operand.hbm [shape: f32[2,1,384], index: 4, kind: input, shape index: {}]
  %s5 = inlined_call_operand.vmem [shape: bf16[256,128], index: 5, kind: input, shape index: {}]
  %s6 = inlined_call_operand.vmem [shape: f32[1,128], index: 6, kind: input, shape index: {}]
  %s7 = inlined_call_operand.hbm [shape: f32[1,128], index: 7, kind: input, shape index: {}]
  %s8 = inlined_call_operand.vmem [shape: bf16[8,256], index: 8, kind: output, shape index: {}]
  %s9 = sld [smem:[#allocation0]]
  $region58: #{ebsnn_gru_forward.2} parent=0
    _
  %s11 = ssub.s32 1, %s9
  %s12 = scalar_select 0, %s11, %s9
  $region1: #{ebsnn_gru_forward.2} parent=0
    #allocation5 [shape = 'u8[49152]{0}', space=vmem, size = 0xc000, scoped, tag = 'input window, operand 1, single buffered']
    #allocation6 [shape = 's32[1]{0}', space=sflag, size = 0x4, scoped, tag = 'scoped memory for ebsnn_gru_forward.2']
    #allocation7 [shape = 'u8[3072]{0}', space=vmem, size = 0xc00, scoped, tag = 'input window, operand 3, single buffered']
    #allocation8 [shape = 's32[1]{0}', space=sflag, size = 0x4, scoped, tag = 'scoped memory for ebsnn_gru_forward.2']
    #allocation9 [shape = 'u8[3072]{0}', space=vmem, size = 0xc00, scoped, tag = 'input window, operand 4, single buffered']
    #allocation10 [shape = 'u8[512]{0}', space=vmem, size = 0x400, scoped, tag = 'input window, operand 7, single buffered']
    #allocation11 [shape = 's32[1]{0}', space=sflag, size = 0x4, scoped, tag = 'scoped memory for ebsnn_gru_forward.2']
    %13 = vsyncpa [#allocation6], 0
    %14 = vsyncpa [#allocation8], 0
    %15 = vsyncpa [#allocation11], 0
    // Predicated region
    $region2: #{ebsnn_gru_forward.2} parent=1 // pred_check
      _
    $region3: #{ebsnn_gru_forward.2} parent=1 // pred_check_branch
      %17 = sbr.rel (0) target = $region5
    $region4: #{ebsnn_gru_forward.2} parent=1 // pred_region
      _
    $region5: #{ebsnn_gru_forward.2} parent=1 // pred_fallthru
      _
    // Predicated region
    $region6: #{ebsnn_gru_forward.2} parent=1 // pred_check
      _
    $region7: #{ebsnn_gru_forward.2} parent=1 // pred_check_branch
      %19 = sbr.rel (0) target = $region9
    $region8: #{ebsnn_gru_forward.2} parent=1 // pred_region
      %21 = vsyncadd [#allocation6], 0
      %s22 = sshll.u32 %s1, 4
      %s23 = int_to_ptr.hbm [resolvable:$true] %s22
      %s24 = sshll.u32 [#allocation5], 4
      %s25 = int_to_ptr.vmem [resolvable:$true] %s24
      %30 = dma.hbm_to_vmem [thread:$0]  %s23, 1536, %s25, [#allocation6], 384, 384, 24
    $region9: #{ebsnn_gru_forward.2} parent=1 // pred_fallthru
      _
    // Predicated region
    $region10: #{ebsnn_gru_forward.2} parent=1 // pred_check
      _
    $region11: #{ebsnn_gru_forward.2} parent=1 // pred_check_branch
      %32 = sbr.rel (0) target = $region13
    $region12: #{ebsnn_gru_forward.2} parent=1 // pred_region
      _
    $region13: #{ebsnn_gru_forward.2} parent=1 // pred_fallthru
      _
    // Predicated region
    $region14: #{ebsnn_gru_forward.2} parent=1 // pred_check
      _
    $region15: #{ebsnn_gru_forward.2} parent=1 // pred_check_branch
      %34 = sbr.rel (0) target = $region17
    $region16: #{ebsnn_gru_forward.2} parent=1 // pred_region
      %36 = vsyncadd [#allocation8], 0
      %s38 = sshll.u32 %s3, 4
      %s39 = int_to_ptr.hbm [resolvable:$true] %s38
      %s40 = sshll.u32 [#allocation7], 4
      %s41 = int_to_ptr.vmem [resolvable:$true] %s40
      %43 = dma.hbm_to_vmem [thread:$0]  %s39, 96, %s41, [#allocation8]
    $region17: #{ebsnn_gru_forward.2} parent=1 // pred_fallthru
      _
    // Predicated region
    $region18: #{ebsnn_gru_forward.2} parent=1 // pred_check
      _
    $region19: #{ebsnn_gru_forward.2} parent=1 // pred_check_branch
      %45 = sbr.rel (0) target = $region21
    $region20: #{ebsnn_gru_forward.2} parent=1 // pred_region
      %47 = vsyncadd [#allocation8], 0
      %s48 = sshll.u32 %s4, 4
      %s49 = int_to_ptr.hbm [resolvable:$true] %s48
      %s50 = sshll.u32 [#allocation9], 4
      %s51 = int_to_ptr.vmem [resolvable:$true] %s50
      %56 = dma.hbm_to_vmem [thread:$0]  %s49, 96, %s51, [#allocation8], 48, 48, 3
    $region21: #{ebsnn_gru_forward.2} parent=1 // pred_fallthru
      _
    // Predicated region
    $region22: #{ebsnn_gru_forward.2} parent=1 // pred_check
      _
    $region23: #{ebsnn_gru_forward.2} parent=1 // pred_check_branch
      %58 = sbr.rel (0) target = $region25
    $region24: #{ebsnn_gru_forward.2} parent=1 // pred_region
      _
    $region25: #{ebsnn_gru_forward.2} parent=1 // pred_fallthru
      _
    // Predicated region
    $region26: #{ebsnn_gru_forward.2} parent=1 // pred_check
      _
    $region27: #{ebsnn_gru_forward.2} parent=1 // pred_check_branch
      %60 = sbr.rel (0) target = $region29
    $region28: #{ebsnn_gru_forward.2} parent=1 // pred_region
      _
    $region29: #{ebsnn_gru_forward.2} parent=1 // pred_fallthru
      _
    // Predicated region
    $region30: #{ebsnn_gru_forward.2} parent=1 // pred_check
      _
    $region31: #{ebsnn_gru_forward.2} parent=1 // pred_check_branch
      %62 = sbr.rel (0) target = $region33
    $region32: #{ebsnn_gru_forward.2} parent=1 // pred_region
      %64 = vsyncadd [#allocation11], 0
      %s66 = sshll.u32 %s7, 4
      %s67 = int_to_ptr.hbm [resolvable:$true] %s66
      %s68 = sshll.u32 [#allocation10], 4
      %s69 = int_to_ptr.vmem [resolvable:$true] %s68
      %71 = dma.hbm_to_vmem [thread:$0]  %s67, 16, %s69, [#allocation11]
    $region33: #{ebsnn_gru_forward.2} parent=1 // pred_fallthru
      _
    // Predicated region
    $region34: #{ebsnn_gru_forward.2} parent=1 // pred_check
      _
    $region35: #{ebsnn_gru_forward.2} parent=1 // pred_check_branch
      %73 = sbr.rel (0) target = $region37
    $region36: #{ebsnn_gru_forward.2} parent=1 // pred_region
      %75 = dma.done [#allocation6], 1536
    $region37: #{ebsnn_gru_forward.2} parent=1 // pred_fallthru
      _
    // Predicated region
    $region38: #{ebsnn_gru_forward.2} parent=1 // pred_check
      _
    $region39: #{ebsnn_gru_forward.2} parent=1 // pred_check_branch
      %77 = sbr.rel (0) target = $region41
    $region40: #{ebsnn_gru_forward.2} parent=1 // pred_region
      %79 = dma.done [#allocation8], 96
    $region41: #{ebsnn_gru_forward.2} parent=1 // pred_fallthru
      _
    // Predicated region
    $region42: #{ebsnn_gru_forward.2} parent=1 // pred_check
      _
    $region43: #{ebsnn_gru_forward.2} parent=1 // pred_check_branch
      %81 = sbr.rel (0) target = $region45
    $region44: #{ebsnn_gru_forward.2} parent=1 // pred_region
      %83 = dma.done [#allocation8], 96
    $region45: #{ebsnn_gru_forward.2} parent=1 // pred_fallthru
      _
    // Predicated region
    $region46: #{ebsnn_gru_forward.2} parent=1 // pred_check
      _
    $region47: #{ebsnn_gru_forward.2} parent=1 // pred_check_branch
      %85 = sbr.rel (0) target = $region49
    $region48: #{ebsnn_gru_forward.2} parent=1 // pred_region
      %87 = dma.done [#allocation11], 16
    $region49: #{ebsnn_gru_forward.2} parent=1 // pred_fallthru
      _
    %v89 = vld [vmem:[%s0] sm:$0xf]
    %v90 = vld [vmem:[%s0 + $0x4] sm:$0xf]
    %v91 = vld [vmem:[%s0 + $0x8] sm:$0xf]
    %v92 = vld [vmem:[%s0 + $0xc] sm:$0xf]
    %v93 = vld [vmem:[%s0 + $0x10] sm:$0xf]
    %v94 = vld [vmem:[%s0 + $0x14] sm:$0xf]
    %v95 = vld [vmem:[%s0 + $0x18] sm:$0xf]
    %v96 = vld [vmem:[%s0 + $0x1c] sm:$0xf]
    %v97 = vld [vmem:[#allocation5] sm:$0xff]
    %v98 = vld [vmem:[#allocation5 + $0x8] sm:$0xff]
    %v99 = vld [vmem:[#allocation5 + $0x10] sm:$0xff]
    %v100 = vld [vmem:[#allocation5 + $0x18] sm:$0xff]
    %v101 = vld [vmem:[#allocation5 + $0x20] sm:$0xff]
    %v102 = vld [vmem:[#allocation5 + $0x28] sm:$0xff]
    %v103 = vld [vmem:[#allocation5 + $0x30] sm:$0xff]
    %v104 = vld [vmem:[#allocation5 + $0x38] sm:$0xff]
    %v105 = vld [vmem:[#allocation5 + $0x40] sm:$0xff]
    %v106 = vld [vmem:[#allocation5 + $0x48] sm:$0xff]
    %v107 = vld [vmem:[#allocation5 + $0x50] sm:$0xff]
    %v108 = vld [vmem:[#allocation5 + $0x58] sm:$0xff]
    %v109 = vld [vmem:[#allocation7] sm:$0x3f]
    %v111 = vperm.slane %v109, 0
    %v112 = vperm.slane %v109, 1
    %v113 = vperm.slane %v109, 2
    %v114 = vperm.slane %v109, 3
    %v115 = vperm.slane %v109, 4
    %v116 = vperm.slane %v109, 5
    %v131 = vunpack.c.l.b16 %v89
    %v132 = vunpack.c.l.b16 %v90
    %v133 = vunpack.c.l.b16 %v91
    %v134 = vunpack.c.l.b16 %v92
    %v135 = vunpack.c.l.b16 %v93
    %v136 = vunpack.c.l.b16 %v94
    %v137 = vunpack.c.l.b16 %v95
    %v138 = vunpack.c.l.b16 %v96
    %v139 = vpack.c.b16 %v132, %v131
    %v140 = vpack.c.b16 %v134, %v133
    %v141 = vpack.c.b16 %v136, %v135
    %v142 = vpack.c.b16 %v138, %v137
    %v155 = vunpack.c.l.b16 %v97
    %v156 = vunpack.c.h.b16 %v97
    %v157 = vunpack.c.l.b16 %v98
    %v158 = vunpack.c.h.b16 %v98
    %v159 = vunpack.c.l.b16 %v99
    %v160 = vunpack.c.h.b16 %v99
    %v161 = vunpack.c.l.b16 %v100
    %v162 = vunpack.c.h.b16 %v100
    %v163 = vunpack.c.l.b16 %v101
    %v164 = vunpack.c.h.b16 %v101
    %v165 = vunpack.c.l.b16 %v102
    %v166 = vunpack.c.h.b16 %v102
    %v167 = vunpack.c.l.b16 %v103
    %v168 = vunpack.c.h.b16 %v103
    %v169 = vunpack.c.l.b16 %v104
    %v170 = vunpack.c.h.b16 %v104
    %v171 = vunpack.c.l.b16 %v105
    %v172 = vunpack.c.h.b16 %v105
    %v173 = vunpack.c.l.b16 %v106
    %v174 = vunpack.c.h.b16 %v106
    %v175 = vunpack.c.l.b16 %v107
    %v176 = vunpack.c.h.b16 %v107
    %v177 = vunpack.c.l.b16 %v108
    %v178 = vunpack.c.h.b16 %v108
    %v179 = vpack.c.b16 %v161, %v155
    %v180 = vpack.c.b16 %v162, %v156
    %v181 = vpack.c.b16 %v163, %v157
    %v182 = vpack.c.b16 %v164, %v158
    %v183 = vpack.c.b16 %v165, %v159
    %v184 = vpack.c.b16 %v166, %v160
    %v185 = vpack.c.b16 %v173, %v167
    %v186 = vpack.c.b16 %v174, %v168
    %v187 = vpack.c.b16 %v175, %v169
    %v188 = vpack.c.b16 %v176, %v170
    %v189 = vpack.c.b16 %v177, %v171
    %v190 = vpack.c.b16 %v178, %v172
    %vm203 = vcmask 261120
    %v205 = vsel %vm203, %v139, 0
    %v208 = vsel %vm203, %v140, 0
    %v211 = vsel %vm203, %v141, 0
    %v214 = vsel %vm203, %v142, 0
    %216 = vmatpush.bf16.msra.mxu0 0
    %217 = vmatpush.bf16.msra.mxu0 0
    %218 = vmatpush.bf16.msra.mxu0 0
    %219 = vmatpush.bf16.msra.mxu0 0
    %220 = vmatpush.bf16.msra.mxu0 0
    %221 = vmatpush.bf16.msra.mxu0 0
    %222 = vmatpush.bf16.msra.mxu0 %v185
    %223 = vmatpush.bf16.msra.mxu0 %v179
    %224 = vmatmul.bf16.gmra.mxu0 %v205
    %v225 = vpop.f32.mrf.mxu0
    %v226 = vadd.f32 %v111, %v225
    %v227 = vpop.f32.mrf.mxu0
    %v228 = vadd.f32 %v111, %v227
    %229 = vmatmul.bf16.gmra.mxu0 %v208
    %v230 = vpop.f32.mrf.mxu0
    %v231 = vadd.f32 %v111, %v230
    %v232 = vpop.f32.mrf.mxu0
    %v233 = vadd.f32 %v111, %v232
    %234 = vmatmul.bf16.gmra.mxu0 %v211
    %v235 = vpop.f32.mrf.mxu0
    %v236 = vadd.f32 %v111, %v235
    %v237 = vpop.f32.mrf.mxu0
    %v238 = vadd.f32 %v111, %v237
    %239 = vmatmul.bf16.gmra.mxu0 %v214
    %v240 = vpop.f32.mrf.mxu0
    %v241 = vadd.f32 %v111, %v240
    %v242 = vpop.f32.mrf.mxu0
    %v243 = vadd.f32 %v111, %v242
    %244 = vdwg.mxu0
    %245 = vmatpush.bf16.msra.mxu0 0
    %246 = vmatpush.bf16.msra.mxu0 0
    %247 = vmatpush.bf16.msra.mxu0 0
    %248 = vmatpush.bf16.msra.mxu0 0
    %249 = vmatpush.bf16.msra.mxu0 0
    %250 = vmatpush.bf16.msra.mxu0 0
    %251 = vmatpush.bf16.msra.mxu0 %v186
    %252 = vmatpush.bf16.msra.mxu0 %v180
    %253 = vmatmul.bf16.gmra.mxu0 %v205
    %v254 = vpop.f32.mrf.mxu0
    %v255 = vadd.f32 %v112, %v254
    %v256 = vpop.f32.mrf.mxu0
    %v257 = vadd.f32 %v112, %v256
    %258 = vmatmul.bf16.gmra.mxu0 %v208
    %v259 = vpop.f32.mrf.mxu0
    %v260 = vadd.f32 %v112, %v259
    %v261 = vpop.f32.mrf.mxu0
    %v262 = vadd.f32 %v112, %v261
    %263 = vmatmul.bf16.gmra.mxu0 %v211
    %v264 = vpop.f32.mrf.mxu0
    %v265 = vadd.f32 %v112, %v264
    %v266 = vpop.f32.mrf.mxu0
    %v267 = vadd.f32 %v112, %v266
    %268 = vmatmul.bf16.gmra.mxu0 %v214
    %v269 = vpop.f32.mrf.mxu0
    %v270 = vadd.f32 %v112, %v269
    %v271 = vpop.f32.mrf.mxu0
    %v272 = vadd.f32 %v112, %v271
    %273 = vdwg.mxu0
    %274 = vmatpush.bf16.msra.mxu0 0
    %275 = vmatpush.bf16.msra.mxu0 0
    %276 = vmatpush.bf16.msra.mxu0 0
    %277 = vmatpush.bf16.msra.mxu0 0
    %278 = vmatpush.bf16.msra.mxu0 0
    %279 = vmatpush.bf16.msra.mxu0 0
    %280 = vmatpush.bf16.msra.mxu0 %v187
    %281 = vmatpush.bf16.msra.mxu0 %v181
    %282 = vmatmul.bf16.gmra.mxu0 %v205
    %v283 = vpop.f32.mrf.mxu0
    %v284 = vadd.f32 %v113, %v283
    %v285 = vpop.f32.mrf.mxu0
    %v286 = vadd.f32 %v113, %v285
    %287 = vmatmul.bf16.gmra.mxu0 %v208
    %v288 = vpop.f32.mrf.mxu0
    %v289 = vadd.f32 %v113, %v288
    %v290 = vpop.f32.mrf.mxu0
    %v291 = vadd.f32 %v113, %v290
    %292 = vmatmul.bf16.gmra.mxu0 %v211
    %v293 = vpop.f32.mrf.mxu0
    %v294 = vadd.f32 %v113, %v293
    %v295 = vpop.f32.mrf.mxu0
    %v296 = vadd.f32 %v113, %v295
    %297 = vmatmul.bf16.gmra.mxu0 %v214
    %v298 = vpop.f32.mrf.mxu0
    %v299 = vadd.f32 %v113, %v298
    %v300 = vpop.f32.mrf.mxu0
    %v301 = vadd.f32 %v113, %v300
    %302 = vdwg.mxu0
    %303 = vmatpush.bf16.msra.mxu0 0
    %304 = vmatpush.bf16.msra.mxu0 0
    %305 = vmatpush.bf16.msra.mxu0 0
    %306 = vmatpush.bf16.msra.mxu0 0
    %307 = vmatpush.bf16.msra.mxu0 0
    %308 = vmatpush.bf16.msra.mxu0 0
    %309 = vmatpush.bf16.msra.mxu0 %v188
    %310 = vmatpush.bf16.msra.mxu0 %v182
    %311 = vmatmul.bf16.gmra.mxu0 %v205
    %v312 = vpop.f32.mrf.mxu0
    %v313 = vadd.f32 %v114, %v312
    %v314 = vpop.f32.mrf.mxu0
    %v315 = vadd.f32 %v114, %v314
    %316 = vmatmul.bf16.gmra.mxu0 %v208
    %v317 = vpop.f32.mrf.mxu0
    %v318 = vadd.f32 %v114, %v317
    %v319 = vpop.f32.mrf.mxu0
    %v320 = vadd.f32 %v114, %v319
    %321 = vmatmul.bf16.gmra.mxu0 %v211
    %v322 = vpop.f32.mrf.mxu0
    %v323 = vadd.f32 %v114, %v322
    %v324 = vpop.f32.mrf.mxu0
    %v325 = vadd.f32 %v114, %v324
    %326 = vmatmul.bf16.gmra.mxu0 %v214
    %v327 = vpop.f32.mrf.mxu0
    %v328 = vadd.f32 %v114, %v327
    %v329 = vpop.f32.mrf.mxu0
    %v330 = vadd.f32 %v114, %v329
    %331 = vdwg.mxu0
    %332 = vmatpush.bf16.msra.mxu0 0
    %333 = vmatpush.bf16.msra.mxu0 0
    %334 = vmatpush.bf16.msra.mxu0 0
    %335 = vmatpush.bf16.msra.mxu0 0
    %336 = vmatpush.bf16.msra.mxu0 0
    %337 = vmatpush.bf16.msra.mxu0 0
    %338 = vmatpush.bf16.msra.mxu0 %v189
    %339 = vmatpush.bf16.msra.mxu0 %v183
    %340 = vmatmul.bf16.gmra.mxu0 %v205
    %v341 = vpop.f32.mrf.mxu0
    %v342 = vadd.f32 %v115, %v341
    %v343 = vpop.f32.mrf.mxu0
    %v344 = vadd.f32 %v115, %v343
    %345 = vmatmul.bf16.gmra.mxu0 %v208
    %v346 = vpop.f32.mrf.mxu0
    %v347 = vadd.f32 %v115, %v346
    %v348 = vpop.f32.mrf.mxu0
    %v349 = vadd.f32 %v115, %v348
    %350 = vmatmul.bf16.gmra.mxu0 %v211
    %v351 = vpop.f32.mrf.mxu0
    %v352 = vadd.f32 %v115, %v351
    %v353 = vpop.f32.mrf.mxu0
    %v354 = vadd.f32 %v115, %v353
    %355 = vmatmul.bf16.gmra.mxu0 %v214
    %v356 = vpop.f32.mrf.mxu0
    %v357 = vadd.f32 %v115, %v356
    %v358 = vpop.f32.mrf.mxu0
    %v359 = vadd.f32 %v115, %v358
    %360 = vdwg.mxu0
    %361 = vmatpush.bf16.msra.mxu0 0
    %362 = vmatpush.bf16.msra.mxu0 0
    %363 = vmatpush.bf16.msra.mxu0 0
    %364 = vmatpush.bf16.msra.mxu0 0
    %365 = vmatpush.bf16.msra.mxu0 0
    %366 = vmatpush.bf16.msra.mxu0 0
    %367 = vmatpush.bf16.msra.mxu0 %v190
    %368 = vmatpush.bf16.msra.mxu0 %v184
    %369 = vmatmul.bf16.gmra.mxu0 %v205
    %v370 = vpop.f32.mrf.mxu0
    %v371 = vadd.f32 %v116, %v370
    %v372 = vpop.f32.mrf.mxu0
    %v373 = vadd.f32 %v116, %v372
    %374 = vmatmul.bf16.gmra.mxu0 %v208
    %v375 = vpop.f32.mrf.mxu0
    %v376 = vadd.f32 %v116, %v375
    %v377 = vpop.f32.mrf.mxu0
    %v378 = vadd.f32 %v116, %v377
    %379 = vmatmul.bf16.gmra.mxu0 %v211
    %v380 = vpop.f32.mrf.mxu0
    %v381 = vadd.f32 %v116, %v380
    %v382 = vpop.f32.mrf.mxu0
    %v383 = vadd.f32 %v116, %v382
    %384 = vmatmul.bf16.gmra.mxu0 %v214
    %v385 = vpop.f32.mrf.mxu0
    %v386 = vadd.f32 %v116, %v385
    %v387 = vpop.f32.mrf.mxu0
    %v388 = vadd.f32 %v116, %v387
    %389 = vdwg.mxu0
    %390 = vst [vmem:[#allocation2] sm:$0xff] %v226
    %391 = vst [vmem:[#allocation2 + $0x8] sm:$0xff] %v255
    %392 = vst [vmem:[#allocation2 + $0x10] sm:$0xff] %v284
    %393 = vst [vmem:[#allocation2 + $0x18] sm:$0xff] %v228
    %394 = vst [vmem:[#allocation2 + $0x20] sm:$0xff] %v257
    %395 = vst [vmem:[#allocation2 + $0x28] sm:$0xff] %v286
    %396 = vst [vmem:[#allocation2 + $0x30] sm:$0xff] %v231
    %397 = vst [vmem:[#allocation2 + $0x38] sm:$0xff] %v260
    %398 = vst [vmem:[#allocation2 + $0x40] sm:$0xff] %v289
    %399 = vst [vmem:[#allocation2 + $0x48] sm:$0xff] %v233
    %400 = vst [vmem:[#allocation2 + $0x50] sm:$0xff] %v262
    %401 = vst [vmem:[#allocation2 + $0x58] sm:$0xff] %v291
    %402 = vst [vmem:[#allocation2 + $0x60] sm:$0xff] %v236
    %403 = vst [vmem:[#allocation2 + $0x68] sm:$0xff] %v265
    %404 = vst [vmem:[#allocation2 + $0x70] sm:$0xff] %v294
    %405 = vst [vmem:[#allocation2 + $0x78] sm:$0xff] %v238
    %406 = vst [vmem:[#allocation2 + $0x80] sm:$0xff] %v267
    %407 = vst [vmem:[#allocation2 + $0x88] sm:$0xff] %v296
    %408 = vst [vmem:[#allocation2 + $0x90] sm:$0xff] %v241
    %409 = vst [vmem:[#allocation2 + $0x98] sm:$0xff] %v270
    %410 = vst [vmem:[#allocation2 + $0xa0] sm:$0xff] %v299
    %411 = vst [vmem:[#allocation2 + $0xa8] sm:$0xff] %v243
    %412 = vst [vmem:[#allocation2 + $0xb0] sm:$0xff] %v272
    %413 = vst [vmem:[#allocation2 + $0xb8] sm:$0xff] %v301
    %s414 = scalar_lea.vmem [#allocation2], 192
    %415 = vst [vmem:[%s414] sm:$0xff] %v313
    %416 = vst [vmem:[%s414 + $0x8] sm:$0xff] %v342
    %417 = vst [vmem:[%s414 + $0x10] sm:$0xff] %v371
    %418 = vst [vmem:[%s414 + $0x18] sm:$0xff] %v315
    %419 = vst [vmem:[%s414 + $0x20] sm:$0xff] %v344
    %420 = vst [vmem:[%s414 + $0x28] sm:$0xff] %v373
    %421 = vst [vmem:[%s414 + $0x30] sm:$0xff] %v318
    %422 = vst [vmem:[%s414 + $0x38] sm:$0xff] %v347
    %423 = vst [vmem:[%s414 + $0x40] sm:$0xff] %v376
    %424 = vst [vmem:[%s414 + $0x48] sm:$0xff] %v320
    %425 = vst [vmem:[%s414 + $0x50] sm:$0xff] %v349
    %426 = vst [vmem:[%s414 + $0x58] sm:$0xff] %v378
    %427 = vst [vmem:[%s414 + $0x60] sm:$0xff] %v323
    %428 = vst [vmem:[%s414 + $0x68] sm:$0xff] %v352
    %429 = vst [vmem:[%s414 + $0x70] sm:$0xff] %v381
    %430 = vst [vmem:[%s414 + $0x78] sm:$0xff] %v325
    %431 = vst [vmem:[%s414 + $0x80] sm:$0xff] %v354
    %432 = vst [vmem:[%s414 + $0x88] sm:$0xff] %v383
    %433 = vst [vmem:[%s414 + $0x90] sm:$0xff] %v328
    %434 = vst [vmem:[%s414 + $0x98] sm:$0xff] %v357
    %435 = vst [vmem:[%s414 + $0xa0] sm:$0xff] %v386
    %436 = vst [vmem:[%s414 + $0xa8] sm:$0xff] %v330
    %437 = vst [vmem:[%s414 + $0xb0] sm:$0xff] %v359
    %438 = vst [vmem:[%s414 + $0xb8] sm:$0xff] %v388
    %v439 = vld [vmem:[%s2] sm:$0xff]
    %v440 = vld [vmem:[%s2 + $0x8] sm:$0xf]
    %v441 = vld [vmem:[%s2 + $0xc] sm:$0xff]
    %v442 = vld [vmem:[%s2 + $0x14] sm:$0xf]
    %v443 = vld [vmem:[%s2 + $0x18] sm:$0xff]
    %v444 = vld [vmem:[%s2 + $0x20] sm:$0xf]
    %v445 = vld [vmem:[%s2 + $0x24] sm:$0xff]
    %v446 = vld [vmem:[%s2 + $0x2c] sm:$0xf]
    %v447 = vld [vmem:[%s2 + $0x30] sm:$0xff]
    %v448 = vld [vmem:[%s2 + $0x38] sm:$0xf]
    %v449 = vld [vmem:[%s2 + $0x3c] sm:$0xff]
    %v450 = vld [vmem:[%s2 + $0x44] sm:$0xf]
    %v451 = vld [vmem:[%s2 + $0x48] sm:$0xff]
    %v452 = vld [vmem:[%s2 + $0x50] sm:$0xf]
    %v453 = vld [vmem:[%s2 + $0x54] sm:$0xff]
    %v454 = vld [vmem:[%s2 + $0x5c] sm:$0xf]
    %v455 = vld [vmem:[%s2 + $0x60] sm:$0xff]
    %v456 = vld [vmem:[%s2 + $0x68] sm:$0xf]
    %v457 = vld [vmem:[%s2 + $0x6c] sm:$0xff]
    %v458 = vld [vmem:[%s2 + $0x74] sm:$0xf]
    %v459 = vld [vmem:[%s2 + $0x78] sm:$0xff]
    %v460 = vld [vmem:[%s2 + $0x80] sm:$0xf]
    %v461 = vld [vmem:[%s2 + $0x84] sm:$0xff]
    %v462 = vld [vmem:[%s2 + $0x8c] sm:$0xf]
    %v463 = vld [vmem:[%s2 + $0x90] sm:$0xff]
    %v464 = vld [vmem:[%s2 + $0x98] sm:$0xf]
    %v465 = vld [vmem:[%s2 + $0x9c] sm:$0xff]
    %v466 = vld [vmem:[%s2 + $0xa4] sm:$0xf]
    %v467 = vld [vmem:[%s2 + $0xa8] sm:$0xff]
    %v468 = vld [vmem:[%s2 + $0xb0] sm:$0xf]
    %v469 = vld [vmem:[%s2 + $0xb4] sm:$0xff]
    %v470 = vld [vmem:[%s2 + $0xbc] sm:$0xf]
    %s471 = scalar_lea.vmem %s2, 192
    %v472 = vld [vmem:[%s471] sm:$0xff]
    %v473 = vld [vmem:[%s471 + $0x8] sm:$0xf]
    %v474 = vld [vmem:[%s471 + $0xc] sm:$0xff]
    %v475 = vld [vmem:[%s471 + $0x14] sm:$0xf]
    %v476 = vld [vmem:[%s471 + $0x18] sm:$0xff]
    %v477 = vld [vmem:[%s471 + $0x20] sm:$0xf]
    %v478 = vld [vmem:[%s471 + $0x24] sm:$0xff]
    %v479 = vld [vmem:[%s471 + $0x2c] sm:$0xf]
    %v480 = vld [vmem:[%s471 + $0x30] sm:$0xff]
    %v481 = vld [vmem:[%s471 + $0x38] sm:$0xf]
    %v482 = vld [vmem:[%s471 + $0x3c] sm:$0xff]
    %v483 = vld [vmem:[%s471 + $0x44] sm:$0xf]
    %v484 = vld [vmem:[%s471 + $0x48] sm:$0xff]
    %v485 = vld [vmem:[%s471 + $0x50] sm:$0xf]
    %v486 = vld [vmem:[%s471 + $0x54] sm:$0xff]
    %v487 = vld [vmem:[%s471 + $0x5c] sm:$0xf]
    %v488 = vld [vmem:[%s471 + $0x60] sm:$0xff]
    %v489 = vld [vmem:[%s471 + $0x68] sm:$0xf]
    %v490 = vld [vmem:[%s471 + $0x6c] sm:$0xff]
    %v491 = vld [vmem:[%s471 + $0x74] sm:$0xf]
    %v492 = vld [vmem:[%s471 + $0x78] sm:$0xff]
    %v493 = vld [vmem:[%s471 + $0x80] sm:$0xf]
    %v494 = vld [vmem:[%s471 + $0x84] sm:$0xff]
    %v495 = vld [vmem:[%s471 + $0x8c] sm:$0xf]
    %v496 = vld [vmem:[%s471 + $0x90] sm:$0xff]
    %v497 = vld [vmem:[%s471 + $0x98] sm:$0xf]
    %v498 = vld [vmem:[%s471 + $0x9c] sm:$0xff]
    %v499 = vld [vmem:[%s471 + $0xa4] sm:$0xf]
    %v500 = vld [vmem:[%s471 + $0xa8] sm:$0xff]
    %v501 = vld [vmem:[%s471 + $0xb0] sm:$0xf]
    %v502 = vld [vmem:[%s471 + $0xb4] sm:$0xff]
    %v503 = vld [vmem:[%s471 + $0xbc] sm:$0xf]
    %v504 = vld [vmem:[#allocation9] sm:$0x7]
    %s505 = scalar_lea.vmem [#allocation9], 3
    %v506 = vld [vmem:[%s505] sm:$0x7]
    %v507 = vld [vmem:[#allocation2] sm:$0xff]
    %v508 = vld [vmem:[#allocation2 + $0x8] sm:$0xff]
    %v509 = vld [vmem:[#allocation2 + $0x10] sm:$0xff]
    %s510 = scalar_lea.vmem %s414, 168 [#allocation2]
    %v511 = vld [vmem:[%s510] sm:$0xff]
    %v512 = vld [vmem:[%s510 + $0x8] sm:$0xff]
    %v513 = vld [vmem:[%s510 + $0x10] sm:$0xff]
    %v515 = vperm.slane %v504, 0
    %v516 = vperm.slane %v504, 1
    %v517 = vperm.slane %v504, 2
    %v553 = vunpack.c.l.b16 %v439
    %v554 = vunpack.c.h.b16 %v439
    %v555 = vunpack.c.l.b16 %v440
    %v556 = vunpack.c.l.b16 %v441
    %v557 = vunpack.c.h.b16 %v441
    %v558 = vunpack.c.l.b16 %v442
    %v559 = vunpack.c.l.b16 %v443
    %v560 = vunpack.c.h.b16 %v443
    %v561 = vunpack.c.l.b16 %v444
    %v562 = vunpack.c.l.b16 %v445
    %v563 = vunpack.c.h.b16 %v445
    %v564 = vunpack.c.l.b16 %v446
    %v565 = vunpack.c.l.b16 %v447
    %v566 = vunpack.c.h.b16 %v447
    %v567 = vunpack.c.l.b16 %v448
    %v568 = vunpack.c.l.b16 %v449
    %v569 = vunpack.c.h.b16 %v449
    %v570 = vunpack.c.l.b16 %v450
    %v571 = vunpack.c.l.b16 %v451
    %v572 = vunpack.c.h.b16 %v451
    %v573 = vunpack.c.l.b16 %v452
    %v574 = vunpack.c.l.b16 %v453
    %v575 = vunpack.c.h.b16 %v453
    %v576 = vunpack.c.l.b16 %v454
    %v577 = vunpack.c.l.b16 %v455
    %v578 = vunpack.c.h.b16 %v455
    %v579 = vunpack.c.l.b16 %v456
    %v580 = vunpack.c.l.b16 %v457
    %v581 = vunpack.c.h.b16 %v457
    %v582 = vunpack.c.l.b16 %v458
    %v583 = vunpack.c.l.b16 %v459
    %v584 = vunpack.c.h.b16 %v459
    %v585 = vunpack.c.l.b16 %v460
    %v586 = vunpack.c.l.b16 %v461
    %v587 = vunpack.c.h.b16 %v461
    %v588 = vunpack.c.l.b16 %v462
    %v589 = vunpack.c.l.b16 %v463
    %v590 = vunpack.c.h.b16 %v463
    %v591 = vunpack.c.l.b16 %v464
    %v592 = vunpack.c.l.b16 %v465
    %v593 = vunpack.c.h.b16 %v465
    %v594 = vunpack.c.l.b16 %v466
    %v595 = vunpack.c.l.b16 %v467
    %v596 = vunpack.c.h.b16 %v467
    %v597 = vunpack.c.l.b16 %v468
    %v598 = vunpack.c.l.b16 %v469
    %v599 = vunpack.c.h.b16 %v469
    %v600 = vunpack.c.l.b16 %v470
    %v601 = vpack.c.b16 %v556, %v553
    %v602 = vpack.c.b16 %v557, %v554
    %v603 = vpack.c.b16 %v558, %v555
    %v604 = vpack.c.b16 %v562, %v559
    %v605 = vpack.c.b16 %v563, %v560
    %v606 = vpack.c.b16 %v564, %v561
    %v607 = vpack.c.b16 %v568, %v565
    %v608 = vpack.c.b16 %v569, %v566
    %v609 = vpack.c.b16 %v570, %v567
    %v610 = vpack.c.b16 %v574, %v571
    %v611 = vpack.c.b16 %v575, %v572
    %v612 = vpack.c.b16 %v576, %v573
    %v613 = vpack.c.b16 %v580, %v577
    %v614 = vpack.c.b16 %v581, %v578
    %v615 = vpack.c.b16 %v582, %v579
    %v616 = vpack.c.b16 %v586, %v583
    %v617 = vpack.c.b16 %v587, %v584
    %v618 = vpack.c.b16 %v588, %v585
    %v619 = vpack.c.b16 %v592, %v589
    %v620 = vpack.c.b16 %v593, %v590
    %v621 = vpack.c.b16 %v594, %v591
    %v622 = vpack.c.b16 %v598, %v595
    %v623 = vpack.c.b16 %v599, %v596
    %v624 = vpack.c.b16 %v600, %v597
    %649 = vmatpush.bf16.msra.mxu0 %v622
    %650 = vmatpush.bf16.msra.mxu0 %v619
    %651 = vmatpush.bf16.msra.mxu0 %v616
    %652 = vmatpush.bf16.msra.mxu0 %v613
    %653 = vmatpush.bf16.msra.mxu0 %v610
    %654 = vmatpush.bf16.msra.mxu0 %v607
    %655 = vmatpush.bf16.msra.mxu0 %v604
    %656 = vmatpush.bf16.msra.mxu0 %v601
    %657 = vmatmul.bf16.gmra.mxu0 0
    %v658 = vpop.f32.mrf.mxu0
    %v659 = vadd.f32 %v515, %v658
    %v660 = vpop.f32.mrf.mxu0
    %661 = vdwg.mxu0
    %662 = vmatpush.bf16.msra.mxu0 %v623
    %663 = vmatpush.bf16.msra.mxu0 %v620
    %664 = vmatpush.bf16.msra.mxu0 %v617
    %665 = vmatpush.bf16.msra.mxu0 %v614
    %666 = vmatpush.bf16.msra.mxu0 %v611
    %667 = vmatpush.bf16.msra.mxu0 %v608
    %668 = vmatpush.bf16.msra.mxu0 %v605
    %669 = vmatpush.bf16.msra.mxu0 %v602
    %670 = vmatmul.bf16.gmra.mxu0 0
    %v671 = vpop.f32.mrf.mxu0
    %v672 = vadd.f32 %v516, %v671
    %v673 = vpop.f32.mrf.mxu0
    %674 = vdwg.mxu0
    %675 = vmatpush.bf16.msra.mxu0 %v624
    %676 = vmatpush.bf16.msra.mxu0 %v621
    %677 = vmatpush.bf16.msra.mxu0 %v618
    %678 = vmatpush.bf16.msra.mxu0 %v615
    %679 = vmatpush.bf16.msra.mxu0 %v612
    %680 = vmatpush.bf16.msra.mxu0 %v609
    %681 = vmatpush.bf16.msra.mxu0 %v606
    %682 = vmatpush.bf16.msra.mxu0 %v603
    %683 = vmatmul.bf16.gmra.mxu0 0
    %v684 = vpop.f32.mrf.mxu0
    %v685 = vadd.f32 %v517, %v684
    %v686 = vpop.f32.mrf.mxu0
    %687 = vdwg.mxu0
    %v689 = vperm.slane %v506, 0
    %v690 = vperm.slane %v506, 1
    %v691 = vperm.slane %v506, 2
    %v727 = vunpack.c.l.b16 %v472
    %v728 = vunpack.c.h.b16 %v472
    %v729 = vunpack.c.l.b16 %v473
    %v730 = vunpack.c.l.b16 %v474
    %v731 = vunpack.c.h.b16 %v474
    %v732 = vunpack.c.l.b16 %v475
    %v733 = vunpack.c.l.b16 %v476
    %v734 = vunpack.c.h.b16 %v476
    %v735 = vunpack.c.l.b16 %v477
    %v736 = vunpack.c.l.b16 %v478
    %v737 = vunpack.c.h.b16 %v478
    %v738 = vunpack.c.l.b16 %v479
    %v739 = vunpack.c.l.b16 %v480
    %v740 = vunpack.c.h.b16 %v480
    %v741 = vunpack.c.l.b16 %v481
    %v742 = vunpack.c.l.b16 %v482
    %v743 = vunpack.c.h.b16 %v482
    %v744 = vunpack.c.l.b16 %v483
    %v745 = vunpack.c.l.b16 %v484
    %v746 = vunpack.c.h.b16 %v484
    %v747 = vunpack.c.l.b16 %v485
    %v748 = vunpack.c.l.b16 %v486
    %v749 = vunpack.c.h.b16 %v486
    %v750 = vunpack.c.l.b16 %v487
    %v751 = vunpack.c.l.b16 %v488
    %v752 = vunpack.c.h.b16 %v488
    %v753 = vunpack.c.l.b16 %v489
    %v754 = vunpack.c.l.b16 %v490
    %v755 = vunpack.c.h.b16 %v490
    %v756 = vunpack.c.l.b16 %v491
    %v757 = vunpack.c.l.b16 %v492
    %v758 = vunpack.c.h.b16 %v492
    %v759 = vunpack.c.l.b16 %v493
    %v760 = vunpack.c.l.b16 %v494
    %v761 = vunpack.c.h.b16 %v494
    %v762 = vunpack.c.l.b16 %v495
    %v763 = vunpack.c.l.b16 %v496
    %v764 = vunpack.c.h.b16 %v496
    %v765 = vunpack.c.l.b16 %v497
    %v766 = vunpack.c.l.b16 %v498
    %v767 = vunpack.c.h.b16 %v498
    %v768 = vunpack.c.l.b16 %v499
    %v769 = vunpack.c.l.b16 %v500
    %v770 = vunpack.c.h.b16 %v500
    %v771 = vunpack.c.l.b16 %v501
    %v772 = vunpack.c.l.b16 %v502
    %v773 = vunpack.c.h.b16 %v502
    %v774 = vunpack.c.l.b16 %v503
    %v775 = vpack.c.b16 %v730, %v727
    %v776 = vpack.c.b16 %v731, %v728
    %v777 = vpack.c.b16 %v732, %v729
    %v778 = vpack.c.b16 %v736, %v733
    %v779 = vpack.c.b16 %v737, %v734
    %v780 = vpack.c.b16 %v738, %v735
    %v781 = vpack.c.b16 %v742, %v739
    %v782 = vpack.c.b16 %v743, %v740
    %v783 = vpack.c.b16 %v744, %v741
    %v784 = vpack.c.b16 %v748, %v745
    %v785 = vpack.c.b16 %v749, %v746
    %v786 = vpack.c.b16 %v750, %v747
    %v787 = vpack.c.b16 %v754, %v751
    %v788 = vpack.c.b16 %v755, %v752
    %v789 = vpack.c.b16 %v756, %v753
    %v790 = vpack.c.b16 %v760, %v757
    %v791 = vpack.c.b16 %v761, %v758
    %v792 = vpack.c.b16 %v762, %v759
    %v793 = vpack.c.b16 %v766, %v763
    %v794 = vpack.c.b16 %v767, %v764
    %v795 = vpack.c.b16 %v768, %v765
    %v796 = vpack.c.b16 %v772, %v769
    %v797 = vpack.c.b16 %v773, %v770
    %v798 = vpack.c.b16 %v774, %v771
    %823 = vmatpush.bf16.msra.mxu0 %v796
    %824 = vmatpush.bf16.msra.mxu0 %v793
    %825 = vmatpush.bf16.msra.mxu0 %v790
    %826 = vmatpush.bf16.msra.mxu0 %v787
    %827 = vmatpush.bf16.msra.mxu0 %v784
    %828 = vmatpush.bf16.msra.mxu0 %v781
    %829 = vmatpush.bf16.msra.mxu0 %v778
    %830 = vmatpush.bf16.msra.mxu0 %v775
    %831 = vmatmul.bf16.gmra.mxu0 0
    %v832 = vpop.f32.mrf.mxu0
    %v833 = vadd.f32 %v689, %v832
    %v834 = vpop.f32.mrf.mxu0
    %835 = vdwg.mxu0
    %836 = vmatpush.bf16.msra.mxu0 %v797
    %837 = vmatpush.bf16.msra.mxu0 %v794
    %838 = vmatpush.bf16.msra.mxu0 %v791
    %839 = vmatpush.bf16.msra.mxu0 %v788
    %840 = vmatpush.bf16.msra.mxu0 %v785
    %841 = vmatpush.bf16.msra.mxu0 %v782
    %842 = vmatpush.bf16.msra.mxu0 %v779
    %843 = vmatpush.bf16.msra.mxu0 %v776
    %844 = vmatmul.bf16.gmra.mxu0 0
    %v845 = vpop.f32.mrf.mxu0
    %v846 = vadd.f32 %v690, %v845
    %v847 = vpop.f32.mrf.mxu0
    %848 = vdwg.mxu0
    %849 = vmatpush.bf16.msra.mxu0 %v798
    %850 = vmatpush.bf16.msra.mxu0 %v795
    %851 = vmatpush.bf16.msra.mxu0 %v792
    %852 = vmatpush.bf16.msra.mxu0 %v789
    %853 = vmatpush.bf16.msra.mxu0 %v786
    %854 = vmatpush.bf16.msra.mxu0 %v783
    %855 = vmatpush.bf16.msra.mxu0 %v780
    %856 = vmatpush.bf16.msra.mxu0 %v777
    %857 = vmatmul.bf16.gmra.mxu0 0
    %v858 = vpop.f32.mrf.mxu0
    %v859 = vadd.f32 %v691, %v858
    %v860 = vpop.f32.mrf.mxu0
    %861 = vdwg.mxu0
    %v862 = vadd.f32 %v507, %v659
    %v863 = vxor.u32 %v862, 2147483648
    %v864 = vmul.f32 %v863, 1.442695
    %v865 = vpow.pop %v864
    %v866 = vadd.f32 %v865, 1.0
    %v867 = vrcp.pop %v866
    %v868 = vmul.f32 %v866, %v867
    %v869 = vsub.f32 1.0, %v868
    %v870 = vmul.f32 %v867, %v869
    %v871 = vadd.f32 %v867, %v870
    %vm872 = vweird.f32 %v866
    %vm873 = vweird.f32 %v867
    %vm874 = vmor %vm872, %vm873
    %v875 = vsel %vm874, %v867, %v871
    %v876 = vand.u32 2147483647, %v866
    %vm877 = vcmp.eq.f32.partialorder %v876, 8.507059e+37
    %v878 = vand.u32 %v866, 2147483648
    %v879 = vor.u32 1.1754944e-38, %v878
    %v880 = vsel %vm877, %v879, %v875
    %v881 = vmul.f32 1.0, %v880
    %v882 = vadd.f32 %v508, %v672
    %v883 = vxor.u32 %v882, 2147483648
    %v884 = vmul.f32 %v883, 1.442695
    %v885 = vpow.pop %v884
    %v886 = vadd.f32 %v885, 1.0
    %v887 = vrcp.pop %v886
    %v888 = vmul.f32 %v886, %v887
    %v889 = vsub.f32 1.0, %v888
    %v890 = vmul.f32 %v887, %v889
    %v891 = vadd.f32 %v887, %v890
    %vm892 = vweird.f32 %v886
    %vm893 = vweird.f32 %v887
    %vm894 = vmor %vm892, %vm893
    %v895 = vsel %vm894, %v887, %v891
    %v896 = vand.u32 2147483647, %v886
    %vm897 = vcmp.eq.f32.partialorder %v896, 8.507059e+37
    %v898 = vand.u32 %v886, 2147483648
    %v899 = vor.u32 1.1754944e-38, %v898
    %v900 = vsel %vm897, %v899, %v895
    %v901 = vmul.f32 1.0, %v900
    %v902 = vmul.f32 %v881, %v685
    %v903 = vadd.f32 %v509, %v902
    %v904 = vtanh.pop %v903
    %v905 = vsub.f32 1.0, %v901
    %v906 = vmul.f32 %v905, %v904
    %v907 = vmul.f32 %v901, 0.0
    %v908 = vadd.f32 %v906, %v907
    %v909 = vadd.f32 %v511, %v833
    %v910 = vxor.u32 %v909, 2147483648
    %v911 = vmul.f32 %v910, 1.442695
    %v912 = vpow.pop %v911
    %v913 = vadd.f32 %v912, 1.0
    %v914 = vrcp.pop %v913
    %v915 = vmul.f32 %v913, %v914
    %v916 = vsub.f32 1.0, %v915
    %v917 = vmul.f32 %v914, %v916
    %v918 = vadd.f32 %v914, %v917
    %vm919 = vweird.f32 %v913
    %vm920 = vweird.f32 %v914
    %vm921 = vmor %vm919, %vm920
    %v922 = vsel %vm921, %v914, %v918
    %v923 = vand.u32 2147483647, %v913
    %vm924 = vcmp.eq.f32.partialorder %v923, 8.507059e+37
    %v925 = vand.u32 %v913, 2147483648
    %v926 = vor.u32 1.1754944e-38, %v925
    %v927 = vsel %vm924, %v926, %v922
    %v928 = vmul.f32 1.0, %v927
    %v929 = vadd.f32 %v512, %v846
    %v930 = vxor.u32 %v929, 2147483648
    %v931 = vmul.f32 %v930, 1.442695
    %v932 = vpow.pop %v931
    %v933 = vadd.f32 %v932, 1.0
    %v934 = vrcp.pop %v933
    %v935 = vmul.f32 %v933, %v934
    %v936 = vsub.f32 1.0, %v935
    %v937 = vmul.f32 %v934, %v936
    %v938 = vadd.f32 %v934, %v937
    %vm939 = vweird.f32 %v933
    %vm940 = vweird.f32 %v934
    %vm941 = vmor %vm939, %vm940
    %v942 = vsel %vm941, %v934, %v938
    %v943 = vand.u32 2147483647, %v933
    %vm944 = vcmp.eq.f32.partialorder %v943, 8.507059e+37
    %v945 = vand.u32 %v933, 2147483648
    %v946 = vor.u32 1.1754944e-38, %v945
    %v947 = vsel %vm944, %v946, %v942
    %v948 = vmul.f32 1.0, %v947
    %v949 = vmul.f32 %v928, %v859
    %v950 = vadd.f32 %v513, %v949
    %v951 = vtanh.pop %v950
    %v952 = vsub.f32 1.0, %v948
    %v953 = vmul.f32 %v952, %v951
    %v954 = vmul.f32 %v948, 0.0
    %v955 = vadd.f32 %v953, %v954
    %956 = vst [vmem:[#allocation3] sm:$0xff] %v908
    %s957 = scalar_lea.vmem [#allocation4], 56
    %958 = vst [vmem:[%s957] sm:$0xff] %v955
    %s959 = scalar_lea.vmem [#allocation2], 24
    %v960 = vld [vmem:[%s959] sm:$0xff]
    %v961 = vld [vmem:[%s959 + $0x8] sm:$0xff]
    %v962 = vld [vmem:[%s959 + $0x10] sm:$0xff]
    %s963 = scalar_lea.vmem %s414, 144 [#allocation2]
    %v964 = vld [vmem:[%s963] sm:$0xff]
    %v965 = vld [vmem:[%s963 + $0x8] sm:$0xff]
    %v966 = vld [vmem:[%s963 + $0x10] sm:$0xff]
    %v967 = vpack.c.bf16 %v908, %v908
    %968 = vmatpush.bf16.msra.mxu0 %v622
    %969 = vmatpush.bf16.msra.mxu0 %v619
    %970 = vmatpush.bf16.msra.mxu0 %v616
    %971 = vmatpush.bf16.msra.mxu0 %v613
    %972 = vmatpush.bf16.msra.mxu0 %v610
    %973 = vmatpush.bf16.msra.mxu0 %v607
    %974 = vmatpush.bf16.msra.mxu0 %v604
    %975 = vmatpush.bf16.msra.mxu0 %v601
    %976 = vmatmul.bf16.gmra.mxu0 %v967
    %v977 = vpop.f32.mrf.mxu0
    %v978 = vadd.f32 %v515, %v977
    %v979 = vpop.f32.mrf.mxu0
    %980 = vdwg.mxu0
    %981 = vmatpush.bf16.msra.mxu0 %v623
    %982 = vmatpush.bf16.msra.mxu0 %v620
    %983 = vmatpush.bf16.msra.mxu0 %v617
    %984 = vmatpush.bf16.msra.mxu0 %v614
    %985 = vmatpush.bf16.msra.mxu0 %v611
    %986 = vmatpush.bf16.msra.mxu0 %v608
    %987 = vmatpush.bf16.msra.mxu0 %v605
    %988 = vmatpush.bf16.msra.mxu0 %v602
    %989 = vmatmul.bf16.gmra.mxu0 %v967
    %v990 = vpop.f32.mrf.mxu0
    %v991 = vadd.f32 %v516, %v990
    %v992 = vpop.f32.mrf.mxu0
    %993 = vdwg.mxu0
    %994 = vmatpush.bf16.msra.mxu0 %v624
    %995 = vmatpush.bf16.msra.mxu0 %v621
    %996 = vmatpush.bf16.msra.mxu0 %v618
    %997 = vmatpush.bf16.msra.mxu0 %v615
    %998 = vmatpush.bf16.msra.mxu0 %v612
    %999 = vmatpush.bf16.msra.mxu0 %v609
    %1000 = vmatpush.bf16.msra.mxu0 %v606
    %1001 = vmatpush.bf16.msra.mxu0 %v603
    %1002 = vmatmul.bf16.gmra.mxu0 %v967
    %v1003 = vpop.f32.mrf.mxu0
    %v1004 = vadd.f32 %v517, %v1003
    %v1005 = vpop.f32.mrf.mxu0
    %1006 = vdwg.mxu0
    %v1007 = vpack.c.bf16 %v955, %v955
    %1008 = vmatpush.bf16.msra.mxu0 %v796
    %1009 = vmatpush.bf16.msra.mxu0 %v793
    %1010 = vmatpush.bf16.msra.mxu0 %v790
    %1011 = vmatpush.bf16.msra.mxu0 %v787
    %1012 = vmatpush.bf16.msra.mxu0 %v784
    %1013 = vmatpush.bf16.msra.mxu0 %v781
    %1014 = vmatpush.bf16.msra.mxu0 %v778
    %1015 = vmatpush.bf16.msra.mxu0 %v775
    %1016 = vmatmul.bf16.gmra.mxu0 %v1007
    %v1017 = vpop.f32.mrf.mxu0
    %v1018 = vadd.f32 %v689, %v1017
    %v1019 = vpop.f32.mrf.mxu0
    %1020 = vdwg.mxu0
    %1021 = vmatpush.bf16.msra.mxu0 %v797
    %1022 = vmatpush.bf16.msra.mxu0 %v794
    %1023 = vmatpush.bf16.msra.mxu0 %v791
    %1024 = vmatpush.bf16.msra.mxu0 %v788
    %1025 = vmatpush.bf16.msra.mxu0 %v785
    %1026 = vmatpush.bf16.msra.mxu0 %v782
    %1027 = vmatpush.bf16.msra.mxu0 %v779
    %1028 = vmatpush.bf16.msra.mxu0 %v776
    %1029 = vmatmul.bf16.gmra.mxu0 %v1007
    %v1030 = vpop.f32.mrf.mxu0
    %v1031 = vadd.f32 %v690, %v1030
    %v1032 = vpop.f32.mrf.mxu0
    %1033 = vdwg.mxu0
    %1034 = vmatpush.bf16.msra.mxu0 %v798
    %1035 = vmatpush.bf16.msra.mxu0 %v795
    %1036 = vmatpush.bf16.msra.mxu0 %v792
    %1037 = vmatpush.bf16.msra.mxu0 %v789
    %1038 = vmatpush.bf16.msra.mxu0 %v786
    %1039 = vmatpush.bf16.msra.mxu0 %v783
    %1040 = vmatpush.bf16.msra.mxu0 %v780
    %1041 = vmatpush.bf16.msra.mxu0 %v777
    %1042 = vmatmul.bf16.gmra.mxu0 %v1007
    %v1043 = vpop.f32.mrf.mxu0
    %v1044 = vadd.f32 %v691, %v1043
    %v1045 = vpop.f32.mrf.mxu0
    %1046 = vdwg.mxu0
    %v1047 = vadd.f32 %v960, %v978
    %v1048 = vxor.u32 %v1047, 2147483648
    %v1049 = vmul.f32 %v1048, 1.442695
    %v1050 = vpow.pop %v1049
    %v1051 = vadd.f32 %v1050, 1.0
    %v1052 = vrcp.pop %v1051
    %v1053 = vmul.f32 %v1051, %v1052
    %v1054 = vsub.f32 1.0, %v1053
    %v1055 = vmul.f32 %v1052, %v1054
    %v1056 = vadd.f32 %v1052, %v1055
    %vm1057 = vweird.f32 %v1051
    %vm1058 = vweird.f32 %v1052
    %vm1059 = vmor %vm1057, %vm1058
    %v1060 = vsel %vm1059, %v1052, %v1056
    %v1061 = vand.u32 2147483647, %v1051
    %vm1062 = vcmp.eq.f32.partialorder %v1061, 8.507059e+37
    %v1063 = vand.u32 %v1051, 2147483648
    %v1064 = vor.u32 1.1754944e-38, %v1063
    %v1065 = vsel %vm1062, %v1064, %v1060
    %v1066 = vmul.f32 1.0, %v1065
    %v1067 = vadd.f32 %v961, %v991
    %v1068 = vxor.u32 %v1067, 2147483648
    %v1069 = vmul.f32 %v1068, 1.442695
    %v1070 = vpow.pop %v1069
    %v1071 = vadd.f32 %v1070, 1.0
    %v1072 = vrcp.pop %v1071
    %v1073 = vmul.f32 %v1071, %v1072
    %v1074 = vsub.f32 1.0, %v1073
    %v1075 = vmul.f32 %v1072, %v1074
    %v1076 = vadd.f32 %v1072, %v1075
    %vm1077 = vweird.f32 %v1071
    %vm1078 = vweird.f32 %v1072
    %vm1079 = vmor %vm1077, %vm1078
    %v1080 = vsel %vm1079, %v1072, %v1076
    %v1081 = vand.u32 2147483647, %v1071
    %vm1082 = vcmp.eq.f32.partialorder %v1081, 8.507059e+37
    %v1083 = vand.u32 %v1071, 2147483648
    %v1084 = vor.u32 1.1754944e-38, %v1083
    %v1085 = vsel %vm1082, %v1084, %v1080
    %v1086 = vmul.f32 1.0, %v1085
    %v1087 = vmul.f32 %v1066, %v1004
    %v1088 = vadd.f32 %v962, %v1087
    %v1089 = vtanh.pop %v1088
    %v1090 = vsub.f32 1.0, %v1086
    %v1091 = vmul.f32 %v1090, %v1089
    %v1092 = vmul.f32 %v1086, %v908
    %v1093 = vadd.f32 %v1091, %v1092
    %v1094 = vadd.f32 %v964, %v1018
    %v1095 = vxor.u32 %v1094, 2147483648
    %v1096 = vmul.f32 %v1095, 1.442695
    %v1097 = vpow.pop %v1096
    %v1098 = vadd.f32 %v1097, 1.0
    %v1099 = vrcp.pop %v1098
    %v1100 = vmul.f32 %v1098, %v1099
    %v1101 = vsub.f32 1.0, %v1100
    %v1102 = vmul.f32 %v1099, %v1101
    %v1103 = vadd.f32 %v1099, %v1102
    %vm1104 = vweird.f32 %v1098
    %vm1105 = vweird.f32 %v1099
    %vm1106 = vmor %vm1104, %vm1105
    %v1107 = vsel %vm1106, %v1099, %v1103
    %v1108 = vand.u32 2147483647, %v1098
    %vm1109 = vcmp.eq.f32.partialorder %v1108, 8.507059e+37
    %v1110 = vand.u32 %v1098, 2147483648
    %v1111 = vor.u32 1.1754944e-38, %v1110
    %v1112 = vsel %vm1109, %v1111, %v1107
    %v1113 = vmul.f32 1.0, %v1112
    %v1114 = vadd.f32 %v965, %v1031
    %v1115 = vxor.u32 %v1114, 2147483648
    %v1116 = vmul.f32 %v1115, 1.442695
    %v1117 = vpow.pop %v1116
    %v1118 = vadd.f32 %v1117, 1.0
    %v1119 = vrcp.pop %v1118
    %v1120 = vmul.f32 %v1118, %v1119
    %v1121 = vsub.f32 1.0, %v1120
    %v1122 = vmul.f32 %v1119, %v1121
    %v1123 = vadd.f32 %v1119, %v1122
    %vm1124 = vweird.f32 %v1118
    %vm1125 = vweird.f32 %v1119
    %vm1126 = vmor %vm1124, %vm1125
    %v1127 = vsel %vm1126, %v1119, %v1123
    %v1128 = vand.u32 2147483647, %v1118
    %vm1129 = vcmp.eq.f32.partialorder %v1128, 8.507059e+37
    %v1130 = vand.u32 %v1118, 2147483648
    %v1131 = vor.u32 1.1754944e-38, %v1130
    %v1132 = vsel %vm1129, %v1131, %v1127
    %v1133 = vmul.f32 1.0, %v1132
    %v1134 = vmul.f32 %v1113, %v1044
    %v1135 = vadd.f32 %v966, %v1134
    %v1136 = vtanh.pop %v1135
    %v1137 = vsub.f32 1.0, %v1133
    %v1138 = vmul.f32 %v1137, %v1136
    %v1139 = vmul.f32 %v1133, %v955
    %v1140 = vadd.f32 %v1138, %v1139
    %s1141 = scalar_lea.vmem [#allocation3], 8
    %1142 = vst [vmem:[%s1141] sm:$0xff] %v1093
    %s1143 = scalar_lea.vmem [#allocation4], 48
    %1144 = vst [vmem:[%s1143] sm:$0xff] %v1140
    %s1145 = scalar_lea.vmem [#allocation2], 48
    %v1146 = vld [vmem:[%s1145] sm:$0xff]
    %v1147 = vld [vmem:[%s1145 + $0x8] sm:$0xff]
    %v1148 = vld [vmem:[%s1145 + $0x10] sm:$0xff]
    %s1149 = scalar_lea.vmem %s414, 120 [#allocation2]
    %v1150 = vld [vmem:[%s1149] sm:$0xff]
    %v1151 = vld [vmem:[%s1149 + $0x8] sm:$0xff]
    %v1152 = vld [vmem:[%s1149 + $0x10] sm:$0xff]
    %v1153 = vpack.c.bf16 %v1093, %v1093
    %1154 = vmatpush.bf16.msra.mxu0 %v622
    %1155 = vmatpush.bf16.msra.mxu0 %v619
    %1156 = vmatpush.bf16.msra.mxu0 %v616
    %1157 = vmatpush.bf16.msra.mxu0 %v613
    %1158 = vmatpush.bf16.msra.mxu0 %v610
    %1159 = vmatpush.bf16.msra.mxu0 %v607
    %1160 = vmatpush.bf16.msra.mxu0 %v604
    %1161 = vmatpush.bf16.msra.mxu0 %v601
    %1162 = vmatmul.bf16.gmra.mxu0 %v1153
    %v1163 = vpop.f32.mrf.mxu0
    %v1164 = vadd.f32 %v515, %v1163
    %v1165 = vpop.f32.mrf.mxu0
    %1166 = vdwg.mxu0
    %1167 = vmatpush.bf16.msra.mxu0 %v623
    %1168 = vmatpush.bf16.msra.mxu0 %v620
    %1169 = vmatpush.bf16.msra.mxu0 %v617
    %1170 = vmatpush.bf16.msra.mxu0 %v614
    %1171 = vmatpush.bf16.msra.mxu0 %v611
    %1172 = vmatpush.bf16.msra.mxu0 %v608
    %1173 = vmatpush.bf16.msra.mxu0 %v605
    %1174 = vmatpush.bf16.msra.mxu0 %v602
    %1175 = vmatmul.bf16.gmra.mxu0 %v1153
    %v1176 = vpop.f32.mrf.mxu0
    %v1177 = vadd.f32 %v516, %v1176
    %v1178 = vpop.f32.mrf.mxu0
    %1179 = vdwg.mxu0
    %1180 = vmatpush.bf16.msra.mxu0 %v624
    %1181 = vmatpush.bf16.msra.mxu0 %v621
    %1182 = vmatpush.bf16.msra.mxu0 %v618
    %1183 = vmatpush.bf16.msra.mxu0 %v615
    %1184 = vmatpush.bf16.msra.mxu0 %v612
    %1185 = vmatpush.bf16.msra.mxu0 %v609
    %1186 = vmatpush.bf16.msra.mxu0 %v606
    %1187 = vmatpush.bf16.msra.mxu0 %v603
    %1188 = vmatmul.bf16.gmra.mxu0 %v1153
    %v1189 = vpop.f32.mrf.mxu0
    %v1190 = vadd.f32 %v517, %v1189
    %v1191 = vpop.f32.mrf.mxu0
    %1192 = vdwg.mxu0
    %v1193 = vpack.c.bf16 %v1140, %v1140
    %1194 = vmatpush.bf16.msra.mxu0 %v796
    %1195 = vmatpush.bf16.msra.mxu0 %v793
    %1196 = vmatpush.bf16.msra.mxu0 %v790
    %1197 = vmatpush.bf16.msra.mxu0 %v787
    %1198 = vmatpush.bf16.msra.mxu0 %v784
    %1199 = vmatpush.bf16.msra.mxu0 %v781
    %1200 = vmatpush.bf16.msra.mxu0 %v778
    %1201 = vmatpush.bf16.msra.mxu0 %v775
    %1202 = vmatmul.bf16.gmra.mxu0 %v1193
    %v1203 = vpop.f32.mrf.mxu0
    %v1204 = vadd.f32 %v689, %v1203
    %v1205 = vpop.f32.mrf.mxu0
    %1206 = vdwg.mxu0
    %1207 = vmatpush.bf16.msra.mxu0 %v797
    %1208 = vmatpush.bf16.msra.mxu0 %v794
    %1209 = vmatpush.bf16.msra.mxu0 %v791
    %1210 = vmatpush.bf16.msra.mxu0 %v788
    %1211 = vmatpush.bf16.msra.mxu0 %v785
    %1212 = vmatpush.bf16.msra.mxu0 %v782
    %1213 = vmatpush.bf16.msra.mxu0 %v779
    %1214 = vmatpush.bf16.msra.mxu0 %v776
    %1215 = vmatmul.bf16.gmra.mxu0 %v1193
    %v1216 = vpop.f32.mrf.mxu0
    %v1217 = vadd.f32 %v690, %v1216
    %v1218 = vpop.f32.mrf.mxu0
    %1219 = vdwg.mxu0
    %1220 = vmatpush.bf16.msra.mxu0 %v798
    %1221 = vmatpush.bf16.msra.mxu0 %v795
    %1222 = vmatpush.bf16.msra.mxu0 %v792
    %1223 = vmatpush.bf16.msra.mxu0 %v789
    %1224 = vmatpush.bf16.msra.mxu0 %v786
    %1225 = vmatpush.bf16.msra.mxu0 %v783
    %1226 = vmatpush.bf16.msra.mxu0 %v780
    %1227 = vmatpush.bf16.msra.mxu0 %v777
    %1228 = vmatmul.bf16.gmra.mxu0 %v1193
    %v1229 = vpop.f32.mrf.mxu0
    %v1230 = vadd.f32 %v691, %v1229
    %v1231 = vpop.f32.mrf.mxu0
    %1232 = vdwg.mxu0
    %v1233 = vadd.f32 %v1146, %v1164
    %v1234 = vxor.u32 %v1233, 2147483648
    %v1235 = vmul.f32 %v1234, 1.442695
    %v1236 = vpow.pop %v1235
    %v1237 = vadd.f32 %v1236, 1.0
    %v1238 = vrcp.pop %v1237
    %v1239 = vmul.f32 %v1237, %v1238
    %v1240 = vsub.f32 1.0, %v1239
    %v1241 = vmul.f32 %v1238, %v1240
    %v1242 = vadd.f32 %v1238, %v1241
    %vm1243 = vweird.f32 %v1237
    %vm1244 = vweird.f32 %v1238
    %vm1245 = vmor %vm1243, %vm1244
    %v1246 = vsel %vm1245, %v1238, %v1242
    %v1247 = vand.u32 2147483647, %v1237
    %vm1248 = vcmp.eq.f32.partialorder %v1247, 8.507059e+37
    %v1249 = vand.u32 %v1237, 2147483648
    %v1250 = vor.u32 1.1754944e-38, %v1249
    %v1251 = vsel %vm1248, %v1250, %v1246
    %v1252 = vmul.f32 1.0, %v1251
    %v1253 = vadd.f32 %v1147, %v1177
    %v1254 = vxor.u32 %v1253, 2147483648
    %v1255 = vmul.f32 %v1254, 1.442695
    %v1256 = vpow.pop %v1255
    %v1257 = vadd.f32 %v1256, 1.0
    %v1258 = vrcp.pop %v1257
    %v1259 = vmul.f32 %v1257, %v1258
    %v1260 = vsub.f32 1.0, %v1259
    %v1261 = vmul.f32 %v1258, %v1260
    %v1262 = vadd.f32 %v1258, %v1261
    %vm1263 = vweird.f32 %v1257
    %vm1264 = vweird.f32 %v1258
    %vm1265 = vmor %vm1263, %vm1264
    %v1266 = vsel %vm1265, %v1258, %v1262
    %v1267 = vand.u32 2147483647, %v1257
    %vm1268 = vcmp.eq.f32.partialorder %v1267, 8.507059e+37
    %v1269 = vand.u32 %v1257, 2147483648
    %v1270 = vor.u32 1.1754944e-38, %v1269
    %v1271 = vsel %vm1268, %v1270, %v1266
    %v1272 = vmul.f32 1.0, %v1271
    %v1273 = vmul.f32 %v1252, %v1190
    %v1274 = vadd.f32 %v1148, %v1273
    %v1275 = vtanh.pop %v1274
    %v1276 = vsub.f32 1.0, %v1272
    %v1277 = vmul.f32 %v1276, %v1275
    %v1278 = vmul.f32 %v1272, %v1093
    %v1279 = vadd.f32 %v1277, %v1278
    %v1280 = vadd.f32 %v1150, %v1204
    %v1281 = vxor.u32 %v1280, 2147483648
    %v1282 = vmul.f32 %v1281, 1.442695
    %v1283 = vpow.pop %v1282
    %v1284 = vadd.f32 %v1283, 1.0
    %v1285 = vrcp.pop %v1284
    %v1286 = vmul.f32 %v1284, %v1285
    %v1287 = vsub.f32 1.0, %v1286
    %v1288 = vmul.f32 %v1285, %v1287
    %v1289 = vadd.f32 %v1285, %v1288
    %vm1290 = vweird.f32 %v1284
    %vm1291 = vweird.f32 %v1285
    %vm1292 = vmor %vm1290, %vm1291
    %v1293 = vsel %vm1292, %v1285, %v1289
    %v1294 = vand.u32 2147483647, %v1284
    %vm1295 = vcmp.eq.f32.partialorder %v1294, 8.507059e+37
    %v1296 = vand.u32 %v1284, 2147483648
    %v1297 = vor.u32 1.1754944e-38, %v1296
    %v1298 = vsel %vm1295, %v1297, %v1293
    %v1299 = vmul.f32 1.0, %v1298
    %v1300 = vadd.f32 %v1151, %v1217
    %v1301 = vxor.u32 %v1300, 2147483648
    %v1302 = vmul.f32 %v1301, 1.442695
    %v1303 = vpow.pop %v1302
    %v1304 = vadd.f32 %v1303, 1.0
    %v1305 = vrcp.pop %v1304
    %v1306 = vmul.f32 %v1304, %v1305
    %v1307 = vsub.f32 1.0, %v1306
    %v1308 = vmul.f32 %v1305, %v1307
    %v1309 = vadd.f32 %v1305, %v1308
    %vm1310 = vweird.f32 %v1304
    %vm1311 = vweird.f32 %v1305
    %vm1312 = vmor %vm1310, %vm1311
    %v1313 = vsel %vm1312, %v1305, %v1309
    %v1314 = vand.u32 2147483647, %v1304
    %vm1315 = vcmp.eq.f32.partialorder %v1314, 8.507059e+37
    %v1316 = vand.u32 %v1304, 2147483648
    %v1317 = vor.u32 1.1754944e-38, %v1316
    %v1318 = vsel %vm1315, %v1317, %v1313
    %v1319 = vmul.f32 1.0, %v1318
    %v1320 = vmul.f32 %v1299, %v1230
    %v1321 = vadd.f32 %v1152, %v1320
    %v1322 = vtanh.pop %v1321
    %v1323 = vsub.f32 1.0, %v1319
    %v1324 = vmul.f32 %v1323, %v1322
    %v1325 = vmul.f32 %v1319, %v1140
    %v1326 = vadd.f32 %v1324, %v1325
    %s1327 = scalar_lea.vmem [#allocation3], 16
    %1328 = vst [vmem:[%s1327] sm:$0xff] %v1279
    %s1329 = scalar_lea.vmem [#allocation4], 40
    %1330 = vst [vmem:[%s1329] sm:$0xff] %v1326
    %s1331 = scalar_lea.vmem [#allocation2], 72
    %v1332 = vld [vmem:[%s1331] sm:$0xff]
    %v1333 = vld [vmem:[%s1331 + $0x8] sm:$0xff]
    %v1334 = vld [vmem:[%s1331 + $0x10] sm:$0xff]
    %s1335 = scalar_lea.vmem %s414, 96 [#allocation2]
    %v1336 = vld [vmem:[%s1335] sm:$0xff]
    %v1337 = vld [vmem:[%s1335 + $0x8] sm:$0xff]
    %v1338 = vld [vmem:[%s1335 + $0x10] sm:$0xff]
    %v1339 = vpack.c.bf16 %v1279, %v1279
    %1340 = vmatpush.bf16.msra.mxu0 %v622
    %1341 = vmatpush.bf16.msra.mxu0 %v619
    %1342 = vmatpush.bf16.msra.mxu0 %v616
    %1343 = vmatpush.bf16.msra.mxu0 %v613
    %1344 = vmatpush.bf16.msra.mxu0 %v610
    %1345 = vmatpush.bf16.msra.mxu0 %v607
    %1346 = vmatpush.bf16.msra.mxu0 %v604
    %1347 = vmatpush.bf16.msra.mxu0 %v601
    %1348 = vmatmul.bf16.gmra.mxu0 %v1339
    %v1349 = vpop.f32.mrf.mxu0
    %v1350 = vadd.f32 %v515, %v1349
    %v1351 = vpop.f32.mrf.mxu0
    %1352 = vdwg.mxu0
    %1353 = vmatpush.bf16.msra.mxu0 %v623
    %1354 = vmatpush.bf16.msra.mxu0 %v620
    %1355 = vmatpush.bf16.msra.mxu0 %v617
    %1356 = vmatpush.bf16.msra.mxu0 %v614
    %1357 = vmatpush.bf16.msra.mxu0 %v611
    %1358 = vmatpush.bf16.msra.mxu0 %v608
    %1359 = vmatpush.bf16.msra.mxu0 %v605
    %1360 = vmatpush.bf16.msra.mxu0 %v602
    %1361 = vmatmul.bf16.gmra.mxu0 %v1339
    %v1362 = vpop.f32.mrf.mxu0
    %v1363 = vadd.f32 %v516, %v1362
    %v1364 = vpop.f32.mrf.mxu0
    %1365 = vdwg.mxu0
    %1366 = vmatpush.bf16.msra.mxu0 %v624
    %1367 = vmatpush.bf16.msra.mxu0 %v621
    %1368 = vmatpush.bf16.msra.mxu0 %v618
    %1369 = vmatpush.bf16.msra.mxu0 %v615
    %1370 = vmatpush.bf16.msra.mxu0 %v612
    %1371 = vmatpush.bf16.msra.mxu0 %v609
    %1372 = vmatpush.bf16.msra.mxu0 %v606
    %1373 = vmatpush.bf16.msra.mxu0 %v603
    %1374 = vmatmul.bf16.gmra.mxu0 %v1339
    %v1375 = vpop.f32.mrf.mxu0
    %v1376 = vadd.f32 %v517, %v1375
    %v1377 = vpop.f32.mrf.mxu0
    %1378 = vdwg.mxu0
    %v1379 = vpack.c.bf16 %v1326, %v1326
    %1380 = vmatpush.bf16.msra.mxu0 %v796
    %1381 = vmatpush.bf16.msra.mxu0 %v793
    %1382 = vmatpush.bf16.msra.mxu0 %v790
    %1383 = vmatpush.bf16.msra.mxu0 %v787
    %1384 = vmatpush.bf16.msra.mxu0 %v784
    %1385 = vmatpush.bf16.msra.mxu0 %v781
    %1386 = vmatpush.bf16.msra.mxu0 %v778
    %1387 = vmatpush.bf16.msra.mxu0 %v775
    %1388 = vmatmul.bf16.gmra.mxu0 %v1379
    %v1389 = vpop.f32.mrf.mxu0
    %v1390 = vadd.f32 %v689, %v1389
    %v1391 = vpop.f32.mrf.mxu0
    %1392 = vdwg.mxu0
    %1393 = vmatpush.bf16.msra.mxu0 %v797
    %1394 = vmatpush.bf16.msra.mxu0 %v794
    %1395 = vmatpush.bf16.msra.mxu0 %v791
    %1396 = vmatpush.bf16.msra.mxu0 %v788
    %1397 = vmatpush.bf16.msra.mxu0 %v785
    %1398 = vmatpush.bf16.msra.mxu0 %v782
    %1399 = vmatpush.bf16.msra.mxu0 %v779
    %1400 = vmatpush.bf16.msra.mxu0 %v776
    %1401 = vmatmul.bf16.gmra.mxu0 %v1379
    %v1402 = vpop.f32.mrf.mxu0
    %v1403 = vadd.f32 %v690, %v1402
    %v1404 = vpop.f32.mrf.mxu0
    %1405 = vdwg.mxu0
    %1406 = vmatpush.bf16.msra.mxu0 %v798
    %1407 = vmatpush.bf16.msra.mxu0 %v795
    %1408 = vmatpush.bf16.msra.mxu0 %v792
    %1409 = vmatpush.bf16.msra.mxu0 %v789
    %1410 = vmatpush.bf16.msra.mxu0 %v786
    %1411 = vmatpush.bf16.msra.mxu0 %v783
    %1412 = vmatpush.bf16.msra.mxu0 %v780
    %1413 = vmatpush.bf16.msra.mxu0 %v777
    %1414 = vmatmul.bf16.gmra.mxu0 %v1379
    %v1415 = vpop.f32.mrf.mxu0
    %v1416 = vadd.f32 %v691, %v1415
    %v1417 = vpop.f32.mrf.mxu0
    %1418 = vdwg.mxu0
    %v1419 = vadd.f32 %v1332, %v1350
    %v1420 = vxor.u32 %v1419, 2147483648
    %v1421 = vmul.f32 %v1420, 1.442695
    %v1422 = vpow.pop %v1421
    %v1423 = vadd.f32 %v1422, 1.0
    %v1424 = vrcp.pop %v1423
    %v1425 = vmul.f32 %v1423, %v1424
    %v1426 = vsub.f32 1.0, %v1425
    %v1427 = vmul.f32 %v1424, %v1426
    %v1428 = vadd.f32 %v1424, %v1427
    %vm1429 = vweird.f32 %v1423
    %vm1430 = vweird.f32 %v1424
    %vm1431 = vmor %vm1429, %vm1430
    %v1432 = vsel %vm1431, %v1424, %v1428
    %v1433 = vand.u32 2147483647, %v1423
    %vm1434 = vcmp.eq.f32.partialorder %v1433, 8.507059e+37
    %v1435 = vand.u32 %v1423, 2147483648
    %v1436 = vor.u32 1.1754944e-38, %v1435
    %v1437 = vsel %vm1434, %v1436, %v1432
    %v1438 = vmul.f32 1.0, %v1437
    %v1439 = vadd.f32 %v1333, %v1363
    %v1440 = vxor.u32 %v1439, 2147483648
    %v1441 = vmul.f32 %v1440, 1.442695
    %v1442 = vpow.pop %v1441
    %v1443 = vadd.f32 %v1442, 1.0
    %v1444 = vrcp.pop %v1443
    %v1445 = vmul.f32 %v1443, %v1444
    %v1446 = vsub.f32 1.0, %v1445
    %v1447 = vmul.f32 %v1444, %v1446
    %v1448 = vadd.f32 %v1444, %v1447
    %vm1449 = vweird.f32 %v1443
    %vm1450 = vweird.f32 %v1444
    %vm1451 = vmor %vm1449, %vm1450
    %v1452 = vsel %vm1451, %v1444, %v1448
    %v1453 = vand.u32 2147483647, %v1443
    %vm1454 = vcmp.eq.f32.partialorder %v1453, 8.507059e+37
    %v1455 = vand.u32 %v1443, 2147483648
    %v1456 = vor.u32 1.1754944e-38, %v1455
    %v1457 = vsel %vm1454, %v1456, %v1452
    %v1458 = vmul.f32 1.0, %v1457
    %v1459 = vmul.f32 %v1438, %v1376
    %v1460 = vadd.f32 %v1334, %v1459
    %v1461 = vtanh.pop %v1460
    %v1462 = vsub.f32 1.0, %v1458
    %v1463 = vmul.f32 %v1462, %v1461
    %v1464 = vmul.f32 %v1458, %v1279
    %v1465 = vadd.f32 %v1463, %v1464
    %v1466 = vadd.f32 %v1336, %v1390
    %v1467 = vxor.u32 %v1466, 2147483648
    %v1468 = vmul.f32 %v1467, 1.442695
    %v1469 = vpow.pop %v1468
    %v1470 = vadd.f32 %v1469, 1.0
    %v1471 = vrcp.pop %v1470
    %v1472 = vmul.f32 %v1470, %v1471
    %v1473 = vsub.f32 1.0, %v1472
    %v1474 = vmul.f32 %v1471, %v1473
    %v1475 = vadd.f32 %v1471, %v1474
    %vm1476 = vweird.f32 %v1470
    %vm1477 = vweird.f32 %v1471
    %vm1478 = vmor %vm1476, %vm1477
    %v1479 = vsel %vm1478, %v1471, %v1475
    %v1480 = vand.u32 2147483647, %v1470
    %vm1481 = vcmp.eq.f32.partialorder %v1480, 8.507059e+37
    %v1482 = vand.u32 %v1470, 2147483648
    %v1483 = vor.u32 1.1754944e-38, %v1482
    %v1484 = vsel %vm1481, %v1483, %v1479
    %v1485 = vmul.f32 1.0, %v1484
    %v1486 = vadd.f32 %v1337, %v1403
    %v1487 = vxor.u32 %v1486, 2147483648
    %v1488 = vmul.f32 %v1487, 1.442695
    %v1489 = vpow.pop %v1488
    %v1490 = vadd.f32 %v1489, 1.0
    %v1491 = vrcp.pop %v1490
    %v1492 = vmul.f32 %v1490, %v1491
    %v1493 = vsub.f32 1.0, %v1492
    %v1494 = vmul.f32 %v1491, %v1493
    %v1495 = vadd.f32 %v1491, %v1494
    %vm1496 = vweird.f32 %v1490
    %vm1497 = vweird.f32 %v1491
    %vm1498 = vmor %vm1496, %vm1497
    %v1499 = vsel %vm1498, %v1491, %v1495
    %v1500 = vand.u32 2147483647, %v1490
    %vm1501 = vcmp.eq.f32.partialorder %v1500, 8.507059e+37
    %v1502 = vand.u32 %v1490, 2147483648
    %v1503 = vor.u32 1.1754944e-38, %v1502
    %v1504 = vsel %vm1501, %v1503, %v1499
    %v1505 = vmul.f32 1.0, %v1504
    %v1506 = vmul.f32 %v1485, %v1416
    %v1507 = vadd.f32 %v1338, %v1506
    %v1508 = vtanh.pop %v1507
    %v1509 = vsub.f32 1.0, %v1505
    %v1510 = vmul.f32 %v1509, %v1508
    %v1511 = vmul.f32 %v1505, %v1326
    %v1512 = vadd.f32 %v1510, %v1511
    %s1513 = scalar_lea.vmem [#allocation3], 24
    %1514 = vst [vmem:[%s1513] sm:$0xff] %v1465
    %s1515 = scalar_lea.vmem [#allocation4], 32
    %1516 = vst [vmem:[%s1515] sm:$0xff] %v1512
    %s1517 = scalar_lea.vmem [#allocation2], 96
    %v1518 = vld [vmem:[%s1517] sm:$0xff]
    %v1519 = vld [vmem:[%s1517 + $0x8] sm:$0xff]
    %v1520 = vld [vmem:[%s1517 + $0x10] sm:$0xff]
    %s1521 = scalar_lea.vmem %s414, 72 [#allocation2]
    %v1522 = vld [vmem:[%s1521] sm:$0xff]
    %v1523 = vld [vmem:[%s1521 + $0x8] sm:$0xff]
    %v1524 = vld [vmem:[%s1521 + $0x10] sm:$0xff]
    %v1525 = vpack.c.bf16 %v1465, %v1465
    %1526 = vmatpush.bf16.msra.mxu0 %v622
    %1527 = vmatpush.bf16.msra.mxu0 %v619
    %1528 = vmatpush.bf16.msra.mxu0 %v616
    %1529 = vmatpush.bf16.msra.mxu0 %v613
    %1530 = vmatpush.bf16.msra.mxu0 %v610
    %1531 = vmatpush.bf16.msra.mxu0 %v607
    %1532 = vmatpush.bf16.msra.mxu0 %v604
    %1533 = vmatpush.bf16.msra.mxu0 %v601
    %1534 = vmatmul.bf16.gmra.mxu0 %v1525
    %v1535 = vpop.f32.mrf.mxu0
    %v1536 = vadd.f32 %v515, %v1535
    %v1537 = vpop.f32.mrf.mxu0
    %1538 = vdwg.mxu0
    %1539 = vmatpush.bf16.msra.mxu0 %v623
    %1540 = vmatpush.bf16.msra.mxu0 %v620
    %1541 = vmatpush.bf16.msra.mxu0 %v617
    %1542 = vmatpush.bf16.msra.mxu0 %v614
    %1543 = vmatpush.bf16.msra.mxu0 %v611
    %1544 = vmatpush.bf16.msra.mxu0 %v608
    %1545 = vmatpush.bf16.msra.mxu0 %v605
    %1546 = vmatpush.bf16.msra.mxu0 %v602
    %1547 = vmatmul.bf16.gmra.mxu0 %v1525
    %v1548 = vpop.f32.mrf.mxu0
    %v1549 = vadd.f32 %v516, %v1548
    %v1550 = vpop.f32.mrf.mxu0
    %1551 = vdwg.mxu0
    %1552 = vmatpush.bf16.msra.mxu0 %v624
    %1553 = vmatpush.bf16.msra.mxu0 %v621
    %1554 = vmatpush.bf16.msra.mxu0 %v618
    %1555 = vmatpush.bf16.msra.mxu0 %v615
    %1556 = vmatpush.bf16.msra.mxu0 %v612
    %1557 = vmatpush.bf16.msra.mxu0 %v609
    %1558 = vmatpush.bf16.msra.mxu0 %v606
    %1559 = vmatpush.bf16.msra.mxu0 %v603
    %1560 = vmatmul.bf16.gmra.mxu0 %v1525
    %v1561 = vpop.f32.mrf.mxu0
    %v1562 = vadd.f32 %v517, %v1561
    %v1563 = vpop.f32.mrf.mxu0
    %1564 = vdwg.mxu0
    %v1565 = vpack.c.bf16 %v1512, %v1512
    %1566 = vmatpush.bf16.msra.mxu0 %v796
    %1567 = vmatpush.bf16.msra.mxu0 %v793
    %1568 = vmatpush.bf16.msra.mxu0 %v790
    %1569 = vmatpush.bf16.msra.mxu0 %v787
    %1570 = vmatpush.bf16.msra.mxu0 %v784
    %1571 = vmatpush.bf16.msra.mxu0 %v781
    %1572 = vmatpush.bf16.msra.mxu0 %v778
    %1573 = vmatpush.bf16.msra.mxu0 %v775
    %1574 = vmatmul.bf16.gmra.mxu0 %v1565
    %v1575 = vpop.f32.mrf.mxu0
    %v1576 = vadd.f32 %v689, %v1575
    %v1577 = vpop.f32.mrf.mxu0
    %1578 = vdwg.mxu0
    %1579 = vmatpush.bf16.msra.mxu0 %v797
    %1580 = vmatpush.bf16.msra.mxu0 %v794
    %1581 = vmatpush.bf16.msra.mxu0 %v791
    %1582 = vmatpush.bf16.msra.mxu0 %v788
    %1583 = vmatpush.bf16.msra.mxu0 %v785
    %1584 = vmatpush.bf16.msra.mxu0 %v782
    %1585 = vmatpush.bf16.msra.mxu0 %v779
    %1586 = vmatpush.bf16.msra.mxu0 %v776
    %1587 = vmatmul.bf16.gmra.mxu0 %v1565
    %v1588 = vpop.f32.mrf.mxu0
    %v1589 = vadd.f32 %v690, %v1588
    %v1590 = vpop.f32.mrf.mxu0
    %1591 = vdwg.mxu0
    %1592 = vmatpush.bf16.msra.mxu0 %v798
    %1593 = vmatpush.bf16.msra.mxu0 %v795
    %1594 = vmatpush.bf16.msra.mxu0 %v792
    %1595 = vmatpush.bf16.msra.mxu0 %v789
    %1596 = vmatpush.bf16.msra.mxu0 %v786
    %1597 = vmatpush.bf16.msra.mxu0 %v783
    %1598 = vmatpush.bf16.msra.mxu0 %v780
    %1599 = vmatpush.bf16.msra.mxu0 %v777
    %1600 = vmatmul.bf16.gmra.mxu0 %v1565
    %v1601 = vpop.f32.mrf.mxu0
    %v1602 = vadd.f32 %v691, %v1601
    %v1603 = vpop.f32.mrf.mxu0
    %1604 = vdwg.mxu0
    %v1605 = vadd.f32 %v1518, %v1536
    %v1606 = vxor.u32 %v1605, 2147483648
    %v1607 = vmul.f32 %v1606, 1.442695
    %v1608 = vpow.pop %v1607
    %v1609 = vadd.f32 %v1608, 1.0
    %v1610 = vrcp.pop %v1609
    %v1611 = vmul.f32 %v1609, %v1610
    %v1612 = vsub.f32 1.0, %v1611
    %v1613 = vmul.f32 %v1610, %v1612
    %v1614 = vadd.f32 %v1610, %v1613
    %vm1615 = vweird.f32 %v1609
    %vm1616 = vweird.f32 %v1610
    %vm1617 = vmor %vm1615, %vm1616
    %v1618 = vsel %vm1617, %v1610, %v1614
    %v1619 = vand.u32 2147483647, %v1609
    %vm1620 = vcmp.eq.f32.partialorder %v1619, 8.507059e+37
    %v1621 = vand.u32 %v1609, 2147483648
    %v1622 = vor.u32 1.1754944e-38, %v1621
    %v1623 = vsel %vm1620, %v1622, %v1618
    %v1624 = vmul.f32 1.0, %v1623
    %v1625 = vadd.f32 %v1519, %v1549
    %v1626 = vxor.u32 %v1625, 2147483648
    %v1627 = vmul.f32 %v1626, 1.442695
    %v1628 = vpow.pop %v1627
    %v1629 = vadd.f32 %v1628, 1.0
    %v1630 = vrcp.pop %v1629
    %v1631 = vmul.f32 %v1629, %v1630
    %v1632 = vsub.f32 1.0, %v1631
    %v1633 = vmul.f32 %v1630, %v1632
    %v1634 = vadd.f32 %v1630, %v1633
    %vm1635 = vweird.f32 %v1629
    %vm1636 = vweird.f32 %v1630
    %vm1637 = vmor %vm1635, %vm1636
    %v1638 = vsel %vm1637, %v1630, %v1634
    %v1639 = vand.u32 2147483647, %v1629
    %vm1640 = vcmp.eq.f32.partialorder %v1639, 8.507059e+37
    %v1641 = vand.u32 %v1629, 2147483648
    %v1642 = vor.u32 1.1754944e-38, %v1641
    %v1643 = vsel %vm1640, %v1642, %v1638
    %v1644 = vmul.f32 1.0, %v1643
    %v1645 = vmul.f32 %v1624, %v1562
    %v1646 = vadd.f32 %v1520, %v1645
    %v1647 = vtanh.pop %v1646
    %v1648 = vsub.f32 1.0, %v1644
    %v1649 = vmul.f32 %v1648, %v1647
    %v1650 = vmul.f32 %v1644, %v1465
    %v1651 = vadd.f32 %v1649, %v1650
    %v1652 = vadd.f32 %v1522, %v1576
    %v1653 = vxor.u32 %v1652, 2147483648
    %v1654 = vmul.f32 %v1653, 1.442695
    %v1655 = vpow.pop %v1654
    %v1656 = vadd.f32 %v1655, 1.0
    %v1657 = vrcp.pop %v1656
    %v1658 = vmul.f32 %v1656, %v1657
    %v1659 = vsub.f32 1.0, %v1658
    %v1660 = vmul.f32 %v1657, %v1659
    %v1661 = vadd.f32 %v1657, %v1660
    %vm1662 = vweird.f32 %v1656
    %vm1663 = vweird.f32 %v1657
    %vm1664 = vmor %vm1662, %vm1663
    %v1665 = vsel %vm1664, %v1657, %v1661
    %v1666 = vand.u32 2147483647, %v1656
    %vm1667 = vcmp.eq.f32.partialorder %v1666, 8.507059e+37
    %v1668 = vand.u32 %v1656, 2147483648
    %v1669 = vor.u32 1.1754944e-38, %v1668
    %v1670 = vsel %vm1667, %v1669, %v1665
    %v1671 = vmul.f32 1.0, %v1670
    %v1672 = vadd.f32 %v1523, %v1589
    %v1673 = vxor.u32 %v1672, 2147483648
    %v1674 = vmul.f32 %v1673, 1.442695
    %v1675 = vpow.pop %v1674
    %v1676 = vadd.f32 %v1675, 1.0
    %v1677 = vrcp.pop %v1676
    %v1678 = vmul.f32 %v1676, %v1677
    %v1679 = vsub.f32 1.0, %v1678
    %v1680 = vmul.f32 %v1677, %v1679
    %v1681 = vadd.f32 %v1677, %v1680
    %vm1682 = vweird.f32 %v1676
    %vm1683 = vweird.f32 %v1677
    %vm1684 = vmor %vm1682, %vm1683
    %v1685 = vsel %vm1684, %v1677, %v1681
    %v1686 = vand.u32 2147483647, %v1676
    %vm1687 = vcmp.eq.f32.partialorder %v1686, 8.507059e+37
    %v1688 = vand.u32 %v1676, 2147483648
    %v1689 = vor.u32 1.1754944e-38, %v1688
    %v1690 = vsel %vm1687, %v1689, %v1685
    %v1691 = vmul.f32 1.0, %v1690
    %v1692 = vmul.f32 %v1671, %v1602
    %v1693 = vadd.f32 %v1524, %v1692
    %v1694 = vtanh.pop %v1693
    %v1695 = vsub.f32 1.0, %v1691
    %v1696 = vmul.f32 %v1695, %v1694
    %v1697 = vmul.f32 %v1691, %v1512
    %v1698 = vadd.f32 %v1696, %v1697
    %s1699 = scalar_lea.vmem [#allocation3], 32
    %1700 = vst [vmem:[%s1699] sm:$0xff] %v1651
    %s1701 = scalar_lea.vmem [#allocation4], 24
    %1702 = vst [vmem:[%s1701] sm:$0xff] %v1698
    %s1703 = scalar_lea.vmem [#allocation2], 120
    %v1704 = vld [vmem:[%s1703] sm:$0xff]
    %v1705 = vld [vmem:[%s1703 + $0x8] sm:$0xff]
    %v1706 = vld [vmem:[%s1703 + $0x10] sm:$0xff]
    %s1707 = scalar_lea.vmem %s414, 48 [#allocation2]
    %v1708 = vld [vmem:[%s1707] sm:$0xff]
    %v1709 = vld [vmem:[%s1707 + $0x8] sm:$0xff]
    %v1710 = vld [vmem:[%s1707 + $0x10] sm:$0xff]
    %v1711 = vpack.c.bf16 %v1651, %v1651
    %1712 = vmatpush.bf16.msra.mxu0 %v622
    %1713 = vmatpush.bf16.msra.mxu0 %v619
    %1714 = vmatpush.bf16.msra.mxu0 %v616
    %1715 = vmatpush.bf16.msra.mxu0 %v613
    %1716 = vmatpush.bf16.msra.mxu0 %v610
    %1717 = vmatpush.bf16.msra.mxu0 %v607
    %1718 = vmatpush.bf16.msra.mxu0 %v604
    %1719 = vmatpush.bf16.msra.mxu0 %v601
    %1720 = vmatmul.bf16.gmra.mxu0 %v1711
    %v1721 = vpop.f32.mrf.mxu0
    %v1722 = vadd.f32 %v515, %v1721
    %v1723 = vpop.f32.mrf.mxu0
    %1724 = vdwg.mxu0
    %1725 = vmatpush.bf16.msra.mxu0 %v623
    %1726 = vmatpush.bf16.msra.mxu0 %v620
    %1727 = vmatpush.bf16.msra.mxu0 %v617
    %1728 = vmatpush.bf16.msra.mxu0 %v614
    %1729 = vmatpush.bf16.msra.mxu0 %v611
    %1730 = vmatpush.bf16.msra.mxu0 %v608
    %1731 = vmatpush.bf16.msra.mxu0 %v605
    %1732 = vmatpush.bf16.msra.mxu0 %v602
    %1733 = vmatmul.bf16.gmra.mxu0 %v1711
    %v1734 = vpop.f32.mrf.mxu0
    %v1735 = vadd.f32 %v516, %v1734
    %v1736 = vpop.f32.mrf.mxu0
    %1737 = vdwg.mxu0
    %1738 = vmatpush.bf16.msra.mxu0 %v624
    %1739 = vmatpush.bf16.msra.mxu0 %v621
    %1740 = vmatpush.bf16.msra.mxu0 %v618
    %1741 = vmatpush.bf16.msra.mxu0 %v615
    %1742 = vmatpush.bf16.msra.mxu0 %v612
    %1743 = vmatpush.bf16.msra.mxu0 %v609
    %1744 = vmatpush.bf16.msra.mxu0 %v606
    %1745 = vmatpush.bf16.msra.mxu0 %v603
    %1746 = vmatmul.bf16.gmra.mxu0 %v1711
    %v1747 = vpop.f32.mrf.mxu0
    %v1748 = vadd.f32 %v517, %v1747
    %v1749 = vpop.f32.mrf.mxu0
    %1750 = vdwg.mxu0
    %v1751 = vpack.c.bf16 %v1698, %v1698
    %1752 = vmatpush.bf16.msra.mxu0 %v796
    %1753 = vmatpush.bf16.msra.mxu0 %v793
    %1754 = vmatpush.bf16.msra.mxu0 %v790
    %1755 = vmatpush.bf16.msra.mxu0 %v787
    %1756 = vmatpush.bf16.msra.mxu0 %v784
    %1757 = vmatpush.bf16.msra.mxu0 %v781
    %1758 = vmatpush.bf16.msra.mxu0 %v778
    %1759 = vmatpush.bf16.msra.mxu0 %v775
    %1760 = vmatmul.bf16.gmra.mxu0 %v1751
    %v1761 = vpop.f32.mrf.mxu0
    %v1762 = vadd.f32 %v689, %v1761
    %v1763 = vpop.f32.mrf.mxu0
    %1764 = vdwg.mxu0
    %1765 = vmatpush.bf16.msra.mxu0 %v797
    %1766 = vmatpush.bf16.msra.mxu0 %v794
    %1767 = vmatpush.bf16.msra.mxu0 %v791
    %1768 = vmatpush.bf16.msra.mxu0 %v788
    %1769 = vmatpush.bf16.msra.mxu0 %v785
    %1770 = vmatpush.bf16.msra.mxu0 %v782
    %1771 = vmatpush.bf16.msra.mxu0 %v779
    %1772 = vmatpush.bf16.msra.mxu0 %v776
    %1773 = vmatmul.bf16.gmra.mxu0 %v1751
    %v1774 = vpop.f32.mrf.mxu0
    %v1775 = vadd.f32 %v690, %v1774
    %v1776 = vpop.f32.mrf.mxu0
    %1777 = vdwg.mxu0
    %1778 = vmatpush.bf16.msra.mxu0 %v798
    %1779 = vmatpush.bf16.msra.mxu0 %v795
    %1780 = vmatpush.bf16.msra.mxu0 %v792
    %1781 = vmatpush.bf16.msra.mxu0 %v789
    %1782 = vmatpush.bf16.msra.mxu0 %v786
    %1783 = vmatpush.bf16.msra.mxu0 %v783
    %1784 = vmatpush.bf16.msra.mxu0 %v780
    %1785 = vmatpush.bf16.msra.mxu0 %v777
    %1786 = vmatmul.bf16.gmra.mxu0 %v1751
    %v1787 = vpop.f32.mrf.mxu0
    %v1788 = vadd.f32 %v691, %v1787
    %v1789 = vpop.f32.mrf.mxu0
    %1790 = vdwg.mxu0
    %v1791 = vadd.f32 %v1704, %v1722
    %v1792 = vxor.u32 %v1791, 2147483648
    %v1793 = vmul.f32 %v1792, 1.442695
    %v1794 = vpow.pop %v1793
    %v1795 = vadd.f32 %v1794, 1.0
    %v1796 = vrcp.pop %v1795
    %v1797 = vmul.f32 %v1795, %v1796
    %v1798 = vsub.f32 1.0, %v1797
    %v1799 = vmul.f32 %v1796, %v1798
    %v1800 = vadd.f32 %v1796, %v1799
    %vm1801 = vweird.f32 %v1795
    %vm1802 = vweird.f32 %v1796
    %vm1803 = vmor %vm1801, %vm1802
    %v1804 = vsel %vm1803, %v1796, %v1800
    %v1805 = vand.u32 2147483647, %v1795
    %vm1806 = vcmp.eq.f32.partialorder %v1805, 8.507059e+37
    %v1807 = vand.u32 %v1795, 2147483648
    %v1808 = vor.u32 1.1754944e-38, %v1807
    %v1809 = vsel %vm1806, %v1808, %v1804
    %v1810 = vmul.f32 1.0, %v1809
    %v1811 = vadd.f32 %v1705, %v1735
    %v1812 = vxor.u32 %v1811, 2147483648
    %v1813 = vmul.f32 %v1812, 1.442695
    %v1814 = vpow.pop %v1813
    %v1815 = vadd.f32 %v1814, 1.0
    %v1816 = vrcp.pop %v1815
    %v1817 = vmul.f32 %v1815, %v1816
    %v1818 = vsub.f32 1.0, %v1817
    %v1819 = vmul.f32 %v1816, %v1818
    %v1820 = vadd.f32 %v1816, %v1819
    %vm1821 = vweird.f32 %v1815
    %vm1822 = vweird.f32 %v1816
    %vm1823 = vmor %vm1821, %vm1822
    %v1824 = vsel %vm1823, %v1816, %v1820
    %v1825 = vand.u32 2147483647, %v1815
    %vm1826 = vcmp.eq.f32.partialorder %v1825, 8.507059e+37
    %v1827 = vand.u32 %v1815, 2147483648
    %v1828 = vor.u32 1.1754944e-38, %v1827
    %v1829 = vsel %vm1826, %v1828, %v1824
    %v1830 = vmul.f32 1.0, %v1829
    %v1831 = vmul.f32 %v1810, %v1748
    %v1832 = vadd.f32 %v1706, %v1831
    %v1833 = vtanh.pop %v1832
    %v1834 = vsub.f32 1.0, %v1830
    %v1835 = vmul.f32 %v1834, %v1833
    %v1836 = vmul.f32 %v1830, %v1651
    %v1837 = vadd.f32 %v1835, %v1836
    %v1838 = vadd.f32 %v1708, %v1762
    %v1839 = vxor.u32 %v1838, 2147483648
    %v1840 = vmul.f32 %v1839, 1.442695
    %v1841 = vpow.pop %v1840
    %v1842 = vadd.f32 %v1841, 1.0
    %v1843 = vrcp.pop %v1842
    %v1844 = vmul.f32 %v1842, %v1843
    %v1845 = vsub.f32 1.0, %v1844
    %v1846 = vmul.f32 %v1843, %v1845
    %v1847 = vadd.f32 %v1843, %v1846
    %vm1848 = vweird.f32 %v1842
    %vm1849 = vweird.f32 %v1843
    %vm1850 = vmor %vm1848, %vm1849
    %v1851 = vsel %vm1850, %v1843, %v1847
    %v1852 = vand.u32 2147483647, %v1842
    %vm1853 = vcmp.eq.f32.partialorder %v1852, 8.507059e+37
    %v1854 = vand.u32 %v1842, 2147483648
    %v1855 = vor.u32 1.1754944e-38, %v1854
    %v1856 = vsel %vm1853, %v1855, %v1851
    %v1857 = vmul.f32 1.0, %v1856
    %v1858 = vadd.f32 %v1709, %v1775
    %v1859 = vxor.u32 %v1858, 2147483648
    %v1860 = vmul.f32 %v1859, 1.442695
    %v1861 = vpow.pop %v1860
    %v1862 = vadd.f32 %v1861, 1.0
    %v1863 = vrcp.pop %v1862
    %v1864 = vmul.f32 %v1862, %v1863
    %v1865 = vsub.f32 1.0, %v1864
    %v1866 = vmul.f32 %v1863, %v1865
    %v1867 = vadd.f32 %v1863, %v1866
    %vm1868 = vweird.f32 %v1862
    %vm1869 = vweird.f32 %v1863
    %vm1870 = vmor %vm1868, %vm1869
    %v1871 = vsel %vm1870, %v1863, %v1867
    %v1872 = vand.u32 2147483647, %v1862
    %vm1873 = vcmp.eq.f32.partialorder %v1872, 8.507059e+37
    %v1874 = vand.u32 %v1862, 2147483648
    %v1875 = vor.u32 1.1754944e-38, %v1874
    %v1876 = vsel %vm1873, %v1875, %v1871
    %v1877 = vmul.f32 1.0, %v1876
    %v1878 = vmul.f32 %v1857, %v1788
    %v1879 = vadd.f32 %v1710, %v1878
    %v1880 = vtanh.pop %v1879
    %v1881 = vsub.f32 1.0, %v1877
    %v1882 = vmul.f32 %v1881, %v1880
    %v1883 = vmul.f32 %v1877, %v1698
    %v1884 = vadd.f32 %v1882, %v1883
    %s1885 = scalar_lea.vmem [#allocation3], 40
    %1886 = vst [vmem:[%s1885] sm:$0xff] %v1837
    %s1887 = scalar_lea.vmem [#allocation4], 16
    %1888 = vst [vmem:[%s1887] sm:$0xff] %v1884
    %s1889 = scalar_lea.vmem [#allocation2], 144
    %v1890 = vld [vmem:[%s1889] sm:$0xff]
    %v1891 = vld [vmem:[%s1889 + $0x8] sm:$0xff]
    %v1892 = vld [vmem:[%s1889 + $0x10] sm:$0xff]
    %s1893 = scalar_lea.vmem %s414, 24 [#allocation2]
    %v1894 = vld [vmem:[%s1893] sm:$0xff]
    %v1895 = vld [vmem:[%s1893 + $0x8] sm:$0xff]
    %v1896 = vld [vmem:[%s1893 + $0x10] sm:$0xff]
    %v1897 = vpack.c.bf16 %v1837, %v1837
    %1898 = vmatpush.bf16.msra.mxu0 %v622
    %1899 = vmatpush.bf16.msra.mxu0 %v619
    %1900 = vmatpush.bf16.msra.mxu0 %v616
    %1901 = vmatpush.bf16.msra.mxu0 %v613
    %1902 = vmatpush.bf16.msra.mxu0 %v610
    %1903 = vmatpush.bf16.msra.mxu0 %v607
    %1904 = vmatpush.bf16.msra.mxu0 %v604
    %1905 = vmatpush.bf16.msra.mxu0 %v601
    %1906 = vmatmul.bf16.gmra.mxu0 %v1897
    %v1907 = vpop.f32.mrf.mxu0
    %v1908 = vadd.f32 %v515, %v1907
    %v1909 = vpop.f32.mrf.mxu0
    %1910 = vdwg.mxu0
    %1911 = vmatpush.bf16.msra.mxu0 %v623
    %1912 = vmatpush.bf16.msra.mxu0 %v620
    %1913 = vmatpush.bf16.msra.mxu0 %v617
    %1914 = vmatpush.bf16.msra.mxu0 %v614
    %1915 = vmatpush.bf16.msra.mxu0 %v611
    %1916 = vmatpush.bf16.msra.mxu0 %v608
    %1917 = vmatpush.bf16.msra.mxu0 %v605
    %1918 = vmatpush.bf16.msra.mxu0 %v602
    %1919 = vmatmul.bf16.gmra.mxu0 %v1897
    %v1920 = vpop.f32.mrf.mxu0
    %v1921 = vadd.f32 %v516, %v1920
    %v1922 = vpop.f32.mrf.mxu0
    %1923 = vdwg.mxu0
    %1924 = vmatpush.bf16.msra.mxu0 %v624
    %1925 = vmatpush.bf16.msra.mxu0 %v621
    %1926 = vmatpush.bf16.msra.mxu0 %v618
    %1927 = vmatpush.bf16.msra.mxu0 %v615
    %1928 = vmatpush.bf16.msra.mxu0 %v612
    %1929 = vmatpush.bf16.msra.mxu0 %v609
    %1930 = vmatpush.bf16.msra.mxu0 %v606
    %1931 = vmatpush.bf16.msra.mxu0 %v603
    %1932 = vmatmul.bf16.gmra.mxu0 %v1897
    %v1933 = vpop.f32.mrf.mxu0
    %v1934 = vadd.f32 %v517, %v1933
    %v1935 = vpop.f32.mrf.mxu0
    %1936 = vdwg.mxu0
    %v1937 = vpack.c.bf16 %v1884, %v1884
    %1938 = vmatpush.bf16.msra.mxu0 %v796
    %1939 = vmatpush.bf16.msra.mxu0 %v793
    %1940 = vmatpush.bf16.msra.mxu0 %v790
    %1941 = vmatpush.bf16.msra.mxu0 %v787
    %1942 = vmatpush.bf16.msra.mxu0 %v784
    %1943 = vmatpush.bf16.msra.mxu0 %v781
    %1944 = vmatpush.bf16.msra.mxu0 %v778
    %1945 = vmatpush.bf16.msra.mxu0 %v775
    %1946 = vmatmul.bf16.gmra.mxu0 %v1937
    %v1947 = vpop.f32.mrf.mxu0
    %v1948 = vadd.f32 %v689, %v1947
    %v1949 = vpop.f32.mrf.mxu0
    %1950 = vdwg.mxu0
    %1951 = vmatpush.bf16.msra.mxu0 %v797
    %1952 = vmatpush.bf16.msra.mxu0 %v794
    %1953 = vmatpush.bf16.msra.mxu0 %v791
    %1954 = vmatpush.bf16.msra.mxu0 %v788
    %1955 = vmatpush.bf16.msra.mxu0 %v785
    %1956 = vmatpush.bf16.msra.mxu0 %v782
    %1957 = vmatpush.bf16.msra.mxu0 %v779
    %1958 = vmatpush.bf16.msra.mxu0 %v776
    %1959 = vmatmul.bf16.gmra.mxu0 %v1937
    %v1960 = vpop.f32.mrf.mxu0
    %v1961 = vadd.f32 %v690, %v1960
    %v1962 = vpop.f32.mrf.mxu0
    %1963 = vdwg.mxu0
    %1964 = vmatpush.bf16.msra.mxu0 %v798
    %1965 = vmatpush.bf16.msra.mxu0 %v795
    %1966 = vmatpush.bf16.msra.mxu0 %v792
    %1967 = vmatpush.bf16.msra.mxu0 %v789
    %1968 = vmatpush.bf16.msra.mxu0 %v786
    %1969 = vmatpush.bf16.msra.mxu0 %v783
    %1970 = vmatpush.bf16.msra.mxu0 %v780
    %1971 = vmatpush.bf16.msra.mxu0 %v777
    %1972 = vmatmul.bf16.gmra.mxu0 %v1937
    %v1973 = vpop.f32.mrf.mxu0
    %v1974 = vadd.f32 %v691, %v1973
    %v1975 = vpop.f32.mrf.mxu0
    %1976 = vdwg.mxu0
    %v1977 = vadd.f32 %v1890, %v1908
    %v1978 = vxor.u32 %v1977, 2147483648
    %v1979 = vmul.f32 %v1978, 1.442695
    %v1980 = vpow.pop %v1979
    %v1981 = vadd.f32 %v1980, 1.0
    %v1982 = vrcp.pop %v1981
    %v1983 = vmul.f32 %v1981, %v1982
    %v1984 = vsub.f32 1.0, %v1983
    %v1985 = vmul.f32 %v1982, %v1984
    %v1986 = vadd.f32 %v1982, %v1985
    %vm1987 = vweird.f32 %v1981
    %vm1988 = vweird.f32 %v1982
    %vm1989 = vmor %vm1987, %vm1988
    %v1990 = vsel %vm1989, %v1982, %v1986
    %v1991 = vand.u32 2147483647, %v1981
    %vm1992 = vcmp.eq.f32.partialorder %v1991, 8.507059e+37
    %v1993 = vand.u32 %v1981, 2147483648
    %v1994 = vor.u32 1.1754944e-38, %v1993
    %v1995 = vsel %vm1992, %v1994, %v1990
    %v1996 = vmul.f32 1.0, %v1995
    %v1997 = vadd.f32 %v1891, %v1921
    %v1998 = vxor.u32 %v1997, 2147483648
    %v1999 = vmul.f32 %v1998, 1.442695
    %v2000 = vpow.pop %v1999
    %v2001 = vadd.f32 %v2000, 1.0
    %v2002 = vrcp.pop %v2001
    %v2003 = vmul.f32 %v2001, %v2002
    %v2004 = vsub.f32 1.0, %v2003
    %v2005 = vmul.f32 %v2002, %v2004
    %v2006 = vadd.f32 %v2002, %v2005
    %vm2007 = vweird.f32 %v2001
    %vm2008 = vweird.f32 %v2002
    %vm2009 = vmor %vm2007, %vm2008
    %v2010 = vsel %vm2009, %v2002, %v2006
    %v2011 = vand.u32 2147483647, %v2001
    %vm2012 = vcmp.eq.f32.partialorder %v2011, 8.507059e+37
    %v2013 = vand.u32 %v2001, 2147483648
    %v2014 = vor.u32 1.1754944e-38, %v2013
    %v2015 = vsel %vm2012, %v2014, %v2010
    %v2016 = vmul.f32 1.0, %v2015
    %v2017 = vmul.f32 %v1996, %v1934
    %v2018 = vadd.f32 %v1892, %v2017
    %v2019 = vtanh.pop %v2018
    %v2020 = vsub.f32 1.0, %v2016
    %v2021 = vmul.f32 %v2020, %v2019
    %v2022 = vmul.f32 %v2016, %v1837
    %v2023 = vadd.f32 %v2021, %v2022
    %v2024 = vadd.f32 %v1894, %v1948
    %v2025 = vxor.u32 %v2024, 2147483648
    %v2026 = vmul.f32 %v2025, 1.442695
    %v2027 = vpow.pop %v2026
    %v2028 = vadd.f32 %v2027, 1.0
    %v2029 = vrcp.pop %v2028
    %v2030 = vmul.f32 %v2028, %v2029
    %v2031 = vsub.f32 1.0, %v2030
    %v2032 = vmul.f32 %v2029, %v2031
    %v2033 = vadd.f32 %v2029, %v2032
    %vm2034 = vweird.f32 %v2028
    %vm2035 = vweird.f32 %v2029
    %vm2036 = vmor %vm2034, %vm2035
    %v2037 = vsel %vm2036, %v2029, %v2033
    %v2038 = vand.u32 2147483647, %v2028
    %vm2039 = vcmp.eq.f32.partialorder %v2038, 8.507059e+37
    %v2040 = vand.u32 %v2028, 2147483648
    %v2041 = vor.u32 1.1754944e-38, %v2040
    %v2042 = vsel %vm2039, %v2041, %v2037
    %v2043 = vmul.f32 1.0, %v2042
    %v2044 = vadd.f32 %v1895, %v1961
    %v2045 = vxor.u32 %v2044, 2147483648
    %v2046 = vmul.f32 %v2045, 1.442695
    %v2047 = vpow.pop %v2046
    %v2048 = vadd.f32 %v2047, 1.0
    %v2049 = vrcp.pop %v2048
    %v2050 = vmul.f32 %v2048, %v2049
    %v2051 = vsub.f32 1.0, %v2050
    %v2052 = vmul.f32 %v2049, %v2051
    %v2053 = vadd.f32 %v2049, %v2052
    %vm2054 = vweird.f32 %v2048
    %vm2055 = vweird.f32 %v2049
    %vm2056 = vmor %vm2054, %vm2055
    %v2057 = vsel %vm2056, %v2049, %v2053
    %v2058 = vand.u32 2147483647, %v2048
    %vm2059 = vcmp.eq.f32.partialorder %v2058, 8.507059e+37
    %v2060 = vand.u32 %v2048, 2147483648
    %v2061 = vor.u32 1.1754944e-38, %v2060
    %v2062 = vsel %vm2059, %v2061, %v2057
    %v2063 = vmul.f32 1.0, %v2062
    %v2064 = vmul.f32 %v2043, %v1974
    %v2065 = vadd.f32 %v1896, %v2064
    %v2066 = vtanh.pop %v2065
    %v2067 = vsub.f32 1.0, %v2063
    %v2068 = vmul.f32 %v2067, %v2066
    %v2069 = vmul.f32 %v2063, %v1884
    %v2070 = vadd.f32 %v2068, %v2069
    %s2071 = scalar_lea.vmem [#allocation3], 48
    %2072 = vst [vmem:[%s2071] sm:$0xff] %v2023
    %s2073 = scalar_lea.vmem [#allocation4], 8
    %2074 = vst [vmem:[%s2073] sm:$0xff] %v2070
    %s2075 = scalar_lea.vmem [#allocation2], 168
    %v2076 = vld [vmem:[%s2075] sm:$0xff]
    %v2077 = vld [vmem:[%s2075 + $0x8] sm:$0xff]
    %v2078 = vld [vmem:[%s2075 + $0x10] sm:$0xff]
    %v2079 = vld [vmem:[%s414] sm:$0xff]
    %v2080 = vld [vmem:[%s414 + $0x8] sm:$0xff]
    %v2081 = vld [vmem:[%s414 + $0x10] sm:$0xff]
    %v2082 = vpack.c.bf16 %v2023, %v2023
    %2083 = vmatpush.bf16.msra.mxu0 %v622
    %2084 = vmatpush.bf16.msra.mxu0 %v619
    %2085 = vmatpush.bf16.msra.mxu0 %v616
    %2086 = vmatpush.bf16.msra.mxu0 %v613
    %2087 = vmatpush.bf16.msra.mxu0 %v610
    %2088 = vmatpush.bf16.msra.mxu0 %v607
    %2089 = vmatpush.bf16.msra.mxu0 %v604
    %2090 = vmatpush.bf16.msra.mxu0 %v601
    %2091 = vmatmul.bf16.gmra.mxu0 %v2082
    %v2092 = vpop.f32.mrf.mxu0
    %v2093 = vadd.f32 %v515, %v2092
    %v2094 = vpop.f32.mrf.mxu0
    %2095 = vdwg.mxu0
    %2096 = vmatpush.bf16.msra.mxu0 %v623
    %2097 = vmatpush.bf16.msra.mxu0 %v620
    %2098 = vmatpush.bf16.msra.mxu0 %v617
    %2099 = vmatpush.bf16.msra.mxu0 %v614
    %2100 = vmatpush.bf16.msra.mxu0 %v611
    %2101 = vmatpush.bf16.msra.mxu0 %v608
    %2102 = vmatpush.bf16.msra.mxu0 %v605
    %2103 = vmatpush.bf16.msra.mxu0 %v602
    %2104 = vmatmul.bf16.gmra.mxu0 %v2082
    %v2105 = vpop.f32.mrf.mxu0
    %v2106 = vadd.f32 %v516, %v2105
    %v2107 = vpop.f32.mrf.mxu0
    %2108 = vdwg.mxu0
    %2109 = vmatpush.bf16.msra.mxu0 %v624
    %2110 = vmatpush.bf16.msra.mxu0 %v621
    %2111 = vmatpush.bf16.msra.mxu0 %v618
    %2112 = vmatpush.bf16.msra.mxu0 %v615
    %2113 = vmatpush.bf16.msra.mxu0 %v612
    %2114 = vmatpush.bf16.msra.mxu0 %v609
    %2115 = vmatpush.bf16.msra.mxu0 %v606
    %2116 = vmatpush.bf16.msra.mxu0 %v603
    %2117 = vmatmul.bf16.gmra.mxu0 %v2082
    %v2118 = vpop.f32.mrf.mxu0
    %v2119 = vadd.f32 %v517, %v2118
    %v2120 = vpop.f32.mrf.mxu0
    %2121 = vdwg.mxu0
    %v2122 = vpack.c.bf16 %v2070, %v2070
    %2123 = vmatpush.bf16.msra.mxu0 %v796
    %2124 = vmatpush.bf16.msra.mxu0 %v793
    %2125 = vmatpush.bf16.msra.mxu0 %v790
    %2126 = vmatpush.bf16.msra.mxu0 %v787
    %2127 = vmatpush.bf16.msra.mxu0 %v784
    %2128 = vmatpush.bf16.msra.mxu0 %v781
    %2129 = vmatpush.bf16.msra.mxu0 %v778
    %2130 = vmatpush.bf16.msra.mxu0 %v775
    %2131 = vmatmul.bf16.gmra.mxu0 %v2122
    %v2132 = vpop.f32.mrf.mxu0
    %v2133 = vadd.f32 %v689, %v2132
    %v2134 = vpop.f32.mrf.mxu0
    %2135 = vdwg.mxu0
    %2136 = vmatpush.bf16.msra.mxu0 %v797
    %2137 = vmatpush.bf16.msra.mxu0 %v794
    %2138 = vmatpush.bf16.msra.mxu0 %v791
    %2139 = vmatpush.bf16.msra.mxu0 %v788
    %2140 = vmatpush.bf16.msra.mxu0 %v785
    %2141 = vmatpush.bf16.msra.mxu0 %v782
    %2142 = vmatpush.bf16.msra.mxu0 %v779
    %2143 = vmatpush.bf16.msra.mxu0 %v776
    %2144 = vmatmul.bf16.gmra.mxu0 %v2122
    %v2145 = vpop.f32.mrf.mxu0
    %v2146 = vadd.f32 %v690, %v2145
    %v2147 = vpop.f32.mrf.mxu0
    %2148 = vdwg.mxu0
    %2149 = vmatpush.bf16.msra.mxu0 %v798
    %2150 = vmatpush.bf16.msra.mxu0 %v795
    %2151 = vmatpush.bf16.msra.mxu0 %v792
    %2152 = vmatpush.bf16.msra.mxu0 %v789
    %2153 = vmatpush.bf16.msra.mxu0 %v786
    %2154 = vmatpush.bf16.msra.mxu0 %v783
    %2155 = vmatpush.bf16.msra.mxu0 %v780
    %2156 = vmatpush.bf16.msra.mxu0 %v777
    %2157 = vmatmul.bf16.gmra.mxu0 %v2122
    %v2158 = vpop.f32.mrf.mxu0
    %v2159 = vadd.f32 %v691, %v2158
    %v2160 = vpop.f32.mrf.mxu0
    %2161 = vdwg.mxu0
    %v2162 = vadd.f32 %v2076, %v2093
    %v2163 = vxor.u32 %v2162, 2147483648
    %v2164 = vmul.f32 %v2163, 1.442695
    %v2165 = vpow.pop %v2164
    %v2166 = vadd.f32 %v2165, 1.0
    %v2167 = vrcp.pop %v2166
    %v2168 = vmul.f32 %v2166, %v2167
    %v2169 = vsub.f32 1.0, %v2168
    %v2170 = vmul.f32 %v2167, %v2169
    %v2171 = vadd.f32 %v2167, %v2170
    %vm2172 = vweird.f32 %v2166
    %vm2173 = vweird.f32 %v2167
    %vm2174 = vmor %vm2172, %vm2173
    %v2175 = vsel %vm2174, %v2167, %v2171
    %v2176 = vand.u32 2147483647, %v2166
    %vm2177 = vcmp.eq.f32.partialorder %v2176, 8.507059e+37
    %v2178 = vand.u32 %v2166, 2147483648
    %v2179 = vor.u32 1.1754944e-38, %v2178
    %v2180 = vsel %vm2177, %v2179, %v2175
    %v2181 = vmul.f32 1.0, %v2180
    %v2182 = vadd.f32 %v2077, %v2106
    %v2183 = vxor.u32 %v2182, 2147483648
    %v2184 = vmul.f32 %v2183, 1.442695
    %v2185 = vpow.pop %v2184
    %v2186 = vadd.f32 %v2185, 1.0
    %v2187 = vrcp.pop %v2186
    %v2188 = vmul.f32 %v2186, %v2187
    %v2189 = vsub.f32 1.0, %v2188
    %v2190 = vmul.f32 %v2187, %v2189
    %v2191 = vadd.f32 %v2187, %v2190
    %vm2192 = vweird.f32 %v2186
    %vm2193 = vweird.f32 %v2187
    %vm2194 = vmor %vm2192, %vm2193
    %v2195 = vsel %vm2194, %v2187, %v2191
    %v2196 = vand.u32 2147483647, %v2186
    %vm2197 = vcmp.eq.f32.partialorder %v2196, 8.507059e+37
    %v2198 = vand.u32 %v2186, 2147483648
    %v2199 = vor.u32 1.1754944e-38, %v2198
    %v2200 = vsel %vm2197, %v2199, %v2195
    %v2201 = vmul.f32 1.0, %v2200
    %v2202 = vmul.f32 %v2181, %v2119
    %v2203 = vadd.f32 %v2078, %v2202
    %v2204 = vtanh.pop %v2203
    %v2205 = vsub.f32 1.0, %v2201
    %v2206 = vmul.f32 %v2205, %v2204
    %v2207 = vmul.f32 %v2201, %v2023
    %v2208 = vadd.f32 %v2206, %v2207
    %v2209 = vadd.f32 %v2079, %v2133
    %v2210 = vxor.u32 %v2209, 2147483648
    %v2211 = vmul.f32 %v2210, 1.442695
    %v2212 = vpow.pop %v2211
    %v2213 = vadd.f32 %v2212, 1.0
    %v2214 = vrcp.pop %v2213
    %v2215 = vmul.f32 %v2213, %v2214
    %v2216 = vsub.f32 1.0, %v2215
    %v2217 = vmul.f32 %v2214, %v2216
    %v2218 = vadd.f32 %v2214, %v2217
    %vm2219 = vweird.f32 %v2213
    %vm2220 = vweird.f32 %v2214
    %vm2221 = vmor %vm2219, %vm2220
    %v2222 = vsel %vm2221, %v2214, %v2218
    %v2223 = vand.u32 2147483647, %v2213
    %vm2224 = vcmp.eq.f32.partialorder %v2223, 8.507059e+37
    %v2225 = vand.u32 %v2213, 2147483648
    %v2226 = vor.u32 1.1754944e-38, %v2225
    %v2227 = vsel %vm2224, %v2226, %v2222
    %v2228 = vmul.f32 1.0, %v2227
    %v2229 = vadd.f32 %v2080, %v2146
    %v2230 = vxor.u32 %v2229, 2147483648
    %v2231 = vmul.f32 %v2230, 1.442695
    %v2232 = vpow.pop %v2231
    %v2233 = vadd.f32 %v2232, 1.0
    %v2234 = vrcp.pop %v2233
    %v2235 = vmul.f32 %v2233, %v2234
    %v2236 = vsub.f32 1.0, %v2235
    %v2237 = vmul.f32 %v2234, %v2236
    %v2238 = vadd.f32 %v2234, %v2237
    %vm2239 = vweird.f32 %v2233
    %vm2240 = vweird.f32 %v2234
    %vm2241 = vmor %vm2239, %vm2240
    %v2242 = vsel %vm2241, %v2234, %v2238
    %v2243 = vand.u32 2147483647, %v2233
    %vm2244 = vcmp.eq.f32.partialorder %v2243, 8.507059e+37
    %v2245 = vand.u32 %v2233, 2147483648
    %v2246 = vor.u32 1.1754944e-38, %v2245
    %v2247 = vsel %vm2244, %v2246, %v2242
    %v2248 = vmul.f32 1.0, %v2247
    %v2249 = vmul.f32 %v2228, %v2159
    %v2250 = vadd.f32 %v2081, %v2249
    %v2251 = vtanh.pop %v2250
    %v2252 = vsub.f32 1.0, %v2248
    %v2253 = vmul.f32 %v2252, %v2251
    %v2254 = vmul.f32 %v2248, %v2070
    %v2255 = vadd.f32 %v2253, %v2254
    %s2256 = scalar_lea.vmem [#allocation3], 56
    %2257 = vst [vmem:[%s2256] sm:$0xff] %v2208
    %2258 = vst [vmem:[#allocation4] sm:$0xff] %v2255
    %v2259 = vld [vmem:[#allocation3] sm:$0xff]
    %v2260 = vld [vmem:[#allocation3 + $0x8] sm:$0xff]
    %v2261 = vld [vmem:[#allocation3 + $0x10] sm:$0xff]
    %v2262 = vld [vmem:[#allocation3 + $0x18] sm:$0xff]
    %v2263 = vld [vmem:[#allocation3 + $0x20] sm:$0xff]
    %v2264 = vld [vmem:[#allocation3 + $0x28] sm:$0xff]
    %v2265 = vld [vmem:[#allocation3 + $0x30] sm:$0xff]
    %v2266 = vld [vmem:[#allocation3 + $0x38] sm:$0xff]
    %v2267 = vld [vmem:[#allocation4] sm:$0xff]
    %v2268 = vld [vmem:[#allocation4 + $0x8] sm:$0xff]
    %v2269 = vld [vmem:[#allocation4 + $0x10] sm:$0xff]
    %v2270 = vld [vmem:[#allocation4 + $0x18] sm:$0xff]
    %v2271 = vld [vmem:[#allocation4 + $0x20] sm:$0xff]
    %v2272 = vld [vmem:[#allocation4 + $0x28] sm:$0xff]
    %v2273 = vld [vmem:[#allocation4 + $0x30] sm:$0xff]
    %v2274 = vld [vmem:[#allocation4 + $0x38] sm:$0xff]
    %v2275 = vld [vmem:[%s5] sm:$0xf]
    %v2276 = vld [vmem:[%s5 + $0x4] sm:$0xf]
    %v2277 = vld [vmem:[%s5 + $0x8] sm:$0xf]
    %v2278 = vld [vmem:[%s5 + $0xc] sm:$0xf]
    %v2279 = vld [vmem:[%s5 + $0x10] sm:$0xf]
    %v2280 = vld [vmem:[%s5 + $0x14] sm:$0xf]
    %v2281 = vld [vmem:[%s5 + $0x18] sm:$0xf]
    %v2282 = vld [vmem:[%s5 + $0x1c] sm:$0xf]
    %v2283 = vld [vmem:[%s5 + $0x20] sm:$0xf]
    %v2284 = vld [vmem:[%s5 + $0x24] sm:$0xf]
    %v2285 = vld [vmem:[%s5 + $0x28] sm:$0xf]
    %v2286 = vld [vmem:[%s5 + $0x2c] sm:$0xf]
    %v2287 = vld [vmem:[%s5 + $0x30] sm:$0xf]
    %v2288 = vld [vmem:[%s5 + $0x34] sm:$0xf]
    %v2289 = vld [vmem:[%s5 + $0x38] sm:$0xf]
    %v2290 = vld [vmem:[%s5 + $0x3c] sm:$0xf]
    %v2291 = vld [vmem:[%s5 + $0x40] sm:$0xf]
    %v2292 = vld [vmem:[%s5 + $0x44] sm:$0xf]
    %v2293 = vld [vmem:[%s5 + $0x48] sm:$0xf]
    %v2294 = vld [vmem:[%s5 + $0x4c] sm:$0xf]
    %v2295 = vld [vmem:[%s5 + $0x50] sm:$0xf]
    %v2296 = vld [vmem:[%s5 + $0x54] sm:$0xf]
    %v2297 = vld [vmem:[%s5 + $0x58] sm:$0xf]
    %v2298 = vld [vmem:[%s5 + $0x5c] sm:$0xf]
    %v2299 = vld [vmem:[%s5 + $0x60] sm:$0xf]
    %v2300 = vld [vmem:[%s5 + $0x64] sm:$0xf]
    %v2301 = vld [vmem:[%s5 + $0x68] sm:$0xf]
    %v2302 = vld [vmem:[%s5 + $0x6c] sm:$0xf]
    %v2303 = vld [vmem:[%s5 + $0x70] sm:$0xf]
    %v2304 = vld [vmem:[%s5 + $0x74] sm:$0xf]
    %v2305 = vld [vmem:[%s5 + $0x78] sm:$0xf]
    %v2306 = vld [vmem:[%s5 + $0x7c] sm:$0xf]
    %v2307 = vpack.c.bf16 %v2260, %v2259
    %v2308 = vpack.c.bf16 %v2262, %v2261
    %v2309 = vpack.c.bf16 %v2264, %v2263
    %v2310 = vpack.c.bf16 %v2266, %v2265
    %v2311 = vpack.c.bf16 %v2268, %v2267
    %v2312 = vpack.c.bf16 %v2270, %v2269
    %v2313 = vpack.c.bf16 %v2272, %v2271
    %v2314 = vpack.c.bf16 %v2274, %v2273
    %v2331 = vunpack.c.l.b16 %v2291
    %v2332 = vunpack.c.l.b16 %v2292
    %v2333 = vunpack.c.l.b16 %v2293
    %v2334 = vunpack.c.l.b16 %v2294
    %v2335 = vunpack.c.l.b16 %v2295
    %v2336 = vunpack.c.l.b16 %v2296
    %v2337 = vunpack.c.l.b16 %v2297
    %v2338 = vunpack.c.l.b16 %v2298
    %v2339 = vunpack.c.l.b16 %v2299
    %v2340 = vunpack.c.l.b16 %v2300
    %v2341 = vunpack.c.l.b16 %v2301
    %v2342 = vunpack.c.l.b16 %v2302
    %v2343 = vunpack.c.l.b16 %v2303
    %v2344 = vunpack.c.l.b16 %v2304
    %v2345 = vunpack.c.l.b16 %v2305
    %v2346 = vunpack.c.l.b16 %v2306
    %v2347 = vpack.c.b16 %v2332, %v2331
    %v2348 = vpack.c.b16 %v2334, %v2333
    %v2349 = vpack.c.b16 %v2336, %v2335
    %v2350 = vpack.c.b16 %v2338, %v2337
    %v2351 = vpack.c.b16 %v2340, %v2339
    %v2352 = vpack.c.b16 %v2342, %v2341
    %v2353 = vpack.c.b16 %v2344, %v2343
    %v2354 = vpack.c.b16 %v2346, %v2345
    %2363 = vmatpush.bf16.msra.mxu0 %v2354
    %2364 = vmatpush.bf16.msra.mxu0 %v2353
    %2365 = vmatpush.bf16.msra.mxu0 %v2352
    %2366 = vmatpush.bf16.msra.mxu0 %v2351
    %2367 = vmatpush.bf16.msra.mxu0 %v2350
    %2368 = vmatpush.bf16.msra.mxu0 %v2349
    %2369 = vmatpush.bf16.msra.mxu0 %v2348
    %2370 = vmatpush.bf16.msra.mxu0 %v2347
    %2371 = vmatmul.bf16.gmra.mxu0 %v2311
    %v2372 = vpop.f32.mrf.mxu0
    %v2373 = vadd.f32 0.0, %v2372
    %v2374 = vpop.f32.mrf.mxu0
    %v2375 = vadd.f32 0.0, %v2374
    %2376 = vmatmul.bf16.gmra.mxu0 %v2312
    %v2377 = vpop.f32.mrf.mxu0
    %v2378 = vadd.f32 0.0, %v2377
    %v2379 = vpop.f32.mrf.mxu0
    %v2380 = vadd.f32 0.0, %v2379
    %2381 = vmatmul.bf16.gmra.mxu0 %v2313
    %v2382 = vpop.f32.mrf.mxu0
    %v2383 = vadd.f32 0.0, %v2382
    %v2384 = vpop.f32.mrf.mxu0
    %v2385 = vadd.f32 0.0, %v2384
    %2386 = vmatmul.bf16.gmra.mxu0 %v2314
    %v2387 = vpop.f32.mrf.mxu0
    %v2388 = vadd.f32 0.0, %v2387
    %v2389 = vpop.f32.mrf.mxu0
    %v2390 = vadd.f32 0.0, %v2389
    %2391 = vdwg.mxu0
    %v2408 = vunpack.c.l.b16 %v2275
    %v2409 = vunpack.c.l.b16 %v2276
    %v2410 = vunpack.c.l.b16 %v2277
    %v2411 = vunpack.c.l.b16 %v2278
    %v2412 = vunpack.c.l.b16 %v2279
    %v2413 = vunpack.c.l.b16 %v2280
    %v2414 = vunpack.c.l.b16 %v2281
    %v2415 = vunpack.c.l.b16 %v2282
    %v2416 = vunpack.c.l.b16 %v2283
    %v2417 = vunpack.c.l.b16 %v2284
    %v2418 = vunpack.c.l.b16 %v2285
    %v2419 = vunpack.c.l.b16 %v2286
    %v2420 = vunpack.c.l.b16 %v2287
    %v2421 = vunpack.c.l.b16 %v2288
    %v2422 = vunpack.c.l.b16 %v2289
    %v2423 = vunpack.c.l.b16 %v2290
    %v2424 = vpack.c.b16 %v2409, %v2408
    %v2425 = vpack.c.b16 %v2411, %v2410
    %v2426 = vpack.c.b16 %v2413, %v2412
    %v2427 = vpack.c.b16 %v2415, %v2414
    %v2428 = vpack.c.b16 %v2417, %v2416
    %v2429 = vpack.c.b16 %v2419, %v2418
    %v2430 = vpack.c.b16 %v2421, %v2420
    %v2431 = vpack.c.b16 %v2423, %v2422
    %2440 = vmatpush.bf16.msra.mxu0 %v2431
    %2441 = vmatpush.bf16.msra.mxu0 %v2430
    %2442 = vmatpush.bf16.msra.mxu0 %v2429
    %2443 = vmatpush.bf16.msra.mxu0 %v2428
    %2444 = vmatpush.bf16.msra.mxu0 %v2427
    %2445 = vmatpush.bf16.msra.mxu0 %v2426
    %2446 = vmatpush.bf16.msra.mxu0 %v2425
    %2447 = vmatpush.bf16.msra.mxu0 %v2424
    %2448 = vmatmul.bf16.gmra.mxu0 %v2307
    %v2449 = vpop.f32.mrf.mxu0
    %v2450 = vadd.f32 %v2373, %v2449
    %v2451 = vpop.f32.mrf.mxu0
    %v2452 = vadd.f32 %v2375, %v2451
    %2453 = vmatmul.bf16.gmra.mxu0 %v2308
    %v2454 = vpop.f32.mrf.mxu0
    %v2455 = vadd.f32 %v2378, %v2454
    %v2456 = vpop.f32.mrf.mxu0
    %v2457 = vadd.f32 %v2380, %v2456
    %2458 = vmatmul.bf16.gmra.mxu0 %v2309
    %v2459 = vpop.f32.mrf.mxu0
    %v2460 = vadd.f32 %v2383, %v2459
    %v2461 = vpop.f32.mrf.mxu0
    %v2462 = vadd.f32 %v2385, %v2461
    %2463 = vmatmul.bf16.gmra.mxu0 %v2310
    %v2464 = vpop.f32.mrf.mxu0
    %v2465 = vadd.f32 %v2388, %v2464
    %v2466 = vpop.f32.mrf.mxu0
    %v2467 = vadd.f32 %v2390, %v2466
    %2468 = vdwg.mxu0
    %v2469 = vld [vmem:[%s6] sm:$0x1]
    %v2471 = vperm.slane %v2469, 0
    %v2473 = vadd.f32 %v2450, %v2471
    %v2474 = vadd.f32 %v2452, %v2471
    %v2475 = vadd.f32 %v2455, %v2471
    %v2476 = vadd.f32 %v2457, %v2471
    %v2477 = vadd.f32 %v2460, %v2471
    %v2478 = vadd.f32 %v2462, %v2471
    %v2479 = vadd.f32 %v2465, %v2471
    %v2480 = vadd.f32 %v2467, %v2471
    %v2481 = vtanh.pop %v2473
    %v2482 = vtanh.pop %v2474
    %v2483 = vtanh.pop %v2475
    %v2484 = vtanh.pop %v2476
    %v2485 = vtanh.pop %v2477
    %v2486 = vtanh.pop %v2478
    %v2487 = vtanh.pop %v2479
    %v2488 = vtanh.pop %v2480
    %v2489 = vld [vmem:[#allocation10] sm:$0x1]
    %v2491 = vperm.slane %v2489, 0
    %v2493 = vmul.f32 %v2481, %v2491
    %v2494 = vmul.f32 %v2482, %v2491
    %v2495 = vmul.f32 %v2483, %v2491
    %v2496 = vmul.f32 %v2484, %v2491
    %v2497 = vmul.f32 %v2485, %v2491
    %v2498 = vmul.f32 %v2486, %v2491
    %v2499 = vmul.f32 %v2487, %v2491
    %v2500 = vmul.f32 %v2488, %v2491
    %2501 = vadd.xlane.f32.xlu0 %v2493
    %v2502 = vpop.xlane.xlu0 %2501
    %2503 = vadd.xlane.f32.xlu0 %v2494
    %v2504 = vpop.xlane.xlu0 %2503
    %2505 = vadd.xlane.f32.xlu0 %v2495
    %v2506 = vpop.xlane.xlu0 %2505
    %2507 = vadd.xlane.f32.xlu0 %v2496
    %v2508 = vpop.xlane.xlu0 %2507
    %2509 = vadd.xlane.f32.xlu0 %v2497
    %v2510 = vpop.xlane.xlu0 %2509
    %2511 = vadd.xlane.f32.xlu0 %v2498
    %v2512 = vpop.xlane.xlu0 %2511
    %2513 = vadd.xlane.f32.xlu0 %v2499
    %v2514 = vpop.xlane.xlu0 %2513
    %2515 = vadd.xlane.f32.xlu0 %v2500
    %v2516 = vpop.xlane.xlu0 %2515
    %v2517 = vmax.f32 %v2502, %v2510
    %v2518 = vmax.f32 %v2504, %v2512
    %v2519 = vmax.f32 %v2506, %v2514
    %v2520 = vmax.f32 %v2508, %v2516
    %v2521 = vmax.f32 %v2517, %v2518
    %v2522 = vmax.f32 %v2519, %v2520
    %v2523 = vmax.f32 %v2521, %v2522
    %v2524 = vsub.f32 %v2502, %v2523
    %v2525 = vsub.f32 %v2504, %v2523
    %v2526 = vsub.f32 %v2506, %v2523
    %v2527 = vsub.f32 %v2508, %v2523
    %v2528 = vsub.f32 %v2510, %v2523
    %v2529 = vsub.f32 %v2512, %v2523
    %v2530 = vsub.f32 %v2514, %v2523
    %v2531 = vsub.f32 %v2516, %v2523
    %v2532 = vmul.f32 %v2524, 1.442695
    %v2533 = vpow.pop %v2532
    %v2534 = vmul.f32 %v2525, 1.442695
    %v2535 = vpow.pop %v2534
    %v2536 = vmul.f32 %v2526, 1.442695
    %v2537 = vpow.pop %v2536
    %v2538 = vmul.f32 %v2527, 1.442695
    %v2539 = vpow.pop %v2538
    %v2540 = vmul.f32 %v2528, 1.442695
    %v2541 = vpow.pop %v2540
    %v2542 = vmul.f32 %v2529, 1.442695
    %v2543 = vpow.pop %v2542
    %v2544 = vmul.f32 %v2530, 1.442695
    %v2545 = vpow.pop %v2544
    %v2546 = vmul.f32 %v2531, 1.442695
    %v2547 = vpow.pop %v2546
    %v2548 = vadd.f32 %v2533, %v2535
    %v2549 = vadd.f32 %v2548, %v2537
    %v2550 = vadd.f32 %v2549, %v2539
    %v2551 = vadd.f32 %v2550, %v2541
    %v2552 = vadd.f32 %v2551, %v2543
    %v2553 = vadd.f32 %v2552, %v2545
    %v2554 = vadd.f32 %v2553, %v2547
    %v2555 = vrcp.pop %v2554
    %v2556 = vmul.f32 %v2533, %v2555
    %v2557 = vmul.f32 %v2535, %v2555
    %v2558 = vmul.f32 %v2537, %v2555
    %v2559 = vmul.f32 %v2539, %v2555
    %v2560 = vmul.f32 %v2541, %v2555
    %v2561 = vmul.f32 %v2543, %v2555
    %v2562 = vmul.f32 %v2545, %v2555
    %v2563 = vmul.f32 %v2547, %v2555
    %v2564 = vmul.f32 %v2556, %v2259
    %v2565 = vmul.f32 %v2557, %v2260
    %v2566 = vmul.f32 %v2558, %v2261
    %v2567 = vmul.f32 %v2559, %v2262
    %v2568 = vmul.f32 %v2560, %v2263
    %v2569 = vmul.f32 %v2561, %v2264
    %v2570 = vmul.f32 %v2562, %v2265
    %v2571 = vmul.f32 %v2563, %v2266
    %v2572 = vadd.f32 %v2564, %v2565
    %v2573 = vadd.f32 %v2572, %v2566
    %v2574 = vadd.f32 %v2573, %v2567
    %v2575 = vadd.f32 %v2574, %v2568
    %v2576 = vadd.f32 %v2575, %v2569
    %v2577 = vadd.f32 %v2576, %v2570
    %v2578 = vadd.f32 %v2577, %v2571
    %v2579 = vmul.f32 %v2556, %v2267
    %v2580 = vmul.f32 %v2557, %v2268
    %v2581 = vmul.f32 %v2558, %v2269
    %v2582 = vmul.f32 %v2559, %v2270
    %v2583 = vmul.f32 %v2560, %v2271
    %v2584 = vmul.f32 %v2561, %v2272
    %v2585 = vmul.f32 %v2562, %v2273
    %v2586 = vmul.f32 %v2563, %v2274
    %v2587 = vadd.f32 %v2579, %v2580
    %v2588 = vadd.f32 %v2587, %v2581
    %v2589 = vadd.f32 %v2588, %v2582
    %v2590 = vadd.f32 %v2589, %v2583
    %v2591 = vadd.f32 %v2590, %v2584
    %v2592 = vadd.f32 %v2591, %v2585
    %v2593 = vadd.f32 %v2592, %v2586
    %v2594 = vpack.c.bf16 %v2578, %v2578
    %2595 = vst [vmem:[%s8] sm:$0xf] %v2594
    %v2596 = vpack.c.bf16 %v2593, %v2593
    %2597 = vst [vmem:[%s8 + $0x4] sm:$0xf] %v2596
    // Predicated region
    $region50: #{ebsnn_gru_forward.2} parent=1 // pred_check
      _
    $region51: #{ebsnn_gru_forward.2} parent=1 // pred_check_branch
      %2599 = sbr.rel (0) target = $region53
    $region52: #{ebsnn_gru_forward.2} parent=1 // pred_region
      _
    $region53: #{ebsnn_gru_forward.2} parent=1 // pred_fallthru
      _
    // Predicated region
    $region54: #{ebsnn_gru_forward.2} parent=1 // pred_check
      _
    $region55: #{ebsnn_gru_forward.2} parent=1 // pred_check_branch
      %2601 = sbr.rel (0) target = $region57
    $region56: #{ebsnn_gru_forward.2} parent=1 // pred_region
      _
    $region57: #{ebsnn_gru_forward.2} parent=1 // pred_fallthru
      _
    %2602 = vsyncpa [#allocation6], 1
    %2603 = vsyncpa [#allocation8], 1
    %2604 = vsyncpa [#allocation11], 1

// kernel: ebsnn_gru_forward.3
$region0: #{ebsnn_gru_forward.3}
  #allocation0 [shape = 'u32[]', space=smem, size = 0x4, offset = 0x4, fixed_abs, tag = 'smem constant byte address 0x4 - core index']
  #allocation1 [shape = 'u32[72,128]{1,0:T(1,128)}', space=vmem, size = 0x9000, scoped, tag = 'internal scratch']
  #allocation2 [shape = 'f32[2,4,8,384]{3,2,1,0:T(8,128)}', space=vmem, size = 0x18000, scoped, tag = 'scratch operand']
  #allocation3 [shape = 'f32[4,8,128]{2,1,0:T(8,128)}', space=vmem, size = 0x4000, scoped, tag = 'scratch operand']
  #allocation4 [shape = 'f32[4,8,128]{2,1,0:T(8,128)}', space=vmem, size = 0x4000, scoped, tag = 'scratch operand']
  %s0 = inlined_call_operand.vmem [shape: bf16[4,8,256], index: 0, kind: input, shape index: {}]
  %s1 = inlined_call_operand.hbm [shape: bf16[256,768], index: 1, kind: input, shape index: {}]
  %s2 = inlined_call_operand.hbm [shape: bf16[2,128,384], index: 2, kind: input, shape index: {}]
  %s3 = inlined_call_operand.hbm [shape: f32[1,768], index: 3, kind: input, shape index: {}]
  %s4 = inlined_call_operand.hbm [shape: f32[2,1,384], index: 4, kind: input, shape index: {}]
  %s5 = inlined_call_operand.vmem [shape: bf16[256,128], index: 5, kind: input, shape index: {}]
  %s6 = inlined_call_operand.hbm [shape: f32[1,128], index: 6, kind: input, shape index: {}]
  %s7 = inlined_call_operand.hbm [shape: f32[1,128], index: 7, kind: input, shape index: {}]
  %s8 = inlined_call_operand.hbm [shape: bf16[256,128], index: 8, kind: input, shape index: {}]
  %s9 = inlined_call_operand.hbm [shape: f32[1,128], index: 9, kind: input, shape index: {}]
  %s10 = inlined_call_operand.vmem [shape: f32[8,128], index: 10, kind: output, shape index: {}]
  %s11 = sld [smem:[#allocation0]]
  $region82: #{ebsnn_gru_forward.3} parent=0
    _
  %s13 = ssub.s32 1, %s11
  %s14 = scalar_select 0, %s13, %s11
  $region1: #{ebsnn_gru_forward.3} parent=0
    #allocation5 [shape = 'u8[393216]{0}', space=vmem, size = 0x60000, scoped, tag = 'input window, operand 1, single buffered']
    #allocation6 [shape = 's32[1]{0}', space=sflag, size = 0x4, scoped, tag = 'scoped memory for ebsnn_gru_forward.3']
    #allocation7 [shape = 'u8[196608]{0}', space=vmem, size = 0x30000, scoped, tag = 'input window, operand 2, single buffered']
    #allocation8 [shape = 's32[1]{0}', space=sflag, size = 0x4, scoped, tag = 'scoped memory for ebsnn_gru_forward.3']
    #allocation9 [shape = 'u8[3072]{0}', space=vmem, size = 0xc00, scoped, tag = 'input window, operand 3, single buffered']
    #allocation10 [shape = 'u8[3072]{0}', space=vmem, size = 0xc00, scoped, tag = 'input window, operand 4, single buffered']
    #allocation11 [shape = 's32[1]{0}', space=sflag, size = 0x4, scoped, tag = 'scoped memory for ebsnn_gru_forward.3']
    #allocation12 [shape = 'u8[512]{0}', space=vmem, size = 0x400, scoped, tag = 'input window, operand 6, single buffered']
    #allocation13 [shape = 'u8[512]{0}', space=vmem, size = 0x400, scoped, tag = 'input window, operand 7, single buffered']
    #allocation14 [shape = 's32[1]{0}', space=sflag, size = 0x4, scoped, tag = 'scoped memory for ebsnn_gru_forward.3']
    #allocation15 [shape = 'u8[65536]{0}', space=vmem, size = 0x10000, scoped, tag = 'input window, operand 8, single buffered']
    #allocation16 [shape = 'u8[512]{0}', space=vmem, size = 0x400, scoped, tag = 'input window, operand 9, single buffered']
    #allocation17 [shape = 's32[1]{0}', space=sflag, size = 0x4, scoped, tag = 'scoped memory for ebsnn_gru_forward.3']
    %15 = vsyncpa [#allocation6], 0
    %16 = vsyncpa [#allocation8], 0
    %17 = vsyncpa [#allocation11], 0
    %18 = vsyncpa [#allocation14], 0
    %19 = vsyncpa [#allocation17], 0
    // Predicated region
    $region2: #{ebsnn_gru_forward.3} parent=1 // pred_check
      _
    $region3: #{ebsnn_gru_forward.3} parent=1 // pred_check_branch
      %21 = sbr.rel (0) target = $region5
    $region4: #{ebsnn_gru_forward.3} parent=1 // pred_region
      _
    $region5: #{ebsnn_gru_forward.3} parent=1 // pred_fallthru
      _
    // Predicated region
    $region6: #{ebsnn_gru_forward.3} parent=1 // pred_check
      _
    $region7: #{ebsnn_gru_forward.3} parent=1 // pred_check_branch
      %23 = sbr.rel (0) target = $region9
    $region8: #{ebsnn_gru_forward.3} parent=1 // pred_region
      %25 = vsyncadd [#allocation6], 0
      %s26 = sshll.u32 %s1, 4
      %s27 = int_to_ptr.hbm [resolvable:$true] %s26
      %s28 = sshll.u32 [#allocation5], 4
      %s29 = int_to_ptr.vmem [resolvable:$true] %s28
      %34 = dma.hbm_to_vmem [thread:$0]  %s27, 12288, %s29, [#allocation6], 384, 384, 24
    $region9: #{ebsnn_gru_forward.3} parent=1 // pred_fallthru
      _
    // Predicated region
    $region10: #{ebsnn_gru_forward.3} parent=1 // pred_check
      _
    $region11: #{ebsnn_gru_forward.3} parent=1 // pred_check_branch
      %36 = sbr.rel (0) target = $region13
    $region12: #{ebsnn_gru_forward.3} parent=1 // pred_region
      %38 = vsyncadd [#allocation8], 0
      %s39 = sshll.u32 %s2, 4
      %s40 = int_to_ptr.hbm [resolvable:$true] %s39
      %s41 = sshll.u32 [#allocation7], 4
      %s42 = int_to_ptr.vmem [resolvable:$true] %s41
      %47 = dma.hbm_to_vmem [thread:$0]  %s40, 6144, %s42, [#allocation8], 192, 192, 12
    $region13: #{ebsnn_gru_forward.3} parent=1 // pred_fallthru
      _
    // Predicated region
    $region14: #{ebsnn_gru_forward.3} parent=1 // pred_check
      _
    $region15: #{ebsnn_gru_forward.3} parent=1 // pred_check_branch
      %49 = sbr.rel (0) target = $region17
    $region16: #{ebsnn_gru_forward.3} parent=1 // pred_region
      %51 = vsyncadd [#allocation8], 0
      %s53 = sshll.u32 %s3, 4
      %s54 = int_to_ptr.hbm [resolvable:$true] %s53
      %s55 = sshll.u32 [#allocation9], 4
      %s56 = int_to_ptr.vmem [resolvable:$true] %s55
      %58 = dma.hbm_to_vmem [thread:$0]  %s54, 96, %s56, [#allocation8]
    $region17: #{ebsnn_gru_forward.3} parent=1 // pred_fallthru
      _
    // Predicated region
    $region18: #{ebsnn_gru_forward.3} parent=1 // pred_check
      _
    $region19: #{ebsnn_gru_forward.3} parent=1 // pred_check_branch
      %60 = sbr.rel (0) target = $region21
    $region20: #{ebsnn_gru_forward.3} parent=1 // pred_region
      %62 = vsyncadd [#allocation11], 0
      %s63 = sshll.u32 %s4, 4
      %s64 = int_to_ptr.hbm [resolvable:$true] %s63
      %s65 = sshll.u32 [#allocation10], 4
      %s66 = int_to_ptr.vmem [resolvable:$true] %s65
      %71 = dma.hbm_to_vmem [thread:$0]  %s64, 96, %s66, [#allocation11], 48, 48, 3
    $region21: #{ebsnn_gru_forward.3} parent=1 // pred_fallthru
      _
    // Predicated region
    $region22: #{ebsnn_gru_forward.3} parent=1 // pred_check
      _
    $region23: #{ebsnn_gru_forward.3} parent=1 // pred_check_branch
      %73 = sbr.rel (0) target = $region25
    $region24: #{ebsnn_gru_forward.3} parent=1 // pred_region
      _
    $region25: #{ebsnn_gru_forward.3} parent=1 // pred_fallthru
      _
    // Predicated region
    $region26: #{ebsnn_gru_forward.3} parent=1 // pred_check
      _
    $region27: #{ebsnn_gru_forward.3} parent=1 // pred_check_branch
      %75 = sbr.rel (0) target = $region29
    $region28: #{ebsnn_gru_forward.3} parent=1 // pred_region
      %77 = vsyncadd [#allocation11], 0
      %s79 = sshll.u32 %s6, 4
      %s80 = int_to_ptr.hbm [resolvable:$true] %s79
      %s81 = sshll.u32 [#allocation12], 4
      %s82 = int_to_ptr.vmem [resolvable:$true] %s81
      %84 = dma.hbm_to_vmem [thread:$0]  %s80, 16, %s82, [#allocation11]
    $region29: #{ebsnn_gru_forward.3} parent=1 // pred_fallthru
      _
    // Predicated region
    $region30: #{ebsnn_gru_forward.3} parent=1 // pred_check
      _
    $region31: #{ebsnn_gru_forward.3} parent=1 // pred_check_branch
      %86 = sbr.rel (0) target = $region33
    $region32: #{ebsnn_gru_forward.3} parent=1 // pred_region
      %88 = vsyncadd [#allocation14], 0
      %s90 = sshll.u32 %s7, 4
      %s91 = int_to_ptr.hbm [resolvable:$true] %s90
      %s92 = sshll.u32 [#allocation13], 4
      %s93 = int_to_ptr.vmem [resolvable:$true] %s92
      %95 = dma.hbm_to_vmem [thread:$0]  %s91, 16, %s93, [#allocation14]
    $region33: #{ebsnn_gru_forward.3} parent=1 // pred_fallthru
      _
    // Predicated region
    $region34: #{ebsnn_gru_forward.3} parent=1 // pred_check
      _
    $region35: #{ebsnn_gru_forward.3} parent=1 // pred_check_branch
      %97 = sbr.rel (0) target = $region37
    $region36: #{ebsnn_gru_forward.3} parent=1 // pred_region
      %99 = vsyncadd [#allocation14], 0
      %s100 = sshll.u32 %s8, 4
      %s101 = int_to_ptr.hbm [resolvable:$true] %s100
      %s102 = sshll.u32 [#allocation15], 4
      %s103 = int_to_ptr.vmem [resolvable:$true] %s102
      %108 = dma.hbm_to_vmem [thread:$0]  %s101, 2048, %s103, [#allocation14], 64, 64, 4
    $region37: #{ebsnn_gru_forward.3} parent=1 // pred_fallthru
      _
    // Predicated region
    $region38: #{ebsnn_gru_forward.3} parent=1 // pred_check
      _
    $region39: #{ebsnn_gru_forward.3} parent=1 // pred_check_branch
      %110 = sbr.rel (0) target = $region41
    $region40: #{ebsnn_gru_forward.3} parent=1 // pred_region
      %112 = vsyncadd [#allocation17], 0
      %s114 = sshll.u32 %s9, 4
      %s115 = int_to_ptr.hbm [resolvable:$true] %s114
      %s116 = sshll.u32 [#allocation16], 4
      %s117 = int_to_ptr.vmem [resolvable:$true] %s116
      %119 = dma.hbm_to_vmem [thread:$0]  %s115, 16, %s117, [#allocation17]
    $region41: #{ebsnn_gru_forward.3} parent=1 // pred_fallthru
      _
    // Predicated region
    $region42: #{ebsnn_gru_forward.3} parent=1 // pred_check
      _
    $region43: #{ebsnn_gru_forward.3} parent=1 // pred_check_branch
      %121 = sbr.rel (0) target = $region45
    $region44: #{ebsnn_gru_forward.3} parent=1 // pred_region
      %123 = dma.done [#allocation6], 12288
    $region45: #{ebsnn_gru_forward.3} parent=1 // pred_fallthru
      _
    // Predicated region
    $region46: #{ebsnn_gru_forward.3} parent=1 // pred_check
      _
    $region47: #{ebsnn_gru_forward.3} parent=1 // pred_check_branch
      %125 = sbr.rel (0) target = $region49
    $region48: #{ebsnn_gru_forward.3} parent=1 // pred_region
      %127 = dma.done [#allocation8], 6144
    $region49: #{ebsnn_gru_forward.3} parent=1 // pred_fallthru
      _
    // Predicated region
    $region50: #{ebsnn_gru_forward.3} parent=1 // pred_check
      _
    $region51: #{ebsnn_gru_forward.3} parent=1 // pred_check_branch
      %129 = sbr.rel (0) target = $region53
    $region52: #{ebsnn_gru_forward.3} parent=1 // pred_region
      %131 = dma.done [#allocation8], 96
    $region53: #{ebsnn_gru_forward.3} parent=1 // pred_fallthru
      _
    // Predicated region
    $region54: #{ebsnn_gru_forward.3} parent=1 // pred_check
      _
    $region55: #{ebsnn_gru_forward.3} parent=1 // pred_check_branch
      %133 = sbr.rel (0) target = $region57
    $region56: #{ebsnn_gru_forward.3} parent=1 // pred_region
      %135 = dma.done [#allocation11], 96
    $region57: #{ebsnn_gru_forward.3} parent=1 // pred_fallthru
      _
    // Predicated region
    $region58: #{ebsnn_gru_forward.3} parent=1 // pred_check
      _
    $region59: #{ebsnn_gru_forward.3} parent=1 // pred_check_branch
      %137 = sbr.rel (0) target = $region61
    $region60: #{ebsnn_gru_forward.3} parent=1 // pred_region
      %139 = dma.done [#allocation11], 16
    $region61: #{ebsnn_gru_forward.3} parent=1 // pred_fallthru
      _
    // Predicated region
    $region62: #{ebsnn_gru_forward.3} parent=1 // pred_check
      _
    $region63: #{ebsnn_gru_forward.3} parent=1 // pred_check_branch
      %141 = sbr.rel (0) target = $region65
    $region64: #{ebsnn_gru_forward.3} parent=1 // pred_region
      %143 = dma.done [#allocation14], 16
    $region65: #{ebsnn_gru_forward.3} parent=1 // pred_fallthru
      _
    // Predicated region
    $region66: #{ebsnn_gru_forward.3} parent=1 // pred_check
      _
    $region67: #{ebsnn_gru_forward.3} parent=1 // pred_check_branch
      %145 = sbr.rel (0) target = $region69
    $region68: #{ebsnn_gru_forward.3} parent=1 // pred_region
      %147 = dma.done [#allocation14], 2048
    $region69: #{ebsnn_gru_forward.3} parent=1 // pred_fallthru
      _
    // Predicated region
    $region70: #{ebsnn_gru_forward.3} parent=1 // pred_check
      _
    $region71: #{ebsnn_gru_forward.3} parent=1 // pred_check_branch
      %149 = sbr.rel (0) target = $region73
    $region72: #{ebsnn_gru_forward.3} parent=1 // pred_region
      %151 = dma.done [#allocation17], 16
    $region73: #{ebsnn_gru_forward.3} parent=1 // pred_fallthru
      _
    %v153 = vld [vmem:[%s0] sm:$0xff]
    %v154 = vld [vmem:[%s0 + $0x8] sm:$0xff]
    %v155 = vld [vmem:[%s0 + $0x10] sm:$0xff]
    %v156 = vld [vmem:[%s0 + $0x18] sm:$0xff]
    %v157 = vld [vmem:[#allocation5] sm:$0xff]
    %v158 = vld [vmem:[#allocation5 + $0x8] sm:$0xff]
    %v159 = vld [vmem:[#allocation5 + $0x10] sm:$0xff]
    %v160 = vld [vmem:[#allocation5 + $0x18] sm:$0xff]
    %v161 = vld [vmem:[#allocation5 + $0x20] sm:$0xff]
    %v162 = vld [vmem:[#allocation5 + $0x28] sm:$0xff]
    %v163 = vld [vmem:[#allocation5 + $0x30] sm:$0xff]
    %v164 = vld [vmem:[#allocation5 + $0x38] sm:$0xff]
    %v165 = vld [vmem:[#allocation5 + $0x40] sm:$0xff]
    %v166 = vld [vmem:[#allocation5 + $0x48] sm:$0xff]
    %v167 = vld [vmem:[#allocation5 + $0x50] sm:$0xff]
    %v168 = vld [vmem:[#allocation5 + $0x58] sm:$0xff]
    %v169 = vld [vmem:[#allocation5 + $0x60] sm:$0xff]
    %v170 = vld [vmem:[#allocation5 + $0x68] sm:$0xff]
    %v171 = vld [vmem:[#allocation5 + $0x70] sm:$0xff]
    %v172 = vld [vmem:[#allocation5 + $0x78] sm:$0xff]
    %v173 = vld [vmem:[#allocation5 + $0x80] sm:$0xff]
    %v174 = vld [vmem:[#allocation5 + $0x88] sm:$0xff]
    %v175 = vld [vmem:[#allocation5 + $0x90] sm:$0xff]
    %v176 = vld [vmem:[#allocation5 + $0x98] sm:$0xff]
    %v177 = vld [vmem:[#allocation5 + $0xa0] sm:$0xff]
    %v178 = vld [vmem:[#allocation5 + $0xa8] sm:$0xff]
    %v179 = vld [vmem:[#allocation5 + $0xb0] sm:$0xff]
    %v180 = vld [vmem:[#allocation5 + $0xb8] sm:$0xff]
    %v181 = vld [vmem:[#allocation5 + $0xc0] sm:$0xff]
    %v182 = vld [vmem:[#allocation5 + $0xc8] sm:$0xff]
    %v183 = vld [vmem:[#allocation5 + $0xd0] sm:$0xff]
    %v184 = vld [vmem:[#allocation5 + $0xd8] sm:$0xff]
    %v185 = vld [vmem:[#allocation5 + $0xe0] sm:$0xff]
    %v186 = vld [vmem:[#allocation5 + $0xe8] sm:$0xff]
    %v187 = vld [vmem:[#allocation5 + $0xf0] sm:$0xff]
    %v188 = vld [vmem:[#allocation5 + $0xf8] sm:$0xff]
    %v189 = vld [vmem:[#allocation5 + $0x100] sm:$0xff]
    %v190 = vld [vmem:[#allocation5 + $0x108] sm:$0xff]
    %v191 = vld [vmem:[#allocation5 + $0x110] sm:$0xff]
    %v192 = vld [vmem:[#allocation5 + $0x118] sm:$0xff]
    %v193 = vld [vmem:[#allocation5 + $0x120] sm:$0xff]
    %v194 = vld [vmem:[#allocation5 + $0x128] sm:$0xff]
    %v195 = vld [vmem:[#allocation5 + $0x130] sm:$0xff]
    %v196 = vld [vmem:[#allocation5 + $0x138] sm:$0xff]
    %v197 = vld [vmem:[#allocation5 + $0x140] sm:$0xff]
    %v198 = vld [vmem:[#allocation5 + $0x148] sm:$0xff]
    %v199 = vld [vmem:[#allocation5 + $0x150] sm:$0xff]
    %v200 = vld [vmem:[#allocation5 + $0x158] sm:$0xff]
    %v201 = vld [vmem:[#allocation5 + $0x160] sm:$0xff]
    %v202 = vld [vmem:[#allocation5 + $0x168] sm:$0xff]
    %v203 = vld [vmem:[#allocation5 + $0x170] sm:$0xff]
    %v204 = vld [vmem:[#allocation5 + $0x178] sm:$0xff]
    %v205 = vld [vmem:[#allocation5 + $0x180] sm:$0xff]
    %v206 = vld [vmem:[#allocation5 + $0x188] sm:$0xff]
    %v207 = vld [vmem:[#allocation5 + $0x190] sm:$0xff]
    %v208 = vld [vmem:[#allocation5 + $0x198] sm:$0xff]
    %v209 = vld [vmem:[#allocation5 + $0x1a0] sm:$0xff]
    %v210 = vld [vmem:[#allocation5 + $0x1a8] sm:$0xff]
    %v211 = vld [vmem:[#allocation5 + $0x1b0] sm:$0xff]
    %v212 = vld [vmem:[#allocation5 + $0x1b8] sm:$0xff]
    %v213 = vld [vmem:[#allocation5 + $0x1c0] sm:$0xff]
    %v214 = vld [vmem:[#allocation5 + $0x1c8] sm:$0xff]
    %v215 = vld [vmem:[#allocation5 + $0x1d0] sm:$0xff]
    %v216 = vld [vmem:[#allocation5 + $0x1d8] sm:$0xff]
    %v217 = vld [vmem:[#allocation5 + $0x1e0] sm:$0xff]
    %v218 = vld [vmem:[#allocation5 + $0x1e8] sm:$0xff]
    %v219 = vld [vmem:[#allocation5 + $0x1f0] sm:$0xff]
    %v220 = vld [vmem:[#allocation5 + $0x1f8] sm:$0xff]
    %v221 = vld [vmem:[#allocation5 + $0x200] sm:$0xff]
    %v222 = vld [vmem:[#allocation5 + $0x208] sm:$0xff]
    %v223 = vld [vmem:[#allocation5 + $0x210] sm:$0xff]
    %v224 = vld [vmem:[#allocation5 + $0x218] sm:$0xff]
    %v225 = vld [vmem:[#allocation5 + $0x220] sm:$0xff]
    %v226 = vld [vmem:[#allocation5 + $0x228] sm:$0xff]
    %v227 = vld [vmem:[#allocation5 + $0x230] sm:$0xff]
    %v228 = vld [vmem:[#allocation5 + $0x238] sm:$0xff]
    %v229 = vld [vmem:[#allocation5 + $0x240] sm:$0xff]
    %v230 = vld [vmem:[#allocation5 + $0x248] sm:$0xff]
    %v231 = vld [vmem:[#allocation5 + $0x250] sm:$0xff]
    %v232 = vld [vmem:[#allocation5 + $0x258] sm:$0xff]
    %v233 = vld [vmem:[#allocation5 + $0x260] sm:$0xff]
    %v234 = vld [vmem:[#allocation5 + $0x268] sm:$0xff]
    %v235 = vld [vmem:[#allocation5 + $0x270] sm:$0xff]
    %v236 = vld [vmem:[#allocation5 + $0x278] sm:$0xff]
    %v237 = vld [vmem:[#allocation5 + $0x280] sm:$0xff]
    %v238 = vld [vmem:[#allocation5 + $0x288] sm:$0xff]
    %v239 = vld [vmem:[#allocation5 + $0x290] sm:$0xff]
    %v240 = vld [vmem:[#allocation5 + $0x298] sm:$0xff]
    %v241 = vld [vmem:[#allocation5 + $0x2a0] sm:$0xff]
    %v242 = vld [vmem:[#allocation5 + $0x2a8] sm:$0xff]
    %v243 = vld [vmem:[#allocation5 + $0x2b0] sm:$0xff]
    %v244 = vld [vmem:[#allocation5 + $0x2b8] sm:$0xff]
    %v245 = vld [vmem:[#allocation5 + $0x2c0] sm:$0xff]
    %v246 = vld [vmem:[#allocation5 + $0x2c8] sm:$0xff]
    %v247 = vld [vmem:[#allocation5 + $0x2d0] sm:$0xff]
    %v248 = vld [vmem:[#allocation5 + $0x2d8] sm:$0xff]
    %v249 = vld [vmem:[#allocation5 + $0x2e0] sm:$0xff]
    %v250 = vld [vmem:[#allocation5 + $0x2e8] sm:$0xff]
    %v251 = vld [vmem:[#allocation5 + $0x2f0] sm:$0xff]
    %v252 = vld [vmem:[#allocation5 + $0x2f8] sm:$0xff]
    %v253 = vld [vmem:[#allocation9] sm:$0x3f]
    %v255 = vperm.slane %v253, 0
    %v256 = vperm.slane %v253, 1
    %v257 = vperm.slane %v253, 2
    %v258 = vperm.slane %v253, 3
    %v259 = vperm.slane %v253, 4
    %v260 = vperm.slane %v253, 5
    %v271 = vunpack.c.l.b16 %v153
    %v272 = vunpack.c.h.b16 %v153
    %v273 = vunpack.c.l.b16 %v154
    %v274 = vunpack.c.h.b16 %v154
    %v275 = vunpack.c.l.b16 %v155
    %v276 = vunpack.c.h.b16 %v155
    %v277 = vunpack.c.l.b16 %v156
    %v278 = vunpack.c.h.b16 %v156
    %v279 = vpack.c.b16 %v273, %v271
    %v280 = vpack.c.b16 %v274, %v272
    %v281 = vpack.c.b16 %v277, %v275
    %v282 = vpack.c.b16 %v278, %v276
    %v383 = vunpack.c.l.b16 %v157
    %v384 = vunpack.c.h.b16 %v157
    %v385 = vunpack.c.l.b16 %v158
    %v386 = vunpack.c.h.b16 %v158
    %v387 = vunpack.c.l.b16 %v159
    %v388 = vunpack.c.h.b16 %v159
    %v389 = vunpack.c.l.b16 %v160
    %v390 = vunpack.c.h.b16 %v160
    %v391 = vunpack.c.l.b16 %v161
    %v392 = vunpack.c.h.b16 %v161
    %v393 = vunpack.c.l.b16 %v162
    %v394 = vunpack.c.h.b16 %v162
    %v395 = vunpack.c.l.b16 %v163
    %v396 = vunpack.c.h.b16 %v163
    %v397 = vunpack.c.l.b16 %v164
    %v398 = vunpack.c.h.b16 %v164
    %v399 = vunpack.c.l.b16 %v165
    %v400 = vunpack.c.h.b16 %v165
    %v401 = vunpack.c.l.b16 %v166
    %v402 = vunpack.c.h.b16 %v166
    %v403 = vunpack.c.l.b16 %v167
    %v404 = vunpack.c.h.b16 %v167
    %v405 = vunpack.c.l.b16 %v168
    %v406 = vunpack.c.h.b16 %v168
    %v407 = vunpack.c.l.b16 %v169
    %v408 = vunpack.c.h.b16 %v169
    %v409 = vunpack.c.l.b16 %v170
    %v410 = vunpack.c.h.b16 %v170
    %v411 = vunpack.c.l.b16 %v171
    %v412 = vunpack.c.h.b16 %v171
    %v413 = vunpack.c.l.b16 %v172
    %v414 = vunpack.c.h.b16 %v172
    %v415 = vunpack.c.l.b16 %v173
    %v416 = vunpack.c.h.b16 %v173
    %v417 = vunpack.c.l.b16 %v174
    %v418 = vunpack.c.h.b16 %v174
    %v419 = vunpack.c.l.b16 %v175
    %v420 = vunpack.c.h.b16 %v175
    %v421 = vunpack.c.l.b16 %v176
    %v422 = vunpack.c.h.b16 %v176
    %v423 = vunpack.c.l.b16 %v177
    %v424 = vunpack.c.h.b16 %v177
    %v425 = vunpack.c.l.b16 %v178
    %v426 = vunpack.c.h.b16 %v178
    %v427 = vunpack.c.l.b16 %v179
    %v428 = vunpack.c.h.b16 %v179
    %v429 = vunpack.c.l.b16 %v180
    %v430 = vunpack.c.h.b16 %v180
    %v431 = vunpack.c.l.b16 %v181
    %v432 = vunpack.c.h.b16 %v181
    %v433 = vunpack.c.l.b16 %v182
    %v434 = vunpack.c.h.b16 %v182
    %v435 = vunpack.c.l.b16 %v183
    %v436 = vunpack.c.h.b16 %v183
    %v437 = vunpack.c.l.b16 %v184
    %v438 = vunpack.c.h.b16 %v184
    %v439 = vunpack.c.l.b16 %v185
    %v440 = vunpack.c.h.b16 %v185
    %v441 = vunpack.c.l.b16 %v186
    %v442 = vunpack.c.h.b16 %v186
    %v443 = vunpack.c.l.b16 %v187
    %v444 = vunpack.c.h.b16 %v187
    %v445 = vunpack.c.l.b16 %v188
    %v446 = vunpack.c.h.b16 %v188
    %v447 = vunpack.c.l.b16 %v189
    %v448 = vunpack.c.h.b16 %v189
    %v449 = vunpack.c.l.b16 %v190
    %v450 = vunpack.c.h.b16 %v190
    %v451 = vunpack.c.l.b16 %v191
    %v452 = vunpack.c.h.b16 %v191
    %v453 = vunpack.c.l.b16 %v192
    %v454 = vunpack.c.h.b16 %v192
    %v455 = vunpack.c.l.b16 %v193
    %v456 = vunpack.c.h.b16 %v193
    %v457 = vunpack.c.l.b16 %v194
    %v458 = vunpack.c.h.b16 %v194
    %v459 = vunpack.c.l.b16 %v195
    %v460 = vunpack.c.h.b16 %v195
    %v461 = vunpack.c.l.b16 %v196
    %v462 = vunpack.c.h.b16 %v196
    %v463 = vunpack.c.l.b16 %v197
    %v464 = vunpack.c.h.b16 %v197
    %v465 = vunpack.c.l.b16 %v198
    %v466 = vunpack.c.h.b16 %v198
    %v467 = vunpack.c.l.b16 %v199
    %v468 = vunpack.c.h.b16 %v199
    %v469 = vunpack.c.l.b16 %v200
    %v470 = vunpack.c.h.b16 %v200
    %v471 = vunpack.c.l.b16 %v201
    %v472 = vunpack.c.h.b16 %v201
    %v473 = vunpack.c.l.b16 %v202
    %v474 = vunpack.c.h.b16 %v202
    %v475 = vunpack.c.l.b16 %v203
    %v476 = vunpack.c.h.b16 %v203
    %v477 = vunpack.c.l.b16 %v204
    %v478 = vunpack.c.h.b16 %v204
    %v479 = vunpack.c.l.b16 %v205
    %v480 = vunpack.c.h.b16 %v205
    %v481 = vunpack.c.l.b16 %v206
    %v482 = vunpack.c.h.b16 %v206
    %v483 = vunpack.c.l.b16 %v207
    %v484 = vunpack.c.h.b16 %v207
    %v485 = vunpack.c.l.b16 %v208
    %v486 = vunpack.c.h.b16 %v208
    %v487 = vunpack.c.l.b16 %v209
    %v488 = vunpack.c.h.b16 %v209
    %v489 = vunpack.c.l.b16 %v210
    %v490 = vunpack.c.h.b16 %v210
    %v491 = vunpack.c.l.b16 %v211
    %v492 = vunpack.c.h.b16 %v211
    %v493 = vunpack.c.l.b16 %v212
    %v494 = vunpack.c.h.b16 %v212
    %v495 = vunpack.c.l.b16 %v213
    %v496 = vunpack.c.h.b16 %v213
    %v497 = vunpack.c.l.b16 %v214
    %v498 = vunpack.c.h.b16 %v214
    %v499 = vunpack.c.l.b16 %v215
    %v500 = vunpack.c.h.b16 %v215
    %v501 = vunpack.c.l.b16 %v216
    %v502 = vunpack.c.h.b16 %v216
    %v503 = vunpack.c.l.b16 %v217
    %v504 = vunpack.c.h.b16 %v217
    %v505 = vunpack.c.l.b16 %v218
    %v506 = vunpack.c.h.b16 %v218
    %v507 = vunpack.c.l.b16 %v219
    %v508 = vunpack.c.h.b16 %v219
    %v509 = vunpack.c.l.b16 %v220
    %v510 = vunpack.c.h.b16 %v220
    %v511 = vunpack.c.l.b16 %v221
    %v512 = vunpack.c.h.b16 %v221
    %v513 = vunpack.c.l.b16 %v222
    %v514 = vunpack.c.h.b16 %v222
    %v515 = vunpack.c.l.b16 %v223
    %v516 = vunpack.c.h.b16 %v223
    %v517 = vunpack.c.l.b16 %v224
    %v518 = vunpack.c.h.b16 %v224
    %v519 = vunpack.c.l.b16 %v225
    %v520 = vunpack.c.h.b16 %v225
    %v521 = vunpack.c.l.b16 %v226
    %v522 = vunpack.c.h.b16 %v226
    %v523 = vunpack.c.l.b16 %v227
    %v524 = vunpack.c.h.b16 %v227
    %v525 = vunpack.c.l.b16 %v228
    %v526 = vunpack.c.h.b16 %v228
    %v527 = vunpack.c.l.b16 %v229
    %v528 = vunpack.c.h.b16 %v229
    %v529 = vunpack.c.l.b16 %v230
    %v530 = vunpack.c.h.b16 %v230
    %v531 = vunpack.c.l.b16 %v231
    %v532 = vunpack.c.h.b16 %v231
    %v533 = vunpack.c.l.b16 %v232
    %v534 = vunpack.c.h.b16 %v232
    %v535 = vunpack.c.l.b16 %v233
    %v536 = vunpack.c.h.b16 %v233
    %v537 = vunpack.c.l.b16 %v234
    %v538 = vunpack.c.h.b16 %v234
    %v539 = vunpack.c.l.b16 %v235
    %v540 = vunpack.c.h.b16 %v235
    %v541 = vunpack.c.l.b16 %v236
    %v542 = vunpack.c.h.b16 %v236
    %v543 = vunpack.c.l.b16 %v237
    %v544 = vunpack.c.h.b16 %v237
    %v545 = vunpack.c.l.b16 %v238
    %v546 = vunpack.c.h.b16 %v238
    %v547 = vunpack.c.l.b16 %v239
    %v548 = vunpack.c.h.b16 %v239
    %v549 = vunpack.c.l.b16 %v240
    %v550 = vunpack.c.h.b16 %v240
    %v551 = vunpack.c.l.b16 %v241
    %v552 = vunpack.c.h.b16 %v241
    %v553 = vunpack.c.l.b16 %v242
    %v554 = vunpack.c.h.b16 %v242
    %v555 = vunpack.c.l.b16 %v243
    %v556 = vunpack.c.h.b16 %v243
    %v557 = vunpack.c.l.b16 %v244
    %v558 = vunpack.c.h.b16 %v244
    %v559 = vunpack.c.l.b16 %v245
    %v560 = vunpack.c.h.b16 %v245
    %v561 = vunpack.c.l.b16 %v246
    %v562 = vunpack.c.h.b16 %v246
    %v563 = vunpack.c.l.b16 %v247
    %v564 = vunpack.c.h.b16 %v247
    %v565 = vunpack.c.l.b16 %v248
    %v566 = vunpack.c.h.b16 %v248
    %v567 = vunpack.c.l.b16 %v249
    %v568 = vunpack.c.h.b16 %v249
    %v569 = vunpack.c.l.b16 %v250
    %v570 = vunpack.c.h.b16 %v250
    %v571 = vunpack.c.l.b16 %v251
    %v572 = vunpack.c.h.b16 %v251
    %v573 = vunpack.c.l.b16 %v252
    %v574 = vunpack.c.h.b16 %v252
    %v575 = vpack.c.b16 %v389, %v383
    %v576 = vpack.c.b16 %v390, %v384
    %v577 = vpack.c.b16 %v391, %v385
    %v578 = vpack.c.b16 %v392, %v386
    %v579 = vpack.c.b16 %v393, %v387
    %v580 = vpack.c.b16 %v394, %v388
    %v581 = vpack.c.b16 %v401, %v395
    %v582 = vpack.c.b16 %v402, %v396
    %v583 = vpack.c.b16 %v403, %v397
    %v584 = vpack.c.b16 %v404, %v398
    %v585 = vpack.c.b16 %v405, %v399
    %v586 = vpack.c.b16 %v406, %v400
    %v587 = vpack.c.b16 %v413, %v407
    %v588 = vpack.c.b16 %v414, %v408
    %v589 = vpack.c.b16 %v415, %v409
    %v590 = vpack.c.b16 %v416, %v410
    %v591 = vpack.c.b16 %v417, %v411
    %v592 = vpack.c.b16 %v418, %v412
    %v593 = vpack.c.b16 %v425, %v419
    %v594 = vpack.c.b16 %v426, %v420
    %v595 = vpack.c.b16 %v427, %v421
    %v596 = vpack.c.b16 %v428, %v422
    %v597 = vpack.c.b16 %v429, %v423
    %v598 = vpack.c.b16 %v430, %v424
    %v599 = vpack.c.b16 %v437, %v431
    %v600 = vpack.c.b16 %v438, %v432
    %v601 = vpack.c.b16 %v439, %v433
    %v602 = vpack.c.b16 %v440, %v434
    %v603 = vpack.c.b16 %v441, %v435
    %v604 = vpack.c.b16 %v442, %v436
    %v605 = vpack.c.b16 %v449, %v443
    %v606 = vpack.c.b16 %v450, %v444
    %v607 = vpack.c.b16 %v451, %v445
    %v608 = vpack.c.b16 %v452, %v446
    %v609 = vpack.c.b16 %v453, %v447
    %v610 = vpack.c.b16 %v454, %v448
    %v611 = vpack.c.b16 %v461, %v455
    %v612 = vpack.c.b16 %v462, %v456
    %v613 = vpack.c.b16 %v463, %v457
    %v614 = vpack.c.b16 %v464, %v458
    %v615 = vpack.c.b16 %v465, %v459
    %v616 = vpack.c.b16 %v466, %v460
    %v617 = vpack.c.b16 %v473, %v467
    %v618 = vpack.c.b16 %v474, %v468
    %v619 = vpack.c.b16 %v475, %v469
    %v620 = vpack.c.b16 %v476, %v470
    %v621 = vpack.c.b16 %v477, %v471
    %v622 = vpack.c.b16 %v478, %v472
    %v623 = vpack.c.b16 %v485, %v479
    %v624 = vpack.c.b16 %v486, %v480
    %v625 = vpack.c.b16 %v487, %v481
    %v626 = vpack.c.b16 %v488, %v482
    %v627 = vpack.c.b16 %v489, %v483
    %v628 = vpack.c.b16 %v490, %v484
    %v629 = vpack.c.b16 %v497, %v491
    %v630 = vpack.c.b16 %v498, %v492
    %v631 = vpack.c.b16 %v499, %v493
    %v632 = vpack.c.b16 %v500, %v494
    %v633 = vpack.c.b16 %v501, %v495
    %v634 = vpack.c.b16 %v502, %v496
    %v635 = vpack.c.b16 %v509, %v503
    %v636 = vpack.c.b16 %v510, %v504
    %v637 = vpack.c.b16 %v511, %v505
    %v638 = vpack.c.b16 %v512, %v506
    %v639 = vpack.c.b16 %v513, %v507
    %v640 = vpack.c.b16 %v514, %v508
    %v641 = vpack.c.b16 %v521, %v515
    %v642 = vpack.c.b16 %v522, %v516
    %v643 = vpack.c.b16 %v523, %v517
    %v644 = vpack.c.b16 %v524, %v518
    %v645 = vpack.c.b16 %v525, %v519
    %v646 = vpack.c.b16 %v526, %v520
    %v647 = vpack.c.b16 %v533, %v527
    %v648 = vpack.c.b16 %v534, %v528
    %v649 = vpack.c.b16 %v535, %v529
    %v650 = vpack.c.b16 %v536, %v530
    %v651 = vpack.c.b16 %v537, %v531
    %v652 = vpack.c.b16 %v538, %v532
    %v653 = vpack.c.b16 %v545, %v539
    %v654 = vpack.c.b16 %v546, %v540
    %v655 = vpack.c.b16 %v547, %v541
    %v656 = vpack.c.b16 %v548, %v542
    %v657 = vpack.c.b16 %v549, %v543
    %v658 = vpack.c.b16 %v550, %v544
    %v659 = vpack.c.b16 %v557, %v551
    %v660 = vpack.c.b16 %v558, %v552
    %v661 = vpack.c.b16 %v559, %v553
    %v662 = vpack.c.b16 %v560, %v554
    %v663 = vpack.c.b16 %v561, %v555
    %v664 = vpack.c.b16 %v562, %v556
    %v665 = vpack.c.b16 %v569, %v563
    %v666 = vpack.c.b16 %v570, %v564
    %v667 = vpack.c.b16 %v571, %v565
    %v668 = vpack.c.b16 %v572, %v566
    %v669 = vpack.c.b16 %v573, %v567
    %v670 = vpack.c.b16 %v574, %v568
    %767 = vmatpush.bf16.msra.mxu0 %v617
    %768 = vmatpush.bf16.msra.mxu0 %v611
    %769 = vmatpush.bf16.msra.mxu0 %v605
    %770 = vmatpush.bf16.msra.mxu0 %v599
    %771 = vmatpush.bf16.msra.mxu0 %v593
    %772 = vmatpush.bf16.msra.mxu0 %v587
    %773 = vmatpush.bf16.msra.mxu0 %v581
    %774 = vmatpush.bf16.msra.mxu0 %v575
    %775 = vmatmul.bf16.gmra.mxu0 %v279
    %v776 = vpop.f32.mrf.mxu0
    %v777 = vadd.f32 %v255, %v776
    %v778 = vpop.f32.mrf.mxu0
    %v779 = vadd.f32 %v255, %v778
    %780 = vmatmul.bf16.gmra.mxu0 %v281
    %v781 = vpop.f32.mrf.mxu0
    %v782 = vadd.f32 %v255, %v781
    %v783 = vpop.f32.mrf.mxu0
    %v784 = vadd.f32 %v255, %v783
    %785 = vdwg.mxu0
    %786 = vmatpush.bf16.msra.mxu0 %v665
    %787 = vmatpush.bf16.msra.mxu0 %v659
    %788 = vmatpush.bf16.msra.mxu0 %v653
    %789 = vmatpush.bf16.msra.mxu0 %v647
    %790 = vmatpush.bf16.msra.mxu0 %v641
    %791 = vmatpush.bf16.msra.mxu0 %v635
    %792 = vmatpush.bf16.msra.mxu0 %v629
    %793 = vmatpush.bf16.msra.mxu0 %v623
    %794 = vmatmul.bf16.gmra.mxu0 %v280
    %v795 = vpop.f32.mrf.mxu0
    %v796 = vadd.f32 %v777, %v795
    %v797 = vpop.f32.mrf.mxu0
    %v798 = vadd.f32 %v779, %v797
    %799 = vmatmul.bf16.gmra.mxu0 %v282
    %v800 = vpop.f32.mrf.mxu0
    %v801 = vadd.f32 %v782, %v800
    %v802 = vpop.f32.mrf.mxu0
    %v803 = vadd.f32 %v784, %v802
    %804 = vdwg.mxu0
    %805 = vmatpush.bf16.msra.mxu0 %v618
    %806 = vmatpush.bf16.msra.mxu0 %v612
    %807 = vmatpush.bf16.msra.mxu0 %v606
    %808 = vmatpush.bf16.msra.mxu0 %v600
    %809 = vmatpush.bf16.msra.mxu0 %v594
    %810 = vmatpush.bf16.msra.mxu0 %v588
    %811 = vmatpush.bf16.msra.mxu0 %v582
    %812 = vmatpush.bf16.msra.mxu0 %v576
    %813 = vmatmul.bf16.gmra.mxu0 %v279
    %v814 = vpop.f32.mrf.mxu0
    %v815 = vadd.f32 %v256, %v814
    %v816 = vpop.f32.mrf.mxu0
    %v817 = vadd.f32 %v256, %v816
    %818 = vmatmul.bf16.gmra.mxu0 %v281
    %v819 = vpop.f32.mrf.mxu0
    %v820 = vadd.f32 %v256, %v819
    %v821 = vpop.f32.mrf.mxu0
    %v822 = vadd.f32 %v256, %v821
    %823 = vdwg.mxu0
    %824 = vmatpush.bf16.msra.mxu0 %v666
    %825 = vmatpush.bf16.msra.mxu0 %v660
    %826 = vmatpush.bf16.msra.mxu0 %v654
    %827 = vmatpush.bf16.msra.mxu0 %v648
    %828 = vmatpush.bf16.msra.mxu0 %v642
    %829 = vmatpush.bf16.msra.mxu0 %v636
    %830 = vmatpush.bf16.msra.mxu0 %v630
    %831 = vmatpush.bf16.msra.mxu0 %v624
    %832 = vmatmul.bf16.gmra.mxu0 %v280
    %v833 = vpop.f32.mrf.mxu0
    %v834 = vadd.f32 %v815, %v833
    %v835 = vpop.f32.mrf.mxu0
    %v836 = vadd.f32 %v817, %v835
    %837 = vmatmul.bf16.gmra.mxu0 %v282
    %v838 = vpop.f32.mrf.mxu0
    %v839 = vadd.f32 %v820, %v838
    %v840 = vpop.f32.mrf.mxu0
    %v841 = vadd.f32 %v822, %v840
    %842 = vdwg.mxu0
    %843 = vmatpush.bf16.msra.mxu0 %v619
    %844 = vmatpush.bf16.msra.mxu0 %v613
    %845 = vmatpush.bf16.msra.mxu0 %v607
    %846 = vmatpush.bf16.msra.mxu0 %v601
    %847 = vmatpush.bf16.msra.mxu0 %v595
    %848 = vmatpush.bf16.msra.mxu0 %v589
    %849 = vmatpush.bf16.msra.mxu0 %v583
    %850 = vmatpush.bf16.msra.mxu0 %v577
    %851 = vmatmul.bf16.gmra.mxu0 %v279
    %v852 = vpop.f32.mrf.mxu0
    %v853 = vadd.f32 %v257, %v852
    %v854 = vpop.f32.mrf.mxu0
    %v855 = vadd.f32 %v257, %v854
    %856 = vmatmul.bf16.gmra.mxu0 %v281
    %v857 = vpop.f32.mrf.mxu0
    %v858 = vadd.f32 %v257, %v857
    %v859 = vpop.f32.mrf.mxu0
    %v860 = vadd.f32 %v257, %v859
    %861 = vdwg.mxu0
    %862 = vmatpush.bf16.msra.mxu0 %v667
    %863 = vmatpush.bf16.msra.mxu0 %v661
    %864 = vmatpush.bf16.msra.mxu0 %v655
    %865 = vmatpush.bf16.msra.mxu0 %v649
    %866 = vmatpush.bf16.msra.mxu0 %v643
    %867 = vmatpush.bf16.msra.mxu0 %v637
    %868 = vmatpush.bf16.msra.mxu0 %v631
    %869 = vmatpush.bf16.msra.mxu0 %v625
    %870 = vmatmul.bf16.gmra.mxu0 %v280
    %v871 = vpop.f32.mrf.mxu0
    %v872 = vadd.f32 %v853, %v871
    %v873 = vpop.f32.mrf.mxu0
    %v874 = vadd.f32 %v855, %v873
    %875 = vmatmul.bf16.gmra.mxu0 %v282
    %v876 = vpop.f32.mrf.mxu0
    %v877 = vadd.f32 %v858, %v876
    %v878 = vpop.f32.mrf.mxu0
    %v879 = vadd.f32 %v860, %v878
    %880 = vdwg.mxu0
    %881 = vmatpush.bf16.msra.mxu0 %v620
    %882 = vmatpush.bf16.msra.mxu0 %v614
    %883 = vmatpush.bf16.msra.mxu0 %v608
    %884 = vmatpush.bf16.msra.mxu0 %v602
    %885 = vmatpush.bf16.msra.mxu0 %v596
    %886 = vmatpush.bf16.msra.mxu0 %v590
    %887 = vmatpush.bf16.msra.mxu0 %v584
    %888 = vmatpush.bf16.msra.mxu0 %v578
    %889 = vmatmul.bf16.gmra.mxu0 %v279
    %v890 = vpop.f32.mrf.mxu0
    %v891 = vadd.f32 %v258, %v890
    %v892 = vpop.f32.mrf.mxu0
    %v893 = vadd.f32 %v258, %v892
    %894 = vmatmul.bf16.gmra.mxu0 %v281
    %v895 = vpop.f32.mrf.mxu0
    %v896 = vadd.f32 %v258, %v895
    %v897 = vpop.f32.mrf.mxu0
    %v898 = vadd.f32 %v258, %v897
    %899 = vdwg.mxu0
    %900 = vmatpush.bf16.msra.mxu0 %v668
    %901 = vmatpush.bf16.msra.mxu0 %v662
    %902 = vmatpush.bf16.msra.mxu0 %v656
    %903 = vmatpush.bf16.msra.mxu0 %v650
    %904 = vmatpush.bf16.msra.mxu0 %v644
    %905 = vmatpush.bf16.msra.mxu0 %v638
    %906 = vmatpush.bf16.msra.mxu0 %v632
    %907 = vmatpush.bf16.msra.mxu0 %v626
    %908 = vmatmul.bf16.gmra.mxu0 %v280
    %v909 = vpop.f32.mrf.mxu0
    %v910 = vadd.f32 %v891, %v909
    %v911 = vpop.f32.mrf.mxu0
    %v912 = vadd.f32 %v893, %v911
    %913 = vmatmul.bf16.gmra.mxu0 %v282
    %v914 = vpop.f32.mrf.mxu0
    %v915 = vadd.f32 %v896, %v914
    %v916 = vpop.f32.mrf.mxu0
    %v917 = vadd.f32 %v898, %v916
    %918 = vdwg.mxu0
    %919 = vmatpush.bf16.msra.mxu0 %v621
    %920 = vmatpush.bf16.msra.mxu0 %v615
    %921 = vmatpush.bf16.msra.mxu0 %v609
    %922 = vmatpush.bf16.msra.mxu0 %v603
    %923 = vmatpush.bf16.msra.mxu0 %v597
    %924 = vmatpush.bf16.msra.mxu0 %v591
    %925 = vmatpush.bf16.msra.mxu0 %v585
    %926 = vmatpush.bf16.msra.mxu0 %v579
    %927 = vmatmul.bf16.gmra.mxu0 %v279
    %v928 = vpop.f32.mrf.mxu0
    %v929 = vadd.f32 %v259, %v928
    %v930 = vpop.f32.mrf.mxu0
    %v931 = vadd.f32 %v259, %v930
    %932 = vmatmul.bf16.gmra.mxu0 %v281
    %v933 = vpop.f32.mrf.mxu0
    %v934 = vadd.f32 %v259, %v933
    %v935 = vpop.f32.mrf.mxu0
    %v936 = vadd.f32 %v259, %v935
    %937 = vdwg.mxu0
    %938 = vmatpush.bf16.msra.mxu0 %v669
    %939 = vmatpush.bf16.msra.mxu0 %v663
    %940 = vmatpush.bf16.msra.mxu0 %v657
    %941 = vmatpush.bf16.msra.mxu0 %v651
    %942 = vmatpush.bf16.msra.mxu0 %v645
    %943 = vmatpush.bf16.msra.mxu0 %v639
    %944 = vmatpush.bf16.msra.mxu0 %v633
    %945 = vmatpush.bf16.msra.mxu0 %v627
    %946 = vmatmul.bf16.gmra.mxu0 %v280
    %v947 = vpop.f32.mrf.mxu0
    %v948 = vadd.f32 %v929, %v947
    %v949 = vpop.f32.mrf.mxu0
    %v950 = vadd.f32 %v931, %v949
    %951 = vmatmul.bf16.gmra.mxu0 %v282
    %v952 = vpop.f32.mrf.mxu0
    %v953 = vadd.f32 %v934, %v952
    %v954 = vpop.f32.mrf.mxu0
    %v955 = vadd.f32 %v936, %v954
    %956 = vdwg.mxu0
    %957 = vmatpush.bf16.msra.mxu0 %v622
    %958 = vmatpush.bf16.msra.mxu0 %v616
    %959 = vmatpush.bf16.msra.mxu0 %v610
    %960 = vmatpush.bf16.msra.mxu0 %v604
    %961 = vmatpush.bf16.msra.mxu0 %v598
    %962 = vmatpush.bf16.msra.mxu0 %v592
    %963 = vmatpush.bf16.msra.mxu0 %v586
    %964 = vmatpush.bf16.msra.mxu0 %v580
    %965 = vmatmul.bf16.gmra.mxu0 %v279
    %v966 = vpop.f32.mrf.mxu0
    %v967 = vadd.f32 %v260, %v966
    %v968 = vpop.f32.mrf.mxu0
    %v969 = vadd.f32 %v260, %v968
    %970 = vmatmul.bf16.gmra.mxu0 %v281
    %v971 = vpop.f32.mrf.mxu0
    %v972 = vadd.f32 %v260, %v971
    %v973 = vpop.f32.mrf.mxu0
    %v974 = vadd.f32 %v260, %v973
    %975 = vdwg.mxu0
    %976 = vmatpush.bf16.msra.mxu0 %v670
    %977 = vmatpush.bf16.msra.mxu0 %v664
    %978 = vmatpush.bf16.msra.mxu0 %v658
    %979 = vmatpush.bf16.msra.mxu0 %v652
    %980 = vmatpush.bf16.msra.mxu0 %v646
    %981 = vmatpush.bf16.msra.mxu0 %v640
    %982 = vmatpush.bf16.msra.mxu0 %v634
    %983 = vmatpush.bf16.msra.mxu0 %v628
    %984 = vmatmul.bf16.gmra.mxu0 %v280
    %v985 = vpop.f32.mrf.mxu0
    %v986 = vadd.f32 %v967, %v985
    %v987 = vpop.f32.mrf.mxu0
    %v988 = vadd.f32 %v969, %v987
    %989 = vmatmul.bf16.gmra.mxu0 %v282
    %v990 = vpop.f32.mrf.mxu0
    %v991 = vadd.f32 %v972, %v990
    %v992 = vpop.f32.mrf.mxu0
    %v993 = vadd.f32 %v974, %v992
    %994 = vdwg.mxu0
    %995 = vst [vmem:[#allocation2] sm:$0xff] %v796
    %996 = vst [vmem:[#allocation2 + $0x8] sm:$0xff] %v834
    %997 = vst [vmem:[#allocation2 + $0x10] sm:$0xff] %v872
    %998 = vst [vmem:[#allocation2 + $0x18] sm:$0xff] %v798
    %999 = vst [vmem:[#allocation2 + $0x20] sm:$0xff] %v836
    %1000 = vst [vmem:[#allocation2 + $0x28] sm:$0xff] %v874
    %1001 = vst [vmem:[#allocation2 + $0x30] sm:$0xff] %v801
    %1002 = vst [vmem:[#allocation2 + $0x38] sm:$0xff] %v839
    %1003 = vst [vmem:[#allocation2 + $0x40] sm:$0xff] %v877
    %1004 = vst [vmem:[#allocation2 + $0x48] sm:$0xff] %v803
    %1005 = vst [vmem:[#allocation2 + $0x50] sm:$0xff] %v841
    %1006 = vst [vmem:[#allocation2 + $0x58] sm:$0xff] %v879
    %s1007 = scalar_lea.vmem [#allocation2], 96
    %1008 = vst [vmem:[%s1007] sm:$0xff] %v910
    %1009 = vst [vmem:[%s1007 + $0x8] sm:$0xff] %v948
    %1010 = vst [vmem:[%s1007 + $0x10] sm:$0xff] %v986
    %1011 = vst [vmem:[%s1007 + $0x18] sm:$0xff] %v912
    %1012 = vst [vmem:[%s1007 + $0x20] sm:$0xff] %v950
    %1013 = vst [vmem:[%s1007 + $0x28] sm:$0xff] %v988
    %1014 = vst [vmem:[%s1007 + $0x30] sm:$0xff] %v915
    %1015 = vst [vmem:[%s1007 + $0x38] sm:$0xff] %v953
    %1016 = vst [vmem:[%s1007 + $0x40] sm:$0xff] %v991
    %1017 = vst [vmem:[%s1007 + $0x48] sm:$0xff] %v917
    %1018 = vst [vmem:[%s1007 + $0x50] sm:$0xff] %v955
    %1019 = vst [vmem:[%s1007 + $0x58] sm:$0xff] %v993
    %v1020 = vld [vmem:[#allocation7] sm:$0xff]
    %v1021 = vld [vmem:[#allocation7 + $0x8] sm:$0xf]
    %v1022 = vld [vmem:[#allocation7 + $0xc] sm:$0xff]
    %v1023 = vld [vmem:[#allocation7 + $0x14] sm:$0xf]
    %v1024 = vld [vmem:[#allocation7 + $0x18] sm:$0xff]
    %v1025 = vld [vmem:[#allocation7 + $0x20] sm:$0xf]
    %v1026 = vld [vmem:[#allocation7 + $0x24] sm:$0xff]
    %v1027 = vld [vmem:[#allocation7 + $0x2c] sm:$0xf]
    %v1028 = vld [vmem:[#allocation7 + $0x30] sm:$0xff]
    %v1029 = vld [vmem:[#allocation7 + $0x38] sm:$0xf]
    %v1030 = vld [vmem:[#allocation7 + $0x3c] sm:$0xff]
    %v1031 = vld [vmem:[#allocation7 + $0x44] sm:$0xf]
    %v1032 = vld [vmem:[#allocation7 + $0x48] sm:$0xff]
    %v1033 = vld [vmem:[#allocation7 + $0x50] sm:$0xf]
    %v1034 = vld [vmem:[#allocation7 + $0x54] sm:$0xff]
    %v1035 = vld [vmem:[#allocation7 + $0x5c] sm:$0xf]
    %v1036 = vld [vmem:[#allocation7 + $0x60] sm:$0xff]
    %v1037 = vld [vmem:[#allocation7 + $0x68] sm:$0xf]
    %v1038 = vld [vmem:[#allocation7 + $0x6c] sm:$0xff]
    %v1039 = vld [vmem:[#allocation7 + $0x74] sm:$0xf]
    %v1040 = vld [vmem:[#allocation7 + $0x78] sm:$0xff]
    %v1041 = vld [vmem:[#allocation7 + $0x80] sm:$0xf]
    %v1042 = vld [vmem:[#allocation7 + $0x84] sm:$0xff]
    %v1043 = vld [vmem:[#allocation7 + $0x8c] sm:$0xf]
    %v1044 = vld [vmem:[#allocation7 + $0x90] sm:$0xff]
    %v1045 = vld [vmem:[#allocation7 + $0x98] sm:$0xf]
    %v1046 = vld [vmem:[#allocation7 + $0x9c] sm:$0xff]
    %v1047 = vld [vmem:[#allocation7 + $0xa4] sm:$0xf]
    %v1048 = vld [vmem:[#allocation7 + $0xa8] sm:$0xff]
    %v1049 = vld [vmem:[#allocation7 + $0xb0] sm:$0xf]
    %v1050 = vld [vmem:[#allocation7 + $0xb4] sm:$0xff]
    %v1051 = vld [vmem:[#allocation7 + $0xbc] sm:$0xf]
    %s1052 = scalar_lea.vmem [#allocation7], 192
    %v1053 = vld [vmem:[%s1052] sm:$0xff]
    %v1054 = vld [vmem:[%s1052 + $0x8] sm:$0xf]
    %v1055 = vld [vmem:[%s1052 + $0xc] sm:$0xff]
    %v1056 = vld [vmem:[%s1052 + $0x14] sm:$0xf]
    %v1057 = vld [vmem:[%s1052 + $0x18] sm:$0xff]
    %v1058 = vld [vmem:[%s1052 + $0x20] sm:$0xf]
    %v1059 = vld [vmem:[%s1052 + $0x24] sm:$0xff]
    %v1060 = vld [vmem:[%s1052 + $0x2c] sm:$0xf]
    %v1061 = vld [vmem:[%s1052 + $0x30] sm:$0xff]
    %v1062 = vld [vmem:[%s1052 + $0x38] sm:$0xf]
    %v1063 = vld [vmem:[%s1052 + $0x3c] sm:$0xff]
    %v1064 = vld [vmem:[%s1052 + $0x44] sm:$0xf]
    %v1065 = vld [vmem:[%s1052 + $0x48] sm:$0xff]
    %v1066 = vld [vmem:[%s1052 + $0x50] sm:$0xf]
    %v1067 = vld [vmem:[%s1052 + $0x54] sm:$0xff]
    %v1068 = vld [vmem:[%s1052 + $0x5c] sm:$0xf]
    %v1069 = vld [vmem:[%s1052 + $0x60] sm:$0xff]
    %v1070 = vld [vmem:[%s1052 + $0x68] sm:$0xf]
    %v1071 = vld [vmem:[%s1052 + $0x6c] sm:$0xff]
    %v1072 = vld [vmem:[%s1052 + $0x74] sm:$0xf]
    %v1073 = vld [vmem:[%s1052 + $0x78] sm:$0xff]
    %v1074 = vld [vmem:[%s1052 + $0x80] sm:$0xf]
    %v1075 = vld [vmem:[%s1052 + $0x84] sm:$0xff]
    %v1076 = vld [vmem:[%s1052 + $0x8c] sm:$0xf]
    %v1077 = vld [vmem:[%s1052 + $0x90] sm:$0xff]
    %v1078 = vld [vmem:[%s1052 + $0x98] sm:$0xf]
    %v1079 = vld [vmem:[%s1052 + $0x9c] sm:$0xff]
    %v1080 = vld [vmem:[%s1052 + $0xa4] sm:$0xf]
    %v1081 = vld [vmem:[%s1052 + $0xa8] sm:$0xff]
    %v1082 = vld [vmem:[%s1052 + $0xb0] sm:$0xf]
    %v1083 = vld [vmem:[%s1052 + $0xb4] sm:$0xff]
    %v1084 = vld [vmem:[%s1052 + $0xbc] sm:$0xf]
    %v1085 = vld [vmem:[#allocation10] sm:$0x7]
    %s1086 = scalar_lea.vmem [#allocation10], 3
    %v1087 = vld [vmem:[%s1086] sm:$0x7]
    %v1088 = vld [vmem:[#allocation2] sm:$0xff]
    %v1089 = vld [vmem:[#allocation2 + $0x8] sm:$0xff]
    %v1090 = vld [vmem:[#allocation2 + $0x10] sm:$0xff]
    %s1091 = scalar_lea.vmem %s1007, 72 [#allocation2]
    %v1092 = vld [vmem:[%s1091] sm:$0xff]
    %v1093 = vld [vmem:[%s1091 + $0x8] sm:$0xff]
    %v1094 = vld [vmem:[%s1091 + $0x10] sm:$0xff]
    %v1096 = vperm.slane %v1085, 0
    %v1097 = vperm.slane %v1085, 1
    %v1098 = vperm.slane %v1085, 2
    %v1134 = vunpack.c.l.b16 %v1020
    %v1135 = vunpack.c.h.b16 %v1020
    %v1136 = vunpack.c.l.b16 %v1021
    %v1137 = vunpack.c.l.b16 %v1022
    %v1138 = vunpack.c.h.b16 %v1022
    %v1139 = vunpack.c.l.b16 %v1023
    %v1140 = vunpack.c.l.b16 %v1024
    %v1141 = vunpack.c.h.b16 %v1024
    %v1142 = vunpack.c.l.b16 %v1025
    %v1143 = vunpack.c.l.b16 %v1026
    %v1144 = vunpack.c.h.b16 %v1026
    %v1145 = vunpack.c.l.b16 %v1027
    %v1146 = vunpack.c.l.b16 %v1028
    %v1147 = vunpack.c.h.b16 %v1028
    %v1148 = vunpack.c.l.b16 %v1029
    %v1149 = vunpack.c.l.b16 %v1030
    %v1150 = vunpack.c.h.b16 %v1030
    %v1151 = vunpack.c.l.b16 %v1031
    %v1152 = vunpack.c.l.b16 %v1032
    %v1153 = vunpack.c.h.b16 %v1032
    %v1154 = vunpack.c.l.b16 %v1033
    %v1155 = vunpack.c.l.b16 %v1034
    %v1156 = vunpack.c.h.b16 %v1034
    %v1157 = vunpack.c.l.b16 %v1035
    %v1158 = vunpack.c.l.b16 %v1036
    %v1159 = vunpack.c.h.b16 %v1036
    %v1160 = vunpack.c.l.b16 %v1037
    %v1161 = vunpack.c.l.b16 %v1038
    %v1162 = vunpack.c.h.b16 %v1038
    %v1163 = vunpack.c.l.b16 %v1039
    %v1164 = vunpack.c.l.b16 %v1040
    %v1165 = vunpack.c.h.b16 %v1040
    %v1166 = vunpack.c.l.b16 %v1041
    %v1167 = vunpack.c.l.b16 %v1042
    %v1168 = vunpack.c.h.b16 %v1042
    %v1169 = vunpack.c.l.b16 %v1043
    %v1170 = vunpack.c.l.b16 %v1044
    %v1171 = vunpack.c.h.b16 %v1044
    %v1172 = vunpack.c.l.b16 %v1045
    %v1173 = vunpack.c.l.b16 %v1046
    %v1174 = vunpack.c.h.b16 %v1046
    %v1175 = vunpack.c.l.b16 %v1047
    %v1176 = vunpack.c.l.b16 %v1048
    %v1177 = vunpack.c.h.b16 %v1048
    %v1178 = vunpack.c.l.b16 %v1049
    %v1179 = vunpack.c.l.b16 %v1050
    %v1180 = vunpack.c.h.b16 %v1050
    %v1181 = vunpack.c.l.b16 %v1051
    %v1182 = vpack.c.b16 %v1137, %v1134
    %v1183 = vpack.c.b16 %v1138, %v1135
    %v1184 = vpack.c.b16 %v1139, %v1136
    %v1185 = vpack.c.b16 %v1143, %v1140
    %v1186 = vpack.c.b16 %v1144, %v1141
    %v1187 = vpack.c.b16 %v1145, %v1142
    %v1188 = vpack.c.b16 %v1149, %v1146
    %v1189 = vpack.c.b16 %v1150, %v1147
    %v1190 = vpack.c.b16 %v1151, %v1148
    %v1191 = vpack.c.b16 %v1155, %v1152
    %v1192 = vpack.c.b16 %v1156, %v1153
    %v1193 = vpack.c.b16 %v1157, %v1154
    %v1194 = vpack.c.b16 %v1161, %v1158
    %v1195 = vpack.c.b16 %v1162, %v1159
    %v1196 = vpack.c.b16 %v1163, %v1160
    %v1197 = vpack.c.b16 %v1167, %v1164
    %v1198 = vpack.c.b16 %v1168, %v1165
    %v1199 = vpack.c.b16 %v1169, %v1166
    %v1200 = vpack.c.b16 %v1173, %v1170
    %v1201 = vpack.c.b16 %v1174, %v1171
    %v1202 = vpack.c.b16 %v1175, %v1172
    %v1203 = vpack.c.b16 %v1179, %v1176
    %v1204 = vpack.c.b16 %v1180, %v1177
    %v1205 = vpack.c.b16 %v1181, %v1178
    %1230 = vmatpush.bf16.msra.mxu0 %v1203
    %1231 = vmatpush.bf16.msra.mxu0 %v1200
    %1232 = vmatpush.bf16.msra.mxu0 %v1197
    %1233 = vmatpush.bf16.msra.mxu0 %v1194
    %1234 = vmatpush.bf16.msra.mxu0 %v1191
    %1235 = vmatpush.bf16.msra.mxu0 %v1188
    %1236 = vmatpush.bf16.msra.mxu0 %v1185
    %1237 = vmatpush.bf16.msra.mxu0 %v1182
    %1238 = vmatmul.bf16.gmra.mxu0 0
    %v1239 = vpop.f32.mrf.mxu0
    %v1240 = vadd.f32 %v1096, %v1239
    %v1241 = vpop.f32.mrf.mxu0
    %1242 = vdwg.mxu0
    %1243 = vmatpush.bf16.msra.mxu0 %v1204
    %1244 = vmatpush.bf16.msra.mxu0 %v1201
    %1245 = vmatpush.bf16.msra.mxu0 %v1198
    %1246 = vmatpush.bf16.msra.mxu0 %v1195
    %1247 = vmatpush.bf16.msra.mxu0 %v1192
    %1248 = vmatpush.bf16.msra.mxu0 %v1189
    %1249 = vmatpush.bf16.msra.mxu0 %v1186
    %1250 = vmatpush.bf16.msra.mxu0 %v1183
    %1251 = vmatmul.bf16.gmra.mxu0 0
    %v1252 = vpop.f32.mrf.mxu0
    %v1253 = vadd.f32 %v1097, %v1252
    %v1254 = vpop.f32.mrf.mxu0
    %1255 = vdwg.mxu0
    %1256 = vmatpush.bf16.msra.mxu0 %v1205
    %1257 = vmatpush.bf16.msra.mxu0 %v1202
    %1258 = vmatpush.bf16.msra.mxu0 %v1199
    %1259 = vmatpush.bf16.msra.mxu0 %v1196
    %1260 = vmatpush.bf16.msra.mxu0 %v1193
    %1261 = vmatpush.bf16.msra.mxu0 %v1190
    %1262 = vmatpush.bf16.msra.mxu0 %v1187
    %1263 = vmatpush.bf16.msra.mxu0 %v1184
    %1264 = vmatmul.bf16.gmra.mxu0 0
    %v1265 = vpop.f32.mrf.mxu0
    %v1266 = vadd.f32 %v1098, %v1265
    %v1267 = vpop.f32.mrf.mxu0
    %1268 = vdwg.mxu0
    %v1270 = vperm.slane %v1087, 0
    %v1271 = vperm.slane %v1087, 1
    %v1272 = vperm.slane %v1087, 2
    %v1308 = vunpack.c.l.b16 %v1053
    %v1309 = vunpack.c.h.b16 %v1053
    %v1310 = vunpack.c.l.b16 %v1054
    %v1311 = vunpack.c.l.b16 %v1055
    %v1312 = vunpack.c.h.b16 %v1055
    %v1313 = vunpack.c.l.b16 %v1056
    %v1314 = vunpack.c.l.b16 %v1057
    %v1315 = vunpack.c.h.b16 %v1057
    %v1316 = vunpack.c.l.b16 %v1058
    %v1317 = vunpack.c.l.b16 %v1059
    %v1318 = vunpack.c.h.b16 %v1059
    %v1319 = vunpack.c.l.b16 %v1060
    %v1320 = vunpack.c.l.b16 %v1061
    %v1321 = vunpack.c.h.b16 %v1061
    %v1322 = vunpack.c.l.b16 %v1062
    %v1323 = vunpack.c.l.b16 %v1063
    %v1324 = vunpack.c.h.b16 %v1063
    %v1325 = vunpack.c.l.b16 %v1064
    %v1326 = vunpack.c.l.b16 %v1065
    %v1327 = vunpack.c.h.b16 %v1065
    %v1328 = vunpack.c.l.b16 %v1066
    %v1329 = vunpack.c.l.b16 %v1067
    %v1330 = vunpack.c.h.b16 %v1067
    %v1331 = vunpack.c.l.b16 %v1068
    %v1332 = vunpack.c.l.b16 %v1069
    %v1333 = vunpack.c.h.b16 %v1069
    %v1334 = vunpack.c.l.b16 %v1070
    %v1335 = vunpack.c.l.b16 %v1071
    %v1336 = vunpack.c.h.b16 %v1071
    %v1337 = vunpack.c.l.b16 %v1072
    %v1338 = vunpack.c.l.b16 %v1073
    %v1339 = vunpack.c.h.b16 %v1073
    %v1340 = vunpack.c.l.b16 %v1074
    %v1341 = vunpack.c.l.b16 %v1075
    %v1342 = vunpack.c.h.b16 %v1075
    %v1343 = vunpack.c.l.b16 %v1076
    %v1344 = vunpack.c.l.b16 %v1077
    %v1345 = vunpack.c.h.b16 %v1077
    %v1346 = vunpack.c.l.b16 %v1078
    %v1347 = vunpack.c.l.b16 %v1079
    %v1348 = vunpack.c.h.b16 %v1079
    %v1349 = vunpack.c.l.b16 %v1080
    %v1350 = vunpack.c.l.b16 %v1081
    %v1351 = vunpack.c.h.b16 %v1081
    %v1352 = vunpack.c.l.b16 %v1082
    %v1353 = vunpack.c.l.b16 %v1083
    %v1354 = vunpack.c.h.b16 %v1083
    %v1355 = vunpack.c.l.b16 %v1084
    %v1356 = vpack.c.b16 %v1311, %v1308
    %v1357 = vpack.c.b16 %v1312, %v1309
    %v1358 = vpack.c.b16 %v1313, %v1310
    %v1359 = vpack.c.b16 %v1317, %v1314
    %v1360 = vpack.c.b16 %v1318, %v1315
    %v1361 = vpack.c.b16 %v1319, %v1316
    %v1362 = vpack.c.b16 %v1323, %v1320
    %v1363 = vpack.c.b16 %v1324, %v1321
    %v1364 = vpack.c.b16 %v1325, %v1322
    %v1365 = vpack.c.b16 %v1329, %v1326
    %v1366 = vpack.c.b16 %v1330, %v1327
    %v1367 = vpack.c.b16 %v1331, %v1328
    %v1368 = vpack.c.b16 %v1335, %v1332
    %v1369 = vpack.c.b16 %v1336, %v1333
    %v1370 = vpack.c.b16 %v1337, %v1334
    %v1371 = vpack.c.b16 %v1341, %v1338
    %v1372 = vpack.c.b16 %v1342, %v1339
    %v1373 = vpack.c.b16 %v1343, %v1340
    %v1374 = vpack.c.b16 %v1347, %v1344
    %v1375 = vpack.c.b16 %v1348, %v1345
    %v1376 = vpack.c.b16 %v1349, %v1346
    %v1377 = vpack.c.b16 %v1353, %v1350
    %v1378 = vpack.c.b16 %v1354, %v1351
    %v1379 = vpack.c.b16 %v1355, %v1352
    %1404 = vmatpush.bf16.msra.mxu0 %v1377
    %1405 = vmatpush.bf16.msra.mxu0 %v1374
    %1406 = vmatpush.bf16.msra.mxu0 %v1371
    %1407 = vmatpush.bf16.msra.mxu0 %v1368
    %1408 = vmatpush.bf16.msra.mxu0 %v1365
    %1409 = vmatpush.bf16.msra.mxu0 %v1362
    %1410 = vmatpush.bf16.msra.mxu0 %v1359
    %1411 = vmatpush.bf16.msra.mxu0 %v1356
    %1412 = vmatmul.bf16.gmra.mxu0 0
    %v1413 = vpop.f32.mrf.mxu0
    %v1414 = vadd.f32 %v1270, %v1413
    %v1415 = vpop.f32.mrf.mxu0
    %1416 = vdwg.mxu0
    %1417 = vmatpush.bf16.msra.mxu0 %v1378
    %1418 = vmatpush.bf16.msra.mxu0 %v1375
    %1419 = vmatpush.bf16.msra.mxu0 %v1372
    %1420 = vmatpush.bf16.msra.mxu0 %v1369
    %1421 = vmatpush.bf16.msra.mxu0 %v1366
    %1422 = vmatpush.bf16.msra.mxu0 %v1363
    %1423 = vmatpush.bf16.msra.mxu0 %v1360
    %1424 = vmatpush.bf16.msra.mxu0 %v1357
    %1425 = vmatmul.bf16.gmra.mxu0 0
    %v1426 = vpop.f32.mrf.mxu0
    %v1427 = vadd.f32 %v1271, %v1426
    %v1428 = vpop.f32.mrf.mxu0
    %1429 = vdwg.mxu0
    %1430 = vmatpush.bf16.msra.mxu0 %v1379
    %1431 = vmatpush.bf16.msra.mxu0 %v1376
    %1432 = vmatpush.bf16.msra.mxu0 %v1373
    %1433 = vmatpush.bf16.msra.mxu0 %v1370
    %1434 = vmatpush.bf16.msra.mxu0 %v1367
    %1435 = vmatpush.bf16.msra.mxu0 %v1364
    %1436 = vmatpush.bf16.msra.mxu0 %v1361
    %1437 = vmatpush.bf16.msra.mxu0 %v1358
    %1438 = vmatmul.bf16.gmra.mxu0 0
    %v1439 = vpop.f32.mrf.mxu0
    %v1440 = vadd.f32 %v1272, %v1439
    %v1441 = vpop.f32.mrf.mxu0
    %1442 = vdwg.mxu0
    %v1443 = vadd.f32 %v1088, %v1240
    %v1444 = vxor.u32 %v1443, 2147483648
    %v1445 = vmul.f32 %v1444, 1.442695
    %v1446 = vpow.pop %v1445
    %v1447 = vadd.f32 %v1446, 1.0
    %v1448 = vrcp.pop %v1447
    %v1449 = vmul.f32 %v1447, %v1448
    %v1450 = vsub.f32 1.0, %v1449
    %v1451 = vmul.f32 %v1448, %v1450
    %v1452 = vadd.f32 %v1448, %v1451
    %vm1453 = vweird.f32 %v1447
    %vm1454 = vweird.f32 %v1448
    %vm1455 = vmor %vm1453, %vm1454
    %v1456 = vsel %vm1455, %v1448, %v1452
    %v1457 = vand.u32 2147483647, %v1447
    %vm1458 = vcmp.eq.f32.partialorder %v1457, 8.507059e+37
    %v1459 = vand.u32 %v1447, 2147483648
    %v1460 = vor.u32 1.1754944e-38, %v1459
    %v1461 = vsel %vm1458, %v1460, %v1456
    %v1462 = vmul.f32 1.0, %v1461
    %v1463 = vadd.f32 %v1089, %v1253
    %v1464 = vxor.u32 %v1463, 2147483648
    %v1465 = vmul.f32 %v1464, 1.442695
    %v1466 = vpow.pop %v1465
    %v1467 = vadd.f32 %v1466, 1.0
    %v1468 = vrcp.pop %v1467
    %v1469 = vmul.f32 %v1467, %v1468
    %v1470 = vsub.f32 1.0, %v1469
    %v1471 = vmul.f32 %v1468, %v1470
    %v1472 = vadd.f32 %v1468, %v1471
    %vm1473 = vweird.f32 %v1467
    %vm1474 = vweird.f32 %v1468
    %vm1475 = vmor %vm1473, %vm1474
    %v1476 = vsel %vm1475, %v1468, %v1472
    %v1477 = vand.u32 2147483647, %v1467
    %vm1478 = vcmp.eq.f32.partialorder %v1477, 8.507059e+37
    %v1479 = vand.u32 %v1467, 2147483648
    %v1480 = vor.u32 1.1754944e-38, %v1479
    %v1481 = vsel %vm1478, %v1480, %v1476
    %v1482 = vmul.f32 1.0, %v1481
    %v1483 = vmul.f32 %v1462, %v1266
    %v1484 = vadd.f32 %v1090, %v1483
    %v1485 = vtanh.pop %v1484
    %v1486 = vsub.f32 1.0, %v1482
    %v1487 = vmul.f32 %v1486, %v1485
    %v1488 = vmul.f32 %v1482, 0.0
    %v1489 = vadd.f32 %v1487, %v1488
    %v1490 = vadd.f32 %v1092, %v1414
    %v1491 = vxor.u32 %v1490, 2147483648
    %v1492 = vmul.f32 %v1491, 1.442695
    %v1493 = vpow.pop %v1492
    %v1494 = vadd.f32 %v1493, 1.0
    %v1495 = vrcp.pop %v1494
    %v1496 = vmul.f32 %v1494, %v1495
    %v1497 = vsub.f32 1.0, %v1496
    %v1498 = vmul.f32 %v1495, %v1497
    %v1499 = vadd.f32 %v1495, %v1498
    %vm1500 = vweird.f32 %v1494
    %vm1501 = vweird.f32 %v1495
    %vm1502 = vmor %vm1500, %vm1501
    %v1503 = vsel %vm1502, %v1495, %v1499
    %v1504 = vand.u32 2147483647, %v1494
    %vm1505 = vcmp.eq.f32.partialorder %v1504, 8.507059e+37
    %v1506 = vand.u32 %v1494, 2147483648
    %v1507 = vor.u32 1.1754944e-38, %v1506
    %v1508 = vsel %vm1505, %v1507, %v1503
    %v1509 = vmul.f32 1.0, %v1508
    %v1510 = vadd.f32 %v1093, %v1427
    %v1511 = vxor.u32 %v1510, 2147483648
    %v1512 = vmul.f32 %v1511, 1.442695
    %v1513 = vpow.pop %v1512
    %v1514 = vadd.f32 %v1513, 1.0
    %v1515 = vrcp.pop %v1514
    %v1516 = vmul.f32 %v1514, %v1515
    %v1517 = vsub.f32 1.0, %v1516
    %v1518 = vmul.f32 %v1515, %v1517
    %v1519 = vadd.f32 %v1515, %v1518
    %vm1520 = vweird.f32 %v1514
    %vm1521 = vweird.f32 %v1515
    %vm1522 = vmor %vm1520, %vm1521
    %v1523 = vsel %vm1522, %v1515, %v1519
    %v1524 = vand.u32 2147483647, %v1514
    %vm1525 = vcmp.eq.f32.partialorder %v1524, 8.507059e+37
    %v1526 = vand.u32 %v1514, 2147483648
    %v1527 = vor.u32 1.1754944e-38, %v1526
    %v1528 = vsel %vm1525, %v1527, %v1523
    %v1529 = vmul.f32 1.0, %v1528
    %v1530 = vmul.f32 %v1509, %v1440
    %v1531 = vadd.f32 %v1094, %v1530
    %v1532 = vtanh.pop %v1531
    %v1533 = vsub.f32 1.0, %v1529
    %v1534 = vmul.f32 %v1533, %v1532
    %v1535 = vmul.f32 %v1529, 0.0
    %v1536 = vadd.f32 %v1534, %v1535
    %1537 = vst [vmem:[#allocation3] sm:$0xff] %v1489
    %s1538 = scalar_lea.vmem [#allocation4], 24
    %1539 = vst [vmem:[%s1538] sm:$0xff] %v1536
    %s1540 = scalar_lea.vmem [#allocation2], 24
    %v1541 = vld [vmem:[%s1540] sm:$0xff]
    %v1542 = vld [vmem:[%s1540 + $0x8] sm:$0xff]
    %v1543 = vld [vmem:[%s1540 + $0x10] sm:$0xff]
    %s1544 = scalar_lea.vmem %s1007, 48 [#allocation2]
    %v1545 = vld [vmem:[%s1544] sm:$0xff]
    %v1546 = vld [vmem:[%s1544 + $0x8] sm:$0xff]
    %v1547 = vld [vmem:[%s1544 + $0x10] sm:$0xff]
    %v1548 = vpack.c.bf16 %v1489, %v1489
    %1549 = vmatpush.bf16.msra.mxu0 %v1203
    %1550 = vmatpush.bf16.msra.mxu0 %v1200
    %1551 = vmatpush.bf16.msra.mxu0 %v1197
    %1552 = vmatpush.bf16.msra.mxu0 %v1194
    %1553 = vmatpush.bf16.msra.mxu0 %v1191
    %1554 = vmatpush.bf16.msra.mxu0 %v1188
    %1555 = vmatpush.bf16.msra.mxu0 %v1185
    %1556 = vmatpush.bf16.msra.mxu0 %v1182
    %1557 = vmatmul.bf16.gmra.mxu0 %v1548
    %v1558 = vpop.f32.mrf.mxu0
    %v1559 = vadd.f32 %v1096, %v1558
    %v1560 = vpop.f32.mrf.mxu0
    %1561 = vdwg.mxu0
    %1562 = vmatpush.bf16.msra.mxu0 %v1204
    %1563 = vmatpush.bf16.msra.mxu0 %v1201
    %1564 = vmatpush.bf16.msra.mxu0 %v1198
    %1565 = vmatpush.bf16.msra.mxu0 %v1195
    %1566 = vmatpush.bf16.msra.mxu0 %v1192
    %1567 = vmatpush.bf16.msra.mxu0 %v1189
    %1568 = vmatpush.bf16.msra.mxu0 %v1186
    %1569 = vmatpush.bf16.msra.mxu0 %v1183
    %1570 = vmatmul.bf16.gmra.mxu0 %v1548
    %v1571 = vpop.f32.mrf.mxu0
    %v1572 = vadd.f32 %v1097, %v1571
    %v1573 = vpop.f32.mrf.mxu0
    %1574 = vdwg.mxu0
    %1575 = vmatpush.bf16.msra.mxu0 %v1205
    %1576 = vmatpush.bf16.msra.mxu0 %v1202
    %1577 = vmatpush.bf16.msra.mxu0 %v1199
    %1578 = vmatpush.bf16.msra.mxu0 %v1196
    %1579 = vmatpush.bf16.msra.mxu0 %v1193
    %1580 = vmatpush.bf16.msra.mxu0 %v1190
    %1581 = vmatpush.bf16.msra.mxu0 %v1187
    %1582 = vmatpush.bf16.msra.mxu0 %v1184
    %1583 = vmatmul.bf16.gmra.mxu0 %v1548
    %v1584 = vpop.f32.mrf.mxu0
    %v1585 = vadd.f32 %v1098, %v1584
    %v1586 = vpop.f32.mrf.mxu0
    %1587 = vdwg.mxu0
    %v1588 = vpack.c.bf16 %v1536, %v1536
    %1589 = vmatpush.bf16.msra.mxu0 %v1377
    %1590 = vmatpush.bf16.msra.mxu0 %v1374
    %1591 = vmatpush.bf16.msra.mxu0 %v1371
    %1592 = vmatpush.bf16.msra.mxu0 %v1368
    %1593 = vmatpush.bf16.msra.mxu0 %v1365
    %1594 = vmatpush.bf16.msra.mxu0 %v1362
    %1595 = vmatpush.bf16.msra.mxu0 %v1359
    %1596 = vmatpush.bf16.msra.mxu0 %v1356
    %1597 = vmatmul.bf16.gmra.mxu0 %v1588
    %v1598 = vpop.f32.mrf.mxu0
    %v1599 = vadd.f32 %v1270, %v1598
    %v1600 = vpop.f32.mrf.mxu0
    %1601 = vdwg.mxu0
    %1602 = vmatpush.bf16.msra.mxu0 %v1378
    %1603 = vmatpush.bf16.msra.mxu0 %v1375
    %1604 = vmatpush.bf16.msra.mxu0 %v1372
    %1605 = vmatpush.bf16.msra.mxu0 %v1369
    %1606 = vmatpush.bf16.msra.mxu0 %v1366
    %1607 = vmatpush.bf16.msra.mxu0 %v1363
    %1608 = vmatpush.bf16.msra.mxu0 %v1360
    %1609 = vmatpush.bf16.msra.mxu0 %v1357
    %1610 = vmatmul.bf16.gmra.mxu0 %v1588
    %v1611 = vpop.f32.mrf.mxu0
    %v1612 = vadd.f32 %v1271, %v1611
    %v1613 = vpop.f32.mrf.mxu0
    %1614 = vdwg.mxu0
    %1615 = vmatpush.bf16.msra.mxu0 %v1379
    %1616 = vmatpush.bf16.msra.mxu0 %v1376
    %1617 = vmatpush.bf16.msra.mxu0 %v1373
    %1618 = vmatpush.bf16.msra.mxu0 %v1370
    %1619 = vmatpush.bf16.msra.mxu0 %v1367
    %1620 = vmatpush.bf16.msra.mxu0 %v1364
    %1621 = vmatpush.bf16.msra.mxu0 %v1361
    %1622 = vmatpush.bf16.msra.mxu0 %v1358
    %1623 = vmatmul.bf16.gmra.mxu0 %v1588
    %v1624 = vpop.f32.mrf.mxu0
    %v1625 = vadd.f32 %v1272, %v1624
    %v1626 = vpop.f32.mrf.mxu0
    %1627 = vdwg.mxu0
    %v1628 = vadd.f32 %v1541, %v1559
    %v1629 = vxor.u32 %v1628, 2147483648
    %v1630 = vmul.f32 %v1629, 1.442695
    %v1631 = vpow.pop %v1630
    %v1632 = vadd.f32 %v1631, 1.0
    %v1633 = vrcp.pop %v1632
    %v1634 = vmul.f32 %v1632, %v1633
    %v1635 = vsub.f32 1.0, %v1634
    %v1636 = vmul.f32 %v1633, %v1635
    %v1637 = vadd.f32 %v1633, %v1636
    %vm1638 = vweird.f32 %v1632
    %vm1639 = vweird.f32 %v1633
    %vm1640 = vmor %vm1638, %vm1639
    %v1641 = vsel %vm1640, %v1633, %v1637
    %v1642 = vand.u32 2147483647, %v1632
    %vm1643 = vcmp.eq.f32.partialorder %v1642, 8.507059e+37
    %v1644 = vand.u32 %v1632, 2147483648
    %v1645 = vor.u32 1.1754944e-38, %v1644
    %v1646 = vsel %vm1643, %v1645, %v1641
    %v1647 = vmul.f32 1.0, %v1646
    %v1648 = vadd.f32 %v1542, %v1572
    %v1649 = vxor.u32 %v1648, 2147483648
    %v1650 = vmul.f32 %v1649, 1.442695
    %v1651 = vpow.pop %v1650
    %v1652 = vadd.f32 %v1651, 1.0
    %v1653 = vrcp.pop %v1652
    %v1654 = vmul.f32 %v1652, %v1653
    %v1655 = vsub.f32 1.0, %v1654
    %v1656 = vmul.f32 %v1653, %v1655
    %v1657 = vadd.f32 %v1653, %v1656
    %vm1658 = vweird.f32 %v1652
    %vm1659 = vweird.f32 %v1653
    %vm1660 = vmor %vm1658, %vm1659
    %v1661 = vsel %vm1660, %v1653, %v1657
    %v1662 = vand.u32 2147483647, %v1652
    %vm1663 = vcmp.eq.f32.partialorder %v1662, 8.507059e+37
    %v1664 = vand.u32 %v1652, 2147483648
    %v1665 = vor.u32 1.1754944e-38, %v1664
    %v1666 = vsel %vm1663, %v1665, %v1661
    %v1667 = vmul.f32 1.0, %v1666
    %v1668 = vmul.f32 %v1647, %v1585
    %v1669 = vadd.f32 %v1543, %v1668
    %v1670 = vtanh.pop %v1669
    %v1671 = vsub.f32 1.0, %v1667
    %v1672 = vmul.f32 %v1671, %v1670
    %v1673 = vmul.f32 %v1667, %v1489
    %v1674 = vadd.f32 %v1672, %v1673
    %v1675 = vadd.f32 %v1545, %v1599
    %v1676 = vxor.u32 %v1675, 2147483648
    %v1677 = vmul.f32 %v1676, 1.442695
    %v1678 = vpow.pop %v1677
    %v1679 = vadd.f32 %v1678, 1.0
    %v1680 = vrcp.pop %v1679
    %v1681 = vmul.f32 %v1679, %v1680
    %v1682 = vsub.f32 1.0, %v1681
    %v1683 = vmul.f32 %v1680, %v1682
    %v1684 = vadd.f32 %v1680, %v1683
    %vm1685 = vweird.f32 %v1679
    %vm1686 = vweird.f32 %v1680
    %vm1687 = vmor %vm1685, %vm1686
    %v1688 = vsel %vm1687, %v1680, %v1684
    %v1689 = vand.u32 2147483647, %v1679
    %vm1690 = vcmp.eq.f32.partialorder %v1689, 8.507059e+37
    %v1691 = vand.u32 %v1679, 2147483648
    %v1692 = vor.u32 1.1754944e-38, %v1691
    %v1693 = vsel %vm1690, %v1692, %v1688
    %v1694 = vmul.f32 1.0, %v1693
    %v1695 = vadd.f32 %v1546, %v1612
    %v1696 = vxor.u32 %v1695, 2147483648
    %v1697 = vmul.f32 %v1696, 1.442695
    %v1698 = vpow.pop %v1697
    %v1699 = vadd.f32 %v1698, 1.0
    %v1700 = vrcp.pop %v1699
    %v1701 = vmul.f32 %v1699, %v1700
    %v1702 = vsub.f32 1.0, %v1701
    %v1703 = vmul.f32 %v1700, %v1702
    %v1704 = vadd.f32 %v1700, %v1703
    %vm1705 = vweird.f32 %v1699
    %vm1706 = vweird.f32 %v1700
    %vm1707 = vmor %vm1705, %vm1706
    %v1708 = vsel %vm1707, %v1700, %v1704
    %v1709 = vand.u32 2147483647, %v1699
    %vm1710 = vcmp.eq.f32.partialorder %v1709, 8.507059e+37
    %v1711 = vand.u32 %v1699, 2147483648
    %v1712 = vor.u32 1.1754944e-38, %v1711
    %v1713 = vsel %vm1710, %v1712, %v1708
    %v1714 = vmul.f32 1.0, %v1713
    %v1715 = vmul.f32 %v1694, %v1625
    %v1716 = vadd.f32 %v1547, %v1715
    %v1717 = vtanh.pop %v1716
    %v1718 = vsub.f32 1.0, %v1714
    %v1719 = vmul.f32 %v1718, %v1717
    %v1720 = vmul.f32 %v1714, %v1536
    %v1721 = vadd.f32 %v1719, %v1720
    %s1722 = scalar_lea.vmem [#allocation3], 8
    %1723 = vst [vmem:[%s1722] sm:$0xff] %v1674
    %s1724 = scalar_lea.vmem [#allocation4], 16
    %1725 = vst [vmem:[%s1724] sm:$0xff] %v1721
    %s1726 = scalar_lea.vmem [#allocation2], 48
    %v1727 = vld [vmem:[%s1726] sm:$0xff]
    %v1728 = vld [vmem:[%s1726 + $0x8] sm:$0xff]
    %v1729 = vld [vmem:[%s1726 + $0x10] sm:$0xff]
    %s1730 = scalar_lea.vmem %s1007, 24 [#allocation2]
    %v1731 = vld [vmem:[%s1730] sm:$0xff]
    %v1732 = vld [vmem:[%s1730 + $0x8] sm:$0xff]
    %v1733 = vld [vmem:[%s1730 + $0x10] sm:$0xff]
    %v1734 = vpack.c.bf16 %v1674, %v1674
    %1735 = vmatpush.bf16.msra.mxu0 %v1203
    %1736 = vmatpush.bf16.msra.mxu0 %v1200
    %1737 = vmatpush.bf16.msra.mxu0 %v1197
    %1738 = vmatpush.bf16.msra.mxu0 %v1194
    %1739 = vmatpush.bf16.msra.mxu0 %v1191
    %1740 = vmatpush.bf16.msra.mxu0 %v1188
    %1741 = vmatpush.bf16.msra.mxu0 %v1185
    %1742 = vmatpush.bf16.msra.mxu0 %v1182
    %1743 = vmatmul.bf16.gmra.mxu0 %v1734
    %v1744 = vpop.f32.mrf.mxu0
    %v1745 = vadd.f32 %v1096, %v1744
    %v1746 = vpop.f32.mrf.mxu0
    %1747 = vdwg.mxu0
    %1748 = vmatpush.bf16.msra.mxu0 %v1204
    %1749 = vmatpush.bf16.msra.mxu0 %v1201
    %1750 = vmatpush.bf16.msra.mxu0 %v1198
    %1751 = vmatpush.bf16.msra.mxu0 %v1195
    %1752 = vmatpush.bf16.msra.mxu0 %v1192
    %1753 = vmatpush.bf16.msra.mxu0 %v1189
    %1754 = vmatpush.bf16.msra.mxu0 %v1186
    %1755 = vmatpush.bf16.msra.mxu0 %v1183
    %1756 = vmatmul.bf16.gmra.mxu0 %v1734
    %v1757 = vpop.f32.mrf.mxu0
    %v1758 = vadd.f32 %v1097, %v1757
    %v1759 = vpop.f32.mrf.mxu0
    %1760 = vdwg.mxu0
    %1761 = vmatpush.bf16.msra.mxu0 %v1205
    %1762 = vmatpush.bf16.msra.mxu0 %v1202
    %1763 = vmatpush.bf16.msra.mxu0 %v1199
    %1764 = vmatpush.bf16.msra.mxu0 %v1196
    %1765 = vmatpush.bf16.msra.mxu0 %v1193
    %1766 = vmatpush.bf16.msra.mxu0 %v1190
    %1767 = vmatpush.bf16.msra.mxu0 %v1187
    %1768 = vmatpush.bf16.msra.mxu0 %v1184
    %1769 = vmatmul.bf16.gmra.mxu0 %v1734
    %v1770 = vpop.f32.mrf.mxu0
    %v1771 = vadd.f32 %v1098, %v1770
    %v1772 = vpop.f32.mrf.mxu0
    %1773 = vdwg.mxu0
    %v1774 = vpack.c.bf16 %v1721, %v1721
    %1775 = vmatpush.bf16.msra.mxu0 %v1377
    %1776 = vmatpush.bf16.msra.mxu0 %v1374
    %1777 = vmatpush.bf16.msra.mxu0 %v1371
    %1778 = vmatpush.bf16.msra.mxu0 %v1368
    %1779 = vmatpush.bf16.msra.mxu0 %v1365
    %1780 = vmatpush.bf16.msra.mxu0 %v1362
    %1781 = vmatpush.bf16.msra.mxu0 %v1359
    %1782 = vmatpush.bf16.msra.mxu0 %v1356
    %1783 = vmatmul.bf16.gmra.mxu0 %v1774
    %v1784 = vpop.f32.mrf.mxu0
    %v1785 = vadd.f32 %v1270, %v1784
    %v1786 = vpop.f32.mrf.mxu0
    %1787 = vdwg.mxu0
    %1788 = vmatpush.bf16.msra.mxu0 %v1378
    %1789 = vmatpush.bf16.msra.mxu0 %v1375
    %1790 = vmatpush.bf16.msra.mxu0 %v1372
    %1791 = vmatpush.bf16.msra.mxu0 %v1369
    %1792 = vmatpush.bf16.msra.mxu0 %v1366
    %1793 = vmatpush.bf16.msra.mxu0 %v1363
    %1794 = vmatpush.bf16.msra.mxu0 %v1360
    %1795 = vmatpush.bf16.msra.mxu0 %v1357
    %1796 = vmatmul.bf16.gmra.mxu0 %v1774
    %v1797 = vpop.f32.mrf.mxu0
    %v1798 = vadd.f32 %v1271, %v1797
    %v1799 = vpop.f32.mrf.mxu0
    %1800 = vdwg.mxu0
    %1801 = vmatpush.bf16.msra.mxu0 %v1379
    %1802 = vmatpush.bf16.msra.mxu0 %v1376
    %1803 = vmatpush.bf16.msra.mxu0 %v1373
    %1804 = vmatpush.bf16.msra.mxu0 %v1370
    %1805 = vmatpush.bf16.msra.mxu0 %v1367
    %1806 = vmatpush.bf16.msra.mxu0 %v1364
    %1807 = vmatpush.bf16.msra.mxu0 %v1361
    %1808 = vmatpush.bf16.msra.mxu0 %v1358
    %1809 = vmatmul.bf16.gmra.mxu0 %v1774
    %v1810 = vpop.f32.mrf.mxu0
    %v1811 = vadd.f32 %v1272, %v1810
    %v1812 = vpop.f32.mrf.mxu0
    %1813 = vdwg.mxu0
    %v1814 = vadd.f32 %v1727, %v1745
    %v1815 = vxor.u32 %v1814, 2147483648
    %v1816 = vmul.f32 %v1815, 1.442695
    %v1817 = vpow.pop %v1816
    %v1818 = vadd.f32 %v1817, 1.0
    %v1819 = vrcp.pop %v1818
    %v1820 = vmul.f32 %v1818, %v1819
    %v1821 = vsub.f32 1.0, %v1820
    %v1822 = vmul.f32 %v1819, %v1821
    %v1823 = vadd.f32 %v1819, %v1822
    %vm1824 = vweird.f32 %v1818
    %vm1825 = vweird.f32 %v1819
    %vm1826 = vmor %vm1824, %vm1825
    %v1827 = vsel %vm1826, %v1819, %v1823
    %v1828 = vand.u32 2147483647, %v1818
    %vm1829 = vcmp.eq.f32.partialorder %v1828, 8.507059e+37
    %v1830 = vand.u32 %v1818, 2147483648
    %v1831 = vor.u32 1.1754944e-38, %v1830
    %v1832 = vsel %vm1829, %v1831, %v1827
    %v1833 = vmul.f32 1.0, %v1832
    %v1834 = vadd.f32 %v1728, %v1758
    %v1835 = vxor.u32 %v1834, 2147483648
    %v1836 = vmul.f32 %v1835, 1.442695
    %v1837 = vpow.pop %v1836
    %v1838 = vadd.f32 %v1837, 1.0
    %v1839 = vrcp.pop %v1838
    %v1840 = vmul.f32 %v1838, %v1839
    %v1841 = vsub.f32 1.0, %v1840
    %v1842 = vmul.f32 %v1839, %v1841
    %v1843 = vadd.f32 %v1839, %v1842
    %vm1844 = vweird.f32 %v1838
    %vm1845 = vweird.f32 %v1839
    %vm1846 = vmor %vm1844, %vm1845
    %v1847 = vsel %vm1846, %v1839, %v1843
    %v1848 = vand.u32 2147483647, %v1838
    %vm1849 = vcmp.eq.f32.partialorder %v1848, 8.507059e+37
    %v1850 = vand.u32 %v1838, 2147483648
    %v1851 = vor.u32 1.1754944e-38, %v1850
    %v1852 = vsel %vm1849, %v1851, %v1847
    %v1853 = vmul.f32 1.0, %v1852
    %v1854 = vmul.f32 %v1833, %v1771
    %v1855 = vadd.f32 %v1729, %v1854
    %v1856 = vtanh.pop %v1855
    %v1857 = vsub.f32 1.0, %v1853
    %v1858 = vmul.f32 %v1857, %v1856
    %v1859 = vmul.f32 %v1853, %v1674
    %v1860 = vadd.f32 %v1858, %v1859
    %v1861 = vadd.f32 %v1731, %v1785
    %v1862 = vxor.u32 %v1861, 2147483648
    %v1863 = vmul.f32 %v1862, 1.442695
    %v1864 = vpow.pop %v1863
    %v1865 = vadd.f32 %v1864, 1.0
    %v1866 = vrcp.pop %v1865
    %v1867 = vmul.f32 %v1865, %v1866
    %v1868 = vsub.f32 1.0, %v1867
    %v1869 = vmul.f32 %v1866, %v1868
    %v1870 = vadd.f32 %v1866, %v1869
    %vm1871 = vweird.f32 %v1865
    %vm1872 = vweird.f32 %v1866
    %vm1873 = vmor %vm1871, %vm1872
    %v1874 = vsel %vm1873, %v1866, %v1870
    %v1875 = vand.u32 2147483647, %v1865
    %vm1876 = vcmp.eq.f32.partialorder %v1875, 8.507059e+37
    %v1877 = vand.u32 %v1865, 2147483648
    %v1878 = vor.u32 1.1754944e-38, %v1877
    %v1879 = vsel %vm1876, %v1878, %v1874
    %v1880 = vmul.f32 1.0, %v1879
    %v1881 = vadd.f32 %v1732, %v1798
    %v1882 = vxor.u32 %v1881, 2147483648
    %v1883 = vmul.f32 %v1882, 1.442695
    %v1884 = vpow.pop %v1883
    %v1885 = vadd.f32 %v1884, 1.0
    %v1886 = vrcp.pop %v1885
    %v1887 = vmul.f32 %v1885, %v1886
    %v1888 = vsub.f32 1.0, %v1887
    %v1889 = vmul.f32 %v1886, %v1888
    %v1890 = vadd.f32 %v1886, %v1889
    %vm1891 = vweird.f32 %v1885
    %vm1892 = vweird.f32 %v1886
    %vm1893 = vmor %vm1891, %vm1892
    %v1894 = vsel %vm1893, %v1886, %v1890
    %v1895 = vand.u32 2147483647, %v1885
    %vm1896 = vcmp.eq.f32.partialorder %v1895, 8.507059e+37
    %v1897 = vand.u32 %v1885, 2147483648
    %v1898 = vor.u32 1.1754944e-38, %v1897
    %v1899 = vsel %vm1896, %v1898, %v1894
    %v1900 = vmul.f32 1.0, %v1899
    %v1901 = vmul.f32 %v1880, %v1811
    %v1902 = vadd.f32 %v1733, %v1901
    %v1903 = vtanh.pop %v1902
    %v1904 = vsub.f32 1.0, %v1900
    %v1905 = vmul.f32 %v1904, %v1903
    %v1906 = vmul.f32 %v1900, %v1721
    %v1907 = vadd.f32 %v1905, %v1906
    %s1908 = scalar_lea.vmem [#allocation3], 16
    %1909 = vst [vmem:[%s1908] sm:$0xff] %v1860
    %s1910 = scalar_lea.vmem [#allocation4], 8
    %1911 = vst [vmem:[%s1910] sm:$0xff] %v1907
    %s1912 = scalar_lea.vmem [#allocation2], 72
    %v1913 = vld [vmem:[%s1912] sm:$0xff]
    %v1914 = vld [vmem:[%s1912 + $0x8] sm:$0xff]
    %v1915 = vld [vmem:[%s1912 + $0x10] sm:$0xff]
    %v1916 = vld [vmem:[%s1007] sm:$0xff]
    %v1917 = vld [vmem:[%s1007 + $0x8] sm:$0xff]
    %v1918 = vld [vmem:[%s1007 + $0x10] sm:$0xff]
    %v1919 = vpack.c.bf16 %v1860, %v1860
    %1920 = vmatpush.bf16.msra.mxu0 %v1203
    %1921 = vmatpush.bf16.msra.mxu0 %v1200
    %1922 = vmatpush.bf16.msra.mxu0 %v1197
    %1923 = vmatpush.bf16.msra.mxu0 %v1194
    %1924 = vmatpush.bf16.msra.mxu0 %v1191
    %1925 = vmatpush.bf16.msra.mxu0 %v1188
    %1926 = vmatpush.bf16.msra.mxu0 %v1185
    %1927 = vmatpush.bf16.msra.mxu0 %v1182
    %1928 = vmatmul.bf16.gmra.mxu0 %v1919
    %v1929 = vpop.f32.mrf.mxu0
    %v1930 = vadd.f32 %v1096, %v1929
    %v1931 = vpop.f32.mrf.mxu0
    %1932 = vdwg.mxu0
    %1933 = vmatpush.bf16.msra.mxu0 %v1204
    %1934 = vmatpush.bf16.msra.mxu0 %v1201
    %1935 = vmatpush.bf16.msra.mxu0 %v1198
    %1936 = vmatpush.bf16.msra.mxu0 %v1195
    %1937 = vmatpush.bf16.msra.mxu0 %v1192
    %1938 = vmatpush.bf16.msra.mxu0 %v1189
    %1939 = vmatpush.bf16.msra.mxu0 %v1186
    %1940 = vmatpush.bf16.msra.mxu0 %v1183
    %1941 = vmatmul.bf16.gmra.mxu0 %v1919
    %v1942 = vpop.f32.mrf.mxu0
    %v1943 = vadd.f32 %v1097, %v1942
    %v1944 = vpop.f32.mrf.mxu0
    %1945 = vdwg.mxu0
    %1946 = vmatpush.bf16.msra.mxu0 %v1205
    %1947 = vmatpush.bf16.msra.mxu0 %v1202
    %1948 = vmatpush.bf16.msra.mxu0 %v1199
    %1949 = vmatpush.bf16.msra.mxu0 %v1196
    %1950 = vmatpush.bf16.msra.mxu0 %v1193
    %1951 = vmatpush.bf16.msra.mxu0 %v1190
    %1952 = vmatpush.bf16.msra.mxu0 %v1187
    %1953 = vmatpush.bf16.msra.mxu0 %v1184
    %1954 = vmatmul.bf16.gmra.mxu0 %v1919
    %v1955 = vpop.f32.mrf.mxu0
    %v1956 = vadd.f32 %v1098, %v1955
    %v1957 = vpop.f32.mrf.mxu0
    %1958 = vdwg.mxu0
    %v1959 = vpack.c.bf16 %v1907, %v1907
    %1960 = vmatpush.bf16.msra.mxu0 %v1377
    %1961 = vmatpush.bf16.msra.mxu0 %v1374
    %1962 = vmatpush.bf16.msra.mxu0 %v1371
    %1963 = vmatpush.bf16.msra.mxu0 %v1368
    %1964 = vmatpush.bf16.msra.mxu0 %v1365
    %1965 = vmatpush.bf16.msra.mxu0 %v1362
    %1966 = vmatpush.bf16.msra.mxu0 %v1359
    %1967 = vmatpush.bf16.msra.mxu0 %v1356
    %1968 = vmatmul.bf16.gmra.mxu0 %v1959
    %v1969 = vpop.f32.mrf.mxu0
    %v1970 = vadd.f32 %v1270, %v1969
    %v1971 = vpop.f32.mrf.mxu0
    %1972 = vdwg.mxu0
    %1973 = vmatpush.bf16.msra.mxu0 %v1378
    %1974 = vmatpush.bf16.msra.mxu0 %v1375
    %1975 = vmatpush.bf16.msra.mxu0 %v1372
    %1976 = vmatpush.bf16.msra.mxu0 %v1369
    %1977 = vmatpush.bf16.msra.mxu0 %v1366
    %1978 = vmatpush.bf16.msra.mxu0 %v1363
    %1979 = vmatpush.bf16.msra.mxu0 %v1360
    %1980 = vmatpush.bf16.msra.mxu0 %v1357
    %1981 = vmatmul.bf16.gmra.mxu0 %v1959
    %v1982 = vpop.f32.mrf.mxu0
    %v1983 = vadd.f32 %v1271, %v1982
    %v1984 = vpop.f32.mrf.mxu0
    %1985 = vdwg.mxu0
    %1986 = vmatpush.bf16.msra.mxu0 %v1379
    %1987 = vmatpush.bf16.msra.mxu0 %v1376
    %1988 = vmatpush.bf16.msra.mxu0 %v1373
    %1989 = vmatpush.bf16.msra.mxu0 %v1370
    %1990 = vmatpush.bf16.msra.mxu0 %v1367
    %1991 = vmatpush.bf16.msra.mxu0 %v1364
    %1992 = vmatpush.bf16.msra.mxu0 %v1361
    %1993 = vmatpush.bf16.msra.mxu0 %v1358
    %1994 = vmatmul.bf16.gmra.mxu0 %v1959
    %v1995 = vpop.f32.mrf.mxu0
    %v1996 = vadd.f32 %v1272, %v1995
    %v1997 = vpop.f32.mrf.mxu0
    %1998 = vdwg.mxu0
    %v1999 = vadd.f32 %v1913, %v1930
    %v2000 = vxor.u32 %v1999, 2147483648
    %v2001 = vmul.f32 %v2000, 1.442695
    %v2002 = vpow.pop %v2001
    %v2003 = vadd.f32 %v2002, 1.0
    %v2004 = vrcp.pop %v2003
    %v2005 = vmul.f32 %v2003, %v2004
    %v2006 = vsub.f32 1.0, %v2005
    %v2007 = vmul.f32 %v2004, %v2006
    %v2008 = vadd.f32 %v2004, %v2007
    %vm2009 = vweird.f32 %v2003
    %vm2010 = vweird.f32 %v2004
    %vm2011 = vmor %vm2009, %vm2010
    %v2012 = vsel %vm2011, %v2004, %v2008
    %v2013 = vand.u32 2147483647, %v2003
    %vm2014 = vcmp.eq.f32.partialorder %v2013, 8.507059e+37
    %v2015 = vand.u32 %v2003, 2147483648
    %v2016 = vor.u32 1.1754944e-38, %v2015
    %v2017 = vsel %vm2014, %v2016, %v2012
    %v2018 = vmul.f32 1.0, %v2017
    %v2019 = vadd.f32 %v1914, %v1943
    %v2020 = vxor.u32 %v2019, 2147483648
    %v2021 = vmul.f32 %v2020, 1.442695
    %v2022 = vpow.pop %v2021
    %v2023 = vadd.f32 %v2022, 1.0
    %v2024 = vrcp.pop %v2023
    %v2025 = vmul.f32 %v2023, %v2024
    %v2026 = vsub.f32 1.0, %v2025
    %v2027 = vmul.f32 %v2024, %v2026
    %v2028 = vadd.f32 %v2024, %v2027
    %vm2029 = vweird.f32 %v2023
    %vm2030 = vweird.f32 %v2024
    %vm2031 = vmor %vm2029, %vm2030
    %v2032 = vsel %vm2031, %v2024, %v2028
    %v2033 = vand.u32 2147483647, %v2023
    %vm2034 = vcmp.eq.f32.partialorder %v2033, 8.507059e+37
    %v2035 = vand.u32 %v2023, 2147483648
    %v2036 = vor.u32 1.1754944e-38, %v2035
    %v2037 = vsel %vm2034, %v2036, %v2032
    %v2038 = vmul.f32 1.0, %v2037
    %v2039 = vmul.f32 %v2018, %v1956
    %v2040 = vadd.f32 %v1915, %v2039
    %v2041 = vtanh.pop %v2040
    %v2042 = vsub.f32 1.0, %v2038
    %v2043 = vmul.f32 %v2042, %v2041
    %v2044 = vmul.f32 %v2038, %v1860
    %v2045 = vadd.f32 %v2043, %v2044
    %v2046 = vadd.f32 %v1916, %v1970
    %v2047 = vxor.u32 %v2046, 2147483648
    %v2048 = vmul.f32 %v2047, 1.442695
    %v2049 = vpow.pop %v2048
    %v2050 = vadd.f32 %v2049, 1.0
    %v2051 = vrcp.pop %v2050
    %v2052 = vmul.f32 %v2050, %v2051
    %v2053 = vsub.f32 1.0, %v2052
    %v2054 = vmul.f32 %v2051, %v2053
    %v2055 = vadd.f32 %v2051, %v2054
    %vm2056 = vweird.f32 %v2050
    %vm2057 = vweird.f32 %v2051
    %vm2058 = vmor %vm2056, %vm2057
    %v2059 = vsel %vm2058, %v2051, %v2055
    %v2060 = vand.u32 2147483647, %v2050
    %vm2061 = vcmp.eq.f32.partialorder %v2060, 8.507059e+37
    %v2062 = vand.u32 %v2050, 2147483648
    %v2063 = vor.u32 1.1754944e-38, %v2062
    %v2064 = vsel %vm2061, %v2063, %v2059
    %v2065 = vmul.f32 1.0, %v2064
    %v2066 = vadd.f32 %v1917, %v1983
    %v2067 = vxor.u32 %v2066, 2147483648
    %v2068 = vmul.f32 %v2067, 1.442695
    %v2069 = vpow.pop %v2068
    %v2070 = vadd.f32 %v2069, 1.0
    %v2071 = vrcp.pop %v2070
    %v2072 = vmul.f32 %v2070, %v2071
    %v2073 = vsub.f32 1.0, %v2072
    %v2074 = vmul.f32 %v2071, %v2073
    %v2075 = vadd.f32 %v2071, %v2074
    %vm2076 = vweird.f32 %v2070
    %vm2077 = vweird.f32 %v2071
    %vm2078 = vmor %vm2076, %vm2077
    %v2079 = vsel %vm2078, %v2071, %v2075
    %v2080 = vand.u32 2147483647, %v2070
    %vm2081 = vcmp.eq.f32.partialorder %v2080, 8.507059e+37
    %v2082 = vand.u32 %v2070, 2147483648
    %v2083 = vor.u32 1.1754944e-38, %v2082
    %v2084 = vsel %vm2081, %v2083, %v2079
    %v2085 = vmul.f32 1.0, %v2084
    %v2086 = vmul.f32 %v2065, %v1996
    %v2087 = vadd.f32 %v1918, %v2086
    %v2088 = vtanh.pop %v2087
    %v2089 = vsub.f32 1.0, %v2085
    %v2090 = vmul.f32 %v2089, %v2088
    %v2091 = vmul.f32 %v2085, %v1907
    %v2092 = vadd.f32 %v2090, %v2091
    %s2093 = scalar_lea.vmem [#allocation3], 24
    %2094 = vst [vmem:[%s2093] sm:$0xff] %v2045
    %2095 = vst [vmem:[#allocation4] sm:$0xff] %v2092
    %v2096 = vld [vmem:[#allocation3] sm:$0xff]
    %v2097 = vld [vmem:[#allocation3 + $0x8] sm:$0xff]
    %v2098 = vld [vmem:[#allocation3 + $0x10] sm:$0xff]
    %v2099 = vld [vmem:[#allocation3 + $0x18] sm:$0xff]
    %v2100 = vld [vmem:[#allocation4] sm:$0xff]
    %v2101 = vld [vmem:[#allocation4 + $0x8] sm:$0xff]
    %v2102 = vld [vmem:[#allocation4 + $0x10] sm:$0xff]
    %v2103 = vld [vmem:[#allocation4 + $0x18] sm:$0xff]
    %v2104 = vld [vmem:[%s5] sm:$0xf]
    %v2105 = vld [vmem:[%s5 + $0x4] sm:$0xf]
    %v2106 = vld [vmem:[%s5 + $0x8] sm:$0xf]
    %v2107 = vld [vmem:[%s5 + $0xc] sm:$0xf]
    %v2108 = vld [vmem:[%s5 + $0x10] sm:$0xf]
    %v2109 = vld [vmem:[%s5 + $0x14] sm:$0xf]
    %v2110 = vld [vmem:[%s5 + $0x18] sm:$0xf]
    %v2111 = vld [vmem:[%s5 + $0x1c] sm:$0xf]
    %v2112 = vld [vmem:[%s5 + $0x20] sm:$0xf]
    %v2113 = vld [vmem:[%s5 + $0x24] sm:$0xf]
    %v2114 = vld [vmem:[%s5 + $0x28] sm:$0xf]
    %v2115 = vld [vmem:[%s5 + $0x2c] sm:$0xf]
    %v2116 = vld [vmem:[%s5 + $0x30] sm:$0xf]
    %v2117 = vld [vmem:[%s5 + $0x34] sm:$0xf]
    %v2118 = vld [vmem:[%s5 + $0x38] sm:$0xf]
    %v2119 = vld [vmem:[%s5 + $0x3c] sm:$0xf]
    %v2120 = vld [vmem:[%s5 + $0x40] sm:$0xf]
    %v2121 = vld [vmem:[%s5 + $0x44] sm:$0xf]
    %v2122 = vld [vmem:[%s5 + $0x48] sm:$0xf]
    %v2123 = vld [vmem:[%s5 + $0x4c] sm:$0xf]
    %v2124 = vld [vmem:[%s5 + $0x50] sm:$0xf]
    %v2125 = vld [vmem:[%s5 + $0x54] sm:$0xf]
    %v2126 = vld [vmem:[%s5 + $0x58] sm:$0xf]
    %v2127 = vld [vmem:[%s5 + $0x5c] sm:$0xf]
    %v2128 = vld [vmem:[%s5 + $0x60] sm:$0xf]
    %v2129 = vld [vmem:[%s5 + $0x64] sm:$0xf]
    %v2130 = vld [vmem:[%s5 + $0x68] sm:$0xf]
    %v2131 = vld [vmem:[%s5 + $0x6c] sm:$0xf]
    %v2132 = vld [vmem:[%s5 + $0x70] sm:$0xf]
    %v2133 = vld [vmem:[%s5 + $0x74] sm:$0xf]
    %v2134 = vld [vmem:[%s5 + $0x78] sm:$0xf]
    %v2135 = vld [vmem:[%s5 + $0x7c] sm:$0xf]
    %v2136 = vpack.c.bf16 %v2097, %v2096
    %v2137 = vpack.c.bf16 %v2099, %v2098
    %v2138 = vpack.c.bf16 %v2101, %v2100
    %v2139 = vpack.c.bf16 %v2103, %v2102
    %v2156 = vunpack.c.l.b16 %v2120
    %v2157 = vunpack.c.l.b16 %v2121
    %v2158 = vunpack.c.l.b16 %v2122
    %v2159 = vunpack.c.l.b16 %v2123
    %v2160 = vunpack.c.l.b16 %v2124
    %v2161 = vunpack.c.l.b16 %v2125
    %v2162 = vunpack.c.l.b16 %v2126
    %v2163 = vunpack.c.l.b16 %v2127
    %v2164 = vunpack.c.l.b16 %v2128
    %v2165 = vunpack.c.l.b16 %v2129
    %v2166 = vunpack.c.l.b16 %v2130
    %v2167 = vunpack.c.l.b16 %v2131
    %v2168 = vunpack.c.l.b16 %v2132
    %v2169 = vunpack.c.l.b16 %v2133
    %v2170 = vunpack.c.l.b16 %v2134
    %v2171 = vunpack.c.l.b16 %v2135
    %v2172 = vpack.c.b16 %v2157, %v2156
    %v2173 = vpack.c.b16 %v2159, %v2158
    %v2174 = vpack.c.b16 %v2161, %v2160
    %v2175 = vpack.c.b16 %v2163, %v2162
    %v2176 = vpack.c.b16 %v2165, %v2164
    %v2177 = vpack.c.b16 %v2167, %v2166
    %v2178 = vpack.c.b16 %v2169, %v2168
    %v2179 = vpack.c.b16 %v2171, %v2170
    %2188 = vmatpush.bf16.msra.mxu0 %v2179
    %2189 = vmatpush.bf16.msra.mxu0 %v2178
    %2190 = vmatpush.bf16.msra.mxu0 %v2177
    %2191 = vmatpush.bf16.msra.mxu0 %v2176
    %2192 = vmatpush.bf16.msra.mxu0 %v2175
    %2193 = vmatpush.bf16.msra.mxu0 %v2174
    %2194 = vmatpush.bf16.msra.mxu0 %v2173
    %2195 = vmatpush.bf16.msra.mxu0 %v2172
    %2196 = vmatmul.bf16.gmra.mxu0 %v2138
    %v2197 = vpop.f32.mrf.mxu0
    %v2198 = vadd.f32 0.0, %v2197
    %v2199 = vpop.f32.mrf.mxu0
    %v2200 = vadd.f32 0.0, %v2199
    %2201 = vmatmul.bf16.gmra.mxu0 %v2139
    %v2202 = vpop.f32.mrf.mxu0
    %v2203 = vadd.f32 0.0, %v2202
    %v2204 = vpop.f32.mrf.mxu0
    %v2205 = vadd.f32 0.0, %v2204
    %2206 = vdwg.mxu0
    %v2223 = vunpack.c.l.b16 %v2104
    %v2224 = vunpack.c.l.b16 %v2105
    %v2225 = vunpack.c.l.b16 %v2106
    %v2226 = vunpack.c.l.b16 %v2107
    %v2227 = vunpack.c.l.b16 %v2108
    %v2228 = vunpack.c.l.b16 %v2109
    %v2229 = vunpack.c.l.b16 %v2110
    %v2230 = vunpack.c.l.b16 %v2111
    %v2231 = vunpack.c.l.b16 %v2112
    %v2232 = vunpack.c.l.b16 %v2113
    %v2233 = vunpack.c.l.b16 %v2114
    %v2234 = vunpack.c.l.b16 %v2115
    %v2235 = vunpack.c.l.b16 %v2116
    %v2236 = vunpack.c.l.b16 %v2117
    %v2237 = vunpack.c.l.b16 %v2118
    %v2238 = vunpack.c.l.b16 %v2119
    %v2239 = vpack.c.b16 %v2224, %v2223
    %v2240 = vpack.c.b16 %v2226, %v2225
    %v2241 = vpack.c.b16 %v2228, %v2227
    %v2242 = vpack.c.b16 %v2230, %v2229
    %v2243 = vpack.c.b16 %v2232, %v2231
    %v2244 = vpack.c.b16 %v2234, %v2233
    %v2245 = vpack.c.b16 %v2236, %v2235
    %v2246 = vpack.c.b16 %v2238, %v2237
    %2255 = vmatpush.bf16.msra.mxu0 %v2246
    %2256 = vmatpush.bf16.msra.mxu0 %v2245
    %2257 = vmatpush.bf16.msra.mxu0 %v2244
    %2258 = vmatpush.bf16.msra.mxu0 %v2243
    %2259 = vmatpush.bf16.msra.mxu0 %v2242
    %2260 = vmatpush.bf16.msra.mxu0 %v2241
    %2261 = vmatpush.bf16.msra.mxu0 %v2240
    %2262 = vmatpush.bf16.msra.mxu0 %v2239
    %2263 = vmatmul.bf16.gmra.mxu0 %v2136
    %v2264 = vpop.f32.mrf.mxu0
    %v2265 = vadd.f32 %v2198, %v2264
    %v2266 = vpop.f32.mrf.mxu0
    %v2267 = vadd.f32 %v2200, %v2266
    %2268 = vmatmul.bf16.gmra.mxu0 %v2137
    %v2269 = vpop.f32.mrf.mxu0
    %v2270 = vadd.f32 %v2203, %v2269
    %v2271 = vpop.f32.mrf.mxu0
    %v2272 = vadd.f32 %v2205, %v2271
    %2273 = vdwg.mxu0
    %v2274 = vld [vmem:[#allocation12] sm:$0x1]
    %v2276 = vperm.slane %v2274, 0
    %v2278 = vadd.f32 %v2265, %v2276
    %v2279 = vadd.f32 %v2267, %v2276
    %v2280 = vadd.f32 %v2270, %v2276
    %v2281 = vadd.f32 %v2272, %v2276
    %v2282 = vtanh.pop %v2278
    %v2283 = vtanh.pop %v2279
    %v2284 = vtanh.pop %v2280
    %v2285 = vtanh.pop %v2281
    %v2286 = vld [vmem:[#allocation13] sm:$0x1]
    %v2288 = vperm.slane %v2286, 0
    %v2290 = vmul.f32 %v2282, %v2288
    %v2291 = vmul.f32 %v2283, %v2288
    %v2292 = vmul.f32 %v2284, %v2288
    %v2293 = vmul.f32 %v2285, %v2288
    %2294 = vadd.xlane.f32.xlu0 %v2290
    %v2295 = vpop.xlane.xlu0 %2294
    %2296 = vadd.xlane.f32.xlu0 %v2291
    %v2297 = vpop.xlane.xlu0 %2296
    %2298 = vadd.xlane.f32.xlu0 %v2292
    %v2299 = vpop.xlane.xlu0 %2298
    %2300 = vadd.xlane.f32.xlu0 %v2293
    %v2301 = vpop.xlane.xlu0 %2300
    %v2302 = vmax.f32 %v2295, %v2297
    %v2303 = vmax.f32 %v2299, %v2301
    %v2304 = vmax.f32 %v2302, %v2303
    %v2305 = vsub.f32 %v2295, %v2304
    %v2306 = vsub.f32 %v2297, %v2304
    %v2307 = vsub.f32 %v2299, %v2304
    %v2308 = vsub.f32 %v2301, %v2304
    %v2309 = vmul.f32 %v2305, 1.442695
    %v2310 = vpow.pop %v2309
    %v2311 = vmul.f32 %v2306, 1.442695
    %v2312 = vpow.pop %v2311
    %v2313 = vmul.f32 %v2307, 1.442695
    %v2314 = vpow.pop %v2313
    %v2315 = vmul.f32 %v2308, 1.442695
    %v2316 = vpow.pop %v2315
    %v2317 = vadd.f32 %v2310, %v2312
    %v2318 = vadd.f32 %v2317, %v2314
    %v2319 = vadd.f32 %v2318, %v2316
    %v2320 = vrcp.pop %v2319
    %v2321 = vmul.f32 %v2310, %v2320
    %v2322 = vmul.f32 %v2312, %v2320
    %v2323 = vmul.f32 %v2314, %v2320
    %v2324 = vmul.f32 %v2316, %v2320
    %v2325 = vmul.f32 %v2321, %v2096
    %v2326 = vmul.f32 %v2322, %v2097
    %v2327 = vmul.f32 %v2323, %v2098
    %v2328 = vmul.f32 %v2324, %v2099
    %v2329 = vadd.f32 %v2325, %v2326
    %v2330 = vadd.f32 %v2329, %v2327
    %v2331 = vadd.f32 %v2330, %v2328
    %v2332 = vmul.f32 %v2321, %v2100
    %v2333 = vmul.f32 %v2322, %v2101
    %v2334 = vmul.f32 %v2323, %v2102
    %v2335 = vmul.f32 %v2324, %v2103
    %v2336 = vadd.f32 %v2332, %v2333
    %v2337 = vadd.f32 %v2336, %v2334
    %v2338 = vadd.f32 %v2337, %v2335
    %v2339 = vld [vmem:[#allocation15] sm:$0xf]
    %v2340 = vld [vmem:[#allocation15 + $0x4] sm:$0xf]
    %v2341 = vld [vmem:[#allocation15 + $0x8] sm:$0xf]
    %v2342 = vld [vmem:[#allocation15 + $0xc] sm:$0xf]
    %v2343 = vld [vmem:[#allocation15 + $0x10] sm:$0xf]
    %v2344 = vld [vmem:[#allocation15 + $0x14] sm:$0xf]
    %v2345 = vld [vmem:[#allocation15 + $0x18] sm:$0xf]
    %v2346 = vld [vmem:[#allocation15 + $0x1c] sm:$0xf]
    %v2347 = vld [vmem:[#allocation15 + $0x20] sm:$0xf]
    %v2348 = vld [vmem:[#allocation15 + $0x24] sm:$0xf]
    %v2349 = vld [vmem:[#allocation15 + $0x28] sm:$0xf]
    %v2350 = vld [vmem:[#allocation15 + $0x2c] sm:$0xf]
    %v2351 = vld [vmem:[#allocation15 + $0x30] sm:$0xf]
    %v2352 = vld [vmem:[#allocation15 + $0x34] sm:$0xf]
    %v2353 = vld [vmem:[#allocation15 + $0x38] sm:$0xf]
    %v2354 = vld [vmem:[#allocation15 + $0x3c] sm:$0xf]
    %v2355 = vld [vmem:[#allocation15 + $0x40] sm:$0xf]
    %v2356 = vld [vmem:[#allocation15 + $0x44] sm:$0xf]
    %v2357 = vld [vmem:[#allocation15 + $0x48] sm:$0xf]
    %v2358 = vld [vmem:[#allocation15 + $0x4c] sm:$0xf]
    %v2359 = vld [vmem:[#allocation15 + $0x50] sm:$0xf]
    %v2360 = vld [vmem:[#allocation15 + $0x54] sm:$0xf]
    %v2361 = vld [vmem:[#allocation15 + $0x58] sm:$0xf]
    %v2362 = vld [vmem:[#allocation15 + $0x5c] sm:$0xf]
    %v2363 = vld [vmem:[#allocation15 + $0x60] sm:$0xf]
    %v2364 = vld [vmem:[#allocation15 + $0x64] sm:$0xf]
    %v2365 = vld [vmem:[#allocation15 + $0x68] sm:$0xf]
    %v2366 = vld [vmem:[#allocation15 + $0x6c] sm:$0xf]
    %v2367 = vld [vmem:[#allocation15 + $0x70] sm:$0xf]
    %v2368 = vld [vmem:[#allocation15 + $0x74] sm:$0xf]
    %v2369 = vld [vmem:[#allocation15 + $0x78] sm:$0xf]
    %v2370 = vld [vmem:[#allocation15 + $0x7c] sm:$0xf]
    %v2371 = vpack.c.bf16 %v2331, %v2331
    %v2372 = vpack.c.bf16 %v2338, %v2338
    %v2389 = vunpack.c.l.b16 %v2355
    %v2390 = vunpack.c.l.b16 %v2356
    %v2391 = vunpack.c.l.b16 %v2357
    %v2392 = vunpack.c.l.b16 %v2358
    %v2393 = vunpack.c.l.b16 %v2359
    %v2394 = vunpack.c.l.b16 %v2360
    %v2395 = vunpack.c.l.b16 %v2361
    %v2396 = vunpack.c.l.b16 %v2362
    %v2397 = vunpack.c.l.b16 %v2363
    %v2398 = vunpack.c.l.b16 %v2364
    %v2399 = vunpack.c.l.b16 %v2365
    %v2400 = vunpack.c.l.b16 %v2366
    %v2401 = vunpack.c.l.b16 %v2367
    %v2402 = vunpack.c.l.b16 %v2368
    %v2403 = vunpack.c.l.b16 %v2369
    %v2404 = vunpack.c.l.b16 %v2370
    %v2405 = vpack.c.b16 %v2390, %v2389
    %v2406 = vpack.c.b16 %v2392, %v2391
    %v2407 = vpack.c.b16 %v2394, %v2393
    %v2408 = vpack.c.b16 %v2396, %v2395
    %v2409 = vpack.c.b16 %v2398, %v2397
    %v2410 = vpack.c.b16 %v2400, %v2399
    %v2411 = vpack.c.b16 %v2402, %v2401
    %v2412 = vpack.c.b16 %v2404, %v2403
    %2421 = vmatpush.bf16.msra.mxu0 %v2412
    %2422 = vmatpush.bf16.msra.mxu0 %v2411
    %2423 = vmatpush.bf16.msra.mxu0 %v2410
    %2424 = vmatpush.bf16.msra.mxu0 %v2409
    %2425 = vmatpush.bf16.msra.mxu0 %v2408
    %2426 = vmatpush.bf16.msra.mxu0 %v2407
    %2427 = vmatpush.bf16.msra.mxu0 %v2406
    %2428 = vmatpush.bf16.msra.mxu0 %v2405
    %2429 = vmatmul.bf16.gmra.mxu0 %v2372
    %v2430 = vpop.f32.mrf.mxu0
    %v2431 = vadd.f32 0.0, %v2430
    %v2432 = vpop.f32.mrf.mxu0
    %2433 = vdwg.mxu0
    %v2450 = vunpack.c.l.b16 %v2339
    %v2451 = vunpack.c.l.b16 %v2340
    %v2452 = vunpack.c.l.b16 %v2341
    %v2453 = vunpack.c.l.b16 %v2342
    %v2454 = vunpack.c.l.b16 %v2343
    %v2455 = vunpack.c.l.b16 %v2344
    %v2456 = vunpack.c.l.b16 %v2345
    %v2457 = vunpack.c.l.b16 %v2346
    %v2458 = vunpack.c.l.b16 %v2347
    %v2459 = vunpack.c.l.b16 %v2348
    %v2460 = vunpack.c.l.b16 %v2349
    %v2461 = vunpack.c.l.b16 %v2350
    %v2462 = vunpack.c.l.b16 %v2351
    %v2463 = vunpack.c.l.b16 %v2352
    %v2464 = vunpack.c.l.b16 %v2353
    %v2465 = vunpack.c.l.b16 %v2354
    %v2466 = vpack.c.b16 %v2451, %v2450
    %v2467 = vpack.c.b16 %v2453, %v2452
    %v2468 = vpack.c.b16 %v2455, %v2454
    %v2469 = vpack.c.b16 %v2457, %v2456
    %v2470 = vpack.c.b16 %v2459, %v2458
    %v2471 = vpack.c.b16 %v2461, %v2460
    %v2472 = vpack.c.b16 %v2463, %v2462
    %v2473 = vpack.c.b16 %v2465, %v2464
    %2482 = vmatpush.bf16.msra.mxu0 %v2473
    %2483 = vmatpush.bf16.msra.mxu0 %v2472
    %2484 = vmatpush.bf16.msra.mxu0 %v2471
    %2485 = vmatpush.bf16.msra.mxu0 %v2470
    %2486 = vmatpush.bf16.msra.mxu0 %v2469
    %2487 = vmatpush.bf16.msra.mxu0 %v2468
    %2488 = vmatpush.bf16.msra.mxu0 %v2467
    %2489 = vmatpush.bf16.msra.mxu0 %v2466
    %2490 = vmatmul.bf16.gmra.mxu0 %v2371
    %v2491 = vpop.f32.mrf.mxu0
    %v2492 = vadd.f32 %v2431, %v2491
    %v2493 = vpop.f32.mrf.mxu0
    %2494 = vdwg.mxu0
    %v2495 = vld [vmem:[#allocation16] sm:$0x1]
    %v2497 = vperm.slane %v2495, 0
    %v2499 = vadd.f32 %v2492, %v2497
    %2500 = vst [vmem:[%s10] sm:$0xff] %v2499
    // Predicated region
    $region74: #{ebsnn_gru_forward.3} parent=1 // pred_check
      _
    $region75: #{ebsnn_gru_forward.3} parent=1 // pred_check_branch
      %2502 = sbr.rel (0) target = $region77
    $region76: #{ebsnn_gru_forward.3} parent=1 // pred_region
      _
    $region77: #{ebsnn_gru_forward.3} parent=1 // pred_fallthru
      _
    // Predicated region
    $region78: #{ebsnn_gru_forward.3} parent=1 // pred_check
      _
    $region79: #{ebsnn_gru_forward.3} parent=1 // pred_check_branch
      %2504 = sbr.rel (0) target = $region81
    $region80: #{ebsnn_gru_forward.3} parent=1 // pred_region
      _
    $region81: #{ebsnn_gru_forward.3} parent=1 // pred_fallthru
      _
    %2505 = vsyncpa [#allocation6], 1
    %2506 = vsyncpa [#allocation8], 1
    %2507 = vsyncpa [#allocation11], 1
    %2508 = vsyncpa [#allocation14], 1
    %2509 = vsyncpa [#allocation17], 1

</llo_original>
